<compile_context>
chip_gen: v6e
topology: v6e:2x2x1
jax: 0.10.0
libtpu: 0.0.40
codegen_flags: <defaults>
</compile_context>

<pallas_src>
import functools

import jax
import jax.numpy as jnp
import numpy as np
from jax.experimental import pallas as pl
from jax.experimental.pallas import tpu as pltpu


# ---------------------------------------------------------------------------
# Pallas kernel: lane-dense matmul (+ optional tanh) with fused BN statistics
# ---------------------------------------------------------------------------

def _fused_matmul_kernel(w_ref, p_ref, y_ref, *stat_refs, act, with_stats):
    """y = act(W @ P) for one M-tile, optionally accumulating per-row stats.

    w_ref : (R, K)  bf16   layer weight, same block every grid step (resident)
    p_ref : (K, TM) bf16   patch tile; TM (spatial*batch) columns on lanes
    y_ref : (R, TM) f32    lane-dense output tile
    stat_refs (only if with_stats): rs_ref, rq_ref : (R, 1) f32 accumulators,
        same output block every step -> resident; grid axis is "arbitrary".
    """
    y = jnp.dot(w_ref[...], p_ref[...], preferred_element_type=jnp.float32)
    if act == "tanh":
        y = jnp.tanh(y)
    y_ref[...] = y

    if with_stats:
        rs_ref, rq_ref = stat_refs

        @pl.when(pl.program_id(0) == 0)
        def _():
            rs_ref[...] = jnp.zeros_like(rs_ref)
            rq_ref[...] = jnp.zeros_like(rq_ref)

        rs_ref[...] += jnp.sum(y, axis=1, keepdims=True)
        rq_ref[...] += jnp.sum(y * y, axis=1, keepdims=True)


def _pick_tile(m, k_rows, r_rows):
    """Largest lane-dense M-tile (multiple of 128) dividing m whose
    double-buffered block footprint stays well inside VMEM; else full extent."""
    budget = 8 * 1024 * 1024
    for t in (1024, 512, 256, 128):
        if m >= t and m % t == 0:
            blk = 2 * (k_rows * t * 2 + r_rows * t * 4) + r_rows * k_rows * 2
            if blk <= budget:
                return t
    return m  # full-extent block is always legal


def fused_matmul(w_rk, p_km, *, act="none", with_stats=True):
    """Lane-dense tiled matmul y = act(W @ P), optional fused row stats.

    Returns y (R, M) f32, and if with_stats also row_sum (R,), row_sq (R,).
    """
    R, K = w_rk.shape
    K2, M = p_km.shape
    assert K == K2
    tm = _pick_tile(M, K, R)
    grid = (M // tm,)

    # bf16 MXU operands (f32 accumulation); the cast fuses into the XLA glue
    # that builds the patch matrix, so the HBM patch tensor is bf16.
    w_bf = w_rk.astype(jnp.bfloat16)
    p_bf = p_km.astype(jnp.bfloat16)

    y_shape = jax.ShapeDtypeStruct((R, M), jnp.float32)
    y_spec = pl.BlockSpec((R, tm), lambda m: (0, m))

    if with_stats:
        out_shape = (y_shape,
                     jax.ShapeDtypeStruct((R, 1), jnp.float32),
                     jax.ShapeDtypeStruct((R, 1), jnp.float32))
        out_specs = (y_spec,
                     pl.BlockSpec((R, 1), lambda m: (0, 0)),
                     pl.BlockSpec((R, 1), lambda m: (0, 0)))
        # Stats accumulate across the M-tile axis -> must stay "arbitrary".
        semantics = ("arbitrary",)
    else:
        out_shape = y_shape
        out_specs = y_spec
        semantics = ("parallel",)      # independent tiles: megacore / 2-TC

    res = pl.pallas_call(
        functools.partial(_fused_matmul_kernel, act=act, with_stats=with_stats),
        out_shape=out_shape,
        grid=grid,
        in_specs=[pl.BlockSpec((R, K), lambda m: (0, 0)),
                  pl.BlockSpec((K, tm), lambda m: (0, m))],
        out_specs=out_specs,
        compiler_params=pltpu.CompilerParams(
            dimension_semantics=semantics,
            # Blocks here are small; explicit limit keeps headroom on v7x's
            # 64 MiB VMEM even at larger ngf / batch.
            vmem_limit_bytes=32 * 1024 * 1024),
    )(w_bf, p_bf)

    if with_stats:
        y, rs, rq = res
        return y, rs[:, 0], rq[:, 0]
    return res


# ---------------------------------------------------------------------------
# Layout glue (pure data movement; XLA fuses the affine+ReLU into the gather)
# ---------------------------------------------------------------------------

# Phase decomposition of ConvTranspose2d(k=4, stride=2, padding=1):
# output row oy = 2j+py takes exactly two kernel rows; KMAP[py][dy] gives the
# kernel index ky used by patch row dy (input row j-1+dy), None = zero tap.
_KMAP = ((3, 1, None), (None, 2, 0))


def _phase_weight(w_t):
    """(Cin, Cout, 4, 4) ConvTranspose2d weight -> (4*Cout, 9*Cin) phase matrix.

    Rows ordered (py, px, co); columns ordered (dy, dx, ci).
    """
    cin, cout = w_t.shape[0], w_t.shape[1]
    wc = jnp.zeros((2, 2, cout, 3, 3, cin), w_t.dtype)
    for py in range(2):
        for dy in range(3):
            ky = _KMAP[py][dy]
            if ky is None:
                continue
            for px in range(2):
                for dx in range(3):
                    kx = _KMAP[px][dx]
                    if kx is None:
                        continue
                    wc = wc.at[py, px, :, dy, dx, :].set(w_t[:, :, ky, kx].T)
    return wc.reshape(4 * cout, 9 * cin)


def _im2col_3x3(a_chwn):
    """(C, H, W, N) -> (9*C, H*W*N) patch matrix, rows ordered (dy, dx, ci)."""
    C, H, W, N = a_chwn.shape
    ap = jnp.pad(a_chwn, ((0, 0), (1, 1), (1, 1), (0, 0)))
    slabs = [ap[:, dy:dy + H, dx:dx + W, :] for dy in range(3) for dx in range(3)]
    return jnp.stack(slabs, axis=0).reshape(9 * C, H * W * N)


def _depth_to_space(y_rm, cout, H, W, N):
    """(4*Cout, H*W*N) phase output (rows (py,px,co)) -> (Cout, 2H, 2W, N)."""
    y = y_rm.reshape(2, 2, cout, H, W, N)
    y = jnp.transpose(y, (2, 3, 0, 4, 1, 5))   # (Cout, H, py, W, px, N)
    return y.reshape(cout, 2 * H, 2 * W, N)


def _bn_scale_bias(ch_sum, ch_sq, gamma, beta, count, eps=1e-5):
    """Training-mode BatchNorm2d scale/bias from per-channel sum / sum-sq."""
    mean = ch_sum / count
    var = ch_sq / count - mean * mean            # biased variance
    inv = jax.lax.rsqrt(var + eps)
    scale = gamma * inv
    bias = beta - mean * scale
    return scale, bias


def _affine_relu(a_chwn, scale, bias):
    # Per-channel affine + ReLU; XLA fuses this with the pad/gather producing
    # the next layer's patch matrix (no separate Pallas pass / HBM round trip).
    return jnp.maximum(a_chwn * scale[:, None, None, None]
                       + bias[:, None, None, None], 0.0)


# ---------------------------------------------------------------------------
# Generator: parameters + forward
# ---------------------------------------------------------------------------

def init_generator_params(key, nz, ngf, nc):
    cfgs = [(nz,       ngf * 8, 4, 1, 0),
            (ngf * 8,  ngf * 4, 4, 2, 1),
            (ngf * 4,  ngf * 2, 4, 2, 1),
            (ngf * 2,  ngf,     4, 2, 1),
            (ngf,      nc,      4, 2, 1)]
    params = {"cfgs": cfgs, "w": [], "gamma": [], "beta": []}
    for i, (cin, cout, k, _s, _p) in enumerate(cfgs):
        key, kw, kg, kb = jax.random.split(key, 4)
        params["w"].append(0.05 * jax.random.normal(kw, (cin, cout, k, k), jnp.float32))
        if i < len(cfgs) - 1:
            params["gamma"].append(1.0 + 0.1 * jax.random.normal(kg, (cout,), jnp.float32))
            params["beta"].append(0.1 * jax.random.normal(kb, (cout,), jnp.float32))
    return params


def generator_forward(params, inputs):
    """Mirrors Generator.forward: x = input[0]; output = self.main(x)."""
    z = inputs[0]                                   # (N, nz, 1, 1) NCHW
    N = z.shape[0]
    cfgs = params["cfgs"]

    # ---- layer 0: ConvTranspose2d(nz, 8g, 4, 1, 0) on a 1x1 input ----------
    # out[co, oy, ox, n] = sum_ci z[n, ci] * w0[ci, co, oy, ox]
    nz, c0 = cfgs[0][0], cfgs[0][1]
    w0m = jnp.transpose(params["w"][0], (1, 2, 3, 0)).reshape(16 * c0, nz)
    p0 = z.reshape(N, nz).T                          # (nz, N)
    y0, rs, rq = fused_matmul(w0m, p0, act="none", with_stats=True)
    scale, bias = _bn_scale_bias(rs.reshape(c0, 16).sum(axis=1),
                                 rq.reshape(c0, 16).sum(axis=1),
                                 params["gamma"][0], params["beta"][0],
                                 float(N * 16))
    a = _affine_relu(y0.reshape(c0, 4, 4, N), scale, bias)
    # TODO(synk): running_mean / running_var buffer updates are training-only
    # side effects with no influence on the forward output; not modeled.

    # ---- layers 1..4: stride-2 transposed convs (sub-pixel decomposition) --
    out = None
    for i in range(1, 5):
        cout = cfgs[i][1]
        C, H, W, _ = a.shape
        patches = _im2col_3x3(a)                     # (9*Cin, H*W*N)
        wc = _phase_weight(params["w"][i])           # (4*Cout, 9*Cin)
        if i == 4:                                   # final layer: Tanh, no BN
            y = fused_matmul(wc, patches, act="tanh", with_stats=False)
            out = _depth_to_space(y, cout, H, W, N)  # (nc, 2H, 2W, N)
        else:
            y, rs, rq = fused_matmul(wc, patches, act="none", with_stats=True)
            scale, bias = _bn_scale_bias(rs.reshape(4, cout).sum(axis=0),
                                         rq.reshape(4, cout).sum(axis=0),
                                         params["gamma"][i], params["beta"][i],
                                         float(4 * H * W * N))
            a = _affine_relu(_depth_to_space(y, cout, H, W, N), scale, bias)

    return jnp.transpose(out, (3, 0, 1, 2))          # CHWN -> NCHW (tiny)


# ---------------------------------------------------------------------------
# Pure-JAX f32 reference (independent formulation) for correctness checking
# ---------------------------------------------------------------------------

def _conv_transpose_ref(x_nchw, w_t, s, p):
    k = w_t.shape[2]
    wf = w_t[:, :, ::-1, ::-1]
    return jax.lax.conv_general_dilated(
        x_nchw, wf, window_strides=(1, 1),
        padding=[(k - 1 - p, k - 1 - p)] * 2,
        lhs_dilation=(s, s),
        dimension_numbers=("NCHW", "IOHW", "NCHW"))


def generator_ref(params, inputs, eps=1e-5):
    x = inputs[0]
    cfgs = params["cfgs"]
    for i, (_cin, _cout, _k, s, p) in enumerate(cfgs):
        x = _conv_transpose_ref(x, params["w"][i], s, p)
        if i < len(cfgs) - 1:
            mean = jnp.mean(x, axis=(0, 2, 3), keepdims=True)
            var = jnp.mean((x - mean) ** 2, axis=(0, 2, 3), keepdims=True)
            g = params["gamma"][i].reshape(1, -1, 1, 1)
            b = params["beta"][i].reshape(1, -1, 1, 1)
            x = jnp.maximum((x - mean) * jax.lax.rsqrt(var + eps) * g + b, 0.0)
        else:
            x = jnp.tanh(x)
    return x


# ---------------------------------------------------------------------------

if __name__ == "__main__":
    N, nz, ngf, nc = 2, 8, 8, 3        # opts = {'z_dim': 8, 'nf': 8, 'nc': 3}

    key = jax.random.PRNGKey(0)
    key, kz = jax.random.split(key)
    params = init_generator_params(key, nz, ngf, nc)

    z = jax.random.normal(kz, (N, nz, 1, 1), jnp.float32)
    inputs = (z,)                      # forward does x = input[0]

    fwd = jax.jit(lambda zz: generator_forward(params, (zz,)))
    out = jax.block_until_ready(fwd(z))
    assert out.shape == (N, nc, 64, 64), out.shape

    ref = jax.block_until_ready(generator_ref(params, inputs))
    # Tolerance accounts for bf16 MXU operands (f32 accumulation) vs f32 ref.
    np.testing.assert_allclose(np.asarray(out), np.asarray(ref),
                               rtol=1e-2, atol=1e-2)

    print("KERNEL_OK")
</pallas_src>

<mosaic_0001>
module attributes {stable_mosaic.version = 11 : i64} {
  func.func @_fused_matmul_kernel(%arg0: i32, %arg1: memref<1024x8xbf16, #tpu.memory_space<vmem>>, %arg2: memref<8x2xbf16, #tpu.memory_space<vmem>>, %arg3: memref<1024x2xf32, #tpu.memory_space<vmem>>, %arg4: memref<1024x1xf32, #tpu.memory_space<vmem>>, %arg5: memref<1024x1xf32, #tpu.memory_space<vmem>>) attributes {dimension_semantics = [#tpu.dimension_semantics<arbitrary>], iteration_bounds = array<i64: 1>, scalar_prefetch = 0 : i64, scratch_operands = 0 : i64, tpu.core_type = #tpu.core_type<tc>, window_params = [{pipeline_mode = #tpu.pipeline_mode<synchronous>, transform_indices = @transform_0, window_bounds = array<i64: 1024, 8>}, {transform_indices = @transform_1, window_bounds = array<i64: 8, 2>}, {transform_indices = @transform_2, window_bounds = array<i64: 1024, 2>}, {pipeline_mode = #tpu.pipeline_mode<synchronous>, transform_indices = @transform_3, window_bounds = array<i64: 1024, 1>}, {pipeline_mode = #tpu.pipeline_mode<synchronous>, transform_indices = @transform_4, window_bounds = array<i64: 1024, 1>}]} {
    %c0 = arith.constant 0 : index
    %c0_0 = arith.constant 0 : index
    %0 = vector.load %arg1[%c0, %c0_0] : memref<1024x8xbf16, #tpu.memory_space<vmem>>, vector<1024x8xbf16>
    %c0_1 = arith.constant 0 : index
    %c0_2 = arith.constant 0 : index
    %1 = vector.load %arg2[%c0_1, %c0_2] : memref<8x2xbf16, #tpu.memory_space<vmem>>, vector<8x2xbf16>
    %cst = arith.constant dense<0.000000e+00> : vector<1024x2xf32>
    %2 = tpu.matmul %0, %1, %cst {dimension_numbers = #tpu.dot_dimension_numbers<[1], [0], [0], [1], [0, 0, 1, 1], [], []>} : vector<1024x8xbf16>, vector<8x2xbf16>, vector<1024x2xf32> -> vector<1024x2xf32>
    %c0_3 = arith.constant 0 : index
    %c0_4 = arith.constant 0 : index
    %3 = vector.load %arg3[%c0_3, %c0_4] : memref<1024x2xf32, #tpu.memory_space<vmem>>, vector<1024x2xf32>
    tpu.vector_store %arg3[%c0_3, %c0_4], %2 {strides = array<i32>} : memref<1024x2xf32, #tpu.memory_space<vmem>>, vector<1024x2xf32>,
    %c0_i32 = arith.constant 0 : i32
    %4 = arith.cmpi eq, %arg0, %c0_i32 : i32
    %5 = arith.extui %4 : i1 to i32
    %c0_i32_5 = arith.constant 0 : i32
    %6 = arith.cmpi ne, %5, %c0_i32_5 : i32
    scf.if %6 {
      %cst_16 = arith.constant 0.000000e+00 : f32
      %18 = vector.broadcast %cst_16 : f32 to vector<1024x1xf32>
      %c0_17 = arith.constant 0 : index
      %c0_18 = arith.constant 0 : index
      %19 = vector.load %arg4[%c0_17, %c0_18] : memref<1024x1xf32, #tpu.memory_space<vmem>>, vector<1024x1xf32>
      tpu.vector_store %arg4[%c0_17, %c0_18], %18 {strides = array<i32>} : memref<1024x1xf32, #tpu.memory_space<vmem>>, vector<1024x1xf32>,
      %cst_19 = arith.constant 0.000000e+00 : f32
      %20 = vector.broadcast %cst_19 : f32 to vector<1024x1xf32>
      %c0_20 = arith.constant 0 : index
      %c0_21 = arith.constant 0 : index
      %21 = vector.load %arg5[%c0_20, %c0_21] : memref<1024x1xf32, #tpu.memory_space<vmem>>, vector<1024x1xf32>
      tpu.vector_store %arg5[%c0_20, %c0_21], %20 {strides = array<i32>} : memref<1024x1xf32, #tpu.memory_space<vmem>>, vector<1024x1xf32>,
    } else {
    }
    %c0_6 = arith.constant 0 : index
    %c0_7 = arith.constant 0 : index
    %7 = vector.load %arg4[%c0_6, %c0_7] : memref<1024x1xf32, #tpu.memory_space<vmem>>, vector<1024x1xf32>
    %cst_8 = arith.constant dense<0.000000e+00> : vector<1024xf32>
    %8 = vector.multi_reduction <add>, %2, %cst_8 [1] : vector<1024x2xf32> to vector<1024xf32>
    %9 = vector.shape_cast %8 : vector<1024xf32> to vector<1024x1xf32>
    %10 = arith.addf %7, %9 : vector<1024x1xf32>
    %c0_9 = arith.constant 0 : index
    %c0_10 = arith.constant 0 : index
    %11 = vector.load %arg4[%c0_9, %c0_10] : memref<1024x1xf32, #tpu.memory_space<vmem>>, vector<1024x1xf32>
    tpu.vector_store %arg4[%c0_9, %c0_10], %10 {strides = array<i32>} : memref<1024x1xf32, #tpu.memory_space<vmem>>, vector<1024x1xf32>,
    %c0_11 = arith.constant 0 : index
    %c0_12 = arith.constant 0 : index
    %12 = vector.load %arg5[%c0_11, %c0_12] : memref<1024x1xf32, #tpu.memory_space<vmem>>, vector<1024x1xf32>
    %13 = arith.mulf %2, %2 : vector<1024x2xf32>
    %cst_13 = arith.constant dense<0.000000e+00> : vector<1024xf32>
    %14 = vector.multi_reduction <add>, %13, %cst_13 [1] : vector<1024x2xf32> to vector<1024xf32>
    %15 = vector.shape_cast %14 : vector<1024xf32> to vector<1024x1xf32>
    %16 = arith.addf %12, %15 : vector<1024x1xf32>
    %c0_14 = arith.constant 0 : index
    %c0_15 = arith.constant 0 : index
    %17 = vector.load %arg5[%c0_14, %c0_15] : memref<1024x1xf32, #tpu.memory_space<vmem>>, vector<1024x1xf32>
    tpu.vector_store %arg5[%c0_14, %c0_15], %16 {strides = array<i32>} : memref<1024x1xf32, #tpu.memory_space<vmem>>, vector<1024x1xf32>,
    return
  }
  func.func @transform_0(%arg0: i32) -> (i32, i32) {
    %c0_i32 = arith.constant 0 : i32
    %c0_i32_0 = arith.constant 0 : i32
    %c0_i32_1 = arith.constant 0 : i32
    return %c0_i32, %c0_i32_0 : i32, i32
  }
  func.func @transform_1(%arg0: i32) -> (i32, i32) {
    %c0_i32 = arith.constant 0 : i32
    %c0_i32_0 = arith.constant 0 : i32
    return %c0_i32, %arg0 : i32, i32
  }
  func.func @transform_2(%arg0: i32) -> (i32, i32) {
    %c0_i32 = arith.constant 0 : i32
    %c0_i32_0 = arith.constant 0 : i32
    return %c0_i32, %arg0 : i32, i32
  }
  func.func @transform_3(%arg0: i32) -> (i32, i32) {
    %c0_i32 = arith.constant 0 : i32
    %c0_i32_0 = arith.constant 0 : i32
    %c0_i32_1 = arith.constant 0 : i32
    return %c0_i32, %c0_i32_0 : i32, i32
  }
  func.func @transform_4(%arg0: i32) -> (i32, i32) {
    %c0_i32 = arith.constant 0 : i32
    %c0_i32_0 = arith.constant 0 : i32
    %c0_i32_1 = arith.constant 0 : i32
    return %c0_i32, %c0_i32_0 : i32, i32
  }
}

module attributes {stable_mosaic.version = 11 : i64} {
  func.func @_fused_matmul_kernel(%arg0: i32, %arg1: memref<128x576xbf16, #tpu.memory_space<vmem>>, %arg2: memref<576x32xbf16, #tpu.memory_space<vmem>>, %arg3: memref<128x32xf32, #tpu.memory_space<vmem>>, %arg4: memref<128x1xf32, #tpu.memory_space<vmem>>, %arg5: memref<128x1xf32, #tpu.memory_space<vmem>>) attributes {dimension_semantics = [#tpu.dimension_semantics<arbitrary>], iteration_bounds = array<i64: 1>, scalar_prefetch = 0 : i64, scratch_operands = 0 : i64, tpu.core_type = #tpu.core_type<tc>, window_params = [{pipeline_mode = #tpu.pipeline_mode<synchronous>, transform_indices = @transform_0, window_bounds = array<i64: 128, 576>}, {transform_indices = @transform_1, window_bounds = array<i64: 576, 32>}, {transform_indices = @transform_2, window_bounds = array<i64: 128, 32>}, {pipeline_mode = #tpu.pipeline_mode<synchronous>, transform_indices = @transform_3, window_bounds = array<i64: 128, 1>}, {pipeline_mode = #tpu.pipeline_mode<synchronous>, transform_indices = @transform_4, window_bounds = array<i64: 128, 1>}]} {
    %c0 = arith.constant 0 : index
    %c0_0 = arith.constant 0 : index
    %0 = vector.load %arg1[%c0, %c0_0] : memref<128x576xbf16, #tpu.memory_space<vmem>>, vector<128x576xbf16>
    %c0_1 = arith.constant 0 : index
    %c0_2 = arith.constant 0 : index
    %1 = vector.load %arg2[%c0_1, %c0_2] : memref<576x32xbf16, #tpu.memory_space<vmem>>, vector<576x32xbf16>
    %cst = arith.constant dense<0.000000e+00> : vector<128x32xf32>
    %2 = tpu.matmul %0, %1, %cst {dimension_numbers = #tpu.dot_dimension_numbers<[1], [0], [0], [1], [0, 0, 1, 1], [], []>} : vector<128x576xbf16>, vector<576x32xbf16>, vector<128x32xf32> -> vector<128x32xf32>
    %c0_3 = arith.constant 0 : index
    %c0_4 = arith.constant 0 : index
    %3 = vector.load %arg3[%c0_3, %c0_4] : memref<128x32xf32, #tpu.memory_space<vmem>>, vector<128x32xf32>
    tpu.vector_store %arg3[%c0_3, %c0_4], %2 {strides = array<i32>} : memref<128x32xf32, #tpu.memory_space<vmem>>, vector<128x32xf32>,
    %c0_i32 = arith.constant 0 : i32
    %4 = arith.cmpi eq, %arg0, %c0_i32 : i32
    %5 = arith.extui %4 : i1 to i32
    %c0_i32_5 = arith.constant 0 : i32
    %6 = arith.cmpi ne, %5, %c0_i32_5 : i32
    scf.if %6 {
      %cst_16 = arith.constant 0.000000e+00 : f32
      %18 = vector.broadcast %cst_16 : f32 to vector<128x1xf32>
      %c0_17 = arith.constant 0 : index
      %c0_18 = arith.constant 0 : index
      %19 = vector.load %arg4[%c0_17, %c0_18] : memref<128x1xf32, #tpu.memory_space<vmem>>, vector<128x1xf32>
      tpu.vector_store %arg4[%c0_17, %c0_18], %18 {strides = array<i32>} : memref<128x1xf32, #tpu.memory_space<vmem>>, vector<128x1xf32>,
      %cst_19 = arith.constant 0.000000e+00 : f32
      %20 = vector.broadcast %cst_19 : f32 to vector<128x1xf32>
      %c0_20 = arith.constant 0 : index
      %c0_21 = arith.constant 0 : index
      %21 = vector.load %arg5[%c0_20, %c0_21] : memref<128x1xf32, #tpu.memory_space<vmem>>, vector<128x1xf32>
      tpu.vector_store %arg5[%c0_20, %c0_21], %20 {strides = array<i32>} : memref<128x1xf32, #tpu.memory_space<vmem>>, vector<128x1xf32>,
    } else {
    }
    %c0_6 = arith.constant 0 : index
    %c0_7 = arith.constant 0 : index
    %7 = vector.load %arg4[%c0_6, %c0_7] : memref<128x1xf32, #tpu.memory_space<vmem>>, vector<128x1xf32>
    %cst_8 = arith.constant dense<0.000000e+00> : vector<128xf32>
    %8 = vector.multi_reduction <add>, %2, %cst_8 [1] : vector<128x32xf32> to vector<128xf32>
    %9 = vector.shape_cast %8 : vector<128xf32> to vector<128x1xf32>
    %10 = arith.addf %7, %9 : vector<128x1xf32>
    %c0_9 = arith.constant 0 : index
    %c0_10 = arith.constant 0 : index
    %11 = vector.load %arg4[%c0_9, %c0_10] : memref<128x1xf32, #tpu.memory_space<vmem>>, vector<128x1xf32>
    tpu.vector_store %arg4[%c0_9, %c0_10], %10 {strides = array<i32>} : memref<128x1xf32, #tpu.memory_space<vmem>>, vector<128x1xf32>,
    %c0_11 = arith.constant 0 : index
    %c0_12 = arith.constant 0 : index
    %12 = vector.load %arg5[%c0_11, %c0_12] : memref<128x1xf32, #tpu.memory_space<vmem>>, vector<128x1xf32>
    %13 = arith.mulf %2, %2 : vector<128x32xf32>
    %cst_13 = arith.constant dense<0.000000e+00> : vector<128xf32>
    %14 = vector.multi_reduction <add>, %13, %cst_13 [1] : vector<128x32xf32> to vector<128xf32>
    %15 = vector.shape_cast %14 : vector<128xf32> to vector<128x1xf32>
    %16 = arith.addf %12, %15 : vector<128x1xf32>
    %c0_14 = arith.constant 0 : index
    %c0_15 = arith.constant 0 : index
    %17 = vector.load %arg5[%c0_14, %c0_15] : memref<128x1xf32, #tpu.memory_space<vmem>>, vector<128x1xf32>
    tpu.vector_store %arg5[%c0_14, %c0_15], %16 {strides = array<i32>} : memref<128x1xf32, #tpu.memory_space<vmem>>, vector<128x1xf32>,
    return
  }
  func.func @transform_0(%arg0: i32) -> (i32, i32) {
    %c0_i32 = arith.constant 0 : i32
    %c0_i32_0 = arith.constant 0 : i32
    %c0_i32_1 = arith.constant 0 : i32
    return %c0_i32, %c0_i32_0 : i32, i32
  }
  func.func @transform_1(%arg0: i32) -> (i32, i32) {
    %c0_i32 = arith.constant 0 : i32
    %c0_i32_0 = arith.constant 0 : i32
    return %c0_i32, %arg0 : i32, i32
  }
  func.func @transform_2(%arg0: i32) -> (i32, i32) {
    %c0_i32 = arith.constant 0 : i32
    %c0_i32_0 = arith.constant 0 : i32
    return %c0_i32, %arg0 : i32, i32
  }
  func.func @transform_3(%arg0: i32) -> (i32, i32) {
    %c0_i32 = arith.constant 0 : i32
    %c0_i32_0 = arith.constant 0 : i32
    %c0_i32_1 = arith.constant 0 : i32
    return %c0_i32, %c0_i32_0 : i32, i32
  }
  func.func @transform_4(%arg0: i32) -> (i32, i32) {
    %c0_i32 = arith.constant 0 : i32
    %c0_i32_0 = arith.constant 0 : i32
    %c0_i32_1 = arith.constant 0 : i32
    return %c0_i32, %c0_i32_0 : i32, i32
  }
}

module attributes {stable_mosaic.version = 11 : i64} {
  func.func @_fused_matmul_kernel(%arg0: i32, %arg1: memref<64x288xbf16, #tpu.memory_space<vmem>>, %arg2: memref<288x128xbf16, #tpu.memory_space<vmem>>, %arg3: memref<64x128xf32, #tpu.memory_space<vmem>>, %arg4: memref<64x1xf32, #tpu.memory_space<vmem>>, %arg5: memref<64x1xf32, #tpu.memory_space<vmem>>) attributes {dimension_semantics = [#tpu.dimension_semantics<arbitrary>], iteration_bounds = array<i64: 1>, scalar_prefetch = 0 : i64, scratch_operands = 0 : i64, tpu.core_type = #tpu.core_type<tc>, window_params = [{pipeline_mode = #tpu.pipeline_mode<synchronous>, transform_indices = @transform_0, window_bounds = array<i64: 64, 288>}, {transform_indices = @transform_1, window_bounds = array<i64: 288, 128>}, {transform_indices = @transform_2, window_bounds = array<i64: 64, 128>}, {pipeline_mode = #tpu.pipeline_mode<synchronous>, transform_indices = @transform_3, window_bounds = array<i64: 64, 1>}, {pipeline_mode = #tpu.pipeline_mode<synchronous>, transform_indices = @transform_4, window_bounds = array<i64: 64, 1>}]} {
    %c0 = arith.constant 0 : index
    %c0_0 = arith.constant 0 : index
    %0 = vector.load %arg1[%c0, %c0_0] : memref<64x288xbf16, #tpu.memory_space<vmem>>, vector<64x288xbf16>
    %c0_1 = arith.constant 0 : index
    %c0_2 = arith.constant 0 : index
    %1 = vector.load %arg2[%c0_1, %c0_2] : memref<288x128xbf16, #tpu.memory_space<vmem>>, vector<288x128xbf16>
    %cst = arith.constant dense<0.000000e+00> : vector<64x128xf32>
    %2 = tpu.matmul %0, %1, %cst {dimension_numbers = #tpu.dot_dimension_numbers<[1], [0], [0], [1], [0, 0, 1, 1], [], []>} : vector<64x288xbf16>, vector<288x128xbf16>, vector<64x128xf32> -> vector<64x128xf32>
    %c0_3 = arith.constant 0 : index
    %c0_4 = arith.constant 0 : index
    %3 = vector.load %arg3[%c0_3, %c0_4] : memref<64x128xf32, #tpu.memory_space<vmem>>, vector<64x128xf32>
    tpu.vector_store %arg3[%c0_3, %c0_4], %2 {strides = array<i32>} : memref<64x128xf32, #tpu.memory_space<vmem>>, vector<64x128xf32>,
    %c0_i32 = arith.constant 0 : i32
    %4 = arith.cmpi eq, %arg0, %c0_i32 : i32
    %5 = arith.extui %4 : i1 to i32
    %c0_i32_5 = arith.constant 0 : i32
    %6 = arith.cmpi ne, %5, %c0_i32_5 : i32
    scf.if %6 {
      %cst_16 = arith.constant 0.000000e+00 : f32
      %18 = vector.broadcast %cst_16 : f32 to vector<64x1xf32>
      %c0_17 = arith.constant 0 : index
      %c0_18 = arith.constant 0 : index
      %19 = vector.load %arg4[%c0_17, %c0_18] : memref<64x1xf32, #tpu.memory_space<vmem>>, vector<64x1xf32>
      tpu.vector_store %arg4[%c0_17, %c0_18], %18 {strides = array<i32>} : memref<64x1xf32, #tpu.memory_space<vmem>>, vector<64x1xf32>,
      %cst_19 = arith.constant 0.000000e+00 : f32
      %20 = vector.broadcast %cst_19 : f32 to vector<64x1xf32>
      %c0_20 = arith.constant 0 : index
      %c0_21 = arith.constant 0 : index
      %21 = vector.load %arg5[%c0_20, %c0_21] : memref<64x1xf32, #tpu.memory_space<vmem>>, vector<64x1xf32>
      tpu.vector_store %arg5[%c0_20, %c0_21], %20 {strides = array<i32>} : memref<64x1xf32, #tpu.memory_space<vmem>>, vector<64x1xf32>,
    } else {
    }
    %c0_6 = arith.constant 0 : index
    %c0_7 = arith.constant 0 : index
    %7 = vector.load %arg4[%c0_6, %c0_7] : memref<64x1xf32, #tpu.memory_space<vmem>>, vector<64x1xf32>
    %cst_8 = arith.constant dense<0.000000e+00> : vector<64xf32>
    %8 = vector.multi_reduction <add>, %2, %cst_8 [1] : vector<64x128xf32> to vector<64xf32>
    %9 = vector.shape_cast %8 : vector<64xf32> to vector<64x1xf32>
    %10 = arith.addf %7, %9 : vector<64x1xf32>
    %c0_9 = arith.constant 0 : index
    %c0_10 = arith.constant 0 : index
    %11 = vector.load %arg4[%c0_9, %c0_10] : memref<64x1xf32, #tpu.memory_space<vmem>>, vector<64x1xf32>
    tpu.vector_store %arg4[%c0_9, %c0_10], %10 {strides = array<i32>} : memref<64x1xf32, #tpu.memory_space<vmem>>, vector<64x1xf32>,
    %c0_11 = arith.constant 0 : index
    %c0_12 = arith.constant 0 : index
    %12 = vector.load %arg5[%c0_11, %c0_12] : memref<64x1xf32, #tpu.memory_space<vmem>>, vector<64x1xf32>
    %13 = arith.mulf %2, %2 : vector<64x128xf32>
    %cst_13 = arith.constant dense<0.000000e+00> : vector<64xf32>
    %14 = vector.multi_reduction <add>, %13, %cst_13 [1] : vector<64x128xf32> to vector<64xf32>
    %15 = vector.shape_cast %14 : vector<64xf32> to vector<64x1xf32>
    %16 = arith.addf %12, %15 : vector<64x1xf32>
    %c0_14 = arith.constant 0 : index
    %c0_15 = arith.constant 0 : index
    %17 = vector.load %arg5[%c0_14, %c0_15] : memref<64x1xf32, #tpu.memory_space<vmem>>, vector<64x1xf32>
    tpu.vector_store %arg5[%c0_14, %c0_15], %16 {strides = array<i32>} : memref<64x1xf32, #tpu.memory_space<vmem>>, vector<64x1xf32>,
    return
  }
  func.func @transform_0(%arg0: i32) -> (i32, i32) {
    %c0_i32 = arith.constant 0 : i32
    %c0_i32_0 = arith.constant 0 : i32
    %c0_i32_1 = arith.constant 0 : i32
    return %c0_i32, %c0_i32_0 : i32, i32
  }
  func.func @transform_1(%arg0: i32) -> (i32, i32) {
    %c0_i32 = arith.constant 0 : i32
    %c0_i32_0 = arith.constant 0 : i32
    return %c0_i32, %arg0 : i32, i32
  }
  func.func @transform_2(%arg0: i32) -> (i32, i32) {
    %c0_i32 = arith.constant 0 : i32
    %c0_i32_0 = arith.constant 0 : i32
    return %c0_i32, %arg0 : i32, i32
  }
  func.func @transform_3(%arg0: i32) -> (i32, i32) {
    %c0_i32 = arith.constant 0 : i32
    %c0_i32_0 = arith.constant 0 : i32
    %c0_i32_1 = arith.constant 0 : i32
    return %c0_i32, %c0_i32_0 : i32, i32
  }
  func.func @transform_4(%arg0: i32) -> (i32, i32) {
    %c0_i32 = arith.constant 0 : i32
    %c0_i32_0 = arith.constant 0 : i32
    %c0_i32_1 = arith.constant 0 : i32
    return %c0_i32, %c0_i32_0 : i32, i32
  }
}

module attributes {stable_mosaic.version = 11 : i64} {
  func.func @_fused_matmul_kernel(%arg0: i32, %arg1: memref<32x144xbf16, #tpu.memory_space<vmem>>, %arg2: memref<144x512xbf16, #tpu.memory_space<vmem>>, %arg3: memref<32x512xf32, #tpu.memory_space<vmem>>, %arg4: memref<32x1xf32, #tpu.memory_space<vmem>>, %arg5: memref<32x1xf32, #tpu.memory_space<vmem>>) attributes {dimension_semantics = [#tpu.dimension_semantics<arbitrary>], iteration_bounds = array<i64: 1>, scalar_prefetch = 0 : i64, scratch_operands = 0 : i64, tpu.core_type = #tpu.core_type<tc>, window_params = [{pipeline_mode = #tpu.pipeline_mode<synchronous>, transform_indices = @transform_0, window_bounds = array<i64: 32, 144>}, {transform_indices = @transform_1, window_bounds = array<i64: 144, 512>}, {transform_indices = @transform_2, window_bounds = array<i64: 32, 512>}, {pipeline_mode = #tpu.pipeline_mode<synchronous>, transform_indices = @transform_3, window_bounds = array<i64: 32, 1>}, {pipeline_mode = #tpu.pipeline_mode<synchronous>, transform_indices = @transform_4, window_bounds = array<i64: 32, 1>}]} {
    %c0 = arith.constant 0 : index
    %c0_0 = arith.constant 0 : index
    %0 = vector.load %arg1[%c0, %c0_0] : memref<32x144xbf16, #tpu.memory_space<vmem>>, vector<32x144xbf16>
    %c0_1 = arith.constant 0 : index
    %c0_2 = arith.constant 0 : index
    %1 = vector.load %arg2[%c0_1, %c0_2] : memref<144x512xbf16, #tpu.memory_space<vmem>>, vector<144x512xbf16>
    %cst = arith.constant dense<0.000000e+00> : vector<32x512xf32>
    %2 = tpu.matmul %0, %1, %cst {dimension_numbers = #tpu.dot_dimension_numbers<[1], [0], [0], [1], [0, 0, 1, 1], [], []>} : vector<32x144xbf16>, vector<144x512xbf16>, vector<32x512xf32> -> vector<32x512xf32>
    %c0_3 = arith.constant 0 : index
    %c0_4 = arith.constant 0 : index
    %3 = vector.load %arg3[%c0_3, %c0_4] : memref<32x512xf32, #tpu.memory_space<vmem>>, vector<32x512xf32>
    tpu.vector_store %arg3[%c0_3, %c0_4], %2 {strides = array<i32>} : memref<32x512xf32, #tpu.memory_space<vmem>>, vector<32x512xf32>,
    %c0_i32 = arith.constant 0 : i32
    %4 = arith.cmpi eq, %arg0, %c0_i32 : i32
    %5 = arith.extui %4 : i1 to i32
    %c0_i32_5 = arith.constant 0 : i32
    %6 = arith.cmpi ne, %5, %c0_i32_5 : i32
    scf.if %6 {
      %cst_16 = arith.constant 0.000000e+00 : f32
      %18 = vector.broadcast %cst_16 : f32 to vector<32x1xf32>
      %c0_17 = arith.constant 0 : index
      %c0_18 = arith.constant 0 : index
      %19 = vector.load %arg4[%c0_17, %c0_18] : memref<32x1xf32, #tpu.memory_space<vmem>>, vector<32x1xf32>
      tpu.vector_store %arg4[%c0_17, %c0_18], %18 {strides = array<i32>} : memref<32x1xf32, #tpu.memory_space<vmem>>, vector<32x1xf32>,
      %cst_19 = arith.constant 0.000000e+00 : f32
      %20 = vector.broadcast %cst_19 : f32 to vector<32x1xf32>
      %c0_20 = arith.constant 0 : index
      %c0_21 = arith.constant 0 : index
      %21 = vector.load %arg5[%c0_20, %c0_21] : memref<32x1xf32, #tpu.memory_space<vmem>>, vector<32x1xf32>
      tpu.vector_store %arg5[%c0_20, %c0_21], %20 {strides = array<i32>} : memref<32x1xf32, #tpu.memory_space<vmem>>, vector<32x1xf32>,
    } else {
    }
    %c0_6 = arith.constant 0 : index
    %c0_7 = arith.constant 0 : index
    %7 = vector.load %arg4[%c0_6, %c0_7] : memref<32x1xf32, #tpu.memory_space<vmem>>, vector<32x1xf32>
    %cst_8 = arith.constant dense<0.000000e+00> : vector<32xf32>
    %8 = vector.multi_reduction <add>, %2, %cst_8 [1] : vector<32x512xf32> to vector<32xf32>
    %9 = vector.shape_cast %8 : vector<32xf32> to vector<32x1xf32>
    %10 = arith.addf %7, %9 : vector<32x1xf32>
    %c0_9 = arith.constant 0 : index
    %c0_10 = arith.constant 0 : index
    %11 = vector.load %arg4[%c0_9, %c0_10] : memref<32x1xf32, #tpu.memory_space<vmem>>, vector<32x1xf32>
    tpu.vector_store %arg4[%c0_9, %c0_10], %10 {strides = array<i32>} : memref<32x1xf32, #tpu.memory_space<vmem>>, vector<32x1xf32>,
    %c0_11 = arith.constant 0 : index
    %c0_12 = arith.constant 0 : index
    %12 = vector.load %arg5[%c0_11, %c0_12] : memref<32x1xf32, #tpu.memory_space<vmem>>, vector<32x1xf32>
    %13 = arith.mulf %2, %2 : vector<32x512xf32>
    %cst_13 = arith.constant dense<0.000000e+00> : vector<32xf32>
    %14 = vector.multi_reduction <add>, %13, %cst_13 [1] : vector<32x512xf32> to vector<32xf32>
    %15 = vector.shape_cast %14 : vector<32xf32> to vector<32x1xf32>
    %16 = arith.addf %12, %15 : vector<32x1xf32>
    %c0_14 = arith.constant 0 : index
    %c0_15 = arith.constant 0 : index
    %17 = vector.load %arg5[%c0_14, %c0_15] : memref<32x1xf32, #tpu.memory_space<vmem>>, vector<32x1xf32>
    tpu.vector_store %arg5[%c0_14, %c0_15], %16 {strides = array<i32>} : memref<32x1xf32, #tpu.memory_space<vmem>>, vector<32x1xf32>,
    return
  }
  func.func @transform_0(%arg0: i32) -> (i32, i32) {
    %c0_i32 = arith.constant 0 : i32
    %c0_i32_0 = arith.constant 0 : i32
    %c0_i32_1 = arith.constant 0 : i32
    return %c0_i32, %c0_i32_0 : i32, i32
  }
  func.func @transform_1(%arg0: i32) -> (i32, i32) {
    %c0_i32 = arith.constant 0 : i32
    %c0_i32_0 = arith.constant 0 : i32
    return %c0_i32, %arg0 : i32, i32
  }
  func.func @transform_2(%arg0: i32) -> (i32, i32) {
    %c0_i32 = arith.constant 0 : i32
    %c0_i32_0 = arith.constant 0 : i32
    return %c0_i32, %arg0 : i32, i32
  }
  func.func @transform_3(%arg0: i32) -> (i32, i32) {
    %c0_i32 = arith.constant 0 : i32
    %c0_i32_0 = arith.constant 0 : i32
    %c0_i32_1 = arith.constant 0 : i32
    return %c0_i32, %c0_i32_0 : i32, i32
  }
  func.func @transform_4(%arg0: i32) -> (i32, i32) {
    %c0_i32 = arith.constant 0 : i32
    %c0_i32_0 = arith.constant 0 : i32
    %c0_i32_1 = arith.constant 0 : i32
    return %c0_i32, %c0_i32_0 : i32, i32
  }
}

module attributes {stable_mosaic.version = 11 : i64} {
  func.func @_fused_matmul_kernel(%arg0: i32, %arg1: memref<12x72xbf16, #tpu.memory_space<vmem>>, %arg2: memref<72x1024xbf16, #tpu.memory_space<vmem>>, %arg3: memref<12x1024xf32, #tpu.memory_space<vmem>>) attributes {dimension_semantics = [#tpu.dimension_semantics<parallel>], iteration_bounds = array<i64: 2>, scalar_prefetch = 0 : i64, scratch_operands = 0 : i64, tpu.core_type = #tpu.core_type<tc>, window_params = [{pipeline_mode = #tpu.pipeline_mode<synchronous>, transform_indices = @transform_0, window_bounds = array<i64: 12, 72>}, {transform_indices = @transform_1, window_bounds = array<i64: 72, 1024>}, {transform_indices = @transform_2, window_bounds = array<i64: 12, 1024>}]} {
    %c0 = arith.constant 0 : index
    %c0_0 = arith.constant 0 : index
    %0 = vector.load %arg1[%c0, %c0_0] : memref<12x72xbf16, #tpu.memory_space<vmem>>, vector<12x72xbf16>
    %c0_1 = arith.constant 0 : index
    %c0_2 = arith.constant 0 : index
    %1 = vector.load %arg2[%c0_1, %c0_2] : memref<72x1024xbf16, #tpu.memory_space<vmem>>, vector<72x1024xbf16>
    %cst = arith.constant dense<0.000000e+00> : vector<12x1024xf32>
    %2 = tpu.matmul %0, %1, %cst {dimension_numbers = #tpu.dot_dimension_numbers<[1], [0], [0], [1], [0, 0, 1, 1], [], []>} : vector<12x72xbf16>, vector<72x1024xbf16>, vector<12x1024xf32> -> vector<12x1024xf32>
    %3 = math.tanh %2 : vector<12x1024xf32>
    %c0_3 = arith.constant 0 : index
    %c0_4 = arith.constant 0 : index
    %4 = vector.load %arg3[%c0_3, %c0_4] : memref<12x1024xf32, #tpu.memory_space<vmem>>, vector<12x1024xf32>
    tpu.vector_store %arg3[%c0_3, %c0_4], %3 {strides = array<i32>} : memref<12x1024xf32, #tpu.memory_space<vmem>>, vector<12x1024xf32>,
    return
  }
  func.func @transform_0(%arg0: i32) -> (i32, i32) {
    %c0_i32 = arith.constant 0 : i32
    %c0_i32_0 = arith.constant 0 : i32
    %c0_i32_1 = arith.constant 0 : i32
    return %c0_i32, %c0_i32_0 : i32, i32
  }
  func.func @transform_1(%arg0: i32) -> (i32, i32) {
    %c0_i32 = arith.constant 0 : i32
    %c0_i32_0 = arith.constant 0 : i32
    return %c0_i32, %arg0 : i32, i32
  }
  func.func @transform_2(%arg0: i32) -> (i32, i32) {
    %c0_i32 = arith.constant 0 : i32
    %c0_i32_0 = arith.constant 0 : i32
    return %c0_i32, %arg0 : i32, i32
  }
}

</mosaic_0001>

<llo_original>
// kernel: squeeze.8
$region0: #{squeeze.8}
  %s0 = inlined_call_operand.vmem [shape: f32[1024], index: 0, kind: input, shape index: {}]
  %s1 = inlined_call_operand.vmem [shape: f32[64,16], index: 1, kind: output, shape index: {}]
  %v2 = vld [vmem:[%s0] sm:$0xff]
  %vm3 = vcmask 130048
  %4 = vst.msk [vmem:[%s1] ss:$8 sm:$0xf] %vm3, %v2
  %5 = vst.msk [vmem:[%s1] ss:$8 sm:$0xf0] %vm3, %v2
  %v6 = vld [vmem:[%s0] sm:$0xff]
  %7 = vrot.lane.b32.xlu0 %v6, 112
  %v8 = vpop.permute.xlu0 %7
  %vm9 = vcmask 130048
  %s10 = scalar_lea.vmem %s1, 1
  %11 = vst.msk [vmem:[%s10] ss:$8 sm:$0xf] %vm9, %v8
  %s12 = scalar_lea.vmem %s1, 1
  %13 = vst.msk [vmem:[%s12] ss:$8 sm:$0xf0] %vm9, %v8
  %v14 = vld [vmem:[%s0] sm:$0xff]
  %15 = vrot.lane.b32.xlu0 %v14, 96
  %v16 = vpop.permute.xlu0 %15
  %vm17 = vcmask 130048
  %s18 = scalar_lea.vmem %s1, 2
  %19 = vst.msk [vmem:[%s18] ss:$8 sm:$0xf] %vm17, %v16
  %s20 = scalar_lea.vmem %s1, 2
  %21 = vst.msk [vmem:[%s20] ss:$8 sm:$0xf0] %vm17, %v16
  %v22 = vld [vmem:[%s0] sm:$0xff]
  %23 = vrot.lane.b32.xlu0 %v22, 80
  %v24 = vpop.permute.xlu0 %23
  %vm25 = vcmask 130048
  %s26 = scalar_lea.vmem %s1, 3
  %27 = vst.msk [vmem:[%s26] ss:$8 sm:$0xf] %vm25, %v24
  %s28 = scalar_lea.vmem %s1, 3
  %29 = vst.msk [vmem:[%s28] ss:$8 sm:$0xf0] %vm25, %v24
  %v30 = vld [vmem:[%s0] sm:$0xff]
  %31 = vrot.lane.b32.xlu0 %v30, 64
  %v32 = vpop.permute.xlu0 %31
  %vm33 = vcmask 130048
  %s34 = scalar_lea.vmem %s1, 4
  %35 = vst.msk [vmem:[%s34] ss:$8 sm:$0xf] %vm33, %v32
  %s36 = scalar_lea.vmem %s1, 4
  %37 = vst.msk [vmem:[%s36] ss:$8 sm:$0xf0] %vm33, %v32
  %v38 = vld [vmem:[%s0] sm:$0xff]
  %39 = vrot.lane.b32.xlu0 %v38, 48
  %v40 = vpop.permute.xlu0 %39
  %vm41 = vcmask 130048
  %s42 = scalar_lea.vmem %s1, 5
  %43 = vst.msk [vmem:[%s42] ss:$8 sm:$0xf] %vm41, %v40
  %s44 = scalar_lea.vmem %s1, 5
  %45 = vst.msk [vmem:[%s44] ss:$8 sm:$0xf0] %vm41, %v40
  %v46 = vld [vmem:[%s0] sm:$0xff]
  %47 = vrot.lane.b32.xlu0 %v46, 32
  %v48 = vpop.permute.xlu0 %47
  %vm49 = vcmask 130048
  %s50 = scalar_lea.vmem %s1, 6
  %51 = vst.msk [vmem:[%s50] ss:$8 sm:$0xf] %vm49, %v48
  %s52 = scalar_lea.vmem %s1, 6
  %53 = vst.msk [vmem:[%s52] ss:$8 sm:$0xf0] %vm49, %v48
  %v54 = vld [vmem:[%s0] sm:$0xff]
  %55 = vrot.lane.b32.xlu0 %v54, 16
  %v56 = vpop.permute.xlu0 %55
  %vm57 = vcmask 130048
  %s58 = scalar_lea.vmem %s1, 7
  %59 = vst.msk [vmem:[%s58] ss:$8 sm:$0xf] %vm57, %v56
  %s60 = scalar_lea.vmem %s1, 7
  %61 = vst.msk [vmem:[%s60] ss:$8 sm:$0xf0] %vm57, %v56

// kernel: squeeze.10
$region0: #{squeeze.10}
  %s0 = inlined_call_operand.vmem [shape: f32[128], index: 0, kind: input, shape index: {}]
  %s1 = inlined_call_operand.vmem [shape: f32[4,32], index: 1, kind: output, shape index: {}]
  $region1: #{squeeze.10} parent=0
    #allocation0 [shape = 'u8[4096]{0}', space=vmem, size = 0x1000, scoped, tag = 'scoped mem for output reshape']
    #allocation1 [shape = 'u8[4096]{0}', space=vmem, size = 0x1000, scoped, tag = 'scoped mem for input reshape']
    %s3 = sshll.u32 1, 1
    %s4 = ssub.s32 %s3, 1
    %v5 = vld [vmem:[%s0] sm:%s4]
    %6 = vst [vmem:[#allocation1] sm:%s4] %v5
    %v7 = vld [vmem:[#allocation1] sm:$0x1]
    %vm8 = vcmask 261120
    %9 = vst.msk [vmem:[#allocation0] sm:$0x1] %vm8, %v7
    %v10 = vld [vmem:[#allocation1] sm:$0x1]
    %11 = vrot.lane.b32.xlu0 %v10, 96
    %v12 = vpop.permute.xlu0 %11
    %vm13 = vcmask 261120
    %s14 = scalar_lea.vmem [#allocation0], 1
    %15 = vst.msk [vmem:[%s14] sm:$0x1] %vm13, %v12
    %v16 = vld [vmem:[#allocation1] sm:$0x1]
    %17 = vrot.lane.b32.xlu0 %v16, 64
    %v18 = vpop.permute.xlu0 %17
    %vm19 = vcmask 261120
    %s20 = scalar_lea.vmem [#allocation0], 2
    %21 = vst.msk [vmem:[%s20] sm:$0x1] %vm19, %v18
    %v22 = vld [vmem:[#allocation1] sm:$0x1]
    %23 = vrot.lane.b32.xlu0 %v22, 32
    %v24 = vpop.permute.xlu0 %23
    %vm25 = vcmask 261120
    %s26 = scalar_lea.vmem [#allocation0], 3
    %27 = vst.msk [vmem:[%s26] sm:$0x1] %vm25, %v24
    %s29 = sshll.u32 1, 4
    %s30 = ssub.s32 %s29, 1
    %v32 = vld [vmem:[#allocation0] sm:%s30]
    %s33 = sshll.u32 1, 4
    %s34 = ssub.s32 %s33, 1
    %35 = vst [vmem:[%s1] sm:%s34] %v32

// kernel: _lambda_.5
$region0: #{_lambda_.5}
  #allocation0 [shape = 'u32[]', space=smem, size = 0x4, offset = 0x4, fixed_abs, tag = 'smem constant byte address 0x4 - core index']
  #allocation1 [shape = 'u32[144,128]{1,0:T(1,128)}', space=vmem, size = 0x12000, scoped, tag = 'internal scratch']
  %s0 = inlined_call_operand.hbm [shape: bf16[1024,8], index: 0, kind: input, shape index: {}]
  %s1 = inlined_call_operand.vmem [shape: bf16[8,2], index: 1, kind: input, shape index: {}]
  %s2 = inlined_call_operand.vmem [shape: f32[1024,2], index: 2, kind: output, shape index: {0}]
  %s3 = inlined_call_operand.vmem [shape: f32[1024,1], index: 3, kind: output, shape index: {1}]
  %s4 = inlined_call_operand.vmem [shape: f32[1024,1], index: 4, kind: output, shape index: {2}]
  %5 = xla_tuple %s2, %s3, %s4
  %s6 = sld [smem:[#allocation0]]
  $region42: #{_lambda_.5} parent=0
    _
  %s8 = ssub.s32 1, %s6
  %s9 = scalar_select 0, %s8, %s6
  $region1: #{_lambda_.5} parent=0
    #allocation2 [shape = 'u8[262144]{0}', space=vmem, size = 0x40000, scoped, tag = 'input window, operand 0, single buffered']
    #allocation3 [shape = 's32[1]{0}', space=sflag, size = 0x4, scoped, tag = 'scoped memory for _lambda_.5']
    %10 = vsyncpa [#allocation3], 0
    // Predicated region
    $region2: #{_lambda_.5} parent=1 // pred_check
      _
    $region3: #{_lambda_.5} parent=1 // pred_check_branch
      %12 = sbr.rel (0) target = $region5
    $region4: #{_lambda_.5} parent=1 // pred_region
      %s14 = ssub.s32 8192, 8192
      %15 = vsyncadd [#allocation3], %s14
      %s16 = sshll.u32 [#allocation2], 4
      %s17 = int_to_ptr.vmem [resolvable:$true] %s16
      %22 = dma.hbm_to_vmem [thread:$0]  %s0, 8192, %s17, [#allocation3], 64, 64, 4
    $region5: #{_lambda_.5} parent=1 // pred_fallthru
      _
    // Predicated region
    $region6: #{_lambda_.5} parent=1 // pred_check
      _
    $region7: #{_lambda_.5} parent=1 // pred_check_branch
      %24 = sbr.rel (0) target = $region9
    $region8: #{_lambda_.5} parent=1 // pred_region
      _
    $region9: #{_lambda_.5} parent=1 // pred_fallthru
      _
    // Predicated region
    $region10: #{_lambda_.5} parent=1 // pred_check
      _
    $region11: #{_lambda_.5} parent=1 // pred_check_branch
      %26 = sbr.rel (0) target = $region13
    $region12: #{_lambda_.5} parent=1 // pred_region
      %27 = dma.done [#allocation3], 8192
    $region13: #{_lambda_.5} parent=1 // pred_fallthru
      _
    %v29 = vld [vmem:[#allocation2] sm:$0xf]
    %v30 = vld [vmem:[#allocation2 + $0x4] sm:$0xf]
    %v31 = vld [vmem:[#allocation2 + $0x8] sm:$0xf]
    %v32 = vld [vmem:[#allocation2 + $0xc] sm:$0xf]
    %v33 = vld [vmem:[#allocation2 + $0x10] sm:$0xf]
    %v34 = vld [vmem:[#allocation2 + $0x14] sm:$0xf]
    %v35 = vld [vmem:[#allocation2 + $0x18] sm:$0xf]
    %v36 = vld [vmem:[#allocation2 + $0x1c] sm:$0xf]
    %v37 = vld [vmem:[#allocation2 + $0x20] sm:$0xf]
    %v38 = vld [vmem:[#allocation2 + $0x24] sm:$0xf]
    %v39 = vld [vmem:[#allocation2 + $0x28] sm:$0xf]
    %v40 = vld [vmem:[#allocation2 + $0x2c] sm:$0xf]
    %v41 = vld [vmem:[#allocation2 + $0x30] sm:$0xf]
    %v42 = vld [vmem:[#allocation2 + $0x34] sm:$0xf]
    %v43 = vld [vmem:[#allocation2 + $0x38] sm:$0xf]
    %v44 = vld [vmem:[#allocation2 + $0x3c] sm:$0xf]
    %v45 = vld [vmem:[#allocation2 + $0x40] sm:$0xf]
    %v46 = vld [vmem:[#allocation2 + $0x44] sm:$0xf]
    %v47 = vld [vmem:[#allocation2 + $0x48] sm:$0xf]
    %v48 = vld [vmem:[#allocation2 + $0x4c] sm:$0xf]
    %v49 = vld [vmem:[#allocation2 + $0x50] sm:$0xf]
    %v50 = vld [vmem:[#allocation2 + $0x54] sm:$0xf]
    %v51 = vld [vmem:[#allocation2 + $0x58] sm:$0xf]
    %v52 = vld [vmem:[#allocation2 + $0x5c] sm:$0xf]
    %v53 = vld [vmem:[#allocation2 + $0x60] sm:$0xf]
    %v54 = vld [vmem:[#allocation2 + $0x64] sm:$0xf]
    %v55 = vld [vmem:[#allocation2 + $0x68] sm:$0xf]
    %v56 = vld [vmem:[#allocation2 + $0x6c] sm:$0xf]
    %v57 = vld [vmem:[#allocation2 + $0x70] sm:$0xf]
    %v58 = vld [vmem:[#allocation2 + $0x74] sm:$0xf]
    %v59 = vld [vmem:[#allocation2 + $0x78] sm:$0xf]
    %v60 = vld [vmem:[#allocation2 + $0x7c] sm:$0xf]
    %v61 = vld [vmem:[#allocation2 + $0x80] sm:$0xf]
    %v62 = vld [vmem:[#allocation2 + $0x84] sm:$0xf]
    %v63 = vld [vmem:[#allocation2 + $0x88] sm:$0xf]
    %v64 = vld [vmem:[#allocation2 + $0x8c] sm:$0xf]
    %v65 = vld [vmem:[#allocation2 + $0x90] sm:$0xf]
    %v66 = vld [vmem:[#allocation2 + $0x94] sm:$0xf]
    %v67 = vld [vmem:[#allocation2 + $0x98] sm:$0xf]
    %v68 = vld [vmem:[#allocation2 + $0x9c] sm:$0xf]
    %v69 = vld [vmem:[#allocation2 + $0xa0] sm:$0xf]
    %v70 = vld [vmem:[#allocation2 + $0xa4] sm:$0xf]
    %v71 = vld [vmem:[#allocation2 + $0xa8] sm:$0xf]
    %v72 = vld [vmem:[#allocation2 + $0xac] sm:$0xf]
    %v73 = vld [vmem:[#allocation2 + $0xb0] sm:$0xf]
    %v74 = vld [vmem:[#allocation2 + $0xb4] sm:$0xf]
    %v75 = vld [vmem:[#allocation2 + $0xb8] sm:$0xf]
    %v76 = vld [vmem:[#allocation2 + $0xbc] sm:$0xf]
    %v77 = vld [vmem:[#allocation2 + $0xc0] sm:$0xf]
    %v78 = vld [vmem:[#allocation2 + $0xc4] sm:$0xf]
    %v79 = vld [vmem:[#allocation2 + $0xc8] sm:$0xf]
    %v80 = vld [vmem:[#allocation2 + $0xcc] sm:$0xf]
    %v81 = vld [vmem:[#allocation2 + $0xd0] sm:$0xf]
    %v82 = vld [vmem:[#allocation2 + $0xd4] sm:$0xf]
    %v83 = vld [vmem:[#allocation2 + $0xd8] sm:$0xf]
    %v84 = vld [vmem:[#allocation2 + $0xdc] sm:$0xf]
    %v85 = vld [vmem:[#allocation2 + $0xe0] sm:$0xf]
    %v86 = vld [vmem:[#allocation2 + $0xe4] sm:$0xf]
    %v87 = vld [vmem:[#allocation2 + $0xe8] sm:$0xf]
    %v88 = vld [vmem:[#allocation2 + $0xec] sm:$0xf]
    %v89 = vld [vmem:[#allocation2 + $0xf0] sm:$0xf]
    %v90 = vld [vmem:[#allocation2 + $0xf4] sm:$0xf]
    %v91 = vld [vmem:[#allocation2 + $0xf8] sm:$0xf]
    %v92 = vld [vmem:[#allocation2 + $0xfc] sm:$0xf]
    %v93 = vld [vmem:[#allocation2 + $0x100] sm:$0xf]
    %v94 = vld [vmem:[#allocation2 + $0x104] sm:$0xf]
    %v95 = vld [vmem:[#allocation2 + $0x108] sm:$0xf]
    %v96 = vld [vmem:[#allocation2 + $0x10c] sm:$0xf]
    %v97 = vld [vmem:[#allocation2 + $0x110] sm:$0xf]
    %v98 = vld [vmem:[#allocation2 + $0x114] sm:$0xf]
    %v99 = vld [vmem:[#allocation2 + $0x118] sm:$0xf]
    %v100 = vld [vmem:[#allocation2 + $0x11c] sm:$0xf]
    %v101 = vld [vmem:[#allocation2 + $0x120] sm:$0xf]
    %v102 = vld [vmem:[#allocation2 + $0x124] sm:$0xf]
    %v103 = vld [vmem:[#allocation2 + $0x128] sm:$0xf]
    %v104 = vld [vmem:[#allocation2 + $0x12c] sm:$0xf]
    %v105 = vld [vmem:[#allocation2 + $0x130] sm:$0xf]
    %v106 = vld [vmem:[#allocation2 + $0x134] sm:$0xf]
    %v107 = vld [vmem:[#allocation2 + $0x138] sm:$0xf]
    %v108 = vld [vmem:[#allocation2 + $0x13c] sm:$0xf]
    %v109 = vld [vmem:[#allocation2 + $0x140] sm:$0xf]
    %v110 = vld [vmem:[#allocation2 + $0x144] sm:$0xf]
    %v111 = vld [vmem:[#allocation2 + $0x148] sm:$0xf]
    %v112 = vld [vmem:[#allocation2 + $0x14c] sm:$0xf]
    %v113 = vld [vmem:[#allocation2 + $0x150] sm:$0xf]
    %v114 = vld [vmem:[#allocation2 + $0x154] sm:$0xf]
    %v115 = vld [vmem:[#allocation2 + $0x158] sm:$0xf]
    %v116 = vld [vmem:[#allocation2 + $0x15c] sm:$0xf]
    %v117 = vld [vmem:[#allocation2 + $0x160] sm:$0xf]
    %v118 = vld [vmem:[#allocation2 + $0x164] sm:$0xf]
    %v119 = vld [vmem:[#allocation2 + $0x168] sm:$0xf]
    %v120 = vld [vmem:[#allocation2 + $0x16c] sm:$0xf]
    %v121 = vld [vmem:[#allocation2 + $0x170] sm:$0xf]
    %v122 = vld [vmem:[#allocation2 + $0x174] sm:$0xf]
    %v123 = vld [vmem:[#allocation2 + $0x178] sm:$0xf]
    %v124 = vld [vmem:[#allocation2 + $0x17c] sm:$0xf]
    %v125 = vld [vmem:[#allocation2 + $0x180] sm:$0xf]
    %v126 = vld [vmem:[#allocation2 + $0x184] sm:$0xf]
    %v127 = vld [vmem:[#allocation2 + $0x188] sm:$0xf]
    %v128 = vld [vmem:[#allocation2 + $0x18c] sm:$0xf]
    %v129 = vld [vmem:[#allocation2 + $0x190] sm:$0xf]
    %v130 = vld [vmem:[#allocation2 + $0x194] sm:$0xf]
    %v131 = vld [vmem:[#allocation2 + $0x198] sm:$0xf]
    %v132 = vld [vmem:[#allocation2 + $0x19c] sm:$0xf]
    %v133 = vld [vmem:[#allocation2 + $0x1a0] sm:$0xf]
    %v134 = vld [vmem:[#allocation2 + $0x1a4] sm:$0xf]
    %v135 = vld [vmem:[#allocation2 + $0x1a8] sm:$0xf]
    %v136 = vld [vmem:[#allocation2 + $0x1ac] sm:$0xf]
    %v137 = vld [vmem:[#allocation2 + $0x1b0] sm:$0xf]
    %v138 = vld [vmem:[#allocation2 + $0x1b4] sm:$0xf]
    %v139 = vld [vmem:[#allocation2 + $0x1b8] sm:$0xf]
    %v140 = vld [vmem:[#allocation2 + $0x1bc] sm:$0xf]
    %v141 = vld [vmem:[#allocation2 + $0x1c0] sm:$0xf]
    %v142 = vld [vmem:[#allocation2 + $0x1c4] sm:$0xf]
    %v143 = vld [vmem:[#allocation2 + $0x1c8] sm:$0xf]
    %v144 = vld [vmem:[#allocation2 + $0x1cc] sm:$0xf]
    %v145 = vld [vmem:[#allocation2 + $0x1d0] sm:$0xf]
    %v146 = vld [vmem:[#allocation2 + $0x1d4] sm:$0xf]
    %v147 = vld [vmem:[#allocation2 + $0x1d8] sm:$0xf]
    %v148 = vld [vmem:[#allocation2 + $0x1dc] sm:$0xf]
    %v149 = vld [vmem:[#allocation2 + $0x1e0] sm:$0xf]
    %v150 = vld [vmem:[#allocation2 + $0x1e4] sm:$0xf]
    %v151 = vld [vmem:[#allocation2 + $0x1e8] sm:$0xf]
    %v152 = vld [vmem:[#allocation2 + $0x1ec] sm:$0xf]
    %v153 = vld [vmem:[#allocation2 + $0x1f0] sm:$0xf]
    %v154 = vld [vmem:[#allocation2 + $0x1f4] sm:$0xf]
    %v155 = vld [vmem:[#allocation2 + $0x1f8] sm:$0xf]
    %v156 = vld [vmem:[#allocation2 + $0x1fc] sm:$0xf]
    %v157 = vld [vmem:[%s1] sm:$0xf]
    %v286 = vunpack.c.l.b16 %v29
    %v287 = vunpack.c.l.b16 %v30
    %v288 = vunpack.c.l.b16 %v31
    %v289 = vunpack.c.l.b16 %v32
    %v290 = vunpack.c.l.b16 %v33
    %v291 = vunpack.c.l.b16 %v34
    %v292 = vunpack.c.l.b16 %v35
    %v293 = vunpack.c.l.b16 %v36
    %v294 = vunpack.c.l.b16 %v37
    %v295 = vunpack.c.l.b16 %v38
    %v296 = vunpack.c.l.b16 %v39
    %v297 = vunpack.c.l.b16 %v40
    %v298 = vunpack.c.l.b16 %v41
    %v299 = vunpack.c.l.b16 %v42
    %v300 = vunpack.c.l.b16 %v43
    %v301 = vunpack.c.l.b16 %v44
    %v302 = vunpack.c.l.b16 %v45
    %v303 = vunpack.c.l.b16 %v46
    %v304 = vunpack.c.l.b16 %v47
    %v305 = vunpack.c.l.b16 %v48
    %v306 = vunpack.c.l.b16 %v49
    %v307 = vunpack.c.l.b16 %v50
    %v308 = vunpack.c.l.b16 %v51
    %v309 = vunpack.c.l.b16 %v52
    %v310 = vunpack.c.l.b16 %v53
    %v311 = vunpack.c.l.b16 %v54
    %v312 = vunpack.c.l.b16 %v55
    %v313 = vunpack.c.l.b16 %v56
    %v314 = vunpack.c.l.b16 %v57
    %v315 = vunpack.c.l.b16 %v58
    %v316 = vunpack.c.l.b16 %v59
    %v317 = vunpack.c.l.b16 %v60
    %v318 = vunpack.c.l.b16 %v61
    %v319 = vunpack.c.l.b16 %v62
    %v320 = vunpack.c.l.b16 %v63
    %v321 = vunpack.c.l.b16 %v64
    %v322 = vunpack.c.l.b16 %v65
    %v323 = vunpack.c.l.b16 %v66
    %v324 = vunpack.c.l.b16 %v67
    %v325 = vunpack.c.l.b16 %v68
    %v326 = vunpack.c.l.b16 %v69
    %v327 = vunpack.c.l.b16 %v70
    %v328 = vunpack.c.l.b16 %v71
    %v329 = vunpack.c.l.b16 %v72
    %v330 = vunpack.c.l.b16 %v73
    %v331 = vunpack.c.l.b16 %v74
    %v332 = vunpack.c.l.b16 %v75
    %v333 = vunpack.c.l.b16 %v76
    %v334 = vunpack.c.l.b16 %v77
    %v335 = vunpack.c.l.b16 %v78
    %v336 = vunpack.c.l.b16 %v79
    %v337 = vunpack.c.l.b16 %v80
    %v338 = vunpack.c.l.b16 %v81
    %v339 = vunpack.c.l.b16 %v82
    %v340 = vunpack.c.l.b16 %v83
    %v341 = vunpack.c.l.b16 %v84
    %v342 = vunpack.c.l.b16 %v85
    %v343 = vunpack.c.l.b16 %v86
    %v344 = vunpack.c.l.b16 %v87
    %v345 = vunpack.c.l.b16 %v88
    %v346 = vunpack.c.l.b16 %v89
    %v347 = vunpack.c.l.b16 %v90
    %v348 = vunpack.c.l.b16 %v91
    %v349 = vunpack.c.l.b16 %v92
    %v350 = vunpack.c.l.b16 %v93
    %v351 = vunpack.c.l.b16 %v94
    %v352 = vunpack.c.l.b16 %v95
    %v353 = vunpack.c.l.b16 %v96
    %v354 = vunpack.c.l.b16 %v97
    %v355 = vunpack.c.l.b16 %v98
    %v356 = vunpack.c.l.b16 %v99
    %v357 = vunpack.c.l.b16 %v100
    %v358 = vunpack.c.l.b16 %v101
    %v359 = vunpack.c.l.b16 %v102
    %v360 = vunpack.c.l.b16 %v103
    %v361 = vunpack.c.l.b16 %v104
    %v362 = vunpack.c.l.b16 %v105
    %v363 = vunpack.c.l.b16 %v106
    %v364 = vunpack.c.l.b16 %v107
    %v365 = vunpack.c.l.b16 %v108
    %v366 = vunpack.c.l.b16 %v109
    %v367 = vunpack.c.l.b16 %v110
    %v368 = vunpack.c.l.b16 %v111
    %v369 = vunpack.c.l.b16 %v112
    %v370 = vunpack.c.l.b16 %v113
    %v371 = vunpack.c.l.b16 %v114
    %v372 = vunpack.c.l.b16 %v115
    %v373 = vunpack.c.l.b16 %v116
    %v374 = vunpack.c.l.b16 %v117
    %v375 = vunpack.c.l.b16 %v118
    %v376 = vunpack.c.l.b16 %v119
    %v377 = vunpack.c.l.b16 %v120
    %v378 = vunpack.c.l.b16 %v121
    %v379 = vunpack.c.l.b16 %v122
    %v380 = vunpack.c.l.b16 %v123
    %v381 = vunpack.c.l.b16 %v124
    %v382 = vunpack.c.l.b16 %v125
    %v383 = vunpack.c.l.b16 %v126
    %v384 = vunpack.c.l.b16 %v127
    %v385 = vunpack.c.l.b16 %v128
    %v386 = vunpack.c.l.b16 %v129
    %v387 = vunpack.c.l.b16 %v130
    %v388 = vunpack.c.l.b16 %v131
    %v389 = vunpack.c.l.b16 %v132
    %v390 = vunpack.c.l.b16 %v133
    %v391 = vunpack.c.l.b16 %v134
    %v392 = vunpack.c.l.b16 %v135
    %v393 = vunpack.c.l.b16 %v136
    %v394 = vunpack.c.l.b16 %v137
    %v395 = vunpack.c.l.b16 %v138
    %v396 = vunpack.c.l.b16 %v139
    %v397 = vunpack.c.l.b16 %v140
    %v398 = vunpack.c.l.b16 %v141
    %v399 = vunpack.c.l.b16 %v142
    %v400 = vunpack.c.l.b16 %v143
    %v401 = vunpack.c.l.b16 %v144
    %v402 = vunpack.c.l.b16 %v145
    %v403 = vunpack.c.l.b16 %v146
    %v404 = vunpack.c.l.b16 %v147
    %v405 = vunpack.c.l.b16 %v148
    %v406 = vunpack.c.l.b16 %v149
    %v407 = vunpack.c.l.b16 %v150
    %v408 = vunpack.c.l.b16 %v151
    %v409 = vunpack.c.l.b16 %v152
    %v410 = vunpack.c.l.b16 %v153
    %v411 = vunpack.c.l.b16 %v154
    %v412 = vunpack.c.l.b16 %v155
    %v413 = vunpack.c.l.b16 %v156
    %v414 = vpack.c.b16 %v287, %v286
    %v415 = vpack.c.b16 %v289, %v288
    %v416 = vpack.c.b16 %v291, %v290
    %v417 = vpack.c.b16 %v293, %v292
    %v418 = vpack.c.b16 %v295, %v294
    %v419 = vpack.c.b16 %v297, %v296
    %v420 = vpack.c.b16 %v299, %v298
    %v421 = vpack.c.b16 %v301, %v300
    %v422 = vpack.c.b16 %v303, %v302
    %v423 = vpack.c.b16 %v305, %v304
    %v424 = vpack.c.b16 %v307, %v306
    %v425 = vpack.c.b16 %v309, %v308
    %v426 = vpack.c.b16 %v311, %v310
    %v427 = vpack.c.b16 %v313, %v312
    %v428 = vpack.c.b16 %v315, %v314
    %v429 = vpack.c.b16 %v317, %v316
    %v430 = vpack.c.b16 %v319, %v318
    %v431 = vpack.c.b16 %v321, %v320
    %v432 = vpack.c.b16 %v323, %v322
    %v433 = vpack.c.b16 %v325, %v324
    %v434 = vpack.c.b16 %v327, %v326
    %v435 = vpack.c.b16 %v329, %v328
    %v436 = vpack.c.b16 %v331, %v330
    %v437 = vpack.c.b16 %v333, %v332
    %v438 = vpack.c.b16 %v335, %v334
    %v439 = vpack.c.b16 %v337, %v336
    %v440 = vpack.c.b16 %v339, %v338
    %v441 = vpack.c.b16 %v341, %v340
    %v442 = vpack.c.b16 %v343, %v342
    %v443 = vpack.c.b16 %v345, %v344
    %v444 = vpack.c.b16 %v347, %v346
    %v445 = vpack.c.b16 %v349, %v348
    %v446 = vpack.c.b16 %v351, %v350
    %v447 = vpack.c.b16 %v353, %v352
    %v448 = vpack.c.b16 %v355, %v354
    %v449 = vpack.c.b16 %v357, %v356
    %v450 = vpack.c.b16 %v359, %v358
    %v451 = vpack.c.b16 %v361, %v360
    %v452 = vpack.c.b16 %v363, %v362
    %v453 = vpack.c.b16 %v365, %v364
    %v454 = vpack.c.b16 %v367, %v366
    %v455 = vpack.c.b16 %v369, %v368
    %v456 = vpack.c.b16 %v371, %v370
    %v457 = vpack.c.b16 %v373, %v372
    %v458 = vpack.c.b16 %v375, %v374
    %v459 = vpack.c.b16 %v377, %v376
    %v460 = vpack.c.b16 %v379, %v378
    %v461 = vpack.c.b16 %v381, %v380
    %v462 = vpack.c.b16 %v383, %v382
    %v463 = vpack.c.b16 %v385, %v384
    %v464 = vpack.c.b16 %v387, %v386
    %v465 = vpack.c.b16 %v389, %v388
    %v466 = vpack.c.b16 %v391, %v390
    %v467 = vpack.c.b16 %v393, %v392
    %v468 = vpack.c.b16 %v395, %v394
    %v469 = vpack.c.b16 %v397, %v396
    %v470 = vpack.c.b16 %v399, %v398
    %v471 = vpack.c.b16 %v401, %v400
    %v472 = vpack.c.b16 %v403, %v402
    %v473 = vpack.c.b16 %v405, %v404
    %v474 = vpack.c.b16 %v407, %v406
    %v475 = vpack.c.b16 %v409, %v408
    %v476 = vpack.c.b16 %v411, %v410
    %v477 = vpack.c.b16 %v413, %v412
    %vm478 = vcmask 64512
    %v480 = vsel %vm478, %v414, 0
    %v483 = vsel %vm478, %v415, 0
    %v486 = vsel %vm478, %v416, 0
    %v489 = vsel %vm478, %v417, 0
    %v492 = vsel %vm478, %v418, 0
    %v495 = vsel %vm478, %v419, 0
    %v498 = vsel %vm478, %v420, 0
    %v501 = vsel %vm478, %v421, 0
    %v504 = vsel %vm478, %v422, 0
    %v507 = vsel %vm478, %v423, 0
    %v510 = vsel %vm478, %v424, 0
    %v513 = vsel %vm478, %v425, 0
    %v516 = vsel %vm478, %v426, 0
    %v519 = vsel %vm478, %v427, 0
    %v522 = vsel %vm478, %v428, 0
    %v525 = vsel %vm478, %v429, 0
    %v528 = vsel %vm478, %v430, 0
    %v531 = vsel %vm478, %v431, 0
    %v534 = vsel %vm478, %v432, 0
    %v537 = vsel %vm478, %v433, 0
    %v540 = vsel %vm478, %v434, 0
    %v543 = vsel %vm478, %v435, 0
    %v546 = vsel %vm478, %v436, 0
    %v549 = vsel %vm478, %v437, 0
    %v552 = vsel %vm478, %v438, 0
    %v555 = vsel %vm478, %v439, 0
    %v558 = vsel %vm478, %v440, 0
    %v561 = vsel %vm478, %v441, 0
    %v564 = vsel %vm478, %v442, 0
    %v567 = vsel %vm478, %v443, 0
    %v570 = vsel %vm478, %v444, 0
    %v573 = vsel %vm478, %v445, 0
    %v576 = vsel %vm478, %v446, 0
    %v579 = vsel %vm478, %v447, 0
    %v582 = vsel %vm478, %v448, 0
    %v585 = vsel %vm478, %v449, 0
    %v588 = vsel %vm478, %v450, 0
    %v591 = vsel %vm478, %v451, 0
    %v594 = vsel %vm478, %v452, 0
    %v597 = vsel %vm478, %v453, 0
    %v600 = vsel %vm478, %v454, 0
    %v603 = vsel %vm478, %v455, 0
    %v606 = vsel %vm478, %v456, 0
    %v609 = vsel %vm478, %v457, 0
    %v612 = vsel %vm478, %v458, 0
    %v615 = vsel %vm478, %v459, 0
    %v618 = vsel %vm478, %v460, 0
    %v621 = vsel %vm478, %v461, 0
    %v624 = vsel %vm478, %v462, 0
    %v627 = vsel %vm478, %v463, 0
    %v630 = vsel %vm478, %v464, 0
    %v633 = vsel %vm478, %v465, 0
    %v636 = vsel %vm478, %v466, 0
    %v639 = vsel %vm478, %v467, 0
    %v642 = vsel %vm478, %v468, 0
    %v645 = vsel %vm478, %v469, 0
    %v648 = vsel %vm478, %v470, 0
    %v651 = vsel %vm478, %v471, 0
    %v654 = vsel %vm478, %v472, 0
    %v657 = vsel %vm478, %v473, 0
    %v660 = vsel %vm478, %v474, 0
    %v663 = vsel %vm478, %v475, 0
    %v666 = vsel %vm478, %v476, 0
    %v669 = vsel %vm478, %v477, 0
    %vm671 = vcmask 1043456
    %v673 = vsel %vm671, %v157, 0
    %675 = vmatprep.subr.bf16.mxu0 0
    %676 = vmatpush1.bf16.msra.mxu0 0
    %677 = vmatprep.subr.bf16.mxu0 0
    %678 = vmatpush1.bf16.msra.mxu0 0
    %679 = vmatprep.subr.bf16.mxu0 0
    %680 = vmatpush1.bf16.msra.mxu0 0
    %681 = vmatprep.subr.bf16.mxu0 0
    %682 = vmatpush1.bf16.msra.mxu0 0
    %683 = vmatprep.subr.bf16.mxu0 0
    %684 = vmatpush1.bf16.msra.mxu0 0
    %685 = vmatprep.subr.bf16.mxu0 0
    %686 = vmatpush1.bf16.msra.mxu0 0
    %687 = vmatprep.subr.bf16.mxu0 0
    %688 = vmatpush1.bf16.msra.mxu0 0
    %689 = vmatprep.subr.bf16.mxu0 0
    %690 = vmatpush1.bf16.msra.mxu0 %v673
    %691 = vmatprep.subr.bf16.mxu0 0
    %692 = vmatpush2.bf16.msra.mxu0 0
    %693 = vmatprep.subr.bf16.mxu0 0
    %694 = vmatpush2.bf16.msra.mxu0 0
    %695 = vmatprep.subr.bf16.mxu0 0
    %696 = vmatpush2.bf16.msra.mxu0 0
    %697 = vmatprep.subr.bf16.mxu0 0
    %698 = vmatpush2.bf16.msra.mxu0 0
    %699 = vmatprep.subr.bf16.mxu0 0
    %700 = vmatpush2.bf16.msra.mxu0 0
    %701 = vmatprep.subr.bf16.mxu0 0
    %702 = vmatpush2.bf16.msra.mxu0 0
    %703 = vmatprep.subr.bf16.mxu0 0
    %704 = vmatpush2.bf16.msra.mxu0 0
    %705 = vmatprep.subr.bf16.mxu0 0
    %706 = vmatpush2.bf16.msra.mxu0 0
    %707 = vmatprep.mubr.bf16.mxu0 0
    %708 = vmatmul.mubr.bf16.gmra.mxu0 %v480
    %v709 = vpop.f32.mrf.mxu0
    %v710 = vadd.f32 0.0, %v709
    %v711 = vpop.f32.mrf.mxu0
    %v712 = vpop.f32.mrf.mxu0
    %v713 = vadd.f32 0.0, %v712
    %v714 = vpop.f32.mrf.mxu0
    %715 = vmatprep.mubr.bf16.mxu0 0
    %716 = vmatmul.mubr.bf16.gmra.mxu0 %v483
    %v717 = vpop.f32.mrf.mxu0
    %v718 = vadd.f32 0.0, %v717
    %v719 = vpop.f32.mrf.mxu0
    %v720 = vpop.f32.mrf.mxu0
    %v721 = vadd.f32 0.0, %v720
    %v722 = vpop.f32.mrf.mxu0
    %723 = vmatprep.mubr.bf16.mxu0 0
    %724 = vmatmul.mubr.bf16.gmra.mxu0 %v486
    %v725 = vpop.f32.mrf.mxu0
    %v726 = vadd.f32 0.0, %v725
    %v727 = vpop.f32.mrf.mxu0
    %v728 = vpop.f32.mrf.mxu0
    %v729 = vadd.f32 0.0, %v728
    %v730 = vpop.f32.mrf.mxu0
    %731 = vmatprep.mubr.bf16.mxu0 0
    %732 = vmatmul.mubr.bf16.gmra.mxu0 %v489
    %v733 = vpop.f32.mrf.mxu0
    %v734 = vadd.f32 0.0, %v733
    %v735 = vpop.f32.mrf.mxu0
    %v736 = vpop.f32.mrf.mxu0
    %v737 = vadd.f32 0.0, %v736
    %v738 = vpop.f32.mrf.mxu0
    %739 = vmatprep.mubr.bf16.mxu0 0
    %740 = vmatmul.mubr.bf16.gmra.mxu0 %v492
    %v741 = vpop.f32.mrf.mxu0
    %v742 = vadd.f32 0.0, %v741
    %v743 = vpop.f32.mrf.mxu0
    %v744 = vpop.f32.mrf.mxu0
    %v745 = vadd.f32 0.0, %v744
    %v746 = vpop.f32.mrf.mxu0
    %747 = vmatprep.mubr.bf16.mxu0 0
    %748 = vmatmul.mubr.bf16.gmra.mxu0 %v495
    %v749 = vpop.f32.mrf.mxu0
    %v750 = vadd.f32 0.0, %v749
    %v751 = vpop.f32.mrf.mxu0
    %v752 = vpop.f32.mrf.mxu0
    %v753 = vadd.f32 0.0, %v752
    %v754 = vpop.f32.mrf.mxu0
    %755 = vmatprep.mubr.bf16.mxu0 0
    %756 = vmatmul.mubr.bf16.gmra.mxu0 %v498
    %v757 = vpop.f32.mrf.mxu0
    %v758 = vadd.f32 0.0, %v757
    %v759 = vpop.f32.mrf.mxu0
    %v760 = vpop.f32.mrf.mxu0
    %v761 = vadd.f32 0.0, %v760
    %v762 = vpop.f32.mrf.mxu0
    %763 = vmatprep.mubr.bf16.mxu0 0
    %764 = vmatmul.mubr.bf16.gmra.mxu0 %v501
    %v765 = vpop.f32.mrf.mxu0
    %v766 = vadd.f32 0.0, %v765
    %v767 = vpop.f32.mrf.mxu0
    %v768 = vpop.f32.mrf.mxu0
    %v769 = vadd.f32 0.0, %v768
    %v770 = vpop.f32.mrf.mxu0
    %771 = vmatprep.mubr.bf16.mxu0 0
    %772 = vmatmul.mubr.bf16.gmra.mxu0 %v504
    %v773 = vpop.f32.mrf.mxu0
    %v774 = vadd.f32 0.0, %v773
    %v775 = vpop.f32.mrf.mxu0
    %v776 = vpop.f32.mrf.mxu0
    %v777 = vadd.f32 0.0, %v776
    %v778 = vpop.f32.mrf.mxu0
    %779 = vmatprep.mubr.bf16.mxu0 0
    %780 = vmatmul.mubr.bf16.gmra.mxu0 %v507
    %v781 = vpop.f32.mrf.mxu0
    %v782 = vadd.f32 0.0, %v781
    %v783 = vpop.f32.mrf.mxu0
    %v784 = vpop.f32.mrf.mxu0
    %v785 = vadd.f32 0.0, %v784
    %v786 = vpop.f32.mrf.mxu0
    %787 = vmatprep.mubr.bf16.mxu0 0
    %788 = vmatmul.mubr.bf16.gmra.mxu0 %v510
    %v789 = vpop.f32.mrf.mxu0
    %v790 = vadd.f32 0.0, %v789
    %v791 = vpop.f32.mrf.mxu0
    %v792 = vpop.f32.mrf.mxu0
    %v793 = vadd.f32 0.0, %v792
    %v794 = vpop.f32.mrf.mxu0
    %795 = vmatprep.mubr.bf16.mxu0 0
    %796 = vmatmul.mubr.bf16.gmra.mxu0 %v513
    %v797 = vpop.f32.mrf.mxu0
    %v798 = vadd.f32 0.0, %v797
    %v799 = vpop.f32.mrf.mxu0
    %v800 = vpop.f32.mrf.mxu0
    %v801 = vadd.f32 0.0, %v800
    %v802 = vpop.f32.mrf.mxu0
    %803 = vmatprep.mubr.bf16.mxu0 0
    %804 = vmatmul.mubr.bf16.gmra.mxu0 %v516
    %v805 = vpop.f32.mrf.mxu0
    %v806 = vadd.f32 0.0, %v805
    %v807 = vpop.f32.mrf.mxu0
    %v808 = vpop.f32.mrf.mxu0
    %v809 = vadd.f32 0.0, %v808
    %v810 = vpop.f32.mrf.mxu0
    %811 = vmatprep.mubr.bf16.mxu0 0
    %812 = vmatmul.mubr.bf16.gmra.mxu0 %v519
    %v813 = vpop.f32.mrf.mxu0
    %v814 = vadd.f32 0.0, %v813
    %v815 = vpop.f32.mrf.mxu0
    %v816 = vpop.f32.mrf.mxu0
    %v817 = vadd.f32 0.0, %v816
    %v818 = vpop.f32.mrf.mxu0
    %819 = vmatprep.mubr.bf16.mxu0 0
    %820 = vmatmul.mubr.bf16.gmra.mxu0 %v522
    %v821 = vpop.f32.mrf.mxu0
    %v822 = vadd.f32 0.0, %v821
    %v823 = vpop.f32.mrf.mxu0
    %v824 = vpop.f32.mrf.mxu0
    %v825 = vadd.f32 0.0, %v824
    %v826 = vpop.f32.mrf.mxu0
    %827 = vmatprep.mubr.bf16.mxu0 0
    %828 = vmatmul.mubr.bf16.gmra.mxu0 %v525
    %v829 = vpop.f32.mrf.mxu0
    %v830 = vadd.f32 0.0, %v829
    %v831 = vpop.f32.mrf.mxu0
    %v832 = vpop.f32.mrf.mxu0
    %v833 = vadd.f32 0.0, %v832
    %v834 = vpop.f32.mrf.mxu0
    %835 = vmatprep.mubr.bf16.mxu0 0
    %836 = vmatmul.mubr.bf16.gmra.mxu0 %v528
    %v837 = vpop.f32.mrf.mxu0
    %v838 = vadd.f32 0.0, %v837
    %v839 = vpop.f32.mrf.mxu0
    %v840 = vpop.f32.mrf.mxu0
    %v841 = vadd.f32 0.0, %v840
    %v842 = vpop.f32.mrf.mxu0
    %843 = vmatprep.mubr.bf16.mxu0 0
    %844 = vmatmul.mubr.bf16.gmra.mxu0 %v531
    %v845 = vpop.f32.mrf.mxu0
    %v846 = vadd.f32 0.0, %v845
    %v847 = vpop.f32.mrf.mxu0
    %v848 = vpop.f32.mrf.mxu0
    %v849 = vadd.f32 0.0, %v848
    %v850 = vpop.f32.mrf.mxu0
    %851 = vmatprep.mubr.bf16.mxu0 0
    %852 = vmatmul.mubr.bf16.gmra.mxu0 %v534
    %v853 = vpop.f32.mrf.mxu0
    %v854 = vadd.f32 0.0, %v853
    %v855 = vpop.f32.mrf.mxu0
    %v856 = vpop.f32.mrf.mxu0
    %v857 = vadd.f32 0.0, %v856
    %v858 = vpop.f32.mrf.mxu0
    %859 = vmatprep.mubr.bf16.mxu0 0
    %860 = vmatmul.mubr.bf16.gmra.mxu0 %v537
    %v861 = vpop.f32.mrf.mxu0
    %v862 = vadd.f32 0.0, %v861
    %v863 = vpop.f32.mrf.mxu0
    %v864 = vpop.f32.mrf.mxu0
    %v865 = vadd.f32 0.0, %v864
    %v866 = vpop.f32.mrf.mxu0
    %867 = vmatprep.mubr.bf16.mxu0 0
    %868 = vmatmul.mubr.bf16.gmra.mxu0 %v540
    %v869 = vpop.f32.mrf.mxu0
    %v870 = vadd.f32 0.0, %v869
    %v871 = vpop.f32.mrf.mxu0
    %v872 = vpop.f32.mrf.mxu0
    %v873 = vadd.f32 0.0, %v872
    %v874 = vpop.f32.mrf.mxu0
    %875 = vmatprep.mubr.bf16.mxu0 0
    %876 = vmatmul.mubr.bf16.gmra.mxu0 %v543
    %v877 = vpop.f32.mrf.mxu0
    %v878 = vadd.f32 0.0, %v877
    %v879 = vpop.f32.mrf.mxu0
    %v880 = vpop.f32.mrf.mxu0
    %v881 = vadd.f32 0.0, %v880
    %v882 = vpop.f32.mrf.mxu0
    %883 = vmatprep.mubr.bf16.mxu0 0
    %884 = vmatmul.mubr.bf16.gmra.mxu0 %v546
    %v885 = vpop.f32.mrf.mxu0
    %v886 = vadd.f32 0.0, %v885
    %v887 = vpop.f32.mrf.mxu0
    %v888 = vpop.f32.mrf.mxu0
    %v889 = vadd.f32 0.0, %v888
    %v890 = vpop.f32.mrf.mxu0
    %891 = vmatprep.mubr.bf16.mxu0 0
    %892 = vmatmul.mubr.bf16.gmra.mxu0 %v549
    %v893 = vpop.f32.mrf.mxu0
    %v894 = vadd.f32 0.0, %v893
    %v895 = vpop.f32.mrf.mxu0
    %v896 = vpop.f32.mrf.mxu0
    %v897 = vadd.f32 0.0, %v896
    %v898 = vpop.f32.mrf.mxu0
    %899 = vmatprep.mubr.bf16.mxu0 0
    %900 = vmatmul.mubr.bf16.gmra.mxu0 %v552
    %v901 = vpop.f32.mrf.mxu0
    %v902 = vadd.f32 0.0, %v901
    %v903 = vpop.f32.mrf.mxu0
    %v904 = vpop.f32.mrf.mxu0
    %v905 = vadd.f32 0.0, %v904
    %v906 = vpop.f32.mrf.mxu0
    %907 = vmatprep.mubr.bf16.mxu0 0
    %908 = vmatmul.mubr.bf16.gmra.mxu0 %v555
    %v909 = vpop.f32.mrf.mxu0
    %v910 = vadd.f32 0.0, %v909
    %v911 = vpop.f32.mrf.mxu0
    %v912 = vpop.f32.mrf.mxu0
    %v913 = vadd.f32 0.0, %v912
    %v914 = vpop.f32.mrf.mxu0
    %915 = vmatprep.mubr.bf16.mxu0 0
    %916 = vmatmul.mubr.bf16.gmra.mxu0 %v558
    %v917 = vpop.f32.mrf.mxu0
    %v918 = vadd.f32 0.0, %v917
    %v919 = vpop.f32.mrf.mxu0
    %v920 = vpop.f32.mrf.mxu0
    %v921 = vadd.f32 0.0, %v920
    %v922 = vpop.f32.mrf.mxu0
    %923 = vmatprep.mubr.bf16.mxu0 0
    %924 = vmatmul.mubr.bf16.gmra.mxu0 %v561
    %v925 = vpop.f32.mrf.mxu0
    %v926 = vadd.f32 0.0, %v925
    %v927 = vpop.f32.mrf.mxu0
    %v928 = vpop.f32.mrf.mxu0
    %v929 = vadd.f32 0.0, %v928
    %v930 = vpop.f32.mrf.mxu0
    %931 = vmatprep.mubr.bf16.mxu0 0
    %932 = vmatmul.mubr.bf16.gmra.mxu0 %v564
    %v933 = vpop.f32.mrf.mxu0
    %v934 = vadd.f32 0.0, %v933
    %v935 = vpop.f32.mrf.mxu0
    %v936 = vpop.f32.mrf.mxu0
    %v937 = vadd.f32 0.0, %v936
    %v938 = vpop.f32.mrf.mxu0
    %939 = vmatprep.mubr.bf16.mxu0 0
    %940 = vmatmul.mubr.bf16.gmra.mxu0 %v567
    %v941 = vpop.f32.mrf.mxu0
    %v942 = vadd.f32 0.0, %v941
    %v943 = vpop.f32.mrf.mxu0
    %v944 = vpop.f32.mrf.mxu0
    %v945 = vadd.f32 0.0, %v944
    %v946 = vpop.f32.mrf.mxu0
    %947 = vmatprep.mubr.bf16.mxu0 0
    %948 = vmatmul.mubr.bf16.gmra.mxu0 %v570
    %v949 = vpop.f32.mrf.mxu0
    %v950 = vadd.f32 0.0, %v949
    %v951 = vpop.f32.mrf.mxu0
    %v952 = vpop.f32.mrf.mxu0
    %v953 = vadd.f32 0.0, %v952
    %v954 = vpop.f32.mrf.mxu0
    %955 = vmatprep.mubr.bf16.mxu0 0
    %956 = vmatmul.mubr.bf16.gmra.mxu0 %v573
    %v957 = vpop.f32.mrf.mxu0
    %v958 = vadd.f32 0.0, %v957
    %v959 = vpop.f32.mrf.mxu0
    %v960 = vpop.f32.mrf.mxu0
    %v961 = vadd.f32 0.0, %v960
    %v962 = vpop.f32.mrf.mxu0
    %963 = vmatprep.mubr.bf16.mxu0 0
    %964 = vmatmul.mubr.bf16.gmra.mxu0 %v576
    %v965 = vpop.f32.mrf.mxu0
    %v966 = vadd.f32 0.0, %v965
    %v967 = vpop.f32.mrf.mxu0
    %v968 = vpop.f32.mrf.mxu0
    %v969 = vadd.f32 0.0, %v968
    %v970 = vpop.f32.mrf.mxu0
    %971 = vmatprep.mubr.bf16.mxu0 0
    %972 = vmatmul.mubr.bf16.gmra.mxu0 %v579
    %v973 = vpop.f32.mrf.mxu0
    %v974 = vadd.f32 0.0, %v973
    %v975 = vpop.f32.mrf.mxu0
    %v976 = vpop.f32.mrf.mxu0
    %v977 = vadd.f32 0.0, %v976
    %v978 = vpop.f32.mrf.mxu0
    %979 = vmatprep.mubr.bf16.mxu0 0
    %980 = vmatmul.mubr.bf16.gmra.mxu0 %v582
    %v981 = vpop.f32.mrf.mxu0
    %v982 = vadd.f32 0.0, %v981
    %v983 = vpop.f32.mrf.mxu0
    %v984 = vpop.f32.mrf.mxu0
    %v985 = vadd.f32 0.0, %v984
    %v986 = vpop.f32.mrf.mxu0
    %987 = vmatprep.mubr.bf16.mxu0 0
    %988 = vmatmul.mubr.bf16.gmra.mxu0 %v585
    %v989 = vpop.f32.mrf.mxu0
    %v990 = vadd.f32 0.0, %v989
    %v991 = vpop.f32.mrf.mxu0
    %v992 = vpop.f32.mrf.mxu0
    %v993 = vadd.f32 0.0, %v992
    %v994 = vpop.f32.mrf.mxu0
    %995 = vmatprep.mubr.bf16.mxu0 0
    %996 = vmatmul.mubr.bf16.gmra.mxu0 %v588
    %v997 = vpop.f32.mrf.mxu0
    %v998 = vadd.f32 0.0, %v997
    %v999 = vpop.f32.mrf.mxu0
    %v1000 = vpop.f32.mrf.mxu0
    %v1001 = vadd.f32 0.0, %v1000
    %v1002 = vpop.f32.mrf.mxu0
    %1003 = vmatprep.mubr.bf16.mxu0 0
    %1004 = vmatmul.mubr.bf16.gmra.mxu0 %v591
    %v1005 = vpop.f32.mrf.mxu0
    %v1006 = vadd.f32 0.0, %v1005
    %v1007 = vpop.f32.mrf.mxu0
    %v1008 = vpop.f32.mrf.mxu0
    %v1009 = vadd.f32 0.0, %v1008
    %v1010 = vpop.f32.mrf.mxu0
    %1011 = vmatprep.mubr.bf16.mxu0 0
    %1012 = vmatmul.mubr.bf16.gmra.mxu0 %v594
    %v1013 = vpop.f32.mrf.mxu0
    %v1014 = vadd.f32 0.0, %v1013
    %v1015 = vpop.f32.mrf.mxu0
    %v1016 = vpop.f32.mrf.mxu0
    %v1017 = vadd.f32 0.0, %v1016
    %v1018 = vpop.f32.mrf.mxu0
    %1019 = vmatprep.mubr.bf16.mxu0 0
    %1020 = vmatmul.mubr.bf16.gmra.mxu0 %v597
    %v1021 = vpop.f32.mrf.mxu0
    %v1022 = vadd.f32 0.0, %v1021
    %v1023 = vpop.f32.mrf.mxu0
    %v1024 = vpop.f32.mrf.mxu0
    %v1025 = vadd.f32 0.0, %v1024
    %v1026 = vpop.f32.mrf.mxu0
    %1027 = vmatprep.mubr.bf16.mxu0 0
    %1028 = vmatmul.mubr.bf16.gmra.mxu0 %v600
    %v1029 = vpop.f32.mrf.mxu0
    %v1030 = vadd.f32 0.0, %v1029
    %v1031 = vpop.f32.mrf.mxu0
    %v1032 = vpop.f32.mrf.mxu0
    %v1033 = vadd.f32 0.0, %v1032
    %v1034 = vpop.f32.mrf.mxu0
    %1035 = vmatprep.mubr.bf16.mxu0 0
    %1036 = vmatmul.mubr.bf16.gmra.mxu0 %v603
    %v1037 = vpop.f32.mrf.mxu0
    %v1038 = vadd.f32 0.0, %v1037
    %v1039 = vpop.f32.mrf.mxu0
    %v1040 = vpop.f32.mrf.mxu0
    %v1041 = vadd.f32 0.0, %v1040
    %v1042 = vpop.f32.mrf.mxu0
    %1043 = vmatprep.mubr.bf16.mxu0 0
    %1044 = vmatmul.mubr.bf16.gmra.mxu0 %v606
    %v1045 = vpop.f32.mrf.mxu0
    %v1046 = vadd.f32 0.0, %v1045
    %v1047 = vpop.f32.mrf.mxu0
    %v1048 = vpop.f32.mrf.mxu0
    %v1049 = vadd.f32 0.0, %v1048
    %v1050 = vpop.f32.mrf.mxu0
    %1051 = vmatprep.mubr.bf16.mxu0 0
    %1052 = vmatmul.mubr.bf16.gmra.mxu0 %v609
    %v1053 = vpop.f32.mrf.mxu0
    %v1054 = vadd.f32 0.0, %v1053
    %v1055 = vpop.f32.mrf.mxu0
    %v1056 = vpop.f32.mrf.mxu0
    %v1057 = vadd.f32 0.0, %v1056
    %v1058 = vpop.f32.mrf.mxu0
    %1059 = vmatprep.mubr.bf16.mxu0 0
    %1060 = vmatmul.mubr.bf16.gmra.mxu0 %v612
    %v1061 = vpop.f32.mrf.mxu0
    %v1062 = vadd.f32 0.0, %v1061
    %v1063 = vpop.f32.mrf.mxu0
    %v1064 = vpop.f32.mrf.mxu0
    %v1065 = vadd.f32 0.0, %v1064
    %v1066 = vpop.f32.mrf.mxu0
    %1067 = vmatprep.mubr.bf16.mxu0 0
    %1068 = vmatmul.mubr.bf16.gmra.mxu0 %v615
    %v1069 = vpop.f32.mrf.mxu0
    %v1070 = vadd.f32 0.0, %v1069
    %v1071 = vpop.f32.mrf.mxu0
    %v1072 = vpop.f32.mrf.mxu0
    %v1073 = vadd.f32 0.0, %v1072
    %v1074 = vpop.f32.mrf.mxu0
    %1075 = vmatprep.mubr.bf16.mxu0 0
    %1076 = vmatmul.mubr.bf16.gmra.mxu0 %v618
    %v1077 = vpop.f32.mrf.mxu0
    %v1078 = vadd.f32 0.0, %v1077
    %v1079 = vpop.f32.mrf.mxu0
    %v1080 = vpop.f32.mrf.mxu0
    %v1081 = vadd.f32 0.0, %v1080
    %v1082 = vpop.f32.mrf.mxu0
    %1083 = vmatprep.mubr.bf16.mxu0 0
    %1084 = vmatmul.mubr.bf16.gmra.mxu0 %v621
    %v1085 = vpop.f32.mrf.mxu0
    %v1086 = vadd.f32 0.0, %v1085
    %v1087 = vpop.f32.mrf.mxu0
    %v1088 = vpop.f32.mrf.mxu0
    %v1089 = vadd.f32 0.0, %v1088
    %v1090 = vpop.f32.mrf.mxu0
    %1091 = vmatprep.mubr.bf16.mxu0 0
    %1092 = vmatmul.mubr.bf16.gmra.mxu0 %v624
    %v1093 = vpop.f32.mrf.mxu0
    %v1094 = vadd.f32 0.0, %v1093
    %v1095 = vpop.f32.mrf.mxu0
    %v1096 = vpop.f32.mrf.mxu0
    %v1097 = vadd.f32 0.0, %v1096
    %v1098 = vpop.f32.mrf.mxu0
    %1099 = vmatprep.mubr.bf16.mxu0 0
    %1100 = vmatmul.mubr.bf16.gmra.mxu0 %v627
    %v1101 = vpop.f32.mrf.mxu0
    %v1102 = vadd.f32 0.0, %v1101
    %v1103 = vpop.f32.mrf.mxu0
    %v1104 = vpop.f32.mrf.mxu0
    %v1105 = vadd.f32 0.0, %v1104
    %v1106 = vpop.f32.mrf.mxu0
    %1107 = vmatprep.mubr.bf16.mxu0 0
    %1108 = vmatmul.mubr.bf16.gmra.mxu0 %v630
    %v1109 = vpop.f32.mrf.mxu0
    %v1110 = vadd.f32 0.0, %v1109
    %v1111 = vpop.f32.mrf.mxu0
    %v1112 = vpop.f32.mrf.mxu0
    %v1113 = vadd.f32 0.0, %v1112
    %v1114 = vpop.f32.mrf.mxu0
    %1115 = vmatprep.mubr.bf16.mxu0 0
    %1116 = vmatmul.mubr.bf16.gmra.mxu0 %v633
    %v1117 = vpop.f32.mrf.mxu0
    %v1118 = vadd.f32 0.0, %v1117
    %v1119 = vpop.f32.mrf.mxu0
    %v1120 = vpop.f32.mrf.mxu0
    %v1121 = vadd.f32 0.0, %v1120
    %v1122 = vpop.f32.mrf.mxu0
    %1123 = vmatprep.mubr.bf16.mxu0 0
    %1124 = vmatmul.mubr.bf16.gmra.mxu0 %v636
    %v1125 = vpop.f32.mrf.mxu0
    %v1126 = vadd.f32 0.0, %v1125
    %v1127 = vpop.f32.mrf.mxu0
    %v1128 = vpop.f32.mrf.mxu0
    %v1129 = vadd.f32 0.0, %v1128
    %v1130 = vpop.f32.mrf.mxu0
    %1131 = vmatprep.mubr.bf16.mxu0 0
    %1132 = vmatmul.mubr.bf16.gmra.mxu0 %v639
    %v1133 = vpop.f32.mrf.mxu0
    %v1134 = vadd.f32 0.0, %v1133
    %v1135 = vpop.f32.mrf.mxu0
    %v1136 = vpop.f32.mrf.mxu0
    %v1137 = vadd.f32 0.0, %v1136
    %v1138 = vpop.f32.mrf.mxu0
    %1139 = vmatprep.mubr.bf16.mxu0 0
    %1140 = vmatmul.mubr.bf16.gmra.mxu0 %v642
    %v1141 = vpop.f32.mrf.mxu0
    %v1142 = vadd.f32 0.0, %v1141
    %v1143 = vpop.f32.mrf.mxu0
    %v1144 = vpop.f32.mrf.mxu0
    %v1145 = vadd.f32 0.0, %v1144
    %v1146 = vpop.f32.mrf.mxu0
    %1147 = vmatprep.mubr.bf16.mxu0 0
    %1148 = vmatmul.mubr.bf16.gmra.mxu0 %v645
    %v1149 = vpop.f32.mrf.mxu0
    %v1150 = vadd.f32 0.0, %v1149
    %v1151 = vpop.f32.mrf.mxu0
    %v1152 = vpop.f32.mrf.mxu0
    %v1153 = vadd.f32 0.0, %v1152
    %v1154 = vpop.f32.mrf.mxu0
    %1155 = vmatprep.mubr.bf16.mxu0 0
    %1156 = vmatmul.mubr.bf16.gmra.mxu0 %v648
    %v1157 = vpop.f32.mrf.mxu0
    %v1158 = vadd.f32 0.0, %v1157
    %v1159 = vpop.f32.mrf.mxu0
    %v1160 = vpop.f32.mrf.mxu0
    %v1161 = vadd.f32 0.0, %v1160
    %v1162 = vpop.f32.mrf.mxu0
    %1163 = vmatprep.mubr.bf16.mxu0 0
    %1164 = vmatmul.mubr.bf16.gmra.mxu0 %v651
    %v1165 = vpop.f32.mrf.mxu0
    %v1166 = vadd.f32 0.0, %v1165
    %v1167 = vpop.f32.mrf.mxu0
    %v1168 = vpop.f32.mrf.mxu0
    %v1169 = vadd.f32 0.0, %v1168
    %v1170 = vpop.f32.mrf.mxu0
    %1171 = vmatprep.mubr.bf16.mxu0 0
    %1172 = vmatmul.mubr.bf16.gmra.mxu0 %v654
    %v1173 = vpop.f32.mrf.mxu0
    %v1174 = vadd.f32 0.0, %v1173
    %v1175 = vpop.f32.mrf.mxu0
    %v1176 = vpop.f32.mrf.mxu0
    %v1177 = vadd.f32 0.0, %v1176
    %v1178 = vpop.f32.mrf.mxu0
    %1179 = vmatprep.mubr.bf16.mxu0 0
    %1180 = vmatmul.mubr.bf16.gmra.mxu0 %v657
    %v1181 = vpop.f32.mrf.mxu0
    %v1182 = vadd.f32 0.0, %v1181
    %v1183 = vpop.f32.mrf.mxu0
    %v1184 = vpop.f32.mrf.mxu0
    %v1185 = vadd.f32 0.0, %v1184
    %v1186 = vpop.f32.mrf.mxu0
    %1187 = vmatprep.mubr.bf16.mxu0 0
    %1188 = vmatmul.mubr.bf16.gmra.mxu0 %v660
    %v1189 = vpop.f32.mrf.mxu0
    %v1190 = vadd.f32 0.0, %v1189
    %v1191 = vpop.f32.mrf.mxu0
    %v1192 = vpop.f32.mrf.mxu0
    %v1193 = vadd.f32 0.0, %v1192
    %v1194 = vpop.f32.mrf.mxu0
    %1195 = vmatprep.mubr.bf16.mxu0 0
    %1196 = vmatmul.mubr.bf16.gmra.mxu0 %v663
    %v1197 = vpop.f32.mrf.mxu0
    %v1198 = vadd.f32 0.0, %v1197
    %v1199 = vpop.f32.mrf.mxu0
    %v1200 = vpop.f32.mrf.mxu0
    %v1201 = vadd.f32 0.0, %v1200
    %v1202 = vpop.f32.mrf.mxu0
    %1203 = vmatprep.mubr.bf16.mxu0 0
    %1204 = vmatmul.mubr.bf16.gmra.mxu0 %v666
    %v1205 = vpop.f32.mrf.mxu0
    %v1206 = vadd.f32 0.0, %v1205
    %v1207 = vpop.f32.mrf.mxu0
    %v1208 = vpop.f32.mrf.mxu0
    %v1209 = vadd.f32 0.0, %v1208
    %v1210 = vpop.f32.mrf.mxu0
    %1211 = vmatprep.mubr.bf16.mxu0 0
    %1212 = vmatmul.mubr.bf16.gmra.mxu0 %v669
    %v1213 = vpop.f32.mrf.mxu0
    %v1214 = vadd.f32 0.0, %v1213
    %v1215 = vpop.f32.mrf.mxu0
    %v1216 = vpop.f32.mrf.mxu0
    %v1217 = vadd.f32 0.0, %v1216
    %v1218 = vpop.f32.mrf.mxu0
    %1219 = vdwg.mxu0
    %vm1220 = vcmask 15360
    %1221 = vst.msk [vmem:[%s2] sm:$0xff] %vm1220, %v710
    %1222 = vst.msk [vmem:[%s2 + $0x8] sm:$0xff] %vm1220, %v713
    %1223 = vst.msk [vmem:[%s2 + $0x10] sm:$0xff] %vm1220, %v718
    %1224 = vst.msk [vmem:[%s2 + $0x18] sm:$0xff] %vm1220, %v721
    %1225 = vst.msk [vmem:[%s2 + $0x20] sm:$0xff] %vm1220, %v726
    %1226 = vst.msk [vmem:[%s2 + $0x28] sm:$0xff] %vm1220, %v729
    %1227 = vst.msk [vmem:[%s2 + $0x30] sm:$0xff] %vm1220, %v734
    %1228 = vst.msk [vmem:[%s2 + $0x38] sm:$0xff] %vm1220, %v737
    %1229 = vst.msk [vmem:[%s2 + $0x40] sm:$0xff] %vm1220, %v742
    %1230 = vst.msk [vmem:[%s2 + $0x48] sm:$0xff] %vm1220, %v745
    %1231 = vst.msk [vmem:[%s2 + $0x50] sm:$0xff] %vm1220, %v750
    %1232 = vst.msk [vmem:[%s2 + $0x58] sm:$0xff] %vm1220, %v753
    %1233 = vst.msk [vmem:[%s2 + $0x60] sm:$0xff] %vm1220, %v758
    %1234 = vst.msk [vmem:[%s2 + $0x68] sm:$0xff] %vm1220, %v761
    %1235 = vst.msk [vmem:[%s2 + $0x70] sm:$0xff] %vm1220, %v766
    %1236 = vst.msk [vmem:[%s2 + $0x78] sm:$0xff] %vm1220, %v769
    %1237 = vst.msk [vmem:[%s2 + $0x80] sm:$0xff] %vm1220, %v774
    %1238 = vst.msk [vmem:[%s2 + $0x88] sm:$0xff] %vm1220, %v777
    %1239 = vst.msk [vmem:[%s2 + $0x90] sm:$0xff] %vm1220, %v782
    %1240 = vst.msk [vmem:[%s2 + $0x98] sm:$0xff] %vm1220, %v785
    %1241 = vst.msk [vmem:[%s2 + $0xa0] sm:$0xff] %vm1220, %v790
    %1242 = vst.msk [vmem:[%s2 + $0xa8] sm:$0xff] %vm1220, %v793
    %1243 = vst.msk [vmem:[%s2 + $0xb0] sm:$0xff] %vm1220, %v798
    %1244 = vst.msk [vmem:[%s2 + $0xb8] sm:$0xff] %vm1220, %v801
    %1245 = vst.msk [vmem:[%s2 + $0xc0] sm:$0xff] %vm1220, %v806
    %1246 = vst.msk [vmem:[%s2 + $0xc8] sm:$0xff] %vm1220, %v809
    %1247 = vst.msk [vmem:[%s2 + $0xd0] sm:$0xff] %vm1220, %v814
    %1248 = vst.msk [vmem:[%s2 + $0xd8] sm:$0xff] %vm1220, %v817
    %1249 = vst.msk [vmem:[%s2 + $0xe0] sm:$0xff] %vm1220, %v822
    %1250 = vst.msk [vmem:[%s2 + $0xe8] sm:$0xff] %vm1220, %v825
    %1251 = vst.msk [vmem:[%s2 + $0xf0] sm:$0xff] %vm1220, %v830
    %1252 = vst.msk [vmem:[%s2 + $0xf8] sm:$0xff] %vm1220, %v833
    %1253 = vst.msk [vmem:[%s2 + $0x100] sm:$0xff] %vm1220, %v838
    %1254 = vst.msk [vmem:[%s2 + $0x108] sm:$0xff] %vm1220, %v841
    %1255 = vst.msk [vmem:[%s2 + $0x110] sm:$0xff] %vm1220, %v846
    %1256 = vst.msk [vmem:[%s2 + $0x118] sm:$0xff] %vm1220, %v849
    %1257 = vst.msk [vmem:[%s2 + $0x120] sm:$0xff] %vm1220, %v854
    %1258 = vst.msk [vmem:[%s2 + $0x128] sm:$0xff] %vm1220, %v857
    %1259 = vst.msk [vmem:[%s2 + $0x130] sm:$0xff] %vm1220, %v862
    %1260 = vst.msk [vmem:[%s2 + $0x138] sm:$0xff] %vm1220, %v865
    %1261 = vst.msk [vmem:[%s2 + $0x140] sm:$0xff] %vm1220, %v870
    %1262 = vst.msk [vmem:[%s2 + $0x148] sm:$0xff] %vm1220, %v873
    %1263 = vst.msk [vmem:[%s2 + $0x150] sm:$0xff] %vm1220, %v878
    %1264 = vst.msk [vmem:[%s2 + $0x158] sm:$0xff] %vm1220, %v881
    %1265 = vst.msk [vmem:[%s2 + $0x160] sm:$0xff] %vm1220, %v886
    %1266 = vst.msk [vmem:[%s2 + $0x168] sm:$0xff] %vm1220, %v889
    %1267 = vst.msk [vmem:[%s2 + $0x170] sm:$0xff] %vm1220, %v894
    %1268 = vst.msk [vmem:[%s2 + $0x178] sm:$0xff] %vm1220, %v897
    %1269 = vst.msk [vmem:[%s2 + $0x180] sm:$0xff] %vm1220, %v902
    %1270 = vst.msk [vmem:[%s2 + $0x188] sm:$0xff] %vm1220, %v905
    %1271 = vst.msk [vmem:[%s2 + $0x190] sm:$0xff] %vm1220, %v910
    %1272 = vst.msk [vmem:[%s2 + $0x198] sm:$0xff] %vm1220, %v913
    %1273 = vst.msk [vmem:[%s2 + $0x1a0] sm:$0xff] %vm1220, %v918
    %1274 = vst.msk [vmem:[%s2 + $0x1a8] sm:$0xff] %vm1220, %v921
    %1275 = vst.msk [vmem:[%s2 + $0x1b0] sm:$0xff] %vm1220, %v926
    %1276 = vst.msk [vmem:[%s2 + $0x1b8] sm:$0xff] %vm1220, %v929
    %1277 = vst.msk [vmem:[%s2 + $0x1c0] sm:$0xff] %vm1220, %v934
    %1278 = vst.msk [vmem:[%s2 + $0x1c8] sm:$0xff] %vm1220, %v937
    %1279 = vst.msk [vmem:[%s2 + $0x1d0] sm:$0xff] %vm1220, %v942
    %1280 = vst.msk [vmem:[%s2 + $0x1d8] sm:$0xff] %vm1220, %v945
    %1281 = vst.msk [vmem:[%s2 + $0x1e0] sm:$0xff] %vm1220, %v950
    %1282 = vst.msk [vmem:[%s2 + $0x1e8] sm:$0xff] %vm1220, %v953
    %1283 = vst.msk [vmem:[%s2 + $0x1f0] sm:$0xff] %vm1220, %v958
    %1284 = vst.msk [vmem:[%s2 + $0x1f8] sm:$0xff] %vm1220, %v961
    %1285 = vst.msk [vmem:[%s2 + $0x200] sm:$0xff] %vm1220, %v966
    %1286 = vst.msk [vmem:[%s2 + $0x208] sm:$0xff] %vm1220, %v969
    %1287 = vst.msk [vmem:[%s2 + $0x210] sm:$0xff] %vm1220, %v974
    %1288 = vst.msk [vmem:[%s2 + $0x218] sm:$0xff] %vm1220, %v977
    %1289 = vst.msk [vmem:[%s2 + $0x220] sm:$0xff] %vm1220, %v982
    %1290 = vst.msk [vmem:[%s2 + $0x228] sm:$0xff] %vm1220, %v985
    %1291 = vst.msk [vmem:[%s2 + $0x230] sm:$0xff] %vm1220, %v990
    %1292 = vst.msk [vmem:[%s2 + $0x238] sm:$0xff] %vm1220, %v993
    %1293 = vst.msk [vmem:[%s2 + $0x240] sm:$0xff] %vm1220, %v998
    %1294 = vst.msk [vmem:[%s2 + $0x248] sm:$0xff] %vm1220, %v1001
    %1295 = vst.msk [vmem:[%s2 + $0x250] sm:$0xff] %vm1220, %v1006
    %1296 = vst.msk [vmem:[%s2 + $0x258] sm:$0xff] %vm1220, %v1009
    %1297 = vst.msk [vmem:[%s2 + $0x260] sm:$0xff] %vm1220, %v1014
    %1298 = vst.msk [vmem:[%s2 + $0x268] sm:$0xff] %vm1220, %v1017
    %1299 = vst.msk [vmem:[%s2 + $0x270] sm:$0xff] %vm1220, %v1022
    %1300 = vst.msk [vmem:[%s2 + $0x278] sm:$0xff] %vm1220, %v1025
    %1301 = vst.msk [vmem:[%s2 + $0x280] sm:$0xff] %vm1220, %v1030
    %1302 = vst.msk [vmem:[%s2 + $0x288] sm:$0xff] %vm1220, %v1033
    %1303 = vst.msk [vmem:[%s2 + $0x290] sm:$0xff] %vm1220, %v1038
    %1304 = vst.msk [vmem:[%s2 + $0x298] sm:$0xff] %vm1220, %v1041
    %1305 = vst.msk [vmem:[%s2 + $0x2a0] sm:$0xff] %vm1220, %v1046
    %1306 = vst.msk [vmem:[%s2 + $0x2a8] sm:$0xff] %vm1220, %v1049
    %1307 = vst.msk [vmem:[%s2 + $0x2b0] sm:$0xff] %vm1220, %v1054
    %1308 = vst.msk [vmem:[%s2 + $0x2b8] sm:$0xff] %vm1220, %v1057
    %1309 = vst.msk [vmem:[%s2 + $0x2c0] sm:$0xff] %vm1220, %v1062
    %1310 = vst.msk [vmem:[%s2 + $0x2c8] sm:$0xff] %vm1220, %v1065
    %1311 = vst.msk [vmem:[%s2 + $0x2d0] sm:$0xff] %vm1220, %v1070
    %1312 = vst.msk [vmem:[%s2 + $0x2d8] sm:$0xff] %vm1220, %v1073
    %1313 = vst.msk [vmem:[%s2 + $0x2e0] sm:$0xff] %vm1220, %v1078
    %1314 = vst.msk [vmem:[%s2 + $0x2e8] sm:$0xff] %vm1220, %v1081
    %1315 = vst.msk [vmem:[%s2 + $0x2f0] sm:$0xff] %vm1220, %v1086
    %1316 = vst.msk [vmem:[%s2 + $0x2f8] sm:$0xff] %vm1220, %v1089
    %1317 = vst.msk [vmem:[%s2 + $0x300] sm:$0xff] %vm1220, %v1094
    %1318 = vst.msk [vmem:[%s2 + $0x308] sm:$0xff] %vm1220, %v1097
    %1319 = vst.msk [vmem:[%s2 + $0x310] sm:$0xff] %vm1220, %v1102
    %1320 = vst.msk [vmem:[%s2 + $0x318] sm:$0xff] %vm1220, %v1105
    %1321 = vst.msk [vmem:[%s2 + $0x320] sm:$0xff] %vm1220, %v1110
    %1322 = vst.msk [vmem:[%s2 + $0x328] sm:$0xff] %vm1220, %v1113
    %1323 = vst.msk [vmem:[%s2 + $0x330] sm:$0xff] %vm1220, %v1118
    %1324 = vst.msk [vmem:[%s2 + $0x338] sm:$0xff] %vm1220, %v1121
    %1325 = vst.msk [vmem:[%s2 + $0x340] sm:$0xff] %vm1220, %v1126
    %1326 = vst.msk [vmem:[%s2 + $0x348] sm:$0xff] %vm1220, %v1129
    %1327 = vst.msk [vmem:[%s2 + $0x350] sm:$0xff] %vm1220, %v1134
    %1328 = vst.msk [vmem:[%s2 + $0x358] sm:$0xff] %vm1220, %v1137
    %1329 = vst.msk [vmem:[%s2 + $0x360] sm:$0xff] %vm1220, %v1142
    %1330 = vst.msk [vmem:[%s2 + $0x368] sm:$0xff] %vm1220, %v1145
    %1331 = vst.msk [vmem:[%s2 + $0x370] sm:$0xff] %vm1220, %v1150
    %1332 = vst.msk [vmem:[%s2 + $0x378] sm:$0xff] %vm1220, %v1153
    %1333 = vst.msk [vmem:[%s2 + $0x380] sm:$0xff] %vm1220, %v1158
    %1334 = vst.msk [vmem:[%s2 + $0x388] sm:$0xff] %vm1220, %v1161
    %1335 = vst.msk [vmem:[%s2 + $0x390] sm:$0xff] %vm1220, %v1166
    %1336 = vst.msk [vmem:[%s2 + $0x398] sm:$0xff] %vm1220, %v1169
    %1337 = vst.msk [vmem:[%s2 + $0x3a0] sm:$0xff] %vm1220, %v1174
    %1338 = vst.msk [vmem:[%s2 + $0x3a8] sm:$0xff] %vm1220, %v1177
    %1339 = vst.msk [vmem:[%s2 + $0x3b0] sm:$0xff] %vm1220, %v1182
    %1340 = vst.msk [vmem:[%s2 + $0x3b8] sm:$0xff] %vm1220, %v1185
    %1341 = vst.msk [vmem:[%s2 + $0x3c0] sm:$0xff] %vm1220, %v1190
    %1342 = vst.msk [vmem:[%s2 + $0x3c8] sm:$0xff] %vm1220, %v1193
    %1343 = vst.msk [vmem:[%s2 + $0x3d0] sm:$0xff] %vm1220, %v1198
    %1344 = vst.msk [vmem:[%s2 + $0x3d8] sm:$0xff] %vm1220, %v1201
    %1345 = vst.msk [vmem:[%s2 + $0x3e0] sm:$0xff] %vm1220, %v1206
    %1346 = vst.msk [vmem:[%s2 + $0x3e8] sm:$0xff] %vm1220, %v1209
    %1347 = vst.msk [vmem:[%s2 + $0x3f0] sm:$0xff] %vm1220, %v1214
    %1348 = vst.msk [vmem:[%s2 + $0x3f8] sm:$0xff] %vm1220, %v1217
    %p1349 = scmp.eq.s32.totalorder 0, 0
    // Predicated region
    $region14: #{_lambda_.5} parent=1 // pred_check
      %p1350 = pneg %p1349
    $region15: #{_lambda_.5} parent=1 // pred_check_branch
      %1352 = sbr.rel (%p1350) target = $region17
    $region16: #{_lambda_.5} parent=1 // pred_region
      %vm1353 = vcmask 7168
      %1354 = vst.msk [vmem:[%s3] sm:$0xff] %vm1353, 0.0
      %1355 = vst.msk [vmem:[%s3 + $0x8] sm:$0xff] %vm1353, 0.0
      %1356 = vst.msk [vmem:[%s3 + $0x10] sm:$0xff] %vm1353, 0.0
      %1357 = vst.msk [vmem:[%s3 + $0x18] sm:$0xff] %vm1353, 0.0
      %1358 = vst.msk [vmem:[%s3 + $0x20] sm:$0xff] %vm1353, 0.0
      %1359 = vst.msk [vmem:[%s3 + $0x28] sm:$0xff] %vm1353, 0.0
      %1360 = vst.msk [vmem:[%s3 + $0x30] sm:$0xff] %vm1353, 0.0
      %1361 = vst.msk [vmem:[%s3 + $0x38] sm:$0xff] %vm1353, 0.0
      %1362 = vst.msk [vmem:[%s3 + $0x40] sm:$0xff] %vm1353, 0.0
      %1363 = vst.msk [vmem:[%s3 + $0x48] sm:$0xff] %vm1353, 0.0
      %1364 = vst.msk [vmem:[%s3 + $0x50] sm:$0xff] %vm1353, 0.0
      %1365 = vst.msk [vmem:[%s3 + $0x58] sm:$0xff] %vm1353, 0.0
      %1366 = vst.msk [vmem:[%s3 + $0x60] sm:$0xff] %vm1353, 0.0
      %1367 = vst.msk [vmem:[%s3 + $0x68] sm:$0xff] %vm1353, 0.0
      %1368 = vst.msk [vmem:[%s3 + $0x70] sm:$0xff] %vm1353, 0.0
      %1369 = vst.msk [vmem:[%s3 + $0x78] sm:$0xff] %vm1353, 0.0
      %1370 = vst.msk [vmem:[%s3 + $0x80] sm:$0xff] %vm1353, 0.0
      %1371 = vst.msk [vmem:[%s3 + $0x88] sm:$0xff] %vm1353, 0.0
      %1372 = vst.msk [vmem:[%s3 + $0x90] sm:$0xff] %vm1353, 0.0
      %1373 = vst.msk [vmem:[%s3 + $0x98] sm:$0xff] %vm1353, 0.0
      %1374 = vst.msk [vmem:[%s3 + $0xa0] sm:$0xff] %vm1353, 0.0
      %1375 = vst.msk [vmem:[%s3 + $0xa8] sm:$0xff] %vm1353, 0.0
      %1376 = vst.msk [vmem:[%s3 + $0xb0] sm:$0xff] %vm1353, 0.0
      %1377 = vst.msk [vmem:[%s3 + $0xb8] sm:$0xff] %vm1353, 0.0
      %1378 = vst.msk [vmem:[%s3 + $0xc0] sm:$0xff] %vm1353, 0.0
      %1379 = vst.msk [vmem:[%s3 + $0xc8] sm:$0xff] %vm1353, 0.0
      %1380 = vst.msk [vmem:[%s3 + $0xd0] sm:$0xff] %vm1353, 0.0
      %1381 = vst.msk [vmem:[%s3 + $0xd8] sm:$0xff] %vm1353, 0.0
      %1382 = vst.msk [vmem:[%s3 + $0xe0] sm:$0xff] %vm1353, 0.0
      %1383 = vst.msk [vmem:[%s3 + $0xe8] sm:$0xff] %vm1353, 0.0
      %1384 = vst.msk [vmem:[%s3 + $0xf0] sm:$0xff] %vm1353, 0.0
      %1385 = vst.msk [vmem:[%s3 + $0xf8] sm:$0xff] %vm1353, 0.0
      %1386 = vst.msk [vmem:[%s3 + $0x100] sm:$0xff] %vm1353, 0.0
      %1387 = vst.msk [vmem:[%s3 + $0x108] sm:$0xff] %vm1353, 0.0
      %1388 = vst.msk [vmem:[%s3 + $0x110] sm:$0xff] %vm1353, 0.0
      %1389 = vst.msk [vmem:[%s3 + $0x118] sm:$0xff] %vm1353, 0.0
      %1390 = vst.msk [vmem:[%s3 + $0x120] sm:$0xff] %vm1353, 0.0
      %1391 = vst.msk [vmem:[%s3 + $0x128] sm:$0xff] %vm1353, 0.0
      %1392 = vst.msk [vmem:[%s3 + $0x130] sm:$0xff] %vm1353, 0.0
      %1393 = vst.msk [vmem:[%s3 + $0x138] sm:$0xff] %vm1353, 0.0
      %1394 = vst.msk [vmem:[%s3 + $0x140] sm:$0xff] %vm1353, 0.0
      %1395 = vst.msk [vmem:[%s3 + $0x148] sm:$0xff] %vm1353, 0.0
      %1396 = vst.msk [vmem:[%s3 + $0x150] sm:$0xff] %vm1353, 0.0
      %1397 = vst.msk [vmem:[%s3 + $0x158] sm:$0xff] %vm1353, 0.0
      %1398 = vst.msk [vmem:[%s3 + $0x160] sm:$0xff] %vm1353, 0.0
      %1399 = vst.msk [vmem:[%s3 + $0x168] sm:$0xff] %vm1353, 0.0
      %1400 = vst.msk [vmem:[%s3 + $0x170] sm:$0xff] %vm1353, 0.0
      %1401 = vst.msk [vmem:[%s3 + $0x178] sm:$0xff] %vm1353, 0.0
      %1402 = vst.msk [vmem:[%s3 + $0x180] sm:$0xff] %vm1353, 0.0
      %1403 = vst.msk [vmem:[%s3 + $0x188] sm:$0xff] %vm1353, 0.0
      %1404 = vst.msk [vmem:[%s3 + $0x190] sm:$0xff] %vm1353, 0.0
      %1405 = vst.msk [vmem:[%s3 + $0x198] sm:$0xff] %vm1353, 0.0
      %1406 = vst.msk [vmem:[%s3 + $0x1a0] sm:$0xff] %vm1353, 0.0
      %1407 = vst.msk [vmem:[%s3 + $0x1a8] sm:$0xff] %vm1353, 0.0
      %1408 = vst.msk [vmem:[%s3 + $0x1b0] sm:$0xff] %vm1353, 0.0
      %1409 = vst.msk [vmem:[%s3 + $0x1b8] sm:$0xff] %vm1353, 0.0
      %1410 = vst.msk [vmem:[%s3 + $0x1c0] sm:$0xff] %vm1353, 0.0
      %1411 = vst.msk [vmem:[%s3 + $0x1c8] sm:$0xff] %vm1353, 0.0
      %1412 = vst.msk [vmem:[%s3 + $0x1d0] sm:$0xff] %vm1353, 0.0
      %1413 = vst.msk [vmem:[%s3 + $0x1d8] sm:$0xff] %vm1353, 0.0
      %1414 = vst.msk [vmem:[%s3 + $0x1e0] sm:$0xff] %vm1353, 0.0
      %1415 = vst.msk [vmem:[%s3 + $0x1e8] sm:$0xff] %vm1353, 0.0
      %1416 = vst.msk [vmem:[%s3 + $0x1f0] sm:$0xff] %vm1353, 0.0
      %1417 = vst.msk [vmem:[%s3 + $0x1f8] sm:$0xff] %vm1353, 0.0
      %1418 = vst.msk [vmem:[%s3 + $0x200] sm:$0xff] %vm1353, 0.0
      %1419 = vst.msk [vmem:[%s3 + $0x208] sm:$0xff] %vm1353, 0.0
      %1420 = vst.msk [vmem:[%s3 + $0x210] sm:$0xff] %vm1353, 0.0
      %1421 = vst.msk [vmem:[%s3 + $0x218] sm:$0xff] %vm1353, 0.0
      %1422 = vst.msk [vmem:[%s3 + $0x220] sm:$0xff] %vm1353, 0.0
      %1423 = vst.msk [vmem:[%s3 + $0x228] sm:$0xff] %vm1353, 0.0
      %1424 = vst.msk [vmem:[%s3 + $0x230] sm:$0xff] %vm1353, 0.0
      %1425 = vst.msk [vmem:[%s3 + $0x238] sm:$0xff] %vm1353, 0.0
      %1426 = vst.msk [vmem:[%s3 + $0x240] sm:$0xff] %vm1353, 0.0
      %1427 = vst.msk [vmem:[%s3 + $0x248] sm:$0xff] %vm1353, 0.0
      %1428 = vst.msk [vmem:[%s3 + $0x250] sm:$0xff] %vm1353, 0.0
      %1429 = vst.msk [vmem:[%s3 + $0x258] sm:$0xff] %vm1353, 0.0
      %1430 = vst.msk [vmem:[%s3 + $0x260] sm:$0xff] %vm1353, 0.0
      %1431 = vst.msk [vmem:[%s3 + $0x268] sm:$0xff] %vm1353, 0.0
      %1432 = vst.msk [vmem:[%s3 + $0x270] sm:$0xff] %vm1353, 0.0
      %1433 = vst.msk [vmem:[%s3 + $0x278] sm:$0xff] %vm1353, 0.0
      %1434 = vst.msk [vmem:[%s3 + $0x280] sm:$0xff] %vm1353, 0.0
      %1435 = vst.msk [vmem:[%s3 + $0x288] sm:$0xff] %vm1353, 0.0
      %1436 = vst.msk [vmem:[%s3 + $0x290] sm:$0xff] %vm1353, 0.0
      %1437 = vst.msk [vmem:[%s3 + $0x298] sm:$0xff] %vm1353, 0.0
      %1438 = vst.msk [vmem:[%s3 + $0x2a0] sm:$0xff] %vm1353, 0.0
      %1439 = vst.msk [vmem:[%s3 + $0x2a8] sm:$0xff] %vm1353, 0.0
      %1440 = vst.msk [vmem:[%s3 + $0x2b0] sm:$0xff] %vm1353, 0.0
      %1441 = vst.msk [vmem:[%s3 + $0x2b8] sm:$0xff] %vm1353, 0.0
      %1442 = vst.msk [vmem:[%s3 + $0x2c0] sm:$0xff] %vm1353, 0.0
      %1443 = vst.msk [vmem:[%s3 + $0x2c8] sm:$0xff] %vm1353, 0.0
      %1444 = vst.msk [vmem:[%s3 + $0x2d0] sm:$0xff] %vm1353, 0.0
      %1445 = vst.msk [vmem:[%s3 + $0x2d8] sm:$0xff] %vm1353, 0.0
      %1446 = vst.msk [vmem:[%s3 + $0x2e0] sm:$0xff] %vm1353, 0.0
      %1447 = vst.msk [vmem:[%s3 + $0x2e8] sm:$0xff] %vm1353, 0.0
      %1448 = vst.msk [vmem:[%s3 + $0x2f0] sm:$0xff] %vm1353, 0.0
      %1449 = vst.msk [vmem:[%s3 + $0x2f8] sm:$0xff] %vm1353, 0.0
      %1450 = vst.msk [vmem:[%s3 + $0x300] sm:$0xff] %vm1353, 0.0
      %1451 = vst.msk [vmem:[%s3 + $0x308] sm:$0xff] %vm1353, 0.0
      %1452 = vst.msk [vmem:[%s3 + $0x310] sm:$0xff] %vm1353, 0.0
      %1453 = vst.msk [vmem:[%s3 + $0x318] sm:$0xff] %vm1353, 0.0
      %1454 = vst.msk [vmem:[%s3 + $0x320] sm:$0xff] %vm1353, 0.0
      %1455 = vst.msk [vmem:[%s3 + $0x328] sm:$0xff] %vm1353, 0.0
      %1456 = vst.msk [vmem:[%s3 + $0x330] sm:$0xff] %vm1353, 0.0
      %1457 = vst.msk [vmem:[%s3 + $0x338] sm:$0xff] %vm1353, 0.0
      %1458 = vst.msk [vmem:[%s3 + $0x340] sm:$0xff] %vm1353, 0.0
      %1459 = vst.msk [vmem:[%s3 + $0x348] sm:$0xff] %vm1353, 0.0
      %1460 = vst.msk [vmem:[%s3 + $0x350] sm:$0xff] %vm1353, 0.0
      %1461 = vst.msk [vmem:[%s3 + $0x358] sm:$0xff] %vm1353, 0.0
      %1462 = vst.msk [vmem:[%s3 + $0x360] sm:$0xff] %vm1353, 0.0
      %1463 = vst.msk [vmem:[%s3 + $0x368] sm:$0xff] %vm1353, 0.0
      %1464 = vst.msk [vmem:[%s3 + $0x370] sm:$0xff] %vm1353, 0.0
      %1465 = vst.msk [vmem:[%s3 + $0x378] sm:$0xff] %vm1353, 0.0
      %1466 = vst.msk [vmem:[%s3 + $0x380] sm:$0xff] %vm1353, 0.0
      %1467 = vst.msk [vmem:[%s3 + $0x388] sm:$0xff] %vm1353, 0.0
      %1468 = vst.msk [vmem:[%s3 + $0x390] sm:$0xff] %vm1353, 0.0
      %1469 = vst.msk [vmem:[%s3 + $0x398] sm:$0xff] %vm1353, 0.0
      %1470 = vst.msk [vmem:[%s3 + $0x3a0] sm:$0xff] %vm1353, 0.0
      %1471 = vst.msk [vmem:[%s3 + $0x3a8] sm:$0xff] %vm1353, 0.0
      %1472 = vst.msk [vmem:[%s3 + $0x3b0] sm:$0xff] %vm1353, 0.0
      %1473 = vst.msk [vmem:[%s3 + $0x3b8] sm:$0xff] %vm1353, 0.0
      %1474 = vst.msk [vmem:[%s3 + $0x3c0] sm:$0xff] %vm1353, 0.0
      %1475 = vst.msk [vmem:[%s3 + $0x3c8] sm:$0xff] %vm1353, 0.0
      %1476 = vst.msk [vmem:[%s3 + $0x3d0] sm:$0xff] %vm1353, 0.0
      %1477 = vst.msk [vmem:[%s3 + $0x3d8] sm:$0xff] %vm1353, 0.0
      %1478 = vst.msk [vmem:[%s3 + $0x3e0] sm:$0xff] %vm1353, 0.0
      %1479 = vst.msk [vmem:[%s3 + $0x3e8] sm:$0xff] %vm1353, 0.0
      %1480 = vst.msk [vmem:[%s3 + $0x3f0] sm:$0xff] %vm1353, 0.0
      %1481 = vst.msk [vmem:[%s3 + $0x3f8] sm:$0xff] %vm1353, 0.0
      %1482 = vst.msk [vmem:[%s4] sm:$0xff] %vm1353, 0.0
      %1483 = vst.msk [vmem:[%s4 + $0x8] sm:$0xff] %vm1353, 0.0
      %1484 = vst.msk [vmem:[%s4 + $0x10] sm:$0xff] %vm1353, 0.0
      %1485 = vst.msk [vmem:[%s4 + $0x18] sm:$0xff] %vm1353, 0.0
      %1486 = vst.msk [vmem:[%s4 + $0x20] sm:$0xff] %vm1353, 0.0
      %1487 = vst.msk [vmem:[%s4 + $0x28] sm:$0xff] %vm1353, 0.0
      %1488 = vst.msk [vmem:[%s4 + $0x30] sm:$0xff] %vm1353, 0.0
      %1489 = vst.msk [vmem:[%s4 + $0x38] sm:$0xff] %vm1353, 0.0
      %1490 = vst.msk [vmem:[%s4 + $0x40] sm:$0xff] %vm1353, 0.0
      %1491 = vst.msk [vmem:[%s4 + $0x48] sm:$0xff] %vm1353, 0.0
      %1492 = vst.msk [vmem:[%s4 + $0x50] sm:$0xff] %vm1353, 0.0
      %1493 = vst.msk [vmem:[%s4 + $0x58] sm:$0xff] %vm1353, 0.0
      %1494 = vst.msk [vmem:[%s4 + $0x60] sm:$0xff] %vm1353, 0.0
      %1495 = vst.msk [vmem:[%s4 + $0x68] sm:$0xff] %vm1353, 0.0
      %1496 = vst.msk [vmem:[%s4 + $0x70] sm:$0xff] %vm1353, 0.0
      %1497 = vst.msk [vmem:[%s4 + $0x78] sm:$0xff] %vm1353, 0.0
      %1498 = vst.msk [vmem:[%s4 + $0x80] sm:$0xff] %vm1353, 0.0
      %1499 = vst.msk [vmem:[%s4 + $0x88] sm:$0xff] %vm1353, 0.0
      %1500 = vst.msk [vmem:[%s4 + $0x90] sm:$0xff] %vm1353, 0.0
      %1501 = vst.msk [vmem:[%s4 + $0x98] sm:$0xff] %vm1353, 0.0
      %1502 = vst.msk [vmem:[%s4 + $0xa0] sm:$0xff] %vm1353, 0.0
      %1503 = vst.msk [vmem:[%s4 + $0xa8] sm:$0xff] %vm1353, 0.0
      %1504 = vst.msk [vmem:[%s4 + $0xb0] sm:$0xff] %vm1353, 0.0
      %1505 = vst.msk [vmem:[%s4 + $0xb8] sm:$0xff] %vm1353, 0.0
      %1506 = vst.msk [vmem:[%s4 + $0xc0] sm:$0xff] %vm1353, 0.0
      %1507 = vst.msk [vmem:[%s4 + $0xc8] sm:$0xff] %vm1353, 0.0
      %1508 = vst.msk [vmem:[%s4 + $0xd0] sm:$0xff] %vm1353, 0.0
      %1509 = vst.msk [vmem:[%s4 + $0xd8] sm:$0xff] %vm1353, 0.0
      %1510 = vst.msk [vmem:[%s4 + $0xe0] sm:$0xff] %vm1353, 0.0
      %1511 = vst.msk [vmem:[%s4 + $0xe8] sm:$0xff] %vm1353, 0.0
      %1512 = vst.msk [vmem:[%s4 + $0xf0] sm:$0xff] %vm1353, 0.0
      %1513 = vst.msk [vmem:[%s4 + $0xf8] sm:$0xff] %vm1353, 0.0
      %1514 = vst.msk [vmem:[%s4 + $0x100] sm:$0xff] %vm1353, 0.0
      %1515 = vst.msk [vmem:[%s4 + $0x108] sm:$0xff] %vm1353, 0.0
      %1516 = vst.msk [vmem:[%s4 + $0x110] sm:$0xff] %vm1353, 0.0
      %1517 = vst.msk [vmem:[%s4 + $0x118] sm:$0xff] %vm1353, 0.0
      %1518 = vst.msk [vmem:[%s4 + $0x120] sm:$0xff] %vm1353, 0.0
      %1519 = vst.msk [vmem:[%s4 + $0x128] sm:$0xff] %vm1353, 0.0
      %1520 = vst.msk [vmem:[%s4 + $0x130] sm:$0xff] %vm1353, 0.0
      %1521 = vst.msk [vmem:[%s4 + $0x138] sm:$0xff] %vm1353, 0.0
      %1522 = vst.msk [vmem:[%s4 + $0x140] sm:$0xff] %vm1353, 0.0
      %1523 = vst.msk [vmem:[%s4 + $0x148] sm:$0xff] %vm1353, 0.0
      %1524 = vst.msk [vmem:[%s4 + $0x150] sm:$0xff] %vm1353, 0.0
      %1525 = vst.msk [vmem:[%s4 + $0x158] sm:$0xff] %vm1353, 0.0
      %1526 = vst.msk [vmem:[%s4 + $0x160] sm:$0xff] %vm1353, 0.0
      %1527 = vst.msk [vmem:[%s4 + $0x168] sm:$0xff] %vm1353, 0.0
      %1528 = vst.msk [vmem:[%s4 + $0x170] sm:$0xff] %vm1353, 0.0
      %1529 = vst.msk [vmem:[%s4 + $0x178] sm:$0xff] %vm1353, 0.0
      %1530 = vst.msk [vmem:[%s4 + $0x180] sm:$0xff] %vm1353, 0.0
      %1531 = vst.msk [vmem:[%s4 + $0x188] sm:$0xff] %vm1353, 0.0
      %1532 = vst.msk [vmem:[%s4 + $0x190] sm:$0xff] %vm1353, 0.0
      %1533 = vst.msk [vmem:[%s4 + $0x198] sm:$0xff] %vm1353, 0.0
      %1534 = vst.msk [vmem:[%s4 + $0x1a0] sm:$0xff] %vm1353, 0.0
      %1535 = vst.msk [vmem:[%s4 + $0x1a8] sm:$0xff] %vm1353, 0.0
      %1536 = vst.msk [vmem:[%s4 + $0x1b0] sm:$0xff] %vm1353, 0.0
      %1537 = vst.msk [vmem:[%s4 + $0x1b8] sm:$0xff] %vm1353, 0.0
      %1538 = vst.msk [vmem:[%s4 + $0x1c0] sm:$0xff] %vm1353, 0.0
      %1539 = vst.msk [vmem:[%s4 + $0x1c8] sm:$0xff] %vm1353, 0.0
      %1540 = vst.msk [vmem:[%s4 + $0x1d0] sm:$0xff] %vm1353, 0.0
      %1541 = vst.msk [vmem:[%s4 + $0x1d8] sm:$0xff] %vm1353, 0.0
      %1542 = vst.msk [vmem:[%s4 + $0x1e0] sm:$0xff] %vm1353, 0.0
      %1543 = vst.msk [vmem:[%s4 + $0x1e8] sm:$0xff] %vm1353, 0.0
      %1544 = vst.msk [vmem:[%s4 + $0x1f0] sm:$0xff] %vm1353, 0.0
      %1545 = vst.msk [vmem:[%s4 + $0x1f8] sm:$0xff] %vm1353, 0.0
      %1546 = vst.msk [vmem:[%s4 + $0x200] sm:$0xff] %vm1353, 0.0
      %1547 = vst.msk [vmem:[%s4 + $0x208] sm:$0xff] %vm1353, 0.0
      %1548 = vst.msk [vmem:[%s4 + $0x210] sm:$0xff] %vm1353, 0.0
      %1549 = vst.msk [vmem:[%s4 + $0x218] sm:$0xff] %vm1353, 0.0
      %1550 = vst.msk [vmem:[%s4 + $0x220] sm:$0xff] %vm1353, 0.0
      %1551 = vst.msk [vmem:[%s4 + $0x228] sm:$0xff] %vm1353, 0.0
      %1552 = vst.msk [vmem:[%s4 + $0x230] sm:$0xff] %vm1353, 0.0
      %1553 = vst.msk [vmem:[%s4 + $0x238] sm:$0xff] %vm1353, 0.0
      %1554 = vst.msk [vmem:[%s4 + $0x240] sm:$0xff] %vm1353, 0.0
      %1555 = vst.msk [vmem:[%s4 + $0x248] sm:$0xff] %vm1353, 0.0
      %1556 = vst.msk [vmem:[%s4 + $0x250] sm:$0xff] %vm1353, 0.0
      %1557 = vst.msk [vmem:[%s4 + $0x258] sm:$0xff] %vm1353, 0.0
      %1558 = vst.msk [vmem:[%s4 + $0x260] sm:$0xff] %vm1353, 0.0
      %1559 = vst.msk [vmem:[%s4 + $0x268] sm:$0xff] %vm1353, 0.0
      %1560 = vst.msk [vmem:[%s4 + $0x270] sm:$0xff] %vm1353, 0.0
      %1561 = vst.msk [vmem:[%s4 + $0x278] sm:$0xff] %vm1353, 0.0
      %1562 = vst.msk [vmem:[%s4 + $0x280] sm:$0xff] %vm1353, 0.0
      %1563 = vst.msk [vmem:[%s4 + $0x288] sm:$0xff] %vm1353, 0.0
      %1564 = vst.msk [vmem:[%s4 + $0x290] sm:$0xff] %vm1353, 0.0
      %1565 = vst.msk [vmem:[%s4 + $0x298] sm:$0xff] %vm1353, 0.0
      %1566 = vst.msk [vmem:[%s4 + $0x2a0] sm:$0xff] %vm1353, 0.0
      %1567 = vst.msk [vmem:[%s4 + $0x2a8] sm:$0xff] %vm1353, 0.0
      %1568 = vst.msk [vmem:[%s4 + $0x2b0] sm:$0xff] %vm1353, 0.0
      %1569 = vst.msk [vmem:[%s4 + $0x2b8] sm:$0xff] %vm1353, 0.0
      %1570 = vst.msk [vmem:[%s4 + $0x2c0] sm:$0xff] %vm1353, 0.0
      %1571 = vst.msk [vmem:[%s4 + $0x2c8] sm:$0xff] %vm1353, 0.0
      %1572 = vst.msk [vmem:[%s4 + $0x2d0] sm:$0xff] %vm1353, 0.0
      %1573 = vst.msk [vmem:[%s4 + $0x2d8] sm:$0xff] %vm1353, 0.0
      %1574 = vst.msk [vmem:[%s4 + $0x2e0] sm:$0xff] %vm1353, 0.0
      %1575 = vst.msk [vmem:[%s4 + $0x2e8] sm:$0xff] %vm1353, 0.0
      %1576 = vst.msk [vmem:[%s4 + $0x2f0] sm:$0xff] %vm1353, 0.0
      %1577 = vst.msk [vmem:[%s4 + $0x2f8] sm:$0xff] %vm1353, 0.0
      %1578 = vst.msk [vmem:[%s4 + $0x300] sm:$0xff] %vm1353, 0.0
      %1579 = vst.msk [vmem:[%s4 + $0x308] sm:$0xff] %vm1353, 0.0
      %1580 = vst.msk [vmem:[%s4 + $0x310] sm:$0xff] %vm1353, 0.0
      %1581 = vst.msk [vmem:[%s4 + $0x318] sm:$0xff] %vm1353, 0.0
      %1582 = vst.msk [vmem:[%s4 + $0x320] sm:$0xff] %vm1353, 0.0
      %1583 = vst.msk [vmem:[%s4 + $0x328] sm:$0xff] %vm1353, 0.0
      %1584 = vst.msk [vmem:[%s4 + $0x330] sm:$0xff] %vm1353, 0.0
      %1585 = vst.msk [vmem:[%s4 + $0x338] sm:$0xff] %vm1353, 0.0
      %1586 = vst.msk [vmem:[%s4 + $0x340] sm:$0xff] %vm1353, 0.0
      %1587 = vst.msk [vmem:[%s4 + $0x348] sm:$0xff] %vm1353, 0.0
      %1588 = vst.msk [vmem:[%s4 + $0x350] sm:$0xff] %vm1353, 0.0
      %1589 = vst.msk [vmem:[%s4 + $0x358] sm:$0xff] %vm1353, 0.0
      %1590 = vst.msk [vmem:[%s4 + $0x360] sm:$0xff] %vm1353, 0.0
      %1591 = vst.msk [vmem:[%s4 + $0x368] sm:$0xff] %vm1353, 0.0
      %1592 = vst.msk [vmem:[%s4 + $0x370] sm:$0xff] %vm1353, 0.0
      %1593 = vst.msk [vmem:[%s4 + $0x378] sm:$0xff] %vm1353, 0.0
      %1594 = vst.msk [vmem:[%s4 + $0x380] sm:$0xff] %vm1353, 0.0
      %1595 = vst.msk [vmem:[%s4 + $0x388] sm:$0xff] %vm1353, 0.0
      %1596 = vst.msk [vmem:[%s4 + $0x390] sm:$0xff] %vm1353, 0.0
      %1597 = vst.msk [vmem:[%s4 + $0x398] sm:$0xff] %vm1353, 0.0
      %1598 = vst.msk [vmem:[%s4 + $0x3a0] sm:$0xff] %vm1353, 0.0
      %1599 = vst.msk [vmem:[%s4 + $0x3a8] sm:$0xff] %vm1353, 0.0
      %1600 = vst.msk [vmem:[%s4 + $0x3b0] sm:$0xff] %vm1353, 0.0
      %1601 = vst.msk [vmem:[%s4 + $0x3b8] sm:$0xff] %vm1353, 0.0
      %1602 = vst.msk [vmem:[%s4 + $0x3c0] sm:$0xff] %vm1353, 0.0
      %1603 = vst.msk [vmem:[%s4 + $0x3c8] sm:$0xff] %vm1353, 0.0
      %1604 = vst.msk [vmem:[%s4 + $0x3d0] sm:$0xff] %vm1353, 0.0
      %1605 = vst.msk [vmem:[%s4 + $0x3d8] sm:$0xff] %vm1353, 0.0
      %1606 = vst.msk [vmem:[%s4 + $0x3e0] sm:$0xff] %vm1353, 0.0
      %1607 = vst.msk [vmem:[%s4 + $0x3e8] sm:$0xff] %vm1353, 0.0
      %1608 = vst.msk [vmem:[%s4 + $0x3f0] sm:$0xff] %vm1353, 0.0
      %1609 = vst.msk [vmem:[%s4 + $0x3f8] sm:$0xff] %vm1353, 0.0
    $region17: #{_lambda_.5} parent=1 // pred_fallthru
      _
    %v1610 = vld [vmem:[%s3] sm:$0xff]
    %v1611 = vld [vmem:[%s3 + $0x8] sm:$0xff]
    %v1612 = vld [vmem:[%s3 + $0x10] sm:$0xff]
    %v1613 = vld [vmem:[%s3 + $0x18] sm:$0xff]
    %v1614 = vld [vmem:[%s3 + $0x20] sm:$0xff]
    %v1615 = vld [vmem:[%s3 + $0x28] sm:$0xff]
    %v1616 = vld [vmem:[%s3 + $0x30] sm:$0xff]
    %v1617 = vld [vmem:[%s3 + $0x38] sm:$0xff]
    %v1618 = vld [vmem:[%s3 + $0x40] sm:$0xff]
    %v1619 = vld [vmem:[%s3 + $0x48] sm:$0xff]
    %v1620 = vld [vmem:[%s3 + $0x50] sm:$0xff]
    %v1621 = vld [vmem:[%s3 + $0x58] sm:$0xff]
    %v1622 = vld [vmem:[%s3 + $0x60] sm:$0xff]
    %v1623 = vld [vmem:[%s3 + $0x68] sm:$0xff]
    %v1624 = vld [vmem:[%s3 + $0x70] sm:$0xff]
    %v1625 = vld [vmem:[%s3 + $0x78] sm:$0xff]
    %v1626 = vld [vmem:[%s3 + $0x80] sm:$0xff]
    %v1627 = vld [vmem:[%s3 + $0x88] sm:$0xff]
    %v1628 = vld [vmem:[%s3 + $0x90] sm:$0xff]
    %v1629 = vld [vmem:[%s3 + $0x98] sm:$0xff]
    %v1630 = vld [vmem:[%s3 + $0xa0] sm:$0xff]
    %v1631 = vld [vmem:[%s3 + $0xa8] sm:$0xff]
    %v1632 = vld [vmem:[%s3 + $0xb0] sm:$0xff]
    %v1633 = vld [vmem:[%s3 + $0xb8] sm:$0xff]
    %v1634 = vld [vmem:[%s3 + $0xc0] sm:$0xff]
    %v1635 = vld [vmem:[%s3 + $0xc8] sm:$0xff]
    %v1636 = vld [vmem:[%s3 + $0xd0] sm:$0xff]
    %v1637 = vld [vmem:[%s3 + $0xd8] sm:$0xff]
    %v1638 = vld [vmem:[%s3 + $0xe0] sm:$0xff]
    %v1639 = vld [vmem:[%s3 + $0xe8] sm:$0xff]
    %v1640 = vld [vmem:[%s3 + $0xf0] sm:$0xff]
    %v1641 = vld [vmem:[%s3 + $0xf8] sm:$0xff]
    %v1642 = vld [vmem:[%s3 + $0x100] sm:$0xff]
    %v1643 = vld [vmem:[%s3 + $0x108] sm:$0xff]
    %v1644 = vld [vmem:[%s3 + $0x110] sm:$0xff]
    %v1645 = vld [vmem:[%s3 + $0x118] sm:$0xff]
    %v1646 = vld [vmem:[%s3 + $0x120] sm:$0xff]
    %v1647 = vld [vmem:[%s3 + $0x128] sm:$0xff]
    %v1648 = vld [vmem:[%s3 + $0x130] sm:$0xff]
    %v1649 = vld [vmem:[%s3 + $0x138] sm:$0xff]
    %v1650 = vld [vmem:[%s3 + $0x140] sm:$0xff]
    %v1651 = vld [vmem:[%s3 + $0x148] sm:$0xff]
    %v1652 = vld [vmem:[%s3 + $0x150] sm:$0xff]
    %v1653 = vld [vmem:[%s3 + $0x158] sm:$0xff]
    %v1654 = vld [vmem:[%s3 + $0x160] sm:$0xff]
    %v1655 = vld [vmem:[%s3 + $0x168] sm:$0xff]
    %v1656 = vld [vmem:[%s3 + $0x170] sm:$0xff]
    %v1657 = vld [vmem:[%s3 + $0x178] sm:$0xff]
    %v1658 = vld [vmem:[%s3 + $0x180] sm:$0xff]
    %v1659 = vld [vmem:[%s3 + $0x188] sm:$0xff]
    %v1660 = vld [vmem:[%s3 + $0x190] sm:$0xff]
    %v1661 = vld [vmem:[%s3 + $0x198] sm:$0xff]
    %v1662 = vld [vmem:[%s3 + $0x1a0] sm:$0xff]
    %v1663 = vld [vmem:[%s3 + $0x1a8] sm:$0xff]
    %v1664 = vld [vmem:[%s3 + $0x1b0] sm:$0xff]
    %v1665 = vld [vmem:[%s3 + $0x1b8] sm:$0xff]
    %v1666 = vld [vmem:[%s3 + $0x1c0] sm:$0xff]
    %v1667 = vld [vmem:[%s3 + $0x1c8] sm:$0xff]
    %v1668 = vld [vmem:[%s3 + $0x1d0] sm:$0xff]
    %v1669 = vld [vmem:[%s3 + $0x1d8] sm:$0xff]
    %v1670 = vld [vmem:[%s3 + $0x1e0] sm:$0xff]
    %v1671 = vld [vmem:[%s3 + $0x1e8] sm:$0xff]
    %v1672 = vld [vmem:[%s3 + $0x1f0] sm:$0xff]
    %v1673 = vld [vmem:[%s3 + $0x1f8] sm:$0xff]
    %v1674 = vld [vmem:[%s3 + $0x200] sm:$0xff]
    %v1675 = vld [vmem:[%s3 + $0x208] sm:$0xff]
    %v1676 = vld [vmem:[%s3 + $0x210] sm:$0xff]
    %v1677 = vld [vmem:[%s3 + $0x218] sm:$0xff]
    %v1678 = vld [vmem:[%s3 + $0x220] sm:$0xff]
    %v1679 = vld [vmem:[%s3 + $0x228] sm:$0xff]
    %v1680 = vld [vmem:[%s3 + $0x230] sm:$0xff]
    %v1681 = vld [vmem:[%s3 + $0x238] sm:$0xff]
    %v1682 = vld [vmem:[%s3 + $0x240] sm:$0xff]
    %v1683 = vld [vmem:[%s3 + $0x248] sm:$0xff]
    %v1684 = vld [vmem:[%s3 + $0x250] sm:$0xff]
    %v1685 = vld [vmem:[%s3 + $0x258] sm:$0xff]
    %v1686 = vld [vmem:[%s3 + $0x260] sm:$0xff]
    %v1687 = vld [vmem:[%s3 + $0x268] sm:$0xff]
    %v1688 = vld [vmem:[%s3 + $0x270] sm:$0xff]
    %v1689 = vld [vmem:[%s3 + $0x278] sm:$0xff]
    %v1690 = vld [vmem:[%s3 + $0x280] sm:$0xff]
    %v1691 = vld [vmem:[%s3 + $0x288] sm:$0xff]
    %v1692 = vld [vmem:[%s3 + $0x290] sm:$0xff]
    %v1693 = vld [vmem:[%s3 + $0x298] sm:$0xff]
    %v1694 = vld [vmem:[%s3 + $0x2a0] sm:$0xff]
    %v1695 = vld [vmem:[%s3 + $0x2a8] sm:$0xff]
    %v1696 = vld [vmem:[%s3 + $0x2b0] sm:$0xff]
    %v1697 = vld [vmem:[%s3 + $0x2b8] sm:$0xff]
    %v1698 = vld [vmem:[%s3 + $0x2c0] sm:$0xff]
    %v1699 = vld [vmem:[%s3 + $0x2c8] sm:$0xff]
    %v1700 = vld [vmem:[%s3 + $0x2d0] sm:$0xff]
    %v1701 = vld [vmem:[%s3 + $0x2d8] sm:$0xff]
    %v1702 = vld [vmem:[%s3 + $0x2e0] sm:$0xff]
    %v1703 = vld [vmem:[%s3 + $0x2e8] sm:$0xff]
    %v1704 = vld [vmem:[%s3 + $0x2f0] sm:$0xff]
    %v1705 = vld [vmem:[%s3 + $0x2f8] sm:$0xff]
    %v1706 = vld [vmem:[%s3 + $0x300] sm:$0xff]
    %v1707 = vld [vmem:[%s3 + $0x308] sm:$0xff]
    %v1708 = vld [vmem:[%s3 + $0x310] sm:$0xff]
    %v1709 = vld [vmem:[%s3 + $0x318] sm:$0xff]
    %v1710 = vld [vmem:[%s3 + $0x320] sm:$0xff]
    %v1711 = vld [vmem:[%s3 + $0x328] sm:$0xff]
    %v1712 = vld [vmem:[%s3 + $0x330] sm:$0xff]
    %v1713 = vld [vmem:[%s3 + $0x338] sm:$0xff]
    %v1714 = vld [vmem:[%s3 + $0x340] sm:$0xff]
    %v1715 = vld [vmem:[%s3 + $0x348] sm:$0xff]
    %v1716 = vld [vmem:[%s3 + $0x350] sm:$0xff]
    %v1717 = vld [vmem:[%s3 + $0x358] sm:$0xff]
    %v1718 = vld [vmem:[%s3 + $0x360] sm:$0xff]
    %v1719 = vld [vmem:[%s3 + $0x368] sm:$0xff]
    %v1720 = vld [vmem:[%s3 + $0x370] sm:$0xff]
    %v1721 = vld [vmem:[%s3 + $0x378] sm:$0xff]
    %v1722 = vld [vmem:[%s3 + $0x380] sm:$0xff]
    %v1723 = vld [vmem:[%s3 + $0x388] sm:$0xff]
    %v1724 = vld [vmem:[%s3 + $0x390] sm:$0xff]
    %v1725 = vld [vmem:[%s3 + $0x398] sm:$0xff]
    %v1726 = vld [vmem:[%s3 + $0x3a0] sm:$0xff]
    %v1727 = vld [vmem:[%s3 + $0x3a8] sm:$0xff]
    %v1728 = vld [vmem:[%s3 + $0x3b0] sm:$0xff]
    %v1729 = vld [vmem:[%s3 + $0x3b8] sm:$0xff]
    %v1730 = vld [vmem:[%s3 + $0x3c0] sm:$0xff]
    %v1731 = vld [vmem:[%s3 + $0x3c8] sm:$0xff]
    %v1732 = vld [vmem:[%s3 + $0x3d0] sm:$0xff]
    %v1733 = vld [vmem:[%s3 + $0x3d8] sm:$0xff]
    %v1734 = vld [vmem:[%s3 + $0x3e0] sm:$0xff]
    %v1735 = vld [vmem:[%s3 + $0x3e8] sm:$0xff]
    %v1736 = vld [vmem:[%s3 + $0x3f0] sm:$0xff]
    %v1737 = vld [vmem:[%s3 + $0x3f8] sm:$0xff]
    %v1738 = vsel %vm1220, %v710, 0.0
    %1739 = vadd.xlane.f32.xlu0 %v1738
    %v1740 = vpop.xlane.xlu0 %1739
    %v1741 = vsel %vm1220, %v713, 0.0
    %1742 = vadd.xlane.f32.xlu0 %v1741
    %v1743 = vpop.xlane.xlu0 %1742
    %v1744 = vsel %vm1220, %v718, 0.0
    %1745 = vadd.xlane.f32.xlu0 %v1744
    %v1746 = vpop.xlane.xlu0 %1745
    %v1747 = vsel %vm1220, %v721, 0.0
    %1748 = vadd.xlane.f32.xlu0 %v1747
    %v1749 = vpop.xlane.xlu0 %1748
    %v1750 = vsel %vm1220, %v726, 0.0
    %1751 = vadd.xlane.f32.xlu0 %v1750
    %v1752 = vpop.xlane.xlu0 %1751
    %v1753 = vsel %vm1220, %v729, 0.0
    %1754 = vadd.xlane.f32.xlu0 %v1753
    %v1755 = vpop.xlane.xlu0 %1754
    %v1756 = vsel %vm1220, %v734, 0.0
    %1757 = vadd.xlane.f32.xlu0 %v1756
    %v1758 = vpop.xlane.xlu0 %1757
    %v1759 = vsel %vm1220, %v737, 0.0
    %1760 = vadd.xlane.f32.xlu0 %v1759
    %v1761 = vpop.xlane.xlu0 %1760
    %v1762 = vsel %vm1220, %v742, 0.0
    %1763 = vadd.xlane.f32.xlu0 %v1762
    %v1764 = vpop.xlane.xlu0 %1763
    %v1765 = vsel %vm1220, %v745, 0.0
    %1766 = vadd.xlane.f32.xlu0 %v1765
    %v1767 = vpop.xlane.xlu0 %1766
    %v1768 = vsel %vm1220, %v750, 0.0
    %1769 = vadd.xlane.f32.xlu0 %v1768
    %v1770 = vpop.xlane.xlu0 %1769
    %v1771 = vsel %vm1220, %v753, 0.0
    %1772 = vadd.xlane.f32.xlu0 %v1771
    %v1773 = vpop.xlane.xlu0 %1772
    %v1774 = vsel %vm1220, %v758, 0.0
    %1775 = vadd.xlane.f32.xlu0 %v1774
    %v1776 = vpop.xlane.xlu0 %1775
    %v1777 = vsel %vm1220, %v761, 0.0
    %1778 = vadd.xlane.f32.xlu0 %v1777
    %v1779 = vpop.xlane.xlu0 %1778
    %v1780 = vsel %vm1220, %v766, 0.0
    %1781 = vadd.xlane.f32.xlu0 %v1780
    %v1782 = vpop.xlane.xlu0 %1781
    %v1783 = vsel %vm1220, %v769, 0.0
    %1784 = vadd.xlane.f32.xlu0 %v1783
    %v1785 = vpop.xlane.xlu0 %1784
    %v1786 = vsel %vm1220, %v774, 0.0
    %1787 = vadd.xlane.f32.xlu0 %v1786
    %v1788 = vpop.xlane.xlu0 %1787
    %v1789 = vsel %vm1220, %v777, 0.0
    %1790 = vadd.xlane.f32.xlu0 %v1789
    %v1791 = vpop.xlane.xlu0 %1790
    %v1792 = vsel %vm1220, %v782, 0.0
    %1793 = vadd.xlane.f32.xlu0 %v1792
    %v1794 = vpop.xlane.xlu0 %1793
    %v1795 = vsel %vm1220, %v785, 0.0
    %1796 = vadd.xlane.f32.xlu0 %v1795
    %v1797 = vpop.xlane.xlu0 %1796
    %v1798 = vsel %vm1220, %v790, 0.0
    %1799 = vadd.xlane.f32.xlu0 %v1798
    %v1800 = vpop.xlane.xlu0 %1799
    %v1801 = vsel %vm1220, %v793, 0.0
    %1802 = vadd.xlane.f32.xlu0 %v1801
    %v1803 = vpop.xlane.xlu0 %1802
    %v1804 = vsel %vm1220, %v798, 0.0
    %1805 = vadd.xlane.f32.xlu0 %v1804
    %v1806 = vpop.xlane.xlu0 %1805
    %v1807 = vsel %vm1220, %v801, 0.0
    %1808 = vadd.xlane.f32.xlu0 %v1807
    %v1809 = vpop.xlane.xlu0 %1808
    %v1810 = vsel %vm1220, %v806, 0.0
    %1811 = vadd.xlane.f32.xlu0 %v1810
    %v1812 = vpop.xlane.xlu0 %1811
    %v1813 = vsel %vm1220, %v809, 0.0
    %1814 = vadd.xlane.f32.xlu0 %v1813
    %v1815 = vpop.xlane.xlu0 %1814
    %v1816 = vsel %vm1220, %v814, 0.0
    %1817 = vadd.xlane.f32.xlu0 %v1816
    %v1818 = vpop.xlane.xlu0 %1817
    %v1819 = vsel %vm1220, %v817, 0.0
    %1820 = vadd.xlane.f32.xlu0 %v1819
    %v1821 = vpop.xlane.xlu0 %1820
    %v1822 = vsel %vm1220, %v822, 0.0
    %1823 = vadd.xlane.f32.xlu0 %v1822
    %v1824 = vpop.xlane.xlu0 %1823
    %v1825 = vsel %vm1220, %v825, 0.0
    %1826 = vadd.xlane.f32.xlu0 %v1825
    %v1827 = vpop.xlane.xlu0 %1826
    %v1828 = vsel %vm1220, %v830, 0.0
    %1829 = vadd.xlane.f32.xlu0 %v1828
    %v1830 = vpop.xlane.xlu0 %1829
    %v1831 = vsel %vm1220, %v833, 0.0
    %1832 = vadd.xlane.f32.xlu0 %v1831
    %v1833 = vpop.xlane.xlu0 %1832
    %v1834 = vsel %vm1220, %v838, 0.0
    %1835 = vadd.xlane.f32.xlu0 %v1834
    %v1836 = vpop.xlane.xlu0 %1835
    %v1837 = vsel %vm1220, %v841, 0.0
    %1838 = vadd.xlane.f32.xlu0 %v1837
    %v1839 = vpop.xlane.xlu0 %1838
    %v1840 = vsel %vm1220, %v846, 0.0
    %1841 = vadd.xlane.f32.xlu0 %v1840
    %v1842 = vpop.xlane.xlu0 %1841
    %v1843 = vsel %vm1220, %v849, 0.0
    %1844 = vadd.xlane.f32.xlu0 %v1843
    %v1845 = vpop.xlane.xlu0 %1844
    %v1846 = vsel %vm1220, %v854, 0.0
    %1847 = vadd.xlane.f32.xlu0 %v1846
    %v1848 = vpop.xlane.xlu0 %1847
    %v1849 = vsel %vm1220, %v857, 0.0
    %1850 = vadd.xlane.f32.xlu0 %v1849
    %v1851 = vpop.xlane.xlu0 %1850
    %v1852 = vsel %vm1220, %v862, 0.0
    %1853 = vadd.xlane.f32.xlu0 %v1852
    %v1854 = vpop.xlane.xlu0 %1853
    %v1855 = vsel %vm1220, %v865, 0.0
    %1856 = vadd.xlane.f32.xlu0 %v1855
    %v1857 = vpop.xlane.xlu0 %1856
    %v1858 = vsel %vm1220, %v870, 0.0
    %1859 = vadd.xlane.f32.xlu0 %v1858
    %v1860 = vpop.xlane.xlu0 %1859
    %v1861 = vsel %vm1220, %v873, 0.0
    %1862 = vadd.xlane.f32.xlu0 %v1861
    %v1863 = vpop.xlane.xlu0 %1862
    %v1864 = vsel %vm1220, %v878, 0.0
    %1865 = vadd.xlane.f32.xlu0 %v1864
    %v1866 = vpop.xlane.xlu0 %1865
    %v1867 = vsel %vm1220, %v881, 0.0
    %1868 = vadd.xlane.f32.xlu0 %v1867
    %v1869 = vpop.xlane.xlu0 %1868
    %v1870 = vsel %vm1220, %v886, 0.0
    %1871 = vadd.xlane.f32.xlu0 %v1870
    %v1872 = vpop.xlane.xlu0 %1871
    %v1873 = vsel %vm1220, %v889, 0.0
    %1874 = vadd.xlane.f32.xlu0 %v1873
    %v1875 = vpop.xlane.xlu0 %1874
    %v1876 = vsel %vm1220, %v894, 0.0
    %1877 = vadd.xlane.f32.xlu0 %v1876
    %v1878 = vpop.xlane.xlu0 %1877
    %v1879 = vsel %vm1220, %v897, 0.0
    %1880 = vadd.xlane.f32.xlu0 %v1879
    %v1881 = vpop.xlane.xlu0 %1880
    %v1882 = vsel %vm1220, %v902, 0.0
    %1883 = vadd.xlane.f32.xlu0 %v1882
    %v1884 = vpop.xlane.xlu0 %1883
    %v1885 = vsel %vm1220, %v905, 0.0
    %1886 = vadd.xlane.f32.xlu0 %v1885
    %v1887 = vpop.xlane.xlu0 %1886
    %v1888 = vsel %vm1220, %v910, 0.0
    %1889 = vadd.xlane.f32.xlu0 %v1888
    %v1890 = vpop.xlane.xlu0 %1889
    %v1891 = vsel %vm1220, %v913, 0.0
    %1892 = vadd.xlane.f32.xlu0 %v1891
    %v1893 = vpop.xlane.xlu0 %1892
    %v1894 = vsel %vm1220, %v918, 0.0
    %1895 = vadd.xlane.f32.xlu0 %v1894
    %v1896 = vpop.xlane.xlu0 %1895
    %v1897 = vsel %vm1220, %v921, 0.0
    %1898 = vadd.xlane.f32.xlu0 %v1897
    %v1899 = vpop.xlane.xlu0 %1898
    %v1900 = vsel %vm1220, %v926, 0.0
    %1901 = vadd.xlane.f32.xlu0 %v1900
    %v1902 = vpop.xlane.xlu0 %1901
    %v1903 = vsel %vm1220, %v929, 0.0
    %1904 = vadd.xlane.f32.xlu0 %v1903
    %v1905 = vpop.xlane.xlu0 %1904
    %v1906 = vsel %vm1220, %v934, 0.0
    %1907 = vadd.xlane.f32.xlu0 %v1906
    %v1908 = vpop.xlane.xlu0 %1907
    %v1909 = vsel %vm1220, %v937, 0.0
    %1910 = vadd.xlane.f32.xlu0 %v1909
    %v1911 = vpop.xlane.xlu0 %1910
    %v1912 = vsel %vm1220, %v942, 0.0
    %1913 = vadd.xlane.f32.xlu0 %v1912
    %v1914 = vpop.xlane.xlu0 %1913
    %v1915 = vsel %vm1220, %v945, 0.0
    %1916 = vadd.xlane.f32.xlu0 %v1915
    %v1917 = vpop.xlane.xlu0 %1916
    %v1918 = vsel %vm1220, %v950, 0.0
    %1919 = vadd.xlane.f32.xlu0 %v1918
    %v1920 = vpop.xlane.xlu0 %1919
    %v1921 = vsel %vm1220, %v953, 0.0
    %1922 = vadd.xlane.f32.xlu0 %v1921
    %v1923 = vpop.xlane.xlu0 %1922
    %v1924 = vsel %vm1220, %v958, 0.0
    %1925 = vadd.xlane.f32.xlu0 %v1924
    %v1926 = vpop.xlane.xlu0 %1925
    %v1927 = vsel %vm1220, %v961, 0.0
    %1928 = vadd.xlane.f32.xlu0 %v1927
    %v1929 = vpop.xlane.xlu0 %1928
    %v1930 = vsel %vm1220, %v966, 0.0
    %1931 = vadd.xlane.f32.xlu0 %v1930
    %v1932 = vpop.xlane.xlu0 %1931
    %v1933 = vsel %vm1220, %v969, 0.0
    %1934 = vadd.xlane.f32.xlu0 %v1933
    %v1935 = vpop.xlane.xlu0 %1934
    %v1936 = vsel %vm1220, %v974, 0.0
    %1937 = vadd.xlane.f32.xlu0 %v1936
    %v1938 = vpop.xlane.xlu0 %1937
    %v1939 = vsel %vm1220, %v977, 0.0
    %1940 = vadd.xlane.f32.xlu0 %v1939
    %v1941 = vpop.xlane.xlu0 %1940
    %v1942 = vsel %vm1220, %v982, 0.0
    %1943 = vadd.xlane.f32.xlu0 %v1942
    %v1944 = vpop.xlane.xlu0 %1943
    %v1945 = vsel %vm1220, %v985, 0.0
    %1946 = vadd.xlane.f32.xlu0 %v1945
    %v1947 = vpop.xlane.xlu0 %1946
    %v1948 = vsel %vm1220, %v990, 0.0
    %1949 = vadd.xlane.f32.xlu0 %v1948
    %v1950 = vpop.xlane.xlu0 %1949
    %v1951 = vsel %vm1220, %v993, 0.0
    %1952 = vadd.xlane.f32.xlu0 %v1951
    %v1953 = vpop.xlane.xlu0 %1952
    %v1954 = vsel %vm1220, %v998, 0.0
    %1955 = vadd.xlane.f32.xlu0 %v1954
    %v1956 = vpop.xlane.xlu0 %1955
    %v1957 = vsel %vm1220, %v1001, 0.0
    %1958 = vadd.xlane.f32.xlu0 %v1957
    %v1959 = vpop.xlane.xlu0 %1958
    %v1960 = vsel %vm1220, %v1006, 0.0
    %1961 = vadd.xlane.f32.xlu0 %v1960
    %v1962 = vpop.xlane.xlu0 %1961
    %v1963 = vsel %vm1220, %v1009, 0.0
    %1964 = vadd.xlane.f32.xlu0 %v1963
    %v1965 = vpop.xlane.xlu0 %1964
    %v1966 = vsel %vm1220, %v1014, 0.0
    %1967 = vadd.xlane.f32.xlu0 %v1966
    %v1968 = vpop.xlane.xlu0 %1967
    %v1969 = vsel %vm1220, %v1017, 0.0
    %1970 = vadd.xlane.f32.xlu0 %v1969
    %v1971 = vpop.xlane.xlu0 %1970
    %v1972 = vsel %vm1220, %v1022, 0.0
    %1973 = vadd.xlane.f32.xlu0 %v1972
    %v1974 = vpop.xlane.xlu0 %1973
    %v1975 = vsel %vm1220, %v1025, 0.0
    %1976 = vadd.xlane.f32.xlu0 %v1975
    %v1977 = vpop.xlane.xlu0 %1976
    %v1978 = vsel %vm1220, %v1030, 0.0
    %1979 = vadd.xlane.f32.xlu0 %v1978
    %v1980 = vpop.xlane.xlu0 %1979
    %v1981 = vsel %vm1220, %v1033, 0.0
    %1982 = vadd.xlane.f32.xlu0 %v1981
    %v1983 = vpop.xlane.xlu0 %1982
    %v1984 = vsel %vm1220, %v1038, 0.0
    %1985 = vadd.xlane.f32.xlu0 %v1984
    %v1986 = vpop.xlane.xlu0 %1985
    %v1987 = vsel %vm1220, %v1041, 0.0
    %1988 = vadd.xlane.f32.xlu0 %v1987
    %v1989 = vpop.xlane.xlu0 %1988
    %v1990 = vsel %vm1220, %v1046, 0.0
    %1991 = vadd.xlane.f32.xlu0 %v1990
    %v1992 = vpop.xlane.xlu0 %1991
    %v1993 = vsel %vm1220, %v1049, 0.0
    %1994 = vadd.xlane.f32.xlu0 %v1993
    %v1995 = vpop.xlane.xlu0 %1994
    %v1996 = vsel %vm1220, %v1054, 0.0
    %1997 = vadd.xlane.f32.xlu0 %v1996
    %v1998 = vpop.xlane.xlu0 %1997
    %v1999 = vsel %vm1220, %v1057, 0.0
    %2000 = vadd.xlane.f32.xlu0 %v1999
    %v2001 = vpop.xlane.xlu0 %2000
    %v2002 = vsel %vm1220, %v1062, 0.0
    %2003 = vadd.xlane.f32.xlu0 %v2002
    %v2004 = vpop.xlane.xlu0 %2003
    %v2005 = vsel %vm1220, %v1065, 0.0
    %2006 = vadd.xlane.f32.xlu0 %v2005
    %v2007 = vpop.xlane.xlu0 %2006
    %v2008 = vsel %vm1220, %v1070, 0.0
    %2009 = vadd.xlane.f32.xlu0 %v2008
    %v2010 = vpop.xlane.xlu0 %2009
    %v2011 = vsel %vm1220, %v1073, 0.0
    %2012 = vadd.xlane.f32.xlu0 %v2011
    %v2013 = vpop.xlane.xlu0 %2012
    %v2014 = vsel %vm1220, %v1078, 0.0
    %2015 = vadd.xlane.f32.xlu0 %v2014
    %v2016 = vpop.xlane.xlu0 %2015
    %v2017 = vsel %vm1220, %v1081, 0.0
    %2018 = vadd.xlane.f32.xlu0 %v2017
    %v2019 = vpop.xlane.xlu0 %2018
    %v2020 = vsel %vm1220, %v1086, 0.0
    %2021 = vadd.xlane.f32.xlu0 %v2020
    %v2022 = vpop.xlane.xlu0 %2021
    %v2023 = vsel %vm1220, %v1089, 0.0
    %2024 = vadd.xlane.f32.xlu0 %v2023
    %v2025 = vpop.xlane.xlu0 %2024
    %v2026 = vsel %vm1220, %v1094, 0.0
    %2027 = vadd.xlane.f32.xlu0 %v2026
    %v2028 = vpop.xlane.xlu0 %2027
    %v2029 = vsel %vm1220, %v1097, 0.0
    %2030 = vadd.xlane.f32.xlu0 %v2029
    %v2031 = vpop.xlane.xlu0 %2030
    %v2032 = vsel %vm1220, %v1102, 0.0
    %2033 = vadd.xlane.f32.xlu0 %v2032
    %v2034 = vpop.xlane.xlu0 %2033
    %v2035 = vsel %vm1220, %v1105, 0.0
    %2036 = vadd.xlane.f32.xlu0 %v2035
    %v2037 = vpop.xlane.xlu0 %2036
    %v2038 = vsel %vm1220, %v1110, 0.0
    %2039 = vadd.xlane.f32.xlu0 %v2038
    %v2040 = vpop.xlane.xlu0 %2039
    %v2041 = vsel %vm1220, %v1113, 0.0
    %2042 = vadd.xlane.f32.xlu0 %v2041
    %v2043 = vpop.xlane.xlu0 %2042
    %v2044 = vsel %vm1220, %v1118, 0.0
    %2045 = vadd.xlane.f32.xlu0 %v2044
    %v2046 = vpop.xlane.xlu0 %2045
    %v2047 = vsel %vm1220, %v1121, 0.0
    %2048 = vadd.xlane.f32.xlu0 %v2047
    %v2049 = vpop.xlane.xlu0 %2048
    %v2050 = vsel %vm1220, %v1126, 0.0
    %2051 = vadd.xlane.f32.xlu0 %v2050
    %v2052 = vpop.xlane.xlu0 %2051
    %v2053 = vsel %vm1220, %v1129, 0.0
    %2054 = vadd.xlane.f32.xlu0 %v2053
    %v2055 = vpop.xlane.xlu0 %2054
    %v2056 = vsel %vm1220, %v1134, 0.0
    %2057 = vadd.xlane.f32.xlu0 %v2056
    %v2058 = vpop.xlane.xlu0 %2057
    %v2059 = vsel %vm1220, %v1137, 0.0
    %2060 = vadd.xlane.f32.xlu0 %v2059
    %v2061 = vpop.xlane.xlu0 %2060
    %v2062 = vsel %vm1220, %v1142, 0.0
    %2063 = vadd.xlane.f32.xlu0 %v2062
    %v2064 = vpop.xlane.xlu0 %2063
    %v2065 = vsel %vm1220, %v1145, 0.0
    %2066 = vadd.xlane.f32.xlu0 %v2065
    %v2067 = vpop.xlane.xlu0 %2066
    %v2068 = vsel %vm1220, %v1150, 0.0
    %2069 = vadd.xlane.f32.xlu0 %v2068
    %v2070 = vpop.xlane.xlu0 %2069
    %v2071 = vsel %vm1220, %v1153, 0.0
    %2072 = vadd.xlane.f32.xlu0 %v2071
    %v2073 = vpop.xlane.xlu0 %2072
    %v2074 = vsel %vm1220, %v1158, 0.0
    %2075 = vadd.xlane.f32.xlu0 %v2074
    %v2076 = vpop.xlane.xlu0 %2075
    %v2077 = vsel %vm1220, %v1161, 0.0
    %2078 = vadd.xlane.f32.xlu0 %v2077
    %v2079 = vpop.xlane.xlu0 %2078
    %v2080 = vsel %vm1220, %v1166, 0.0
    %2081 = vadd.xlane.f32.xlu0 %v2080
    %v2082 = vpop.xlane.xlu0 %2081
    %v2083 = vsel %vm1220, %v1169, 0.0
    %2084 = vadd.xlane.f32.xlu0 %v2083
    %v2085 = vpop.xlane.xlu0 %2084
    %v2086 = vsel %vm1220, %v1174, 0.0
    %2087 = vadd.xlane.f32.xlu0 %v2086
    %v2088 = vpop.xlane.xlu0 %2087
    %v2089 = vsel %vm1220, %v1177, 0.0
    %2090 = vadd.xlane.f32.xlu0 %v2089
    %v2091 = vpop.xlane.xlu0 %2090
    %v2092 = vsel %vm1220, %v1182, 0.0
    %2093 = vadd.xlane.f32.xlu0 %v2092
    %v2094 = vpop.xlane.xlu0 %2093
    %v2095 = vsel %vm1220, %v1185, 0.0
    %2096 = vadd.xlane.f32.xlu0 %v2095
    %v2097 = vpop.xlane.xlu0 %2096
    %v2098 = vsel %vm1220, %v1190, 0.0
    %2099 = vadd.xlane.f32.xlu0 %v2098
    %v2100 = vpop.xlane.xlu0 %2099
    %v2101 = vsel %vm1220, %v1193, 0.0
    %2102 = vadd.xlane.f32.xlu0 %v2101
    %v2103 = vpop.xlane.xlu0 %2102
    %v2104 = vsel %vm1220, %v1198, 0.0
    %2105 = vadd.xlane.f32.xlu0 %v2104
    %v2106 = vpop.xlane.xlu0 %2105
    %v2107 = vsel %vm1220, %v1201, 0.0
    %2108 = vadd.xlane.f32.xlu0 %v2107
    %v2109 = vpop.xlane.xlu0 %2108
    %v2110 = vsel %vm1220, %v1206, 0.0
    %2111 = vadd.xlane.f32.xlu0 %v2110
    %v2112 = vpop.xlane.xlu0 %2111
    %v2113 = vsel %vm1220, %v1209, 0.0
    %2114 = vadd.xlane.f32.xlu0 %v2113
    %v2115 = vpop.xlane.xlu0 %2114
    %v2116 = vsel %vm1220, %v1214, 0.0
    %2117 = vadd.xlane.f32.xlu0 %v2116
    %v2118 = vpop.xlane.xlu0 %2117
    %v2119 = vsel %vm1220, %v1217, 0.0
    %2120 = vadd.xlane.f32.xlu0 %v2119
    %v2121 = vpop.xlane.xlu0 %2120
    %v2122 = vadd.f32 %v1610, %v1740
    %v2123 = vadd.f32 %v1611, %v1743
    %v2124 = vadd.f32 %v1612, %v1746
    %v2125 = vadd.f32 %v1613, %v1749
    %v2126 = vadd.f32 %v1614, %v1752
    %v2127 = vadd.f32 %v1615, %v1755
    %v2128 = vadd.f32 %v1616, %v1758
    %v2129 = vadd.f32 %v1617, %v1761
    %v2130 = vadd.f32 %v1618, %v1764
    %v2131 = vadd.f32 %v1619, %v1767
    %v2132 = vadd.f32 %v1620, %v1770
    %v2133 = vadd.f32 %v1621, %v1773
    %v2134 = vadd.f32 %v1622, %v1776
    %v2135 = vadd.f32 %v1623, %v1779
    %v2136 = vadd.f32 %v1624, %v1782
    %v2137 = vadd.f32 %v1625, %v1785
    %v2138 = vadd.f32 %v1626, %v1788
    %v2139 = vadd.f32 %v1627, %v1791
    %v2140 = vadd.f32 %v1628, %v1794
    %v2141 = vadd.f32 %v1629, %v1797
    %v2142 = vadd.f32 %v1630, %v1800
    %v2143 = vadd.f32 %v1631, %v1803
    %v2144 = vadd.f32 %v1632, %v1806
    %v2145 = vadd.f32 %v1633, %v1809
    %v2146 = vadd.f32 %v1634, %v1812
    %v2147 = vadd.f32 %v1635, %v1815
    %v2148 = vadd.f32 %v1636, %v1818
    %v2149 = vadd.f32 %v1637, %v1821
    %v2150 = vadd.f32 %v1638, %v1824
    %v2151 = vadd.f32 %v1639, %v1827
    %v2152 = vadd.f32 %v1640, %v1830
    %v2153 = vadd.f32 %v1641, %v1833
    %v2154 = vadd.f32 %v1642, %v1836
    %v2155 = vadd.f32 %v1643, %v1839
    %v2156 = vadd.f32 %v1644, %v1842
    %v2157 = vadd.f32 %v1645, %v1845
    %v2158 = vadd.f32 %v1646, %v1848
    %v2159 = vadd.f32 %v1647, %v1851
    %v2160 = vadd.f32 %v1648, %v1854
    %v2161 = vadd.f32 %v1649, %v1857
    %v2162 = vadd.f32 %v1650, %v1860
    %v2163 = vadd.f32 %v1651, %v1863
    %v2164 = vadd.f32 %v1652, %v1866
    %v2165 = vadd.f32 %v1653, %v1869
    %v2166 = vadd.f32 %v1654, %v1872
    %v2167 = vadd.f32 %v1655, %v1875
    %v2168 = vadd.f32 %v1656, %v1878
    %v2169 = vadd.f32 %v1657, %v1881
    %v2170 = vadd.f32 %v1658, %v1884
    %v2171 = vadd.f32 %v1659, %v1887
    %v2172 = vadd.f32 %v1660, %v1890
    %v2173 = vadd.f32 %v1661, %v1893
    %v2174 = vadd.f32 %v1662, %v1896
    %v2175 = vadd.f32 %v1663, %v1899
    %v2176 = vadd.f32 %v1664, %v1902
    %v2177 = vadd.f32 %v1665, %v1905
    %v2178 = vadd.f32 %v1666, %v1908
    %v2179 = vadd.f32 %v1667, %v1911
    %v2180 = vadd.f32 %v1668, %v1914
    %v2181 = vadd.f32 %v1669, %v1917
    %v2182 = vadd.f32 %v1670, %v1920
    %v2183 = vadd.f32 %v1671, %v1923
    %v2184 = vadd.f32 %v1672, %v1926
    %v2185 = vadd.f32 %v1673, %v1929
    %v2186 = vadd.f32 %v1674, %v1932
    %v2187 = vadd.f32 %v1675, %v1935
    %v2188 = vadd.f32 %v1676, %v1938
    %v2189 = vadd.f32 %v1677, %v1941
    %v2190 = vadd.f32 %v1678, %v1944
    %v2191 = vadd.f32 %v1679, %v1947
    %v2192 = vadd.f32 %v1680, %v1950
    %v2193 = vadd.f32 %v1681, %v1953
    %v2194 = vadd.f32 %v1682, %v1956
    %v2195 = vadd.f32 %v1683, %v1959
    %v2196 = vadd.f32 %v1684, %v1962
    %v2197 = vadd.f32 %v1685, %v1965
    %v2198 = vadd.f32 %v1686, %v1968
    %v2199 = vadd.f32 %v1687, %v1971
    %v2200 = vadd.f32 %v1688, %v1974
    %v2201 = vadd.f32 %v1689, %v1977
    %v2202 = vadd.f32 %v1690, %v1980
    %v2203 = vadd.f32 %v1691, %v1983
    %v2204 = vadd.f32 %v1692, %v1986
    %v2205 = vadd.f32 %v1693, %v1989
    %v2206 = vadd.f32 %v1694, %v1992
    %v2207 = vadd.f32 %v1695, %v1995
    %v2208 = vadd.f32 %v1696, %v1998
    %v2209 = vadd.f32 %v1697, %v2001
    %v2210 = vadd.f32 %v1698, %v2004
    %v2211 = vadd.f32 %v1699, %v2007
    %v2212 = vadd.f32 %v1700, %v2010
    %v2213 = vadd.f32 %v1701, %v2013
    %v2214 = vadd.f32 %v1702, %v2016
    %v2215 = vadd.f32 %v1703, %v2019
    %v2216 = vadd.f32 %v1704, %v2022
    %v2217 = vadd.f32 %v1705, %v2025
    %v2218 = vadd.f32 %v1706, %v2028
    %v2219 = vadd.f32 %v1707, %v2031
    %v2220 = vadd.f32 %v1708, %v2034
    %v2221 = vadd.f32 %v1709, %v2037
    %v2222 = vadd.f32 %v1710, %v2040
    %v2223 = vadd.f32 %v1711, %v2043
    %v2224 = vadd.f32 %v1712, %v2046
    %v2225 = vadd.f32 %v1713, %v2049
    %v2226 = vadd.f32 %v1714, %v2052
    %v2227 = vadd.f32 %v1715, %v2055
    %v2228 = vadd.f32 %v1716, %v2058
    %v2229 = vadd.f32 %v1717, %v2061
    %v2230 = vadd.f32 %v1718, %v2064
    %v2231 = vadd.f32 %v1719, %v2067
    %v2232 = vadd.f32 %v1720, %v2070
    %v2233 = vadd.f32 %v1721, %v2073
    %v2234 = vadd.f32 %v1722, %v2076
    %v2235 = vadd.f32 %v1723, %v2079
    %v2236 = vadd.f32 %v1724, %v2082
    %v2237 = vadd.f32 %v1725, %v2085
    %v2238 = vadd.f32 %v1726, %v2088
    %v2239 = vadd.f32 %v1727, %v2091
    %v2240 = vadd.f32 %v1728, %v2094
    %v2241 = vadd.f32 %v1729, %v2097
    %v2242 = vadd.f32 %v1730, %v2100
    %v2243 = vadd.f32 %v1731, %v2103
    %v2244 = vadd.f32 %v1732, %v2106
    %v2245 = vadd.f32 %v1733, %v2109
    %v2246 = vadd.f32 %v1734, %v2112
    %v2247 = vadd.f32 %v1735, %v2115
    %v2248 = vadd.f32 %v1736, %v2118
    %v2249 = vadd.f32 %v1737, %v2121
    %vm2250 = vcmask 7168
    %2251 = vst.msk [vmem:[%s3] sm:$0xff] %vm2250, %v2122
    %2252 = vst.msk [vmem:[%s3 + $0x8] sm:$0xff] %vm2250, %v2123
    %2253 = vst.msk [vmem:[%s3 + $0x10] sm:$0xff] %vm2250, %v2124
    %2254 = vst.msk [vmem:[%s3 + $0x18] sm:$0xff] %vm2250, %v2125
    %2255 = vst.msk [vmem:[%s3 + $0x20] sm:$0xff] %vm2250, %v2126
    %2256 = vst.msk [vmem:[%s3 + $0x28] sm:$0xff] %vm2250, %v2127
    %2257 = vst.msk [vmem:[%s3 + $0x30] sm:$0xff] %vm2250, %v2128
    %2258 = vst.msk [vmem:[%s3 + $0x38] sm:$0xff] %vm2250, %v2129
    %2259 = vst.msk [vmem:[%s3 + $0x40] sm:$0xff] %vm2250, %v2130
    %2260 = vst.msk [vmem:[%s3 + $0x48] sm:$0xff] %vm2250, %v2131
    %2261 = vst.msk [vmem:[%s3 + $0x50] sm:$0xff] %vm2250, %v2132
    %2262 = vst.msk [vmem:[%s3 + $0x58] sm:$0xff] %vm2250, %v2133
    %2263 = vst.msk [vmem:[%s3 + $0x60] sm:$0xff] %vm2250, %v2134
    %2264 = vst.msk [vmem:[%s3 + $0x68] sm:$0xff] %vm2250, %v2135
    %2265 = vst.msk [vmem:[%s3 + $0x70] sm:$0xff] %vm2250, %v2136
    %2266 = vst.msk [vmem:[%s3 + $0x78] sm:$0xff] %vm2250, %v2137
    %2267 = vst.msk [vmem:[%s3 + $0x80] sm:$0xff] %vm2250, %v2138
    %2268 = vst.msk [vmem:[%s3 + $0x88] sm:$0xff] %vm2250, %v2139
    %2269 = vst.msk [vmem:[%s3 + $0x90] sm:$0xff] %vm2250, %v2140
    %2270 = vst.msk [vmem:[%s3 + $0x98] sm:$0xff] %vm2250, %v2141
    %2271 = vst.msk [vmem:[%s3 + $0xa0] sm:$0xff] %vm2250, %v2142
    %2272 = vst.msk [vmem:[%s3 + $0xa8] sm:$0xff] %vm2250, %v2143
    %2273 = vst.msk [vmem:[%s3 + $0xb0] sm:$0xff] %vm2250, %v2144
    %2274 = vst.msk [vmem:[%s3 + $0xb8] sm:$0xff] %vm2250, %v2145
    %2275 = vst.msk [vmem:[%s3 + $0xc0] sm:$0xff] %vm2250, %v2146
    %2276 = vst.msk [vmem:[%s3 + $0xc8] sm:$0xff] %vm2250, %v2147
    %2277 = vst.msk [vmem:[%s3 + $0xd0] sm:$0xff] %vm2250, %v2148
    %2278 = vst.msk [vmem:[%s3 + $0xd8] sm:$0xff] %vm2250, %v2149
    %2279 = vst.msk [vmem:[%s3 + $0xe0] sm:$0xff] %vm2250, %v2150
    %2280 = vst.msk [vmem:[%s3 + $0xe8] sm:$0xff] %vm2250, %v2151
    %2281 = vst.msk [vmem:[%s3 + $0xf0] sm:$0xff] %vm2250, %v2152
    %2282 = vst.msk [vmem:[%s3 + $0xf8] sm:$0xff] %vm2250, %v2153
    %2283 = vst.msk [vmem:[%s3 + $0x100] sm:$0xff] %vm2250, %v2154
    %2284 = vst.msk [vmem:[%s3 + $0x108] sm:$0xff] %vm2250, %v2155
    %2285 = vst.msk [vmem:[%s3 + $0x110] sm:$0xff] %vm2250, %v2156
    %2286 = vst.msk [vmem:[%s3 + $0x118] sm:$0xff] %vm2250, %v2157
    %2287 = vst.msk [vmem:[%s3 + $0x120] sm:$0xff] %vm2250, %v2158
    %2288 = vst.msk [vmem:[%s3 + $0x128] sm:$0xff] %vm2250, %v2159
    %2289 = vst.msk [vmem:[%s3 + $0x130] sm:$0xff] %vm2250, %v2160
    %2290 = vst.msk [vmem:[%s3 + $0x138] sm:$0xff] %vm2250, %v2161
    %2291 = vst.msk [vmem:[%s3 + $0x140] sm:$0xff] %vm2250, %v2162
    %2292 = vst.msk [vmem:[%s3 + $0x148] sm:$0xff] %vm2250, %v2163
    %2293 = vst.msk [vmem:[%s3 + $0x150] sm:$0xff] %vm2250, %v2164
    %2294 = vst.msk [vmem:[%s3 + $0x158] sm:$0xff] %vm2250, %v2165
    %2295 = vst.msk [vmem:[%s3 + $0x160] sm:$0xff] %vm2250, %v2166
    %2296 = vst.msk [vmem:[%s3 + $0x168] sm:$0xff] %vm2250, %v2167
    %2297 = vst.msk [vmem:[%s3 + $0x170] sm:$0xff] %vm2250, %v2168
    %2298 = vst.msk [vmem:[%s3 + $0x178] sm:$0xff] %vm2250, %v2169
    %2299 = vst.msk [vmem:[%s3 + $0x180] sm:$0xff] %vm2250, %v2170
    %2300 = vst.msk [vmem:[%s3 + $0x188] sm:$0xff] %vm2250, %v2171
    %2301 = vst.msk [vmem:[%s3 + $0x190] sm:$0xff] %vm2250, %v2172
    %2302 = vst.msk [vmem:[%s3 + $0x198] sm:$0xff] %vm2250, %v2173
    %2303 = vst.msk [vmem:[%s3 + $0x1a0] sm:$0xff] %vm2250, %v2174
    %2304 = vst.msk [vmem:[%s3 + $0x1a8] sm:$0xff] %vm2250, %v2175
    %2305 = vst.msk [vmem:[%s3 + $0x1b0] sm:$0xff] %vm2250, %v2176
    %2306 = vst.msk [vmem:[%s3 + $0x1b8] sm:$0xff] %vm2250, %v2177
    %2307 = vst.msk [vmem:[%s3 + $0x1c0] sm:$0xff] %vm2250, %v2178
    %2308 = vst.msk [vmem:[%s3 + $0x1c8] sm:$0xff] %vm2250, %v2179
    %2309 = vst.msk [vmem:[%s3 + $0x1d0] sm:$0xff] %vm2250, %v2180
    %2310 = vst.msk [vmem:[%s3 + $0x1d8] sm:$0xff] %vm2250, %v2181
    %2311 = vst.msk [vmem:[%s3 + $0x1e0] sm:$0xff] %vm2250, %v2182
    %2312 = vst.msk [vmem:[%s3 + $0x1e8] sm:$0xff] %vm2250, %v2183
    %2313 = vst.msk [vmem:[%s3 + $0x1f0] sm:$0xff] %vm2250, %v2184
    %2314 = vst.msk [vmem:[%s3 + $0x1f8] sm:$0xff] %vm2250, %v2185
    %2315 = vst.msk [vmem:[%s3 + $0x200] sm:$0xff] %vm2250, %v2186
    %2316 = vst.msk [vmem:[%s3 + $0x208] sm:$0xff] %vm2250, %v2187
    %2317 = vst.msk [vmem:[%s3 + $0x210] sm:$0xff] %vm2250, %v2188
    %2318 = vst.msk [vmem:[%s3 + $0x218] sm:$0xff] %vm2250, %v2189
    %2319 = vst.msk [vmem:[%s3 + $0x220] sm:$0xff] %vm2250, %v2190
    %2320 = vst.msk [vmem:[%s3 + $0x228] sm:$0xff] %vm2250, %v2191
    %2321 = vst.msk [vmem:[%s3 + $0x230] sm:$0xff] %vm2250, %v2192
    %2322 = vst.msk [vmem:[%s3 + $0x238] sm:$0xff] %vm2250, %v2193
    %2323 = vst.msk [vmem:[%s3 + $0x240] sm:$0xff] %vm2250, %v2194
    %2324 = vst.msk [vmem:[%s3 + $0x248] sm:$0xff] %vm2250, %v2195
    %2325 = vst.msk [vmem:[%s3 + $0x250] sm:$0xff] %vm2250, %v2196
    %2326 = vst.msk [vmem:[%s3 + $0x258] sm:$0xff] %vm2250, %v2197
    %2327 = vst.msk [vmem:[%s3 + $0x260] sm:$0xff] %vm2250, %v2198
    %2328 = vst.msk [vmem:[%s3 + $0x268] sm:$0xff] %vm2250, %v2199
    %2329 = vst.msk [vmem:[%s3 + $0x270] sm:$0xff] %vm2250, %v2200
    %2330 = vst.msk [vmem:[%s3 + $0x278] sm:$0xff] %vm2250, %v2201
    %2331 = vst.msk [vmem:[%s3 + $0x280] sm:$0xff] %vm2250, %v2202
    %2332 = vst.msk [vmem:[%s3 + $0x288] sm:$0xff] %vm2250, %v2203
    %2333 = vst.msk [vmem:[%s3 + $0x290] sm:$0xff] %vm2250, %v2204
    %2334 = vst.msk [vmem:[%s3 + $0x298] sm:$0xff] %vm2250, %v2205
    %2335 = vst.msk [vmem:[%s3 + $0x2a0] sm:$0xff] %vm2250, %v2206
    %2336 = vst.msk [vmem:[%s3 + $0x2a8] sm:$0xff] %vm2250, %v2207
    %2337 = vst.msk [vmem:[%s3 + $0x2b0] sm:$0xff] %vm2250, %v2208
    %2338 = vst.msk [vmem:[%s3 + $0x2b8] sm:$0xff] %vm2250, %v2209
    %2339 = vst.msk [vmem:[%s3 + $0x2c0] sm:$0xff] %vm2250, %v2210
    %2340 = vst.msk [vmem:[%s3 + $0x2c8] sm:$0xff] %vm2250, %v2211
    %2341 = vst.msk [vmem:[%s3 + $0x2d0] sm:$0xff] %vm2250, %v2212
    %2342 = vst.msk [vmem:[%s3 + $0x2d8] sm:$0xff] %vm2250, %v2213
    %2343 = vst.msk [vmem:[%s3 + $0x2e0] sm:$0xff] %vm2250, %v2214
    %2344 = vst.msk [vmem:[%s3 + $0x2e8] sm:$0xff] %vm2250, %v2215
    %2345 = vst.msk [vmem:[%s3 + $0x2f0] sm:$0xff] %vm2250, %v2216
    %2346 = vst.msk [vmem:[%s3 + $0x2f8] sm:$0xff] %vm2250, %v2217
    %2347 = vst.msk [vmem:[%s3 + $0x300] sm:$0xff] %vm2250, %v2218
    %2348 = vst.msk [vmem:[%s3 + $0x308] sm:$0xff] %vm2250, %v2219
    %2349 = vst.msk [vmem:[%s3 + $0x310] sm:$0xff] %vm2250, %v2220
    %2350 = vst.msk [vmem:[%s3 + $0x318] sm:$0xff] %vm2250, %v2221
    %2351 = vst.msk [vmem:[%s3 + $0x320] sm:$0xff] %vm2250, %v2222
    %2352 = vst.msk [vmem:[%s3 + $0x328] sm:$0xff] %vm2250, %v2223
    %2353 = vst.msk [vmem:[%s3 + $0x330] sm:$0xff] %vm2250, %v2224
    %2354 = vst.msk [vmem:[%s3 + $0x338] sm:$0xff] %vm2250, %v2225
    %2355 = vst.msk [vmem:[%s3 + $0x340] sm:$0xff] %vm2250, %v2226
    %2356 = vst.msk [vmem:[%s3 + $0x348] sm:$0xff] %vm2250, %v2227
    %2357 = vst.msk [vmem:[%s3 + $0x350] sm:$0xff] %vm2250, %v2228
    %2358 = vst.msk [vmem:[%s3 + $0x358] sm:$0xff] %vm2250, %v2229
    %2359 = vst.msk [vmem:[%s3 + $0x360] sm:$0xff] %vm2250, %v2230
    %2360 = vst.msk [vmem:[%s3 + $0x368] sm:$0xff] %vm2250, %v2231
    %2361 = vst.msk [vmem:[%s3 + $0x370] sm:$0xff] %vm2250, %v2232
    %2362 = vst.msk [vmem:[%s3 + $0x378] sm:$0xff] %vm2250, %v2233
    %2363 = vst.msk [vmem:[%s3 + $0x380] sm:$0xff] %vm2250, %v2234
    %2364 = vst.msk [vmem:[%s3 + $0x388] sm:$0xff] %vm2250, %v2235
    %2365 = vst.msk [vmem:[%s3 + $0x390] sm:$0xff] %vm2250, %v2236
    %2366 = vst.msk [vmem:[%s3 + $0x398] sm:$0xff] %vm2250, %v2237
    %2367 = vst.msk [vmem:[%s3 + $0x3a0] sm:$0xff] %vm2250, %v2238
    %2368 = vst.msk [vmem:[%s3 + $0x3a8] sm:$0xff] %vm2250, %v2239
    %2369 = vst.msk [vmem:[%s3 + $0x3b0] sm:$0xff] %vm2250, %v2240
    %2370 = vst.msk [vmem:[%s3 + $0x3b8] sm:$0xff] %vm2250, %v2241
    %2371 = vst.msk [vmem:[%s3 + $0x3c0] sm:$0xff] %vm2250, %v2242
    %2372 = vst.msk [vmem:[%s3 + $0x3c8] sm:$0xff] %vm2250, %v2243
    %2373 = vst.msk [vmem:[%s3 + $0x3d0] sm:$0xff] %vm2250, %v2244
    %2374 = vst.msk [vmem:[%s3 + $0x3d8] sm:$0xff] %vm2250, %v2245
    %2375 = vst.msk [vmem:[%s3 + $0x3e0] sm:$0xff] %vm2250, %v2246
    %2376 = vst.msk [vmem:[%s3 + $0x3e8] sm:$0xff] %vm2250, %v2247
    %2377 = vst.msk [vmem:[%s3 + $0x3f0] sm:$0xff] %vm2250, %v2248
    %2378 = vst.msk [vmem:[%s3 + $0x3f8] sm:$0xff] %vm2250, %v2249
    %v2379 = vld [vmem:[%s4] sm:$0xff]
    %v2380 = vld [vmem:[%s4 + $0x8] sm:$0xff]
    %v2381 = vld [vmem:[%s4 + $0x10] sm:$0xff]
    %v2382 = vld [vmem:[%s4 + $0x18] sm:$0xff]
    %v2383 = vld [vmem:[%s4 + $0x20] sm:$0xff]
    %v2384 = vld [vmem:[%s4 + $0x28] sm:$0xff]
    %v2385 = vld [vmem:[%s4 + $0x30] sm:$0xff]
    %v2386 = vld [vmem:[%s4 + $0x38] sm:$0xff]
    %v2387 = vld [vmem:[%s4 + $0x40] sm:$0xff]
    %v2388 = vld [vmem:[%s4 + $0x48] sm:$0xff]
    %v2389 = vld [vmem:[%s4 + $0x50] sm:$0xff]
    %v2390 = vld [vmem:[%s4 + $0x58] sm:$0xff]
    %v2391 = vld [vmem:[%s4 + $0x60] sm:$0xff]
    %v2392 = vld [vmem:[%s4 + $0x68] sm:$0xff]
    %v2393 = vld [vmem:[%s4 + $0x70] sm:$0xff]
    %v2394 = vld [vmem:[%s4 + $0x78] sm:$0xff]
    %v2395 = vld [vmem:[%s4 + $0x80] sm:$0xff]
    %v2396 = vld [vmem:[%s4 + $0x88] sm:$0xff]
    %v2397 = vld [vmem:[%s4 + $0x90] sm:$0xff]
    %v2398 = vld [vmem:[%s4 + $0x98] sm:$0xff]
    %v2399 = vld [vmem:[%s4 + $0xa0] sm:$0xff]
    %v2400 = vld [vmem:[%s4 + $0xa8] sm:$0xff]
    %v2401 = vld [vmem:[%s4 + $0xb0] sm:$0xff]
    %v2402 = vld [vmem:[%s4 + $0xb8] sm:$0xff]
    %v2403 = vld [vmem:[%s4 + $0xc0] sm:$0xff]
    %v2404 = vld [vmem:[%s4 + $0xc8] sm:$0xff]
    %v2405 = vld [vmem:[%s4 + $0xd0] sm:$0xff]
    %v2406 = vld [vmem:[%s4 + $0xd8] sm:$0xff]
    %v2407 = vld [vmem:[%s4 + $0xe0] sm:$0xff]
    %v2408 = vld [vmem:[%s4 + $0xe8] sm:$0xff]
    %v2409 = vld [vmem:[%s4 + $0xf0] sm:$0xff]
    %v2410 = vld [vmem:[%s4 + $0xf8] sm:$0xff]
    %v2411 = vld [vmem:[%s4 + $0x100] sm:$0xff]
    %v2412 = vld [vmem:[%s4 + $0x108] sm:$0xff]
    %v2413 = vld [vmem:[%s4 + $0x110] sm:$0xff]
    %v2414 = vld [vmem:[%s4 + $0x118] sm:$0xff]
    %v2415 = vld [vmem:[%s4 + $0x120] sm:$0xff]
    %v2416 = vld [vmem:[%s4 + $0x128] sm:$0xff]
    %v2417 = vld [vmem:[%s4 + $0x130] sm:$0xff]
    %v2418 = vld [vmem:[%s4 + $0x138] sm:$0xff]
    %v2419 = vld [vmem:[%s4 + $0x140] sm:$0xff]
    %v2420 = vld [vmem:[%s4 + $0x148] sm:$0xff]
    %v2421 = vld [vmem:[%s4 + $0x150] sm:$0xff]
    %v2422 = vld [vmem:[%s4 + $0x158] sm:$0xff]
    %v2423 = vld [vmem:[%s4 + $0x160] sm:$0xff]
    %v2424 = vld [vmem:[%s4 + $0x168] sm:$0xff]
    %v2425 = vld [vmem:[%s4 + $0x170] sm:$0xff]
    %v2426 = vld [vmem:[%s4 + $0x178] sm:$0xff]
    %v2427 = vld [vmem:[%s4 + $0x180] sm:$0xff]
    %v2428 = vld [vmem:[%s4 + $0x188] sm:$0xff]
    %v2429 = vld [vmem:[%s4 + $0x190] sm:$0xff]
    %v2430 = vld [vmem:[%s4 + $0x198] sm:$0xff]
    %v2431 = vld [vmem:[%s4 + $0x1a0] sm:$0xff]
    %v2432 = vld [vmem:[%s4 + $0x1a8] sm:$0xff]
    %v2433 = vld [vmem:[%s4 + $0x1b0] sm:$0xff]
    %v2434 = vld [vmem:[%s4 + $0x1b8] sm:$0xff]
    %v2435 = vld [vmem:[%s4 + $0x1c0] sm:$0xff]
    %v2436 = vld [vmem:[%s4 + $0x1c8] sm:$0xff]
    %v2437 = vld [vmem:[%s4 + $0x1d0] sm:$0xff]
    %v2438 = vld [vmem:[%s4 + $0x1d8] sm:$0xff]
    %v2439 = vld [vmem:[%s4 + $0x1e0] sm:$0xff]
    %v2440 = vld [vmem:[%s4 + $0x1e8] sm:$0xff]
    %v2441 = vld [vmem:[%s4 + $0x1f0] sm:$0xff]
    %v2442 = vld [vmem:[%s4 + $0x1f8] sm:$0xff]
    %v2443 = vld [vmem:[%s4 + $0x200] sm:$0xff]
    %v2444 = vld [vmem:[%s4 + $0x208] sm:$0xff]
    %v2445 = vld [vmem:[%s4 + $0x210] sm:$0xff]
    %v2446 = vld [vmem:[%s4 + $0x218] sm:$0xff]
    %v2447 = vld [vmem:[%s4 + $0x220] sm:$0xff]
    %v2448 = vld [vmem:[%s4 + $0x228] sm:$0xff]
    %v2449 = vld [vmem:[%s4 + $0x230] sm:$0xff]
    %v2450 = vld [vmem:[%s4 + $0x238] sm:$0xff]
    %v2451 = vld [vmem:[%s4 + $0x240] sm:$0xff]
    %v2452 = vld [vmem:[%s4 + $0x248] sm:$0xff]
    %v2453 = vld [vmem:[%s4 + $0x250] sm:$0xff]
    %v2454 = vld [vmem:[%s4 + $0x258] sm:$0xff]
    %v2455 = vld [vmem:[%s4 + $0x260] sm:$0xff]
    %v2456 = vld [vmem:[%s4 + $0x268] sm:$0xff]
    %v2457 = vld [vmem:[%s4 + $0x270] sm:$0xff]
    %v2458 = vld [vmem:[%s4 + $0x278] sm:$0xff]
    %v2459 = vld [vmem:[%s4 + $0x280] sm:$0xff]
    %v2460 = vld [vmem:[%s4 + $0x288] sm:$0xff]
    %v2461 = vld [vmem:[%s4 + $0x290] sm:$0xff]
    %v2462 = vld [vmem:[%s4 + $0x298] sm:$0xff]
    %v2463 = vld [vmem:[%s4 + $0x2a0] sm:$0xff]
    %v2464 = vld [vmem:[%s4 + $0x2a8] sm:$0xff]
    %v2465 = vld [vmem:[%s4 + $0x2b0] sm:$0xff]
    %v2466 = vld [vmem:[%s4 + $0x2b8] sm:$0xff]
    %v2467 = vld [vmem:[%s4 + $0x2c0] sm:$0xff]
    %v2468 = vld [vmem:[%s4 + $0x2c8] sm:$0xff]
    %v2469 = vld [vmem:[%s4 + $0x2d0] sm:$0xff]
    %v2470 = vld [vmem:[%s4 + $0x2d8] sm:$0xff]
    %v2471 = vld [vmem:[%s4 + $0x2e0] sm:$0xff]
    %v2472 = vld [vmem:[%s4 + $0x2e8] sm:$0xff]
    %v2473 = vld [vmem:[%s4 + $0x2f0] sm:$0xff]
    %v2474 = vld [vmem:[%s4 + $0x2f8] sm:$0xff]
    %v2475 = vld [vmem:[%s4 + $0x300] sm:$0xff]
    %v2476 = vld [vmem:[%s4 + $0x308] sm:$0xff]
    %v2477 = vld [vmem:[%s4 + $0x310] sm:$0xff]
    %v2478 = vld [vmem:[%s4 + $0x318] sm:$0xff]
    %v2479 = vld [vmem:[%s4 + $0x320] sm:$0xff]
    %v2480 = vld [vmem:[%s4 + $0x328] sm:$0xff]
    %v2481 = vld [vmem:[%s4 + $0x330] sm:$0xff]
    %v2482 = vld [vmem:[%s4 + $0x338] sm:$0xff]
    %v2483 = vld [vmem:[%s4 + $0x340] sm:$0xff]
    %v2484 = vld [vmem:[%s4 + $0x348] sm:$0xff]
    %v2485 = vld [vmem:[%s4 + $0x350] sm:$0xff]
    %v2486 = vld [vmem:[%s4 + $0x358] sm:$0xff]
    %v2487 = vld [vmem:[%s4 + $0x360] sm:$0xff]
    %v2488 = vld [vmem:[%s4 + $0x368] sm:$0xff]
    %v2489 = vld [vmem:[%s4 + $0x370] sm:$0xff]
    %v2490 = vld [vmem:[%s4 + $0x378] sm:$0xff]
    %v2491 = vld [vmem:[%s4 + $0x380] sm:$0xff]
    %v2492 = vld [vmem:[%s4 + $0x388] sm:$0xff]
    %v2493 = vld [vmem:[%s4 + $0x390] sm:$0xff]
    %v2494 = vld [vmem:[%s4 + $0x398] sm:$0xff]
    %v2495 = vld [vmem:[%s4 + $0x3a0] sm:$0xff]
    %v2496 = vld [vmem:[%s4 + $0x3a8] sm:$0xff]
    %v2497 = vld [vmem:[%s4 + $0x3b0] sm:$0xff]
    %v2498 = vld [vmem:[%s4 + $0x3b8] sm:$0xff]
    %v2499 = vld [vmem:[%s4 + $0x3c0] sm:$0xff]
    %v2500 = vld [vmem:[%s4 + $0x3c8] sm:$0xff]
    %v2501 = vld [vmem:[%s4 + $0x3d0] sm:$0xff]
    %v2502 = vld [vmem:[%s4 + $0x3d8] sm:$0xff]
    %v2503 = vld [vmem:[%s4 + $0x3e0] sm:$0xff]
    %v2504 = vld [vmem:[%s4 + $0x3e8] sm:$0xff]
    %v2505 = vld [vmem:[%s4 + $0x3f0] sm:$0xff]
    %v2506 = vld [vmem:[%s4 + $0x3f8] sm:$0xff]
    %v2507 = vmul.f32 %v710, %v710
    %v2508 = vmul.f32 %v713, %v713
    %v2509 = vmul.f32 %v718, %v718
    %v2510 = vmul.f32 %v721, %v721
    %v2511 = vmul.f32 %v726, %v726
    %v2512 = vmul.f32 %v729, %v729
    %v2513 = vmul.f32 %v734, %v734
    %v2514 = vmul.f32 %v737, %v737
    %v2515 = vmul.f32 %v742, %v742
    %v2516 = vmul.f32 %v745, %v745
    %v2517 = vmul.f32 %v750, %v750
    %v2518 = vmul.f32 %v753, %v753
    %v2519 = vmul.f32 %v758, %v758
    %v2520 = vmul.f32 %v761, %v761
    %v2521 = vmul.f32 %v766, %v766
    %v2522 = vmul.f32 %v769, %v769
    %v2523 = vmul.f32 %v774, %v774
    %v2524 = vmul.f32 %v777, %v777
    %v2525 = vmul.f32 %v782, %v782
    %v2526 = vmul.f32 %v785, %v785
    %v2527 = vmul.f32 %v790, %v790
    %v2528 = vmul.f32 %v793, %v793
    %v2529 = vmul.f32 %v798, %v798
    %v2530 = vmul.f32 %v801, %v801
    %v2531 = vmul.f32 %v806, %v806
    %v2532 = vmul.f32 %v809, %v809
    %v2533 = vmul.f32 %v814, %v814
    %v2534 = vmul.f32 %v817, %v817
    %v2535 = vmul.f32 %v822, %v822
    %v2536 = vmul.f32 %v825, %v825
    %v2537 = vmul.f32 %v830, %v830
    %v2538 = vmul.f32 %v833, %v833
    %v2539 = vmul.f32 %v838, %v838
    %v2540 = vmul.f32 %v841, %v841
    %v2541 = vmul.f32 %v846, %v846
    %v2542 = vmul.f32 %v849, %v849
    %v2543 = vmul.f32 %v854, %v854
    %v2544 = vmul.f32 %v857, %v857
    %v2545 = vmul.f32 %v862, %v862
    %v2546 = vmul.f32 %v865, %v865
    %v2547 = vmul.f32 %v870, %v870
    %v2548 = vmul.f32 %v873, %v873
    %v2549 = vmul.f32 %v878, %v878
    %v2550 = vmul.f32 %v881, %v881
    %v2551 = vmul.f32 %v886, %v886
    %v2552 = vmul.f32 %v889, %v889
    %v2553 = vmul.f32 %v894, %v894
    %v2554 = vmul.f32 %v897, %v897
    %v2555 = vmul.f32 %v902, %v902
    %v2556 = vmul.f32 %v905, %v905
    %v2557 = vmul.f32 %v910, %v910
    %v2558 = vmul.f32 %v913, %v913
    %v2559 = vmul.f32 %v918, %v918
    %v2560 = vmul.f32 %v921, %v921
    %v2561 = vmul.f32 %v926, %v926
    %v2562 = vmul.f32 %v929, %v929
    %v2563 = vmul.f32 %v934, %v934
    %v2564 = vmul.f32 %v937, %v937
    %v2565 = vmul.f32 %v942, %v942
    %v2566 = vmul.f32 %v945, %v945
    %v2567 = vmul.f32 %v950, %v950
    %v2568 = vmul.f32 %v953, %v953
    %v2569 = vmul.f32 %v958, %v958
    %v2570 = vmul.f32 %v961, %v961
    %v2571 = vmul.f32 %v966, %v966
    %v2572 = vmul.f32 %v969, %v969
    %v2573 = vmul.f32 %v974, %v974
    %v2574 = vmul.f32 %v977, %v977
    %v2575 = vmul.f32 %v982, %v982
    %v2576 = vmul.f32 %v985, %v985
    %v2577 = vmul.f32 %v990, %v990
    %v2578 = vmul.f32 %v993, %v993
    %v2579 = vmul.f32 %v998, %v998
    %v2580 = vmul.f32 %v1001, %v1001
    %v2581 = vmul.f32 %v1006, %v1006
    %v2582 = vmul.f32 %v1009, %v1009
    %v2583 = vmul.f32 %v1014, %v1014
    %v2584 = vmul.f32 %v1017, %v1017
    %v2585 = vmul.f32 %v1022, %v1022
    %v2586 = vmul.f32 %v1025, %v1025
    %v2587 = vmul.f32 %v1030, %v1030
    %v2588 = vmul.f32 %v1033, %v1033
    %v2589 = vmul.f32 %v1038, %v1038
    %v2590 = vmul.f32 %v1041, %v1041
    %v2591 = vmul.f32 %v1046, %v1046
    %v2592 = vmul.f32 %v1049, %v1049
    %v2593 = vmul.f32 %v1054, %v1054
    %v2594 = vmul.f32 %v1057, %v1057
    %v2595 = vmul.f32 %v1062, %v1062
    %v2596 = vmul.f32 %v1065, %v1065
    %v2597 = vmul.f32 %v1070, %v1070
    %v2598 = vmul.f32 %v1073, %v1073
    %v2599 = vmul.f32 %v1078, %v1078
    %v2600 = vmul.f32 %v1081, %v1081
    %v2601 = vmul.f32 %v1086, %v1086
    %v2602 = vmul.f32 %v1089, %v1089
    %v2603 = vmul.f32 %v1094, %v1094
    %v2604 = vmul.f32 %v1097, %v1097
    %v2605 = vmul.f32 %v1102, %v1102
    %v2606 = vmul.f32 %v1105, %v1105
    %v2607 = vmul.f32 %v1110, %v1110
    %v2608 = vmul.f32 %v1113, %v1113
    %v2609 = vmul.f32 %v1118, %v1118
    %v2610 = vmul.f32 %v1121, %v1121
    %v2611 = vmul.f32 %v1126, %v1126
    %v2612 = vmul.f32 %v1129, %v1129
    %v2613 = vmul.f32 %v1134, %v1134
    %v2614 = vmul.f32 %v1137, %v1137
    %v2615 = vmul.f32 %v1142, %v1142
    %v2616 = vmul.f32 %v1145, %v1145
    %v2617 = vmul.f32 %v1150, %v1150
    %v2618 = vmul.f32 %v1153, %v1153
    %v2619 = vmul.f32 %v1158, %v1158
    %v2620 = vmul.f32 %v1161, %v1161
    %v2621 = vmul.f32 %v1166, %v1166
    %v2622 = vmul.f32 %v1169, %v1169
    %v2623 = vmul.f32 %v1174, %v1174
    %v2624 = vmul.f32 %v1177, %v1177
    %v2625 = vmul.f32 %v1182, %v1182
    %v2626 = vmul.f32 %v1185, %v1185
    %v2627 = vmul.f32 %v1190, %v1190
    %v2628 = vmul.f32 %v1193, %v1193
    %v2629 = vmul.f32 %v1198, %v1198
    %v2630 = vmul.f32 %v1201, %v1201
    %v2631 = vmul.f32 %v1206, %v1206
    %v2632 = vmul.f32 %v1209, %v1209
    %v2633 = vmul.f32 %v1214, %v1214
    %v2634 = vmul.f32 %v1217, %v1217
    %v2635 = vsel %vm1220, %v2507, 0.0
    %2636 = vadd.xlane.f32.xlu0 %v2635
    %v2637 = vpop.xlane.xlu0 %2636
    %v2638 = vsel %vm1220, %v2508, 0.0
    %2639 = vadd.xlane.f32.xlu0 %v2638
    %v2640 = vpop.xlane.xlu0 %2639
    %v2641 = vsel %vm1220, %v2509, 0.0
    %2642 = vadd.xlane.f32.xlu0 %v2641
    %v2643 = vpop.xlane.xlu0 %2642
    %v2644 = vsel %vm1220, %v2510, 0.0
    %2645 = vadd.xlane.f32.xlu0 %v2644
    %v2646 = vpop.xlane.xlu0 %2645
    %v2647 = vsel %vm1220, %v2511, 0.0
    %2648 = vadd.xlane.f32.xlu0 %v2647
    %v2649 = vpop.xlane.xlu0 %2648
    %v2650 = vsel %vm1220, %v2512, 0.0
    %2651 = vadd.xlane.f32.xlu0 %v2650
    %v2652 = vpop.xlane.xlu0 %2651
    %v2653 = vsel %vm1220, %v2513, 0.0
    %2654 = vadd.xlane.f32.xlu0 %v2653
    %v2655 = vpop.xlane.xlu0 %2654
    %v2656 = vsel %vm1220, %v2514, 0.0
    %2657 = vadd.xlane.f32.xlu0 %v2656
    %v2658 = vpop.xlane.xlu0 %2657
    %v2659 = vsel %vm1220, %v2515, 0.0
    %2660 = vadd.xlane.f32.xlu0 %v2659
    %v2661 = vpop.xlane.xlu0 %2660
    %v2662 = vsel %vm1220, %v2516, 0.0
    %2663 = vadd.xlane.f32.xlu0 %v2662
    %v2664 = vpop.xlane.xlu0 %2663
    %v2665 = vsel %vm1220, %v2517, 0.0
    %2666 = vadd.xlane.f32.xlu0 %v2665
    %v2667 = vpop.xlane.xlu0 %2666
    %v2668 = vsel %vm1220, %v2518, 0.0
    %2669 = vadd.xlane.f32.xlu0 %v2668
    %v2670 = vpop.xlane.xlu0 %2669
    %v2671 = vsel %vm1220, %v2519, 0.0
    %2672 = vadd.xlane.f32.xlu0 %v2671
    %v2673 = vpop.xlane.xlu0 %2672
    %v2674 = vsel %vm1220, %v2520, 0.0
    %2675 = vadd.xlane.f32.xlu0 %v2674
    %v2676 = vpop.xlane.xlu0 %2675
    %v2677 = vsel %vm1220, %v2521, 0.0
    %2678 = vadd.xlane.f32.xlu0 %v2677
    %v2679 = vpop.xlane.xlu0 %2678
    %v2680 = vsel %vm1220, %v2522, 0.0
    %2681 = vadd.xlane.f32.xlu0 %v2680
    %v2682 = vpop.xlane.xlu0 %2681
    %v2683 = vsel %vm1220, %v2523, 0.0
    %2684 = vadd.xlane.f32.xlu0 %v2683
    %v2685 = vpop.xlane.xlu0 %2684
    %v2686 = vsel %vm1220, %v2524, 0.0
    %2687 = vadd.xlane.f32.xlu0 %v2686
    %v2688 = vpop.xlane.xlu0 %2687
    %v2689 = vsel %vm1220, %v2525, 0.0
    %2690 = vadd.xlane.f32.xlu0 %v2689
    %v2691 = vpop.xlane.xlu0 %2690
    %v2692 = vsel %vm1220, %v2526, 0.0
    %2693 = vadd.xlane.f32.xlu0 %v2692
    %v2694 = vpop.xlane.xlu0 %2693
    %v2695 = vsel %vm1220, %v2527, 0.0
    %2696 = vadd.xlane.f32.xlu0 %v2695
    %v2697 = vpop.xlane.xlu0 %2696
    %v2698 = vsel %vm1220, %v2528, 0.0
    %2699 = vadd.xlane.f32.xlu0 %v2698
    %v2700 = vpop.xlane.xlu0 %2699
    %v2701 = vsel %vm1220, %v2529, 0.0
    %2702 = vadd.xlane.f32.xlu0 %v2701
    %v2703 = vpop.xlane.xlu0 %2702
    %v2704 = vsel %vm1220, %v2530, 0.0
    %2705 = vadd.xlane.f32.xlu0 %v2704
    %v2706 = vpop.xlane.xlu0 %2705
    %v2707 = vsel %vm1220, %v2531, 0.0
    %2708 = vadd.xlane.f32.xlu0 %v2707
    %v2709 = vpop.xlane.xlu0 %2708
    %v2710 = vsel %vm1220, %v2532, 0.0
    %2711 = vadd.xlane.f32.xlu0 %v2710
    %v2712 = vpop.xlane.xlu0 %2711
    %v2713 = vsel %vm1220, %v2533, 0.0
    %2714 = vadd.xlane.f32.xlu0 %v2713
    %v2715 = vpop.xlane.xlu0 %2714
    %v2716 = vsel %vm1220, %v2534, 0.0
    %2717 = vadd.xlane.f32.xlu0 %v2716
    %v2718 = vpop.xlane.xlu0 %2717
    %v2719 = vsel %vm1220, %v2535, 0.0
    %2720 = vadd.xlane.f32.xlu0 %v2719
    %v2721 = vpop.xlane.xlu0 %2720
    %v2722 = vsel %vm1220, %v2536, 0.0
    %2723 = vadd.xlane.f32.xlu0 %v2722
    %v2724 = vpop.xlane.xlu0 %2723
    %v2725 = vsel %vm1220, %v2537, 0.0
    %2726 = vadd.xlane.f32.xlu0 %v2725
    %v2727 = vpop.xlane.xlu0 %2726
    %v2728 = vsel %vm1220, %v2538, 0.0
    %2729 = vadd.xlane.f32.xlu0 %v2728
    %v2730 = vpop.xlane.xlu0 %2729
    %v2731 = vsel %vm1220, %v2539, 0.0
    %2732 = vadd.xlane.f32.xlu0 %v2731
    %v2733 = vpop.xlane.xlu0 %2732
    %v2734 = vsel %vm1220, %v2540, 0.0
    %2735 = vadd.xlane.f32.xlu0 %v2734
    %v2736 = vpop.xlane.xlu0 %2735
    %v2737 = vsel %vm1220, %v2541, 0.0
    %2738 = vadd.xlane.f32.xlu0 %v2737
    %v2739 = vpop.xlane.xlu0 %2738
    %v2740 = vsel %vm1220, %v2542, 0.0
    %2741 = vadd.xlane.f32.xlu0 %v2740
    %v2742 = vpop.xlane.xlu0 %2741
    %v2743 = vsel %vm1220, %v2543, 0.0
    %2744 = vadd.xlane.f32.xlu0 %v2743
    %v2745 = vpop.xlane.xlu0 %2744
    %v2746 = vsel %vm1220, %v2544, 0.0
    %2747 = vadd.xlane.f32.xlu0 %v2746
    %v2748 = vpop.xlane.xlu0 %2747
    %v2749 = vsel %vm1220, %v2545, 0.0
    %2750 = vadd.xlane.f32.xlu0 %v2749
    %v2751 = vpop.xlane.xlu0 %2750
    %v2752 = vsel %vm1220, %v2546, 0.0
    %2753 = vadd.xlane.f32.xlu0 %v2752
    %v2754 = vpop.xlane.xlu0 %2753
    %v2755 = vsel %vm1220, %v2547, 0.0
    %2756 = vadd.xlane.f32.xlu0 %v2755
    %v2757 = vpop.xlane.xlu0 %2756
    %v2758 = vsel %vm1220, %v2548, 0.0
    %2759 = vadd.xlane.f32.xlu0 %v2758
    %v2760 = vpop.xlane.xlu0 %2759
    %v2761 = vsel %vm1220, %v2549, 0.0
    %2762 = vadd.xlane.f32.xlu0 %v2761
    %v2763 = vpop.xlane.xlu0 %2762
    %v2764 = vsel %vm1220, %v2550, 0.0
    %2765 = vadd.xlane.f32.xlu0 %v2764
    %v2766 = vpop.xlane.xlu0 %2765
    %v2767 = vsel %vm1220, %v2551, 0.0
    %2768 = vadd.xlane.f32.xlu0 %v2767
    %v2769 = vpop.xlane.xlu0 %2768
    %v2770 = vsel %vm1220, %v2552, 0.0
    %2771 = vadd.xlane.f32.xlu0 %v2770
    %v2772 = vpop.xlane.xlu0 %2771
    %v2773 = vsel %vm1220, %v2553, 0.0
    %2774 = vadd.xlane.f32.xlu0 %v2773
    %v2775 = vpop.xlane.xlu0 %2774
    %v2776 = vsel %vm1220, %v2554, 0.0
    %2777 = vadd.xlane.f32.xlu0 %v2776
    %v2778 = vpop.xlane.xlu0 %2777
    %v2779 = vsel %vm1220, %v2555, 0.0
    %2780 = vadd.xlane.f32.xlu0 %v2779
    %v2781 = vpop.xlane.xlu0 %2780
    %v2782 = vsel %vm1220, %v2556, 0.0
    %2783 = vadd.xlane.f32.xlu0 %v2782
    %v2784 = vpop.xlane.xlu0 %2783
    %v2785 = vsel %vm1220, %v2557, 0.0
    %2786 = vadd.xlane.f32.xlu0 %v2785
    %v2787 = vpop.xlane.xlu0 %2786
    %v2788 = vsel %vm1220, %v2558, 0.0
    %2789 = vadd.xlane.f32.xlu0 %v2788
    %v2790 = vpop.xlane.xlu0 %2789
    %v2791 = vsel %vm1220, %v2559, 0.0
    %2792 = vadd.xlane.f32.xlu0 %v2791
    %v2793 = vpop.xlane.xlu0 %2792
    %v2794 = vsel %vm1220, %v2560, 0.0
    %2795 = vadd.xlane.f32.xlu0 %v2794
    %v2796 = vpop.xlane.xlu0 %2795
    %v2797 = vsel %vm1220, %v2561, 0.0
    %2798 = vadd.xlane.f32.xlu0 %v2797
    %v2799 = vpop.xlane.xlu0 %2798
    %v2800 = vsel %vm1220, %v2562, 0.0
    %2801 = vadd.xlane.f32.xlu0 %v2800
    %v2802 = vpop.xlane.xlu0 %2801
    %v2803 = vsel %vm1220, %v2563, 0.0
    %2804 = vadd.xlane.f32.xlu0 %v2803
    %v2805 = vpop.xlane.xlu0 %2804
    %v2806 = vsel %vm1220, %v2564, 0.0
    %2807 = vadd.xlane.f32.xlu0 %v2806
    %v2808 = vpop.xlane.xlu0 %2807
    %v2809 = vsel %vm1220, %v2565, 0.0
    %2810 = vadd.xlane.f32.xlu0 %v2809
    %v2811 = vpop.xlane.xlu0 %2810
    %v2812 = vsel %vm1220, %v2566, 0.0
    %2813 = vadd.xlane.f32.xlu0 %v2812
    %v2814 = vpop.xlane.xlu0 %2813
    %v2815 = vsel %vm1220, %v2567, 0.0
    %2816 = vadd.xlane.f32.xlu0 %v2815
    %v2817 = vpop.xlane.xlu0 %2816
    %v2818 = vsel %vm1220, %v2568, 0.0
    %2819 = vadd.xlane.f32.xlu0 %v2818
    %v2820 = vpop.xlane.xlu0 %2819
    %v2821 = vsel %vm1220, %v2569, 0.0
    %2822 = vadd.xlane.f32.xlu0 %v2821
    %v2823 = vpop.xlane.xlu0 %2822
    %v2824 = vsel %vm1220, %v2570, 0.0
    %2825 = vadd.xlane.f32.xlu0 %v2824
    %v2826 = vpop.xlane.xlu0 %2825
    %v2827 = vsel %vm1220, %v2571, 0.0
    %2828 = vadd.xlane.f32.xlu0 %v2827
    %v2829 = vpop.xlane.xlu0 %2828
    %v2830 = vsel %vm1220, %v2572, 0.0
    %2831 = vadd.xlane.f32.xlu0 %v2830
    %v2832 = vpop.xlane.xlu0 %2831
    %v2833 = vsel %vm1220, %v2573, 0.0
    %2834 = vadd.xlane.f32.xlu0 %v2833
    %v2835 = vpop.xlane.xlu0 %2834
    %v2836 = vsel %vm1220, %v2574, 0.0
    %2837 = vadd.xlane.f32.xlu0 %v2836
    %v2838 = vpop.xlane.xlu0 %2837
    %v2839 = vsel %vm1220, %v2575, 0.0
    %2840 = vadd.xlane.f32.xlu0 %v2839
    %v2841 = vpop.xlane.xlu0 %2840
    %v2842 = vsel %vm1220, %v2576, 0.0
    %2843 = vadd.xlane.f32.xlu0 %v2842
    %v2844 = vpop.xlane.xlu0 %2843
    %v2845 = vsel %vm1220, %v2577, 0.0
    %2846 = vadd.xlane.f32.xlu0 %v2845
    %v2847 = vpop.xlane.xlu0 %2846
    %v2848 = vsel %vm1220, %v2578, 0.0
    %2849 = vadd.xlane.f32.xlu0 %v2848
    %v2850 = vpop.xlane.xlu0 %2849
    %v2851 = vsel %vm1220, %v2579, 0.0
    %2852 = vadd.xlane.f32.xlu0 %v2851
    %v2853 = vpop.xlane.xlu0 %2852
    %v2854 = vsel %vm1220, %v2580, 0.0
    %2855 = vadd.xlane.f32.xlu0 %v2854
    %v2856 = vpop.xlane.xlu0 %2855
    %v2857 = vsel %vm1220, %v2581, 0.0
    %2858 = vadd.xlane.f32.xlu0 %v2857
    %v2859 = vpop.xlane.xlu0 %2858
    %v2860 = vsel %vm1220, %v2582, 0.0
    %2861 = vadd.xlane.f32.xlu0 %v2860
    %v2862 = vpop.xlane.xlu0 %2861
    %v2863 = vsel %vm1220, %v2583, 0.0
    %2864 = vadd.xlane.f32.xlu0 %v2863
    %v2865 = vpop.xlane.xlu0 %2864
    %v2866 = vsel %vm1220, %v2584, 0.0
    %2867 = vadd.xlane.f32.xlu0 %v2866
    %v2868 = vpop.xlane.xlu0 %2867
    %v2869 = vsel %vm1220, %v2585, 0.0
    %2870 = vadd.xlane.f32.xlu0 %v2869
    %v2871 = vpop.xlane.xlu0 %2870
    %v2872 = vsel %vm1220, %v2586, 0.0
    %2873 = vadd.xlane.f32.xlu0 %v2872
    %v2874 = vpop.xlane.xlu0 %2873
    %v2875 = vsel %vm1220, %v2587, 0.0
    %2876 = vadd.xlane.f32.xlu0 %v2875
    %v2877 = vpop.xlane.xlu0 %2876
    %v2878 = vsel %vm1220, %v2588, 0.0
    %2879 = vadd.xlane.f32.xlu0 %v2878
    %v2880 = vpop.xlane.xlu0 %2879
    %v2881 = vsel %vm1220, %v2589, 0.0
    %2882 = vadd.xlane.f32.xlu0 %v2881
    %v2883 = vpop.xlane.xlu0 %2882
    %v2884 = vsel %vm1220, %v2590, 0.0
    %2885 = vadd.xlane.f32.xlu0 %v2884
    %v2886 = vpop.xlane.xlu0 %2885
    %v2887 = vsel %vm1220, %v2591, 0.0
    %2888 = vadd.xlane.f32.xlu0 %v2887
    %v2889 = vpop.xlane.xlu0 %2888
    %v2890 = vsel %vm1220, %v2592, 0.0
    %2891 = vadd.xlane.f32.xlu0 %v2890
    %v2892 = vpop.xlane.xlu0 %2891
    %v2893 = vsel %vm1220, %v2593, 0.0
    %2894 = vadd.xlane.f32.xlu0 %v2893
    %v2895 = vpop.xlane.xlu0 %2894
    %v2896 = vsel %vm1220, %v2594, 0.0
    %2897 = vadd.xlane.f32.xlu0 %v2896
    %v2898 = vpop.xlane.xlu0 %2897
    %v2899 = vsel %vm1220, %v2595, 0.0
    %2900 = vadd.xlane.f32.xlu0 %v2899
    %v2901 = vpop.xlane.xlu0 %2900
    %v2902 = vsel %vm1220, %v2596, 0.0
    %2903 = vadd.xlane.f32.xlu0 %v2902
    %v2904 = vpop.xlane.xlu0 %2903
    %v2905 = vsel %vm1220, %v2597, 0.0
    %2906 = vadd.xlane.f32.xlu0 %v2905
    %v2907 = vpop.xlane.xlu0 %2906
    %v2908 = vsel %vm1220, %v2598, 0.0
    %2909 = vadd.xlane.f32.xlu0 %v2908
    %v2910 = vpop.xlane.xlu0 %2909
    %v2911 = vsel %vm1220, %v2599, 0.0
    %2912 = vadd.xlane.f32.xlu0 %v2911
    %v2913 = vpop.xlane.xlu0 %2912
    %v2914 = vsel %vm1220, %v2600, 0.0
    %2915 = vadd.xlane.f32.xlu0 %v2914
    %v2916 = vpop.xlane.xlu0 %2915
    %v2917 = vsel %vm1220, %v2601, 0.0
    %2918 = vadd.xlane.f32.xlu0 %v2917
    %v2919 = vpop.xlane.xlu0 %2918
    %v2920 = vsel %vm1220, %v2602, 0.0
    %2921 = vadd.xlane.f32.xlu0 %v2920
    %v2922 = vpop.xlane.xlu0 %2921
    %v2923 = vsel %vm1220, %v2603, 0.0
    %2924 = vadd.xlane.f32.xlu0 %v2923
    %v2925 = vpop.xlane.xlu0 %2924
    %v2926 = vsel %vm1220, %v2604, 0.0
    %2927 = vadd.xlane.f32.xlu0 %v2926
    %v2928 = vpop.xlane.xlu0 %2927
    %v2929 = vsel %vm1220, %v2605, 0.0
    %2930 = vadd.xlane.f32.xlu0 %v2929
    %v2931 = vpop.xlane.xlu0 %2930
    %v2932 = vsel %vm1220, %v2606, 0.0
    %2933 = vadd.xlane.f32.xlu0 %v2932
    %v2934 = vpop.xlane.xlu0 %2933
    %v2935 = vsel %vm1220, %v2607, 0.0
    %2936 = vadd.xlane.f32.xlu0 %v2935
    %v2937 = vpop.xlane.xlu0 %2936
    %v2938 = vsel %vm1220, %v2608, 0.0
    %2939 = vadd.xlane.f32.xlu0 %v2938
    %v2940 = vpop.xlane.xlu0 %2939
    %v2941 = vsel %vm1220, %v2609, 0.0
    %2942 = vadd.xlane.f32.xlu0 %v2941
    %v2943 = vpop.xlane.xlu0 %2942
    %v2944 = vsel %vm1220, %v2610, 0.0
    %2945 = vadd.xlane.f32.xlu0 %v2944
    %v2946 = vpop.xlane.xlu0 %2945
    %v2947 = vsel %vm1220, %v2611, 0.0
    %2948 = vadd.xlane.f32.xlu0 %v2947
    %v2949 = vpop.xlane.xlu0 %2948
    %v2950 = vsel %vm1220, %v2612, 0.0
    %2951 = vadd.xlane.f32.xlu0 %v2950
    %v2952 = vpop.xlane.xlu0 %2951
    %v2953 = vsel %vm1220, %v2613, 0.0
    %2954 = vadd.xlane.f32.xlu0 %v2953
    %v2955 = vpop.xlane.xlu0 %2954
    %v2956 = vsel %vm1220, %v2614, 0.0
    %2957 = vadd.xlane.f32.xlu0 %v2956
    %v2958 = vpop.xlane.xlu0 %2957
    %v2959 = vsel %vm1220, %v2615, 0.0
    %2960 = vadd.xlane.f32.xlu0 %v2959
    %v2961 = vpop.xlane.xlu0 %2960
    %v2962 = vsel %vm1220, %v2616, 0.0
    %2963 = vadd.xlane.f32.xlu0 %v2962
    %v2964 = vpop.xlane.xlu0 %2963
    %v2965 = vsel %vm1220, %v2617, 0.0
    %2966 = vadd.xlane.f32.xlu0 %v2965
    %v2967 = vpop.xlane.xlu0 %2966
    %v2968 = vsel %vm1220, %v2618, 0.0
    %2969 = vadd.xlane.f32.xlu0 %v2968
    %v2970 = vpop.xlane.xlu0 %2969
    %v2971 = vsel %vm1220, %v2619, 0.0
    %2972 = vadd.xlane.f32.xlu0 %v2971
    %v2973 = vpop.xlane.xlu0 %2972
    %v2974 = vsel %vm1220, %v2620, 0.0
    %2975 = vadd.xlane.f32.xlu0 %v2974
    %v2976 = vpop.xlane.xlu0 %2975
    %v2977 = vsel %vm1220, %v2621, 0.0
    %2978 = vadd.xlane.f32.xlu0 %v2977
    %v2979 = vpop.xlane.xlu0 %2978
    %v2980 = vsel %vm1220, %v2622, 0.0
    %2981 = vadd.xlane.f32.xlu0 %v2980
    %v2982 = vpop.xlane.xlu0 %2981
    %v2983 = vsel %vm1220, %v2623, 0.0
    %2984 = vadd.xlane.f32.xlu0 %v2983
    %v2985 = vpop.xlane.xlu0 %2984
    %v2986 = vsel %vm1220, %v2624, 0.0
    %2987 = vadd.xlane.f32.xlu0 %v2986
    %v2988 = vpop.xlane.xlu0 %2987
    %v2989 = vsel %vm1220, %v2625, 0.0
    %2990 = vadd.xlane.f32.xlu0 %v2989
    %v2991 = vpop.xlane.xlu0 %2990
    %v2992 = vsel %vm1220, %v2626, 0.0
    %2993 = vadd.xlane.f32.xlu0 %v2992
    %v2994 = vpop.xlane.xlu0 %2993
    %v2995 = vsel %vm1220, %v2627, 0.0
    %2996 = vadd.xlane.f32.xlu0 %v2995
    %v2997 = vpop.xlane.xlu0 %2996
    %v2998 = vsel %vm1220, %v2628, 0.0
    %2999 = vadd.xlane.f32.xlu0 %v2998
    %v3000 = vpop.xlane.xlu0 %2999
    %v3001 = vsel %vm1220, %v2629, 0.0
    %3002 = vadd.xlane.f32.xlu0 %v3001
    %v3003 = vpop.xlane.xlu0 %3002
    %v3004 = vsel %vm1220, %v2630, 0.0
    %3005 = vadd.xlane.f32.xlu0 %v3004
    %v3006 = vpop.xlane.xlu0 %3005
    %v3007 = vsel %vm1220, %v2631, 0.0
    %3008 = vadd.xlane.f32.xlu0 %v3007
    %v3009 = vpop.xlane.xlu0 %3008
    %v3010 = vsel %vm1220, %v2632, 0.0
    %3011 = vadd.xlane.f32.xlu0 %v3010
    %v3012 = vpop.xlane.xlu0 %3011
    %v3013 = vsel %vm1220, %v2633, 0.0
    %3014 = vadd.xlane.f32.xlu0 %v3013
    %v3015 = vpop.xlane.xlu0 %3014
    %v3016 = vsel %vm1220, %v2634, 0.0
    %3017 = vadd.xlane.f32.xlu0 %v3016
    %v3018 = vpop.xlane.xlu0 %3017
    %v3019 = vadd.f32 %v2379, %v2637
    %v3020 = vadd.f32 %v2380, %v2640
    %v3021 = vadd.f32 %v2381, %v2643
    %v3022 = vadd.f32 %v2382, %v2646
    %v3023 = vadd.f32 %v2383, %v2649
    %v3024 = vadd.f32 %v2384, %v2652
    %v3025 = vadd.f32 %v2385, %v2655
    %v3026 = vadd.f32 %v2386, %v2658
    %v3027 = vadd.f32 %v2387, %v2661
    %v3028 = vadd.f32 %v2388, %v2664
    %v3029 = vadd.f32 %v2389, %v2667
    %v3030 = vadd.f32 %v2390, %v2670
    %v3031 = vadd.f32 %v2391, %v2673
    %v3032 = vadd.f32 %v2392, %v2676
    %v3033 = vadd.f32 %v2393, %v2679
    %v3034 = vadd.f32 %v2394, %v2682
    %v3035 = vadd.f32 %v2395, %v2685
    %v3036 = vadd.f32 %v2396, %v2688
    %v3037 = vadd.f32 %v2397, %v2691
    %v3038 = vadd.f32 %v2398, %v2694
    %v3039 = vadd.f32 %v2399, %v2697
    %v3040 = vadd.f32 %v2400, %v2700
    %v3041 = vadd.f32 %v2401, %v2703
    %v3042 = vadd.f32 %v2402, %v2706
    %v3043 = vadd.f32 %v2403, %v2709
    %v3044 = vadd.f32 %v2404, %v2712
    %v3045 = vadd.f32 %v2405, %v2715
    %v3046 = vadd.f32 %v2406, %v2718
    %v3047 = vadd.f32 %v2407, %v2721
    %v3048 = vadd.f32 %v2408, %v2724
    %v3049 = vadd.f32 %v2409, %v2727
    %v3050 = vadd.f32 %v2410, %v2730
    %v3051 = vadd.f32 %v2411, %v2733
    %v3052 = vadd.f32 %v2412, %v2736
    %v3053 = vadd.f32 %v2413, %v2739
    %v3054 = vadd.f32 %v2414, %v2742
    %v3055 = vadd.f32 %v2415, %v2745
    %v3056 = vadd.f32 %v2416, %v2748
    %v3057 = vadd.f32 %v2417, %v2751
    %v3058 = vadd.f32 %v2418, %v2754
    %v3059 = vadd.f32 %v2419, %v2757
    %v3060 = vadd.f32 %v2420, %v2760
    %v3061 = vadd.f32 %v2421, %v2763
    %v3062 = vadd.f32 %v2422, %v2766
    %v3063 = vadd.f32 %v2423, %v2769
    %v3064 = vadd.f32 %v2424, %v2772
    %v3065 = vadd.f32 %v2425, %v2775
    %v3066 = vadd.f32 %v2426, %v2778
    %v3067 = vadd.f32 %v2427, %v2781
    %v3068 = vadd.f32 %v2428, %v2784
    %v3069 = vadd.f32 %v2429, %v2787
    %v3070 = vadd.f32 %v2430, %v2790
    %v3071 = vadd.f32 %v2431, %v2793
    %v3072 = vadd.f32 %v2432, %v2796
    %v3073 = vadd.f32 %v2433, %v2799
    %v3074 = vadd.f32 %v2434, %v2802
    %v3075 = vadd.f32 %v2435, %v2805
    %v3076 = vadd.f32 %v2436, %v2808
    %v3077 = vadd.f32 %v2437, %v2811
    %v3078 = vadd.f32 %v2438, %v2814
    %v3079 = vadd.f32 %v2439, %v2817
    %v3080 = vadd.f32 %v2440, %v2820
    %v3081 = vadd.f32 %v2441, %v2823
    %v3082 = vadd.f32 %v2442, %v2826
    %v3083 = vadd.f32 %v2443, %v2829
    %v3084 = vadd.f32 %v2444, %v2832
    %v3085 = vadd.f32 %v2445, %v2835
    %v3086 = vadd.f32 %v2446, %v2838
    %v3087 = vadd.f32 %v2447, %v2841
    %v3088 = vadd.f32 %v2448, %v2844
    %v3089 = vadd.f32 %v2449, %v2847
    %v3090 = vadd.f32 %v2450, %v2850
    %v3091 = vadd.f32 %v2451, %v2853
    %v3092 = vadd.f32 %v2452, %v2856
    %v3093 = vadd.f32 %v2453, %v2859
    %v3094 = vadd.f32 %v2454, %v2862
    %v3095 = vadd.f32 %v2455, %v2865
    %v3096 = vadd.f32 %v2456, %v2868
    %v3097 = vadd.f32 %v2457, %v2871
    %v3098 = vadd.f32 %v2458, %v2874
    %v3099 = vadd.f32 %v2459, %v2877
    %v3100 = vadd.f32 %v2460, %v2880
    %v3101 = vadd.f32 %v2461, %v2883
    %v3102 = vadd.f32 %v2462, %v2886
    %v3103 = vadd.f32 %v2463, %v2889
    %v3104 = vadd.f32 %v2464, %v2892
    %v3105 = vadd.f32 %v2465, %v2895
    %v3106 = vadd.f32 %v2466, %v2898
    %v3107 = vadd.f32 %v2467, %v2901
    %v3108 = vadd.f32 %v2468, %v2904
    %v3109 = vadd.f32 %v2469, %v2907
    %v3110 = vadd.f32 %v2470, %v2910
    %v3111 = vadd.f32 %v2471, %v2913
    %v3112 = vadd.f32 %v2472, %v2916
    %v3113 = vadd.f32 %v2473, %v2919
    %v3114 = vadd.f32 %v2474, %v2922
    %v3115 = vadd.f32 %v2475, %v2925
    %v3116 = vadd.f32 %v2476, %v2928
    %v3117 = vadd.f32 %v2477, %v2931
    %v3118 = vadd.f32 %v2478, %v2934
    %v3119 = vadd.f32 %v2479, %v2937
    %v3120 = vadd.f32 %v2480, %v2940
    %v3121 = vadd.f32 %v2481, %v2943
    %v3122 = vadd.f32 %v2482, %v2946
    %v3123 = vadd.f32 %v2483, %v2949
    %v3124 = vadd.f32 %v2484, %v2952
    %v3125 = vadd.f32 %v2485, %v2955
    %v3126 = vadd.f32 %v2486, %v2958
    %v3127 = vadd.f32 %v2487, %v2961
    %v3128 = vadd.f32 %v2488, %v2964
    %v3129 = vadd.f32 %v2489, %v2967
    %v3130 = vadd.f32 %v2490, %v2970
    %v3131 = vadd.f32 %v2491, %v2973
    %v3132 = vadd.f32 %v2492, %v2976
    %v3133 = vadd.f32 %v2493, %v2979
    %v3134 = vadd.f32 %v2494, %v2982
    %v3135 = vadd.f32 %v2495, %v2985
    %v3136 = vadd.f32 %v2496, %v2988
    %v3137 = vadd.f32 %v2497, %v2991
    %v3138 = vadd.f32 %v2498, %v2994
    %v3139 = vadd.f32 %v2499, %v2997
    %v3140 = vadd.f32 %v2500, %v3000
    %v3141 = vadd.f32 %v2501, %v3003
    %v3142 = vadd.f32 %v2502, %v3006
    %v3143 = vadd.f32 %v2503, %v3009
    %v3144 = vadd.f32 %v2504, %v3012
    %v3145 = vadd.f32 %v2505, %v3015
    %v3146 = vadd.f32 %v2506, %v3018
    %3147 = vst.msk [vmem:[%s4] sm:$0xff] %vm2250, %v3019
    %3148 = vst.msk [vmem:[%s4 + $0x8] sm:$0xff] %vm2250, %v3020
    %3149 = vst.msk [vmem:[%s4 + $0x10] sm:$0xff] %vm2250, %v3021
    %3150 = vst.msk [vmem:[%s4 + $0x18] sm:$0xff] %vm2250, %v3022
    %3151 = vst.msk [vmem:[%s4 + $0x20] sm:$0xff] %vm2250, %v3023
    %3152 = vst.msk [vmem:[%s4 + $0x28] sm:$0xff] %vm2250, %v3024
    %3153 = vst.msk [vmem:[%s4 + $0x30] sm:$0xff] %vm2250, %v3025
    %3154 = vst.msk [vmem:[%s4 + $0x38] sm:$0xff] %vm2250, %v3026
    %3155 = vst.msk [vmem:[%s4 + $0x40] sm:$0xff] %vm2250, %v3027
    %3156 = vst.msk [vmem:[%s4 + $0x48] sm:$0xff] %vm2250, %v3028
    %3157 = vst.msk [vmem:[%s4 + $0x50] sm:$0xff] %vm2250, %v3029
    %3158 = vst.msk [vmem:[%s4 + $0x58] sm:$0xff] %vm2250, %v3030
    %3159 = vst.msk [vmem:[%s4 + $0x60] sm:$0xff] %vm2250, %v3031
    %3160 = vst.msk [vmem:[%s4 + $0x68] sm:$0xff] %vm2250, %v3032
    %3161 = vst.msk [vmem:[%s4 + $0x70] sm:$0xff] %vm2250, %v3033
    %3162 = vst.msk [vmem:[%s4 + $0x78] sm:$0xff] %vm2250, %v3034
    %3163 = vst.msk [vmem:[%s4 + $0x80] sm:$0xff] %vm2250, %v3035
    %3164 = vst.msk [vmem:[%s4 + $0x88] sm:$0xff] %vm2250, %v3036
    %3165 = vst.msk [vmem:[%s4 + $0x90] sm:$0xff] %vm2250, %v3037
    %3166 = vst.msk [vmem:[%s4 + $0x98] sm:$0xff] %vm2250, %v3038
    %3167 = vst.msk [vmem:[%s4 + $0xa0] sm:$0xff] %vm2250, %v3039
    %3168 = vst.msk [vmem:[%s4 + $0xa8] sm:$0xff] %vm2250, %v3040
    %3169 = vst.msk [vmem:[%s4 + $0xb0] sm:$0xff] %vm2250, %v3041
    %3170 = vst.msk [vmem:[%s4 + $0xb8] sm:$0xff] %vm2250, %v3042
    %3171 = vst.msk [vmem:[%s4 + $0xc0] sm:$0xff] %vm2250, %v3043
    %3172 = vst.msk [vmem:[%s4 + $0xc8] sm:$0xff] %vm2250, %v3044
    %3173 = vst.msk [vmem:[%s4 + $0xd0] sm:$0xff] %vm2250, %v3045
    %3174 = vst.msk [vmem:[%s4 + $0xd8] sm:$0xff] %vm2250, %v3046
    %3175 = vst.msk [vmem:[%s4 + $0xe0] sm:$0xff] %vm2250, %v3047
    %3176 = vst.msk [vmem:[%s4 + $0xe8] sm:$0xff] %vm2250, %v3048
    %3177 = vst.msk [vmem:[%s4 + $0xf0] sm:$0xff] %vm2250, %v3049
    %3178 = vst.msk [vmem:[%s4 + $0xf8] sm:$0xff] %vm2250, %v3050
    %3179 = vst.msk [vmem:[%s4 + $0x100] sm:$0xff] %vm2250, %v3051
    %3180 = vst.msk [vmem:[%s4 + $0x108] sm:$0xff] %vm2250, %v3052
    %3181 = vst.msk [vmem:[%s4 + $0x110] sm:$0xff] %vm2250, %v3053
    %3182 = vst.msk [vmem:[%s4 + $0x118] sm:$0xff] %vm2250, %v3054
    %3183 = vst.msk [vmem:[%s4 + $0x120] sm:$0xff] %vm2250, %v3055
    %3184 = vst.msk [vmem:[%s4 + $0x128] sm:$0xff] %vm2250, %v3056
    %3185 = vst.msk [vmem:[%s4 + $0x130] sm:$0xff] %vm2250, %v3057
    %3186 = vst.msk [vmem:[%s4 + $0x138] sm:$0xff] %vm2250, %v3058
    %3187 = vst.msk [vmem:[%s4 + $0x140] sm:$0xff] %vm2250, %v3059
    %3188 = vst.msk [vmem:[%s4 + $0x148] sm:$0xff] %vm2250, %v3060
    %3189 = vst.msk [vmem:[%s4 + $0x150] sm:$0xff] %vm2250, %v3061
    %3190 = vst.msk [vmem:[%s4 + $0x158] sm:$0xff] %vm2250, %v3062
    %3191 = vst.msk [vmem:[%s4 + $0x160] sm:$0xff] %vm2250, %v3063
    %3192 = vst.msk [vmem:[%s4 + $0x168] sm:$0xff] %vm2250, %v3064
    %3193 = vst.msk [vmem:[%s4 + $0x170] sm:$0xff] %vm2250, %v3065
    %3194 = vst.msk [vmem:[%s4 + $0x178] sm:$0xff] %vm2250, %v3066
    %3195 = vst.msk [vmem:[%s4 + $0x180] sm:$0xff] %vm2250, %v3067
    %3196 = vst.msk [vmem:[%s4 + $0x188] sm:$0xff] %vm2250, %v3068
    %3197 = vst.msk [vmem:[%s4 + $0x190] sm:$0xff] %vm2250, %v3069
    %3198 = vst.msk [vmem:[%s4 + $0x198] sm:$0xff] %vm2250, %v3070
    %3199 = vst.msk [vmem:[%s4 + $0x1a0] sm:$0xff] %vm2250, %v3071
    %3200 = vst.msk [vmem:[%s4 + $0x1a8] sm:$0xff] %vm2250, %v3072
    %3201 = vst.msk [vmem:[%s4 + $0x1b0] sm:$0xff] %vm2250, %v3073
    %3202 = vst.msk [vmem:[%s4 + $0x1b8] sm:$0xff] %vm2250, %v3074
    %3203 = vst.msk [vmem:[%s4 + $0x1c0] sm:$0xff] %vm2250, %v3075
    %3204 = vst.msk [vmem:[%s4 + $0x1c8] sm:$0xff] %vm2250, %v3076
    %3205 = vst.msk [vmem:[%s4 + $0x1d0] sm:$0xff] %vm2250, %v3077
    %3206 = vst.msk [vmem:[%s4 + $0x1d8] sm:$0xff] %vm2250, %v3078
    %3207 = vst.msk [vmem:[%s4 + $0x1e0] sm:$0xff] %vm2250, %v3079
    %3208 = vst.msk [vmem:[%s4 + $0x1e8] sm:$0xff] %vm2250, %v3080
    %3209 = vst.msk [vmem:[%s4 + $0x1f0] sm:$0xff] %vm2250, %v3081
    %3210 = vst.msk [vmem:[%s4 + $0x1f8] sm:$0xff] %vm2250, %v3082
    %3211 = vst.msk [vmem:[%s4 + $0x200] sm:$0xff] %vm2250, %v3083
    %3212 = vst.msk [vmem:[%s4 + $0x208] sm:$0xff] %vm2250, %v3084
    %3213 = vst.msk [vmem:[%s4 + $0x210] sm:$0xff] %vm2250, %v3085
    %3214 = vst.msk [vmem:[%s4 + $0x218] sm:$0xff] %vm2250, %v3086
    %3215 = vst.msk [vmem:[%s4 + $0x220] sm:$0xff] %vm2250, %v3087
    %3216 = vst.msk [vmem:[%s4 + $0x228] sm:$0xff] %vm2250, %v3088
    %3217 = vst.msk [vmem:[%s4 + $0x230] sm:$0xff] %vm2250, %v3089
    %3218 = vst.msk [vmem:[%s4 + $0x238] sm:$0xff] %vm2250, %v3090
    %3219 = vst.msk [vmem:[%s4 + $0x240] sm:$0xff] %vm2250, %v3091
    %3220 = vst.msk [vmem:[%s4 + $0x248] sm:$0xff] %vm2250, %v3092
    %3221 = vst.msk [vmem:[%s4 + $0x250] sm:$0xff] %vm2250, %v3093
    %3222 = vst.msk [vmem:[%s4 + $0x258] sm:$0xff] %vm2250, %v3094
    %3223 = vst.msk [vmem:[%s4 + $0x260] sm:$0xff] %vm2250, %v3095
    %3224 = vst.msk [vmem:[%s4 + $0x268] sm:$0xff] %vm2250, %v3096
    %3225 = vst.msk [vmem:[%s4 + $0x270] sm:$0xff] %vm2250, %v3097
    %3226 = vst.msk [vmem:[%s4 + $0x278] sm:$0xff] %vm2250, %v3098
    %3227 = vst.msk [vmem:[%s4 + $0x280] sm:$0xff] %vm2250, %v3099
    %3228 = vst.msk [vmem:[%s4 + $0x288] sm:$0xff] %vm2250, %v3100
    %3229 = vst.msk [vmem:[%s4 + $0x290] sm:$0xff] %vm2250, %v3101
    %3230 = vst.msk [vmem:[%s4 + $0x298] sm:$0xff] %vm2250, %v3102
    %3231 = vst.msk [vmem:[%s4 + $0x2a0] sm:$0xff] %vm2250, %v3103
    %3232 = vst.msk [vmem:[%s4 + $0x2a8] sm:$0xff] %vm2250, %v3104
    %3233 = vst.msk [vmem:[%s4 + $0x2b0] sm:$0xff] %vm2250, %v3105
    %3234 = vst.msk [vmem:[%s4 + $0x2b8] sm:$0xff] %vm2250, %v3106
    %3235 = vst.msk [vmem:[%s4 + $0x2c0] sm:$0xff] %vm2250, %v3107
    %3236 = vst.msk [vmem:[%s4 + $0x2c8] sm:$0xff] %vm2250, %v3108
    %3237 = vst.msk [vmem:[%s4 + $0x2d0] sm:$0xff] %vm2250, %v3109
    %3238 = vst.msk [vmem:[%s4 + $0x2d8] sm:$0xff] %vm2250, %v3110
    %3239 = vst.msk [vmem:[%s4 + $0x2e0] sm:$0xff] %vm2250, %v3111
    %3240 = vst.msk [vmem:[%s4 + $0x2e8] sm:$0xff] %vm2250, %v3112
    %3241 = vst.msk [vmem:[%s4 + $0x2f0] sm:$0xff] %vm2250, %v3113
    %3242 = vst.msk [vmem:[%s4 + $0x2f8] sm:$0xff] %vm2250, %v3114
    %3243 = vst.msk [vmem:[%s4 + $0x300] sm:$0xff] %vm2250, %v3115
    %3244 = vst.msk [vmem:[%s4 + $0x308] sm:$0xff] %vm2250, %v3116
    %3245 = vst.msk [vmem:[%s4 + $0x310] sm:$0xff] %vm2250, %v3117
    %3246 = vst.msk [vmem:[%s4 + $0x318] sm:$0xff] %vm2250, %v3118
    %3247 = vst.msk [vmem:[%s4 + $0x320] sm:$0xff] %vm2250, %v3119
    %3248 = vst.msk [vmem:[%s4 + $0x328] sm:$0xff] %vm2250, %v3120
    %3249 = vst.msk [vmem:[%s4 + $0x330] sm:$0xff] %vm2250, %v3121
    %3250 = vst.msk [vmem:[%s4 + $0x338] sm:$0xff] %vm2250, %v3122
    %3251 = vst.msk [vmem:[%s4 + $0x340] sm:$0xff] %vm2250, %v3123
    %3252 = vst.msk [vmem:[%s4 + $0x348] sm:$0xff] %vm2250, %v3124
    %3253 = vst.msk [vmem:[%s4 + $0x350] sm:$0xff] %vm2250, %v3125
    %3254 = vst.msk [vmem:[%s4 + $0x358] sm:$0xff] %vm2250, %v3126
    %3255 = vst.msk [vmem:[%s4 + $0x360] sm:$0xff] %vm2250, %v3127
    %3256 = vst.msk [vmem:[%s4 + $0x368] sm:$0xff] %vm2250, %v3128
    %3257 = vst.msk [vmem:[%s4 + $0x370] sm:$0xff] %vm2250, %v3129
    %3258 = vst.msk [vmem:[%s4 + $0x378] sm:$0xff] %vm2250, %v3130
    %3259 = vst.msk [vmem:[%s4 + $0x380] sm:$0xff] %vm2250, %v3131
    %3260 = vst.msk [vmem:[%s4 + $0x388] sm:$0xff] %vm2250, %v3132
    %3261 = vst.msk [vmem:[%s4 + $0x390] sm:$0xff] %vm2250, %v3133
    %3262 = vst.msk [vmem:[%s4 + $0x398] sm:$0xff] %vm2250, %v3134
    %3263 = vst.msk [vmem:[%s4 + $0x3a0] sm:$0xff] %vm2250, %v3135
    %3264 = vst.msk [vmem:[%s4 + $0x3a8] sm:$0xff] %vm2250, %v3136
    %3265 = vst.msk [vmem:[%s4 + $0x3b0] sm:$0xff] %vm2250, %v3137
    %3266 = vst.msk [vmem:[%s4 + $0x3b8] sm:$0xff] %vm2250, %v3138
    %3267 = vst.msk [vmem:[%s4 + $0x3c0] sm:$0xff] %vm2250, %v3139
    %3268 = vst.msk [vmem:[%s4 + $0x3c8] sm:$0xff] %vm2250, %v3140
    %3269 = vst.msk [vmem:[%s4 + $0x3d0] sm:$0xff] %vm2250, %v3141
    %3270 = vst.msk [vmem:[%s4 + $0x3d8] sm:$0xff] %vm2250, %v3142
    %3271 = vst.msk [vmem:[%s4 + $0x3e0] sm:$0xff] %vm2250, %v3143
    %3272 = vst.msk [vmem:[%s4 + $0x3e8] sm:$0xff] %vm2250, %v3144
    %3273 = vst.msk [vmem:[%s4 + $0x3f0] sm:$0xff] %vm2250, %v3145
    %3274 = vst.msk [vmem:[%s4 + $0x3f8] sm:$0xff] %vm2250, %v3146
    // Predicated region
    $region18: #{_lambda_.5} parent=1 // pred_check
      _
    $region19: #{_lambda_.5} parent=1 // pred_check_branch
      %3276 = sbr.rel (0) target = $region21
    $region20: #{_lambda_.5} parent=1 // pred_region
      _
    $region21: #{_lambda_.5} parent=1 // pred_fallthru
      _
    // Predicated region
    $region22: #{_lambda_.5} parent=1 // pred_check
      _
    $region23: #{_lambda_.5} parent=1 // pred_check_branch
      %3278 = sbr.rel (0) target = $region25
    $region24: #{_lambda_.5} parent=1 // pred_region
      _
    $region25: #{_lambda_.5} parent=1 // pred_fallthru
      _
    // Predicated region
    $region26: #{_lambda_.5} parent=1 // pred_check
      _
    $region27: #{_lambda_.5} parent=1 // pred_check_branch
      %3280 = sbr.rel (0) target = $region29
    $region28: #{_lambda_.5} parent=1 // pred_region
      _
    $region29: #{_lambda_.5} parent=1 // pred_fallthru
      _
    // Predicated region
    $region30: #{_lambda_.5} parent=1 // pred_check
      _
    $region31: #{_lambda_.5} parent=1 // pred_check_branch
      %3282 = sbr.rel (0) target = $region33
    $region32: #{_lambda_.5} parent=1 // pred_region
      _
    $region33: #{_lambda_.5} parent=1 // pred_fallthru
      _
    // Predicated region
    $region34: #{_lambda_.5} parent=1 // pred_check
      _
    $region35: #{_lambda_.5} parent=1 // pred_check_branch
      %3284 = sbr.rel (0) target = $region37
    $region36: #{_lambda_.5} parent=1 // pred_region
      _
    $region37: #{_lambda_.5} parent=1 // pred_fallthru
      _
    // Predicated region
    $region38: #{_lambda_.5} parent=1 // pred_check
      _
    $region39: #{_lambda_.5} parent=1 // pred_check_branch
      %3286 = sbr.rel (0) target = $region41
    $region40: #{_lambda_.5} parent=1 // pred_region
      _
    $region41: #{_lambda_.5} parent=1 // pred_fallthru
      _
    %3287 = vsyncpa [#allocation3], 1

// kernel: _lambda_.6
$region0: #{_lambda_.6}
  #allocation0 [shape = 'u32[]', space=smem, size = 0x4, offset = 0x4, fixed_abs, tag = 'smem constant byte address 0x4 - core index']
  #allocation1 [shape = 'u32[144,128]{1,0:T(1,128)}', space=vmem, size = 0x12000, scoped, tag = 'internal scratch']
  %s0 = inlined_call_operand.hbm [shape: bf16[128,576], index: 0, kind: input, shape index: {}]
  %s1 = inlined_call_operand.vmem [shape: bf16[576,32], index: 1, kind: input, shape index: {}]
  %s2 = inlined_call_operand.vmem [shape: f32[128,32], index: 2, kind: output, shape index: {0}]
  %s3 = inlined_call_operand.vmem [shape: f32[128,1], index: 3, kind: output, shape index: {1}]
  %s4 = inlined_call_operand.vmem [shape: f32[128,1], index: 4, kind: output, shape index: {2}]
  %5 = xla_tuple %s2, %s3, %s4
  %s6 = sld [smem:[#allocation0]]
  $region42: #{_lambda_.6} parent=0
    _
  %s8 = ssub.s32 1, %s6
  %s9 = scalar_select 0, %s8, %s6
  $region1: #{_lambda_.6} parent=0
    #allocation2 [shape = 'u8[163840]{0}', space=vmem, size = 0x28000, scoped, tag = 'input window, operand 0, single buffered']
    #allocation3 [shape = 's32[1]{0}', space=sflag, size = 0x4, scoped, tag = 'scoped memory for _lambda_.6']
    %10 = vsyncpa [#allocation3], 0
    // Predicated region
    $region2: #{_lambda_.6} parent=1 // pred_check
      _
    $region3: #{_lambda_.6} parent=1 // pred_check_branch
      %12 = sbr.rel (0) target = $region5
    $region4: #{_lambda_.6} parent=1 // pred_region
      %s14 = ssub.s32 5120, 5120
      %15 = vsyncadd [#allocation3], %s14
      %s16 = sshll.u32 [#allocation2], 4
      %s17 = int_to_ptr.vmem [resolvable:$true] %s16
      %22 = dma.hbm_to_vmem [thread:$0]  %s0, 5120, %s17, [#allocation3], 320, 320, 20
    $region5: #{_lambda_.6} parent=1 // pred_fallthru
      _
    // Predicated region
    $region6: #{_lambda_.6} parent=1 // pred_check
      _
    $region7: #{_lambda_.6} parent=1 // pred_check_branch
      %24 = sbr.rel (0) target = $region9
    $region8: #{_lambda_.6} parent=1 // pred_region
      _
    $region9: #{_lambda_.6} parent=1 // pred_fallthru
      _
    // Predicated region
    $region10: #{_lambda_.6} parent=1 // pred_check
      _
    $region11: #{_lambda_.6} parent=1 // pred_check_branch
      %26 = sbr.rel (0) target = $region13
    $region12: #{_lambda_.6} parent=1 // pred_region
      %27 = dma.done [#allocation3], 5120
    $region13: #{_lambda_.6} parent=1 // pred_fallthru
      _
    %v29 = vld [vmem:[#allocation2] sm:$0xff]
    %v30 = vld [vmem:[#allocation2 + $0x8] sm:$0xff]
    %v31 = vld [vmem:[#allocation2 + $0x10] sm:$0xf]
    %v32 = vld [vmem:[#allocation2 + $0x14] sm:$0xff]
    %v33 = vld [vmem:[#allocation2 + $0x1c] sm:$0xff]
    %v34 = vld [vmem:[#allocation2 + $0x24] sm:$0xf]
    %v35 = vld [vmem:[#allocation2 + $0x28] sm:$0xff]
    %v36 = vld [vmem:[#allocation2 + $0x30] sm:$0xff]
    %v37 = vld [vmem:[#allocation2 + $0x38] sm:$0xf]
    %v38 = vld [vmem:[#allocation2 + $0x3c] sm:$0xff]
    %v39 = vld [vmem:[#allocation2 + $0x44] sm:$0xff]
    %v40 = vld [vmem:[#allocation2 + $0x4c] sm:$0xf]
    %v41 = vld [vmem:[#allocation2 + $0x50] sm:$0xff]
    %v42 = vld [vmem:[#allocation2 + $0x58] sm:$0xff]
    %v43 = vld [vmem:[#allocation2 + $0x60] sm:$0xf]
    %v44 = vld [vmem:[#allocation2 + $0x64] sm:$0xff]
    %v45 = vld [vmem:[#allocation2 + $0x6c] sm:$0xff]
    %v46 = vld [vmem:[#allocation2 + $0x74] sm:$0xf]
    %v47 = vld [vmem:[#allocation2 + $0x78] sm:$0xff]
    %v48 = vld [vmem:[#allocation2 + $0x80] sm:$0xff]
    %v49 = vld [vmem:[#allocation2 + $0x88] sm:$0xf]
    %v50 = vld [vmem:[#allocation2 + $0x8c] sm:$0xff]
    %v51 = vld [vmem:[#allocation2 + $0x94] sm:$0xff]
    %v52 = vld [vmem:[#allocation2 + $0x9c] sm:$0xf]
    %v53 = vld [vmem:[#allocation2 + $0xa0] sm:$0xff]
    %v54 = vld [vmem:[#allocation2 + $0xa8] sm:$0xff]
    %v55 = vld [vmem:[#allocation2 + $0xb0] sm:$0xf]
    %v56 = vld [vmem:[#allocation2 + $0xb4] sm:$0xff]
    %v57 = vld [vmem:[#allocation2 + $0xbc] sm:$0xff]
    %v58 = vld [vmem:[#allocation2 + $0xc4] sm:$0xf]
    %v59 = vld [vmem:[#allocation2 + $0xc8] sm:$0xff]
    %v60 = vld [vmem:[#allocation2 + $0xd0] sm:$0xff]
    %v61 = vld [vmem:[#allocation2 + $0xd8] sm:$0xf]
    %v62 = vld [vmem:[#allocation2 + $0xdc] sm:$0xff]
    %v63 = vld [vmem:[#allocation2 + $0xe4] sm:$0xff]
    %v64 = vld [vmem:[#allocation2 + $0xec] sm:$0xf]
    %v65 = vld [vmem:[#allocation2 + $0xf0] sm:$0xff]
    %v66 = vld [vmem:[#allocation2 + $0xf8] sm:$0xff]
    %v67 = vld [vmem:[#allocation2 + $0x100] sm:$0xf]
    %v68 = vld [vmem:[#allocation2 + $0x104] sm:$0xff]
    %v69 = vld [vmem:[#allocation2 + $0x10c] sm:$0xff]
    %v70 = vld [vmem:[#allocation2 + $0x114] sm:$0xf]
    %v71 = vld [vmem:[#allocation2 + $0x118] sm:$0xff]
    %v72 = vld [vmem:[#allocation2 + $0x120] sm:$0xff]
    %v73 = vld [vmem:[#allocation2 + $0x128] sm:$0xf]
    %v74 = vld [vmem:[#allocation2 + $0x12c] sm:$0xff]
    %v75 = vld [vmem:[#allocation2 + $0x134] sm:$0xff]
    %v76 = vld [vmem:[#allocation2 + $0x13c] sm:$0xf]
    %v77 = vld [vmem:[%s1] sm:$0xf]
    %v78 = vld [vmem:[%s1 + $0x4] sm:$0xf]
    %v79 = vld [vmem:[%s1 + $0x8] sm:$0xf]
    %v80 = vld [vmem:[%s1 + $0xc] sm:$0xf]
    %v81 = vld [vmem:[%s1 + $0x10] sm:$0xf]
    %v82 = vld [vmem:[%s1 + $0x14] sm:$0xf]
    %v83 = vld [vmem:[%s1 + $0x18] sm:$0xf]
    %v84 = vld [vmem:[%s1 + $0x1c] sm:$0xf]
    %v85 = vld [vmem:[%s1 + $0x20] sm:$0xf]
    %v86 = vld [vmem:[%s1 + $0x24] sm:$0xf]
    %v87 = vld [vmem:[%s1 + $0x28] sm:$0xf]
    %v88 = vld [vmem:[%s1 + $0x2c] sm:$0xf]
    %v89 = vld [vmem:[%s1 + $0x30] sm:$0xf]
    %v90 = vld [vmem:[%s1 + $0x34] sm:$0xf]
    %v91 = vld [vmem:[%s1 + $0x38] sm:$0xf]
    %v92 = vld [vmem:[%s1 + $0x3c] sm:$0xf]
    %v93 = vld [vmem:[%s1 + $0x40] sm:$0xf]
    %v94 = vld [vmem:[%s1 + $0x44] sm:$0xf]
    %v95 = vld [vmem:[%s1 + $0x48] sm:$0xf]
    %v96 = vld [vmem:[%s1 + $0x4c] sm:$0xf]
    %v97 = vld [vmem:[%s1 + $0x50] sm:$0xf]
    %v98 = vld [vmem:[%s1 + $0x54] sm:$0xf]
    %v99 = vld [vmem:[%s1 + $0x58] sm:$0xf]
    %v100 = vld [vmem:[%s1 + $0x5c] sm:$0xf]
    %v101 = vld [vmem:[%s1 + $0x60] sm:$0xf]
    %v102 = vld [vmem:[%s1 + $0x64] sm:$0xf]
    %v103 = vld [vmem:[%s1 + $0x68] sm:$0xf]
    %v104 = vld [vmem:[%s1 + $0x6c] sm:$0xf]
    %v105 = vld [vmem:[%s1 + $0x70] sm:$0xf]
    %v106 = vld [vmem:[%s1 + $0x74] sm:$0xf]
    %v107 = vld [vmem:[%s1 + $0x78] sm:$0xf]
    %v108 = vld [vmem:[%s1 + $0x7c] sm:$0xf]
    %v109 = vld [vmem:[%s1 + $0x80] sm:$0xf]
    %v110 = vld [vmem:[%s1 + $0x84] sm:$0xf]
    %v111 = vld [vmem:[%s1 + $0x88] sm:$0xf]
    %v112 = vld [vmem:[%s1 + $0x8c] sm:$0xf]
    %v113 = vld [vmem:[%s1 + $0x90] sm:$0xf]
    %v114 = vld [vmem:[%s1 + $0x94] sm:$0xf]
    %v115 = vld [vmem:[%s1 + $0x98] sm:$0xf]
    %v116 = vld [vmem:[%s1 + $0x9c] sm:$0xf]
    %v117 = vld [vmem:[%s1 + $0xa0] sm:$0xf]
    %v118 = vld [vmem:[%s1 + $0xa4] sm:$0xf]
    %v119 = vld [vmem:[%s1 + $0xa8] sm:$0xf]
    %v120 = vld [vmem:[%s1 + $0xac] sm:$0xf]
    %v121 = vld [vmem:[%s1 + $0xb0] sm:$0xf]
    %v122 = vld [vmem:[%s1 + $0xb4] sm:$0xf]
    %v123 = vld [vmem:[%s1 + $0xb8] sm:$0xf]
    %v124 = vld [vmem:[%s1 + $0xbc] sm:$0xf]
    %v125 = vld [vmem:[%s1 + $0xc0] sm:$0xf]
    %v126 = vld [vmem:[%s1 + $0xc4] sm:$0xf]
    %v127 = vld [vmem:[%s1 + $0xc8] sm:$0xf]
    %v128 = vld [vmem:[%s1 + $0xcc] sm:$0xf]
    %v129 = vld [vmem:[%s1 + $0xd0] sm:$0xf]
    %v130 = vld [vmem:[%s1 + $0xd4] sm:$0xf]
    %v131 = vld [vmem:[%s1 + $0xd8] sm:$0xf]
    %v132 = vld [vmem:[%s1 + $0xdc] sm:$0xf]
    %v133 = vld [vmem:[%s1 + $0xe0] sm:$0xf]
    %v134 = vld [vmem:[%s1 + $0xe4] sm:$0xf]
    %v135 = vld [vmem:[%s1 + $0xe8] sm:$0xf]
    %v136 = vld [vmem:[%s1 + $0xec] sm:$0xf]
    %v137 = vld [vmem:[%s1 + $0xf0] sm:$0xf]
    %v138 = vld [vmem:[%s1 + $0xf4] sm:$0xf]
    %v139 = vld [vmem:[%s1 + $0xf8] sm:$0xf]
    %v140 = vld [vmem:[%s1 + $0xfc] sm:$0xf]
    %v141 = vld [vmem:[%s1 + $0x100] sm:$0xf]
    %v142 = vld [vmem:[%s1 + $0x104] sm:$0xf]
    %v143 = vld [vmem:[%s1 + $0x108] sm:$0xf]
    %v144 = vld [vmem:[%s1 + $0x10c] sm:$0xf]
    %v145 = vld [vmem:[%s1 + $0x110] sm:$0xf]
    %v146 = vld [vmem:[%s1 + $0x114] sm:$0xf]
    %v147 = vld [vmem:[%s1 + $0x118] sm:$0xf]
    %v148 = vld [vmem:[%s1 + $0x11c] sm:$0xf]
    %v197 = vunpack.c.l.b16 %v29
    %v198 = vunpack.c.h.b16 %v29
    %v199 = vunpack.c.l.b16 %v30
    %v200 = vunpack.c.h.b16 %v30
    %v201 = vunpack.c.l.b16 %v31
    %v202 = vunpack.c.l.b16 %v32
    %v203 = vunpack.c.h.b16 %v32
    %v204 = vunpack.c.l.b16 %v33
    %v205 = vunpack.c.h.b16 %v33
    %v206 = vunpack.c.l.b16 %v34
    %v207 = vunpack.c.l.b16 %v35
    %v208 = vunpack.c.h.b16 %v35
    %v209 = vunpack.c.l.b16 %v36
    %v210 = vunpack.c.h.b16 %v36
    %v211 = vunpack.c.l.b16 %v37
    %v212 = vunpack.c.l.b16 %v38
    %v213 = vunpack.c.h.b16 %v38
    %v214 = vunpack.c.l.b16 %v39
    %v215 = vunpack.c.h.b16 %v39
    %v216 = vunpack.c.l.b16 %v40
    %v217 = vunpack.c.l.b16 %v41
    %v218 = vunpack.c.h.b16 %v41
    %v219 = vunpack.c.l.b16 %v42
    %v220 = vunpack.c.h.b16 %v42
    %v221 = vunpack.c.l.b16 %v43
    %v222 = vunpack.c.l.b16 %v44
    %v223 = vunpack.c.h.b16 %v44
    %v224 = vunpack.c.l.b16 %v45
    %v225 = vunpack.c.h.b16 %v45
    %v226 = vunpack.c.l.b16 %v46
    %v227 = vunpack.c.l.b16 %v47
    %v228 = vunpack.c.h.b16 %v47
    %v229 = vunpack.c.l.b16 %v48
    %v230 = vunpack.c.h.b16 %v48
    %v231 = vunpack.c.l.b16 %v49
    %v232 = vunpack.c.l.b16 %v50
    %v233 = vunpack.c.h.b16 %v50
    %v234 = vunpack.c.l.b16 %v51
    %v235 = vunpack.c.h.b16 %v51
    %v236 = vunpack.c.l.b16 %v52
    %v237 = vunpack.c.l.b16 %v53
    %v238 = vunpack.c.h.b16 %v53
    %v239 = vunpack.c.l.b16 %v54
    %v240 = vunpack.c.h.b16 %v54
    %v241 = vunpack.c.l.b16 %v55
    %v242 = vunpack.c.l.b16 %v56
    %v243 = vunpack.c.h.b16 %v56
    %v244 = vunpack.c.l.b16 %v57
    %v245 = vunpack.c.h.b16 %v57
    %v246 = vunpack.c.l.b16 %v58
    %v247 = vunpack.c.l.b16 %v59
    %v248 = vunpack.c.h.b16 %v59
    %v249 = vunpack.c.l.b16 %v60
    %v250 = vunpack.c.h.b16 %v60
    %v251 = vunpack.c.l.b16 %v61
    %v252 = vunpack.c.l.b16 %v62
    %v253 = vunpack.c.h.b16 %v62
    %v254 = vunpack.c.l.b16 %v63
    %v255 = vunpack.c.h.b16 %v63
    %v256 = vunpack.c.l.b16 %v64
    %v257 = vunpack.c.l.b16 %v65
    %v258 = vunpack.c.h.b16 %v65
    %v259 = vunpack.c.l.b16 %v66
    %v260 = vunpack.c.h.b16 %v66
    %v261 = vunpack.c.l.b16 %v67
    %v262 = vunpack.c.l.b16 %v68
    %v263 = vunpack.c.h.b16 %v68
    %v264 = vunpack.c.l.b16 %v69
    %v265 = vunpack.c.h.b16 %v69
    %v266 = vunpack.c.l.b16 %v70
    %v267 = vunpack.c.l.b16 %v71
    %v268 = vunpack.c.h.b16 %v71
    %v269 = vunpack.c.l.b16 %v72
    %v270 = vunpack.c.h.b16 %v72
    %v271 = vunpack.c.l.b16 %v73
    %v272 = vunpack.c.l.b16 %v74
    %v273 = vunpack.c.h.b16 %v74
    %v274 = vunpack.c.l.b16 %v75
    %v275 = vunpack.c.h.b16 %v75
    %v276 = vunpack.c.l.b16 %v76
    %v277 = vpack.c.b16 %v202, %v197
    %v278 = vpack.c.b16 %v203, %v198
    %v279 = vpack.c.b16 %v204, %v199
    %v280 = vpack.c.b16 %v205, %v200
    %v281 = vpack.c.b16 %v206, %v201
    %v282 = vpack.c.b16 %v212, %v207
    %v283 = vpack.c.b16 %v213, %v208
    %v284 = vpack.c.b16 %v214, %v209
    %v285 = vpack.c.b16 %v215, %v210
    %v286 = vpack.c.b16 %v216, %v211
    %v287 = vpack.c.b16 %v222, %v217
    %v288 = vpack.c.b16 %v223, %v218
    %v289 = vpack.c.b16 %v224, %v219
    %v290 = vpack.c.b16 %v225, %v220
    %v291 = vpack.c.b16 %v226, %v221
    %v292 = vpack.c.b16 %v232, %v227
    %v293 = vpack.c.b16 %v233, %v228
    %v294 = vpack.c.b16 %v234, %v229
    %v295 = vpack.c.b16 %v235, %v230
    %v296 = vpack.c.b16 %v236, %v231
    %v297 = vpack.c.b16 %v242, %v237
    %v298 = vpack.c.b16 %v243, %v238
    %v299 = vpack.c.b16 %v244, %v239
    %v300 = vpack.c.b16 %v245, %v240
    %v301 = vpack.c.b16 %v246, %v241
    %v302 = vpack.c.b16 %v252, %v247
    %v303 = vpack.c.b16 %v253, %v248
    %v304 = vpack.c.b16 %v254, %v249
    %v305 = vpack.c.b16 %v255, %v250
    %v306 = vpack.c.b16 %v256, %v251
    %v307 = vpack.c.b16 %v262, %v257
    %v308 = vpack.c.b16 %v263, %v258
    %v309 = vpack.c.b16 %v264, %v259
    %v310 = vpack.c.b16 %v265, %v260
    %v311 = vpack.c.b16 %v266, %v261
    %v312 = vpack.c.b16 %v272, %v267
    %v313 = vpack.c.b16 %v273, %v268
    %v314 = vpack.c.b16 %v274, %v269
    %v315 = vpack.c.b16 %v275, %v270
    %v316 = vpack.c.b16 %v276, %v271
    %v421 = vunpack.c.l.b16 %v77
    %v422 = vunpack.c.l.b16 %v78
    %v423 = vunpack.c.l.b16 %v79
    %v424 = vunpack.c.l.b16 %v80
    %v425 = vunpack.c.l.b16 %v81
    %v426 = vunpack.c.l.b16 %v82
    %v427 = vunpack.c.l.b16 %v83
    %v428 = vunpack.c.l.b16 %v84
    %v429 = vunpack.c.l.b16 %v85
    %v430 = vunpack.c.l.b16 %v86
    %v431 = vunpack.c.l.b16 %v87
    %v432 = vunpack.c.l.b16 %v88
    %v433 = vunpack.c.l.b16 %v89
    %v434 = vunpack.c.l.b16 %v90
    %v435 = vunpack.c.l.b16 %v91
    %v436 = vunpack.c.l.b16 %v92
    %v437 = vunpack.c.l.b16 %v93
    %v438 = vunpack.c.l.b16 %v94
    %v439 = vunpack.c.l.b16 %v95
    %v440 = vunpack.c.l.b16 %v96
    %v441 = vunpack.c.l.b16 %v97
    %v442 = vunpack.c.l.b16 %v98
    %v443 = vunpack.c.l.b16 %v99
    %v444 = vunpack.c.l.b16 %v100
    %v445 = vunpack.c.l.b16 %v101
    %v446 = vunpack.c.l.b16 %v102
    %v447 = vunpack.c.l.b16 %v103
    %v448 = vunpack.c.l.b16 %v104
    %v449 = vunpack.c.l.b16 %v105
    %v450 = vunpack.c.l.b16 %v106
    %v451 = vunpack.c.l.b16 %v107
    %v452 = vunpack.c.l.b16 %v108
    %v453 = vunpack.c.l.b16 %v109
    %v454 = vunpack.c.l.b16 %v110
    %v455 = vunpack.c.l.b16 %v111
    %v456 = vunpack.c.l.b16 %v112
    %v457 = vunpack.c.l.b16 %v113
    %v458 = vunpack.c.l.b16 %v114
    %v459 = vunpack.c.l.b16 %v115
    %v460 = vunpack.c.l.b16 %v116
    %v461 = vunpack.c.l.b16 %v117
    %v462 = vunpack.c.l.b16 %v118
    %v463 = vunpack.c.l.b16 %v119
    %v464 = vunpack.c.l.b16 %v120
    %v465 = vunpack.c.l.b16 %v121
    %v466 = vunpack.c.l.b16 %v122
    %v467 = vunpack.c.l.b16 %v123
    %v468 = vunpack.c.l.b16 %v124
    %v469 = vunpack.c.l.b16 %v125
    %v470 = vunpack.c.l.b16 %v126
    %v471 = vunpack.c.l.b16 %v127
    %v472 = vunpack.c.l.b16 %v128
    %v473 = vunpack.c.l.b16 %v129
    %v474 = vunpack.c.l.b16 %v130
    %v475 = vunpack.c.l.b16 %v131
    %v476 = vunpack.c.l.b16 %v132
    %v477 = vunpack.c.l.b16 %v133
    %v478 = vunpack.c.l.b16 %v134
    %v479 = vunpack.c.l.b16 %v135
    %v480 = vunpack.c.l.b16 %v136
    %v481 = vunpack.c.l.b16 %v137
    %v482 = vunpack.c.l.b16 %v138
    %v483 = vunpack.c.l.b16 %v139
    %v484 = vunpack.c.l.b16 %v140
    %v485 = vunpack.c.l.b16 %v141
    %v486 = vunpack.c.l.b16 %v142
    %v487 = vunpack.c.l.b16 %v143
    %v488 = vunpack.c.l.b16 %v144
    %v489 = vunpack.c.l.b16 %v145
    %v490 = vunpack.c.l.b16 %v146
    %v491 = vunpack.c.l.b16 %v147
    %v492 = vunpack.c.l.b16 %v148
    %v493 = vpack.c.b16 %v422, %v421
    %v494 = vpack.c.b16 %v424, %v423
    %v495 = vpack.c.b16 %v426, %v425
    %v496 = vpack.c.b16 %v428, %v427
    %v497 = vpack.c.b16 %v430, %v429
    %v498 = vpack.c.b16 %v432, %v431
    %v499 = vpack.c.b16 %v434, %v433
    %v500 = vpack.c.b16 %v436, %v435
    %v501 = vpack.c.b16 %v438, %v437
    %v502 = vpack.c.b16 %v440, %v439
    %v503 = vpack.c.b16 %v442, %v441
    %v504 = vpack.c.b16 %v444, %v443
    %v505 = vpack.c.b16 %v446, %v445
    %v506 = vpack.c.b16 %v448, %v447
    %v507 = vpack.c.b16 %v450, %v449
    %v508 = vpack.c.b16 %v452, %v451
    %v509 = vpack.c.b16 %v454, %v453
    %v510 = vpack.c.b16 %v456, %v455
    %v511 = vpack.c.b16 %v458, %v457
    %v512 = vpack.c.b16 %v460, %v459
    %v513 = vpack.c.b16 %v462, %v461
    %v514 = vpack.c.b16 %v464, %v463
    %v515 = vpack.c.b16 %v466, %v465
    %v516 = vpack.c.b16 %v468, %v467
    %v517 = vpack.c.b16 %v470, %v469
    %v518 = vpack.c.b16 %v472, %v471
    %v519 = vpack.c.b16 %v474, %v473
    %v520 = vpack.c.b16 %v476, %v475
    %v521 = vpack.c.b16 %v478, %v477
    %v522 = vpack.c.b16 %v480, %v479
    %v523 = vpack.c.b16 %v482, %v481
    %v524 = vpack.c.b16 %v484, %v483
    %v525 = vpack.c.b16 %v486, %v485
    %v526 = vpack.c.b16 %v488, %v487
    %v527 = vpack.c.b16 %v490, %v489
    %v528 = vpack.c.b16 %v492, %v491
    %vm565 = vcmask 523264
    %v567 = vsel %vm565, %v281, 0
    %v570 = vsel %vm565, %v286, 0
    %v573 = vsel %vm565, %v291, 0
    %v576 = vsel %vm565, %v296, 0
    %v579 = vsel %vm565, %v301, 0
    %v582 = vsel %vm565, %v306, 0
    %v585 = vsel %vm565, %v311, 0
    %v588 = vsel %vm565, %v316, 0
    %590 = vmatprep.subr.bf16.mxu0 0
    %591 = vmatpush1.bf16.msra.mxu0 %v500
    %592 = vmatprep.subr.bf16.mxu0 0
    %593 = vmatpush1.bf16.msra.mxu0 %v499
    %594 = vmatprep.subr.bf16.mxu0 0
    %595 = vmatpush1.bf16.msra.mxu0 %v498
    %596 = vmatprep.subr.bf16.mxu0 0
    %597 = vmatpush1.bf16.msra.mxu0 %v497
    %598 = vmatprep.subr.bf16.mxu0 0
    %599 = vmatpush1.bf16.msra.mxu0 %v496
    %600 = vmatprep.subr.bf16.mxu0 0
    %601 = vmatpush1.bf16.msra.mxu0 %v495
    %602 = vmatprep.subr.bf16.mxu0 0
    %603 = vmatpush1.bf16.msra.mxu0 %v494
    %604 = vmatprep.subr.bf16.mxu0 0
    %605 = vmatpush1.bf16.msra.mxu0 %v493
    %606 = vmatprep.subr.bf16.mxu0 0
    %607 = vmatpush2.bf16.msra.mxu0 %v508
    %608 = vmatprep.subr.bf16.mxu0 0
    %609 = vmatpush2.bf16.msra.mxu0 %v507
    %610 = vmatprep.subr.bf16.mxu0 0
    %611 = vmatpush2.bf16.msra.mxu0 %v506
    %612 = vmatprep.subr.bf16.mxu0 0
    %613 = vmatpush2.bf16.msra.mxu0 %v505
    %614 = vmatprep.subr.bf16.mxu0 0
    %615 = vmatpush2.bf16.msra.mxu0 %v504
    %616 = vmatprep.subr.bf16.mxu0 0
    %617 = vmatpush2.bf16.msra.mxu0 %v503
    %618 = vmatprep.subr.bf16.mxu0 0
    %619 = vmatpush2.bf16.msra.mxu0 %v502
    %620 = vmatprep.subr.bf16.mxu0 0
    %621 = vmatpush2.bf16.msra.mxu0 %v501
    %622 = vmatprep.mubr.bf16.mxu0 %v278
    %623 = vmatmul.mubr.bf16.gmra.mxu0 %v277
    %v624 = vpop.f32.mrf.mxu0
    %v625 = vadd.f32 0.0, %v624
    %v626 = vpop.f32.mrf.mxu0
    %v627 = vpop.f32.mrf.mxu0
    %v628 = vadd.f32 0.0, %v627
    %v629 = vpop.f32.mrf.mxu0
    %630 = vmatprep.mubr.bf16.mxu0 %v283
    %631 = vmatmul.mubr.bf16.gmra.mxu0 %v282
    %v632 = vpop.f32.mrf.mxu0
    %v633 = vadd.f32 0.0, %v632
    %v634 = vpop.f32.mrf.mxu0
    %v635 = vpop.f32.mrf.mxu0
    %v636 = vadd.f32 0.0, %v635
    %v637 = vpop.f32.mrf.mxu0
    %638 = vmatprep.mubr.bf16.mxu0 %v288
    %639 = vmatmul.mubr.bf16.gmra.mxu0 %v287
    %v640 = vpop.f32.mrf.mxu0
    %v641 = vadd.f32 0.0, %v640
    %v642 = vpop.f32.mrf.mxu0
    %v643 = vpop.f32.mrf.mxu0
    %v644 = vadd.f32 0.0, %v643
    %v645 = vpop.f32.mrf.mxu0
    %646 = vmatprep.mubr.bf16.mxu0 %v293
    %647 = vmatmul.mubr.bf16.gmra.mxu0 %v292
    %v648 = vpop.f32.mrf.mxu0
    %v649 = vadd.f32 0.0, %v648
    %v650 = vpop.f32.mrf.mxu0
    %v651 = vpop.f32.mrf.mxu0
    %v652 = vadd.f32 0.0, %v651
    %v653 = vpop.f32.mrf.mxu0
    %654 = vmatprep.mubr.bf16.mxu0 %v298
    %655 = vmatmul.mubr.bf16.gmra.mxu0 %v297
    %v656 = vpop.f32.mrf.mxu0
    %v657 = vadd.f32 0.0, %v656
    %v658 = vpop.f32.mrf.mxu0
    %v659 = vpop.f32.mrf.mxu0
    %v660 = vadd.f32 0.0, %v659
    %v661 = vpop.f32.mrf.mxu0
    %662 = vmatprep.mubr.bf16.mxu0 %v303
    %663 = vmatmul.mubr.bf16.gmra.mxu0 %v302
    %v664 = vpop.f32.mrf.mxu0
    %v665 = vadd.f32 0.0, %v664
    %v666 = vpop.f32.mrf.mxu0
    %v667 = vpop.f32.mrf.mxu0
    %v668 = vadd.f32 0.0, %v667
    %v669 = vpop.f32.mrf.mxu0
    %670 = vmatprep.mubr.bf16.mxu0 %v308
    %671 = vmatmul.mubr.bf16.gmra.mxu0 %v307
    %v672 = vpop.f32.mrf.mxu0
    %v673 = vadd.f32 0.0, %v672
    %v674 = vpop.f32.mrf.mxu0
    %v675 = vpop.f32.mrf.mxu0
    %v676 = vadd.f32 0.0, %v675
    %v677 = vpop.f32.mrf.mxu0
    %678 = vmatprep.mubr.bf16.mxu0 %v313
    %679 = vmatmul.mubr.bf16.gmra.mxu0 %v312
    %v680 = vpop.f32.mrf.mxu0
    %v681 = vadd.f32 0.0, %v680
    %v682 = vpop.f32.mrf.mxu0
    %v683 = vpop.f32.mrf.mxu0
    %v684 = vadd.f32 0.0, %v683
    %v685 = vpop.f32.mrf.mxu0
    %686 = vdwg.mxu0
    %687 = vmatprep.subr.bf16.mxu0 0
    %688 = vmatpush1.bf16.msra.mxu0 %v516
    %689 = vmatprep.subr.bf16.mxu0 0
    %690 = vmatpush1.bf16.msra.mxu0 %v515
    %691 = vmatprep.subr.bf16.mxu0 0
    %692 = vmatpush1.bf16.msra.mxu0 %v514
    %693 = vmatprep.subr.bf16.mxu0 0
    %694 = vmatpush1.bf16.msra.mxu0 %v513
    %695 = vmatprep.subr.bf16.mxu0 0
    %696 = vmatpush1.bf16.msra.mxu0 %v512
    %697 = vmatprep.subr.bf16.mxu0 0
    %698 = vmatpush1.bf16.msra.mxu0 %v511
    %699 = vmatprep.subr.bf16.mxu0 0
    %700 = vmatpush1.bf16.msra.mxu0 %v510
    %701 = vmatprep.subr.bf16.mxu0 0
    %702 = vmatpush1.bf16.msra.mxu0 %v509
    %703 = vmatprep.subr.bf16.mxu0 0
    %704 = vmatpush2.bf16.msra.mxu0 %v524
    %705 = vmatprep.subr.bf16.mxu0 0
    %706 = vmatpush2.bf16.msra.mxu0 %v523
    %707 = vmatprep.subr.bf16.mxu0 0
    %708 = vmatpush2.bf16.msra.mxu0 %v522
    %709 = vmatprep.subr.bf16.mxu0 0
    %710 = vmatpush2.bf16.msra.mxu0 %v521
    %711 = vmatprep.subr.bf16.mxu0 0
    %712 = vmatpush2.bf16.msra.mxu0 %v520
    %713 = vmatprep.subr.bf16.mxu0 0
    %714 = vmatpush2.bf16.msra.mxu0 %v519
    %715 = vmatprep.subr.bf16.mxu0 0
    %716 = vmatpush2.bf16.msra.mxu0 %v518
    %717 = vmatprep.subr.bf16.mxu0 0
    %718 = vmatpush2.bf16.msra.mxu0 %v517
    %719 = vmatprep.mubr.bf16.mxu0 %v280
    %720 = vmatmul.mubr.bf16.gmra.mxu0 %v279
    %v721 = vpop.f32.mrf.mxu0
    %v722 = vadd.f32 %v625, %v721
    %v723 = vpop.f32.mrf.mxu0
    %v724 = vpop.f32.mrf.mxu0
    %v725 = vadd.f32 %v628, %v724
    %v726 = vpop.f32.mrf.mxu0
    %727 = vmatprep.mubr.bf16.mxu0 %v285
    %728 = vmatmul.mubr.bf16.gmra.mxu0 %v284
    %v729 = vpop.f32.mrf.mxu0
    %v730 = vadd.f32 %v633, %v729
    %v731 = vpop.f32.mrf.mxu0
    %v732 = vpop.f32.mrf.mxu0
    %v733 = vadd.f32 %v636, %v732
    %v734 = vpop.f32.mrf.mxu0
    %735 = vmatprep.mubr.bf16.mxu0 %v290
    %736 = vmatmul.mubr.bf16.gmra.mxu0 %v289
    %v737 = vpop.f32.mrf.mxu0
    %v738 = vadd.f32 %v641, %v737
    %v739 = vpop.f32.mrf.mxu0
    %v740 = vpop.f32.mrf.mxu0
    %v741 = vadd.f32 %v644, %v740
    %v742 = vpop.f32.mrf.mxu0
    %743 = vmatprep.mubr.bf16.mxu0 %v295
    %744 = vmatmul.mubr.bf16.gmra.mxu0 %v294
    %v745 = vpop.f32.mrf.mxu0
    %v746 = vadd.f32 %v649, %v745
    %v747 = vpop.f32.mrf.mxu0
    %v748 = vpop.f32.mrf.mxu0
    %v749 = vadd.f32 %v652, %v748
    %v750 = vpop.f32.mrf.mxu0
    %751 = vmatprep.mubr.bf16.mxu0 %v300
    %752 = vmatmul.mubr.bf16.gmra.mxu0 %v299
    %v753 = vpop.f32.mrf.mxu0
    %v754 = vadd.f32 %v657, %v753
    %v755 = vpop.f32.mrf.mxu0
    %v756 = vpop.f32.mrf.mxu0
    %v757 = vadd.f32 %v660, %v756
    %v758 = vpop.f32.mrf.mxu0
    %759 = vmatprep.mubr.bf16.mxu0 %v305
    %760 = vmatmul.mubr.bf16.gmra.mxu0 %v304
    %v761 = vpop.f32.mrf.mxu0
    %v762 = vadd.f32 %v665, %v761
    %v763 = vpop.f32.mrf.mxu0
    %v764 = vpop.f32.mrf.mxu0
    %v765 = vadd.f32 %v668, %v764
    %v766 = vpop.f32.mrf.mxu0
    %767 = vmatprep.mubr.bf16.mxu0 %v310
    %768 = vmatmul.mubr.bf16.gmra.mxu0 %v309
    %v769 = vpop.f32.mrf.mxu0
    %v770 = vadd.f32 %v673, %v769
    %v771 = vpop.f32.mrf.mxu0
    %v772 = vpop.f32.mrf.mxu0
    %v773 = vadd.f32 %v676, %v772
    %v774 = vpop.f32.mrf.mxu0
    %775 = vmatprep.mubr.bf16.mxu0 %v315
    %776 = vmatmul.mubr.bf16.gmra.mxu0 %v314
    %v777 = vpop.f32.mrf.mxu0
    %v778 = vadd.f32 %v681, %v777
    %v779 = vpop.f32.mrf.mxu0
    %v780 = vpop.f32.mrf.mxu0
    %v781 = vadd.f32 %v684, %v780
    %v782 = vpop.f32.mrf.mxu0
    %783 = vdwg.mxu0
    %784 = vmatprep.subr.bf16.mxu0 0
    %785 = vmatpush1.bf16.msra.mxu0 0
    %786 = vmatprep.subr.bf16.mxu0 0
    %787 = vmatpush1.bf16.msra.mxu0 0
    %788 = vmatprep.subr.bf16.mxu0 0
    %789 = vmatpush1.bf16.msra.mxu0 0
    %790 = vmatprep.subr.bf16.mxu0 0
    %791 = vmatpush1.bf16.msra.mxu0 0
    %792 = vmatprep.subr.bf16.mxu0 0
    %793 = vmatpush1.bf16.msra.mxu0 %v528
    %794 = vmatprep.subr.bf16.mxu0 0
    %795 = vmatpush1.bf16.msra.mxu0 %v527
    %796 = vmatprep.subr.bf16.mxu0 0
    %797 = vmatpush1.bf16.msra.mxu0 %v526
    %798 = vmatprep.subr.bf16.mxu0 0
    %799 = vmatpush1.bf16.msra.mxu0 %v525
    %800 = vmatprep.subr.bf16.mxu0 0
    %801 = vmatpush2.bf16.msra.mxu0 0
    %802 = vmatprep.subr.bf16.mxu0 0
    %803 = vmatpush2.bf16.msra.mxu0 0
    %804 = vmatprep.subr.bf16.mxu0 0
    %805 = vmatpush2.bf16.msra.mxu0 0
    %806 = vmatprep.subr.bf16.mxu0 0
    %807 = vmatpush2.bf16.msra.mxu0 0
    %808 = vmatprep.subr.bf16.mxu0 0
    %809 = vmatpush2.bf16.msra.mxu0 0
    %810 = vmatprep.subr.bf16.mxu0 0
    %811 = vmatpush2.bf16.msra.mxu0 0
    %812 = vmatprep.subr.bf16.mxu0 0
    %813 = vmatpush2.bf16.msra.mxu0 0
    %814 = vmatprep.subr.bf16.mxu0 0
    %815 = vmatpush2.bf16.msra.mxu0 0
    %816 = vmatprep.mubr.bf16.mxu0 0
    %817 = vmatmul.mubr.bf16.gmra.mxu0 %v567
    %v818 = vpop.f32.mrf.mxu0
    %v819 = vadd.f32 %v722, %v818
    %v820 = vpop.f32.mrf.mxu0
    %v821 = vpop.f32.mrf.mxu0
    %v822 = vadd.f32 %v725, %v821
    %v823 = vpop.f32.mrf.mxu0
    %824 = vmatprep.mubr.bf16.mxu0 0
    %825 = vmatmul.mubr.bf16.gmra.mxu0 %v570
    %v826 = vpop.f32.mrf.mxu0
    %v827 = vadd.f32 %v730, %v826
    %v828 = vpop.f32.mrf.mxu0
    %v829 = vpop.f32.mrf.mxu0
    %v830 = vadd.f32 %v733, %v829
    %v831 = vpop.f32.mrf.mxu0
    %832 = vmatprep.mubr.bf16.mxu0 0
    %833 = vmatmul.mubr.bf16.gmra.mxu0 %v573
    %v834 = vpop.f32.mrf.mxu0
    %v835 = vadd.f32 %v738, %v834
    %v836 = vpop.f32.mrf.mxu0
    %v837 = vpop.f32.mrf.mxu0
    %v838 = vadd.f32 %v741, %v837
    %v839 = vpop.f32.mrf.mxu0
    %840 = vmatprep.mubr.bf16.mxu0 0
    %841 = vmatmul.mubr.bf16.gmra.mxu0 %v576
    %v842 = vpop.f32.mrf.mxu0
    %v843 = vadd.f32 %v746, %v842
    %v844 = vpop.f32.mrf.mxu0
    %v845 = vpop.f32.mrf.mxu0
    %v846 = vadd.f32 %v749, %v845
    %v847 = vpop.f32.mrf.mxu0
    %848 = vmatprep.mubr.bf16.mxu0 0
    %849 = vmatmul.mubr.bf16.gmra.mxu0 %v579
    %v850 = vpop.f32.mrf.mxu0
    %v851 = vadd.f32 %v754, %v850
    %v852 = vpop.f32.mrf.mxu0
    %v853 = vpop.f32.mrf.mxu0
    %v854 = vadd.f32 %v757, %v853
    %v855 = vpop.f32.mrf.mxu0
    %856 = vmatprep.mubr.bf16.mxu0 0
    %857 = vmatmul.mubr.bf16.gmra.mxu0 %v582
    %v858 = vpop.f32.mrf.mxu0
    %v859 = vadd.f32 %v762, %v858
    %v860 = vpop.f32.mrf.mxu0
    %v861 = vpop.f32.mrf.mxu0
    %v862 = vadd.f32 %v765, %v861
    %v863 = vpop.f32.mrf.mxu0
    %864 = vmatprep.mubr.bf16.mxu0 0
    %865 = vmatmul.mubr.bf16.gmra.mxu0 %v585
    %v866 = vpop.f32.mrf.mxu0
    %v867 = vadd.f32 %v770, %v866
    %v868 = vpop.f32.mrf.mxu0
    %v869 = vpop.f32.mrf.mxu0
    %v870 = vadd.f32 %v773, %v869
    %v871 = vpop.f32.mrf.mxu0
    %872 = vmatprep.mubr.bf16.mxu0 0
    %873 = vmatmul.mubr.bf16.gmra.mxu0 %v588
    %v874 = vpop.f32.mrf.mxu0
    %v875 = vadd.f32 %v778, %v874
    %v876 = vpop.f32.mrf.mxu0
    %v877 = vpop.f32.mrf.mxu0
    %v878 = vadd.f32 %v781, %v877
    %v879 = vpop.f32.mrf.mxu0
    %880 = vdwg.mxu0
    %vm881 = vcmask 261120
    %882 = vst.msk [vmem:[%s2] sm:$0xff] %vm881, %v819
    %883 = vst.msk [vmem:[%s2 + $0x8] sm:$0xff] %vm881, %v822
    %884 = vst.msk [vmem:[%s2 + $0x10] sm:$0xff] %vm881, %v827
    %885 = vst.msk [vmem:[%s2 + $0x18] sm:$0xff] %vm881, %v830
    %886 = vst.msk [vmem:[%s2 + $0x20] sm:$0xff] %vm881, %v835
    %887 = vst.msk [vmem:[%s2 + $0x28] sm:$0xff] %vm881, %v838
    %888 = vst.msk [vmem:[%s2 + $0x30] sm:$0xff] %vm881, %v843
    %889 = vst.msk [vmem:[%s2 + $0x38] sm:$0xff] %vm881, %v846
    %890 = vst.msk [vmem:[%s2 + $0x40] sm:$0xff] %vm881, %v851
    %891 = vst.msk [vmem:[%s2 + $0x48] sm:$0xff] %vm881, %v854
    %892 = vst.msk [vmem:[%s2 + $0x50] sm:$0xff] %vm881, %v859
    %893 = vst.msk [vmem:[%s2 + $0x58] sm:$0xff] %vm881, %v862
    %894 = vst.msk [vmem:[%s2 + $0x60] sm:$0xff] %vm881, %v867
    %895 = vst.msk [vmem:[%s2 + $0x68] sm:$0xff] %vm881, %v870
    %896 = vst.msk [vmem:[%s2 + $0x70] sm:$0xff] %vm881, %v875
    %897 = vst.msk [vmem:[%s2 + $0x78] sm:$0xff] %vm881, %v878
    %p898 = scmp.eq.s32.totalorder 0, 0
    // Predicated region
    $region14: #{_lambda_.6} parent=1 // pred_check
      %p899 = pneg %p898
    $region15: #{_lambda_.6} parent=1 // pred_check_branch
      %901 = sbr.rel (%p899) target = $region17
    $region16: #{_lambda_.6} parent=1 // pred_region
      %vm902 = vcmask 7168
      %903 = vst.msk [vmem:[%s3] sm:$0xff] %vm902, 0.0
      %904 = vst.msk [vmem:[%s3 + $0x8] sm:$0xff] %vm902, 0.0
      %905 = vst.msk [vmem:[%s3 + $0x10] sm:$0xff] %vm902, 0.0
      %906 = vst.msk [vmem:[%s3 + $0x18] sm:$0xff] %vm902, 0.0
      %907 = vst.msk [vmem:[%s3 + $0x20] sm:$0xff] %vm902, 0.0
      %908 = vst.msk [vmem:[%s3 + $0x28] sm:$0xff] %vm902, 0.0
      %909 = vst.msk [vmem:[%s3 + $0x30] sm:$0xff] %vm902, 0.0
      %910 = vst.msk [vmem:[%s3 + $0x38] sm:$0xff] %vm902, 0.0
      %911 = vst.msk [vmem:[%s3 + $0x40] sm:$0xff] %vm902, 0.0
      %912 = vst.msk [vmem:[%s3 + $0x48] sm:$0xff] %vm902, 0.0
      %913 = vst.msk [vmem:[%s3 + $0x50] sm:$0xff] %vm902, 0.0
      %914 = vst.msk [vmem:[%s3 + $0x58] sm:$0xff] %vm902, 0.0
      %915 = vst.msk [vmem:[%s3 + $0x60] sm:$0xff] %vm902, 0.0
      %916 = vst.msk [vmem:[%s3 + $0x68] sm:$0xff] %vm902, 0.0
      %917 = vst.msk [vmem:[%s3 + $0x70] sm:$0xff] %vm902, 0.0
      %918 = vst.msk [vmem:[%s3 + $0x78] sm:$0xff] %vm902, 0.0
      %919 = vst.msk [vmem:[%s4] sm:$0xff] %vm902, 0.0
      %920 = vst.msk [vmem:[%s4 + $0x8] sm:$0xff] %vm902, 0.0
      %921 = vst.msk [vmem:[%s4 + $0x10] sm:$0xff] %vm902, 0.0
      %922 = vst.msk [vmem:[%s4 + $0x18] sm:$0xff] %vm902, 0.0
      %923 = vst.msk [vmem:[%s4 + $0x20] sm:$0xff] %vm902, 0.0
      %924 = vst.msk [vmem:[%s4 + $0x28] sm:$0xff] %vm902, 0.0
      %925 = vst.msk [vmem:[%s4 + $0x30] sm:$0xff] %vm902, 0.0
      %926 = vst.msk [vmem:[%s4 + $0x38] sm:$0xff] %vm902, 0.0
      %927 = vst.msk [vmem:[%s4 + $0x40] sm:$0xff] %vm902, 0.0
      %928 = vst.msk [vmem:[%s4 + $0x48] sm:$0xff] %vm902, 0.0
      %929 = vst.msk [vmem:[%s4 + $0x50] sm:$0xff] %vm902, 0.0
      %930 = vst.msk [vmem:[%s4 + $0x58] sm:$0xff] %vm902, 0.0
      %931 = vst.msk [vmem:[%s4 + $0x60] sm:$0xff] %vm902, 0.0
      %932 = vst.msk [vmem:[%s4 + $0x68] sm:$0xff] %vm902, 0.0
      %933 = vst.msk [vmem:[%s4 + $0x70] sm:$0xff] %vm902, 0.0
      %934 = vst.msk [vmem:[%s4 + $0x78] sm:$0xff] %vm902, 0.0
    $region17: #{_lambda_.6} parent=1 // pred_fallthru
      _
    %v935 = vld [vmem:[%s3] sm:$0xff]
    %v936 = vld [vmem:[%s3 + $0x8] sm:$0xff]
    %v937 = vld [vmem:[%s3 + $0x10] sm:$0xff]
    %v938 = vld [vmem:[%s3 + $0x18] sm:$0xff]
    %v939 = vld [vmem:[%s3 + $0x20] sm:$0xff]
    %v940 = vld [vmem:[%s3 + $0x28] sm:$0xff]
    %v941 = vld [vmem:[%s3 + $0x30] sm:$0xff]
    %v942 = vld [vmem:[%s3 + $0x38] sm:$0xff]
    %v943 = vld [vmem:[%s3 + $0x40] sm:$0xff]
    %v944 = vld [vmem:[%s3 + $0x48] sm:$0xff]
    %v945 = vld [vmem:[%s3 + $0x50] sm:$0xff]
    %v946 = vld [vmem:[%s3 + $0x58] sm:$0xff]
    %v947 = vld [vmem:[%s3 + $0x60] sm:$0xff]
    %v948 = vld [vmem:[%s3 + $0x68] sm:$0xff]
    %v949 = vld [vmem:[%s3 + $0x70] sm:$0xff]
    %v950 = vld [vmem:[%s3 + $0x78] sm:$0xff]
    %v951 = vsel %vm881, %v819, 0.0
    %952 = vadd.xlane.f32.xlu0 %v951
    %v953 = vpop.xlane.xlu0 %952
    %v954 = vsel %vm881, %v822, 0.0
    %955 = vadd.xlane.f32.xlu0 %v954
    %v956 = vpop.xlane.xlu0 %955
    %v957 = vsel %vm881, %v827, 0.0
    %958 = vadd.xlane.f32.xlu0 %v957
    %v959 = vpop.xlane.xlu0 %958
    %v960 = vsel %vm881, %v830, 0.0
    %961 = vadd.xlane.f32.xlu0 %v960
    %v962 = vpop.xlane.xlu0 %961
    %v963 = vsel %vm881, %v835, 0.0
    %964 = vadd.xlane.f32.xlu0 %v963
    %v965 = vpop.xlane.xlu0 %964
    %v966 = vsel %vm881, %v838, 0.0
    %967 = vadd.xlane.f32.xlu0 %v966
    %v968 = vpop.xlane.xlu0 %967
    %v969 = vsel %vm881, %v843, 0.0
    %970 = vadd.xlane.f32.xlu0 %v969
    %v971 = vpop.xlane.xlu0 %970
    %v972 = vsel %vm881, %v846, 0.0
    %973 = vadd.xlane.f32.xlu0 %v972
    %v974 = vpop.xlane.xlu0 %973
    %v975 = vsel %vm881, %v851, 0.0
    %976 = vadd.xlane.f32.xlu0 %v975
    %v977 = vpop.xlane.xlu0 %976
    %v978 = vsel %vm881, %v854, 0.0
    %979 = vadd.xlane.f32.xlu0 %v978
    %v980 = vpop.xlane.xlu0 %979
    %v981 = vsel %vm881, %v859, 0.0
    %982 = vadd.xlane.f32.xlu0 %v981
    %v983 = vpop.xlane.xlu0 %982
    %v984 = vsel %vm881, %v862, 0.0
    %985 = vadd.xlane.f32.xlu0 %v984
    %v986 = vpop.xlane.xlu0 %985
    %v987 = vsel %vm881, %v867, 0.0
    %988 = vadd.xlane.f32.xlu0 %v987
    %v989 = vpop.xlane.xlu0 %988
    %v990 = vsel %vm881, %v870, 0.0
    %991 = vadd.xlane.f32.xlu0 %v990
    %v992 = vpop.xlane.xlu0 %991
    %v993 = vsel %vm881, %v875, 0.0
    %994 = vadd.xlane.f32.xlu0 %v993
    %v995 = vpop.xlane.xlu0 %994
    %v996 = vsel %vm881, %v878, 0.0
    %997 = vadd.xlane.f32.xlu0 %v996
    %v998 = vpop.xlane.xlu0 %997
    %v999 = vadd.f32 %v935, %v953
    %v1000 = vadd.f32 %v936, %v956
    %v1001 = vadd.f32 %v937, %v959
    %v1002 = vadd.f32 %v938, %v962
    %v1003 = vadd.f32 %v939, %v965
    %v1004 = vadd.f32 %v940, %v968
    %v1005 = vadd.f32 %v941, %v971
    %v1006 = vadd.f32 %v942, %v974
    %v1007 = vadd.f32 %v943, %v977
    %v1008 = vadd.f32 %v944, %v980
    %v1009 = vadd.f32 %v945, %v983
    %v1010 = vadd.f32 %v946, %v986
    %v1011 = vadd.f32 %v947, %v989
    %v1012 = vadd.f32 %v948, %v992
    %v1013 = vadd.f32 %v949, %v995
    %v1014 = vadd.f32 %v950, %v998
    %vm1015 = vcmask 7168
    %1016 = vst.msk [vmem:[%s3] sm:$0xff] %vm1015, %v999
    %1017 = vst.msk [vmem:[%s3 + $0x8] sm:$0xff] %vm1015, %v1000
    %1018 = vst.msk [vmem:[%s3 + $0x10] sm:$0xff] %vm1015, %v1001
    %1019 = vst.msk [vmem:[%s3 + $0x18] sm:$0xff] %vm1015, %v1002
    %1020 = vst.msk [vmem:[%s3 + $0x20] sm:$0xff] %vm1015, %v1003
    %1021 = vst.msk [vmem:[%s3 + $0x28] sm:$0xff] %vm1015, %v1004
    %1022 = vst.msk [vmem:[%s3 + $0x30] sm:$0xff] %vm1015, %v1005
    %1023 = vst.msk [vmem:[%s3 + $0x38] sm:$0xff] %vm1015, %v1006
    %1024 = vst.msk [vmem:[%s3 + $0x40] sm:$0xff] %vm1015, %v1007
    %1025 = vst.msk [vmem:[%s3 + $0x48] sm:$0xff] %vm1015, %v1008
    %1026 = vst.msk [vmem:[%s3 + $0x50] sm:$0xff] %vm1015, %v1009
    %1027 = vst.msk [vmem:[%s3 + $0x58] sm:$0xff] %vm1015, %v1010
    %1028 = vst.msk [vmem:[%s3 + $0x60] sm:$0xff] %vm1015, %v1011
    %1029 = vst.msk [vmem:[%s3 + $0x68] sm:$0xff] %vm1015, %v1012
    %1030 = vst.msk [vmem:[%s3 + $0x70] sm:$0xff] %vm1015, %v1013
    %1031 = vst.msk [vmem:[%s3 + $0x78] sm:$0xff] %vm1015, %v1014
    %v1032 = vld [vmem:[%s4] sm:$0xff]
    %v1033 = vld [vmem:[%s4 + $0x8] sm:$0xff]
    %v1034 = vld [vmem:[%s4 + $0x10] sm:$0xff]
    %v1035 = vld [vmem:[%s4 + $0x18] sm:$0xff]
    %v1036 = vld [vmem:[%s4 + $0x20] sm:$0xff]
    %v1037 = vld [vmem:[%s4 + $0x28] sm:$0xff]
    %v1038 = vld [vmem:[%s4 + $0x30] sm:$0xff]
    %v1039 = vld [vmem:[%s4 + $0x38] sm:$0xff]
    %v1040 = vld [vmem:[%s4 + $0x40] sm:$0xff]
    %v1041 = vld [vmem:[%s4 + $0x48] sm:$0xff]
    %v1042 = vld [vmem:[%s4 + $0x50] sm:$0xff]
    %v1043 = vld [vmem:[%s4 + $0x58] sm:$0xff]
    %v1044 = vld [vmem:[%s4 + $0x60] sm:$0xff]
    %v1045 = vld [vmem:[%s4 + $0x68] sm:$0xff]
    %v1046 = vld [vmem:[%s4 + $0x70] sm:$0xff]
    %v1047 = vld [vmem:[%s4 + $0x78] sm:$0xff]
    %v1048 = vmul.f32 %v819, %v819
    %v1049 = vmul.f32 %v822, %v822
    %v1050 = vmul.f32 %v827, %v827
    %v1051 = vmul.f32 %v830, %v830
    %v1052 = vmul.f32 %v835, %v835
    %v1053 = vmul.f32 %v838, %v838
    %v1054 = vmul.f32 %v843, %v843
    %v1055 = vmul.f32 %v846, %v846
    %v1056 = vmul.f32 %v851, %v851
    %v1057 = vmul.f32 %v854, %v854
    %v1058 = vmul.f32 %v859, %v859
    %v1059 = vmul.f32 %v862, %v862
    %v1060 = vmul.f32 %v867, %v867
    %v1061 = vmul.f32 %v870, %v870
    %v1062 = vmul.f32 %v875, %v875
    %v1063 = vmul.f32 %v878, %v878
    %v1064 = vsel %vm881, %v1048, 0.0
    %1065 = vadd.xlane.f32.xlu0 %v1064
    %v1066 = vpop.xlane.xlu0 %1065
    %v1067 = vsel %vm881, %v1049, 0.0
    %1068 = vadd.xlane.f32.xlu0 %v1067
    %v1069 = vpop.xlane.xlu0 %1068
    %v1070 = vsel %vm881, %v1050, 0.0
    %1071 = vadd.xlane.f32.xlu0 %v1070
    %v1072 = vpop.xlane.xlu0 %1071
    %v1073 = vsel %vm881, %v1051, 0.0
    %1074 = vadd.xlane.f32.xlu0 %v1073
    %v1075 = vpop.xlane.xlu0 %1074
    %v1076 = vsel %vm881, %v1052, 0.0
    %1077 = vadd.xlane.f32.xlu0 %v1076
    %v1078 = vpop.xlane.xlu0 %1077
    %v1079 = vsel %vm881, %v1053, 0.0
    %1080 = vadd.xlane.f32.xlu0 %v1079
    %v1081 = vpop.xlane.xlu0 %1080
    %v1082 = vsel %vm881, %v1054, 0.0
    %1083 = vadd.xlane.f32.xlu0 %v1082
    %v1084 = vpop.xlane.xlu0 %1083
    %v1085 = vsel %vm881, %v1055, 0.0
    %1086 = vadd.xlane.f32.xlu0 %v1085
    %v1087 = vpop.xlane.xlu0 %1086
    %v1088 = vsel %vm881, %v1056, 0.0
    %1089 = vadd.xlane.f32.xlu0 %v1088
    %v1090 = vpop.xlane.xlu0 %1089
    %v1091 = vsel %vm881, %v1057, 0.0
    %1092 = vadd.xlane.f32.xlu0 %v1091
    %v1093 = vpop.xlane.xlu0 %1092
    %v1094 = vsel %vm881, %v1058, 0.0
    %1095 = vadd.xlane.f32.xlu0 %v1094
    %v1096 = vpop.xlane.xlu0 %1095
    %v1097 = vsel %vm881, %v1059, 0.0
    %1098 = vadd.xlane.f32.xlu0 %v1097
    %v1099 = vpop.xlane.xlu0 %1098
    %v1100 = vsel %vm881, %v1060, 0.0
    %1101 = vadd.xlane.f32.xlu0 %v1100
    %v1102 = vpop.xlane.xlu0 %1101
    %v1103 = vsel %vm881, %v1061, 0.0
    %1104 = vadd.xlane.f32.xlu0 %v1103
    %v1105 = vpop.xlane.xlu0 %1104
    %v1106 = vsel %vm881, %v1062, 0.0
    %1107 = vadd.xlane.f32.xlu0 %v1106
    %v1108 = vpop.xlane.xlu0 %1107
    %v1109 = vsel %vm881, %v1063, 0.0
    %1110 = vadd.xlane.f32.xlu0 %v1109
    %v1111 = vpop.xlane.xlu0 %1110
    %v1112 = vadd.f32 %v1032, %v1066
    %v1113 = vadd.f32 %v1033, %v1069
    %v1114 = vadd.f32 %v1034, %v1072
    %v1115 = vadd.f32 %v1035, %v1075
    %v1116 = vadd.f32 %v1036, %v1078
    %v1117 = vadd.f32 %v1037, %v1081
    %v1118 = vadd.f32 %v1038, %v1084
    %v1119 = vadd.f32 %v1039, %v1087
    %v1120 = vadd.f32 %v1040, %v1090
    %v1121 = vadd.f32 %v1041, %v1093
    %v1122 = vadd.f32 %v1042, %v1096
    %v1123 = vadd.f32 %v1043, %v1099
    %v1124 = vadd.f32 %v1044, %v1102
    %v1125 = vadd.f32 %v1045, %v1105
    %v1126 = vadd.f32 %v1046, %v1108
    %v1127 = vadd.f32 %v1047, %v1111
    %1128 = vst.msk [vmem:[%s4] sm:$0xff] %vm1015, %v1112
    %1129 = vst.msk [vmem:[%s4 + $0x8] sm:$0xff] %vm1015, %v1113
    %1130 = vst.msk [vmem:[%s4 + $0x10] sm:$0xff] %vm1015, %v1114
    %1131 = vst.msk [vmem:[%s4 + $0x18] sm:$0xff] %vm1015, %v1115
    %1132 = vst.msk [vmem:[%s4 + $0x20] sm:$0xff] %vm1015, %v1116
    %1133 = vst.msk [vmem:[%s4 + $0x28] sm:$0xff] %vm1015, %v1117
    %1134 = vst.msk [vmem:[%s4 + $0x30] sm:$0xff] %vm1015, %v1118
    %1135 = vst.msk [vmem:[%s4 + $0x38] sm:$0xff] %vm1015, %v1119
    %1136 = vst.msk [vmem:[%s4 + $0x40] sm:$0xff] %vm1015, %v1120
    %1137 = vst.msk [vmem:[%s4 + $0x48] sm:$0xff] %vm1015, %v1121
    %1138 = vst.msk [vmem:[%s4 + $0x50] sm:$0xff] %vm1015, %v1122
    %1139 = vst.msk [vmem:[%s4 + $0x58] sm:$0xff] %vm1015, %v1123
    %1140 = vst.msk [vmem:[%s4 + $0x60] sm:$0xff] %vm1015, %v1124
    %1141 = vst.msk [vmem:[%s4 + $0x68] sm:$0xff] %vm1015, %v1125
    %1142 = vst.msk [vmem:[%s4 + $0x70] sm:$0xff] %vm1015, %v1126
    %1143 = vst.msk [vmem:[%s4 + $0x78] sm:$0xff] %vm1015, %v1127
    // Predicated region
    $region18: #{_lambda_.6} parent=1 // pred_check
      _
    $region19: #{_lambda_.6} parent=1 // pred_check_branch
      %1145 = sbr.rel (0) target = $region21
    $region20: #{_lambda_.6} parent=1 // pred_region
      _
    $region21: #{_lambda_.6} parent=1 // pred_fallthru
      _
    // Predicated region
    $region22: #{_lambda_.6} parent=1 // pred_check
      _
    $region23: #{_lambda_.6} parent=1 // pred_check_branch
      %1147 = sbr.rel (0) target = $region25
    $region24: #{_lambda_.6} parent=1 // pred_region
      _
    $region25: #{_lambda_.6} parent=1 // pred_fallthru
      _
    // Predicated region
    $region26: #{_lambda_.6} parent=1 // pred_check
      _
    $region27: #{_lambda_.6} parent=1 // pred_check_branch
      %1149 = sbr.rel (0) target = $region29
    $region28: #{_lambda_.6} parent=1 // pred_region
      _
    $region29: #{_lambda_.6} parent=1 // pred_fallthru
      _
    // Predicated region
    $region30: #{_lambda_.6} parent=1 // pred_check
      _
    $region31: #{_lambda_.6} parent=1 // pred_check_branch
      %1151 = sbr.rel (0) target = $region33
    $region32: #{_lambda_.6} parent=1 // pred_region
      _
    $region33: #{_lambda_.6} parent=1 // pred_fallthru
      _
    // Predicated region
    $region34: #{_lambda_.6} parent=1 // pred_check
      _
    $region35: #{_lambda_.6} parent=1 // pred_check_branch
      %1153 = sbr.rel (0) target = $region37
    $region36: #{_lambda_.6} parent=1 // pred_region
      _
    $region37: #{_lambda_.6} parent=1 // pred_fallthru
      _
    // Predicated region
    $region38: #{_lambda_.6} parent=1 // pred_check
      _
    $region39: #{_lambda_.6} parent=1 // pred_check_branch
      %1155 = sbr.rel (0) target = $region41
    $region40: #{_lambda_.6} parent=1 // pred_region
      _
    $region41: #{_lambda_.6} parent=1 // pred_fallthru
      _
    %1156 = vsyncpa [#allocation3], 1

// kernel: squeeze.12
$region0: #{squeeze.12}
  %s0 = inlined_call_operand.vmem [shape: f32[64], index: 0, kind: input, shape index: {}]
  %s1 = inlined_call_operand.vmem [shape: f32[4,16], index: 1, kind: output, shape index: {}]
  $region1: #{squeeze.12} parent=0
    #allocation0 [shape = 'u8[4096]{0}', space=vmem, size = 0x1000, scoped, tag = 'scoped mem for output reshape']
    #allocation1 [shape = 'u8[4096]{0}', space=vmem, size = 0x1000, scoped, tag = 'scoped mem for input reshape']
    %s3 = sshll.u32 1, 1
    %s4 = ssub.s32 %s3, 1
    %v5 = vld [vmem:[%s0] sm:%s4]
    %6 = vst [vmem:[#allocation1] sm:%s4] %v5
    %v7 = vld [vmem:[#allocation1] sm:$0x1]
    %vm8 = vcmask 130048
    %9 = vst.msk [vmem:[#allocation0] sm:$0x1] %vm8, %v7
    %v10 = vld [vmem:[#allocation1] sm:$0x1]
    %11 = vrot.lane.b32.xlu0 %v10, 112
    %v12 = vpop.permute.xlu0 %11
    %vm13 = vcmask 130048
    %s14 = scalar_lea.vmem [#allocation0], 1
    %15 = vst.msk [vmem:[%s14] sm:$0x1] %vm13, %v12
    %v16 = vld [vmem:[#allocation1] sm:$0x1]
    %17 = vrot.lane.b32.xlu0 %v16, 96
    %v18 = vpop.permute.xlu0 %17
    %vm19 = vcmask 130048
    %s20 = scalar_lea.vmem [#allocation0], 2
    %21 = vst.msk [vmem:[%s20] sm:$0x1] %vm19, %v18
    %v22 = vld [vmem:[#allocation1] sm:$0x1]
    %23 = vrot.lane.b32.xlu0 %v22, 80
    %v24 = vpop.permute.xlu0 %23
    %vm25 = vcmask 130048
    %s26 = scalar_lea.vmem [#allocation0], 3
    %27 = vst.msk [vmem:[%s26] sm:$0x1] %vm25, %v24
    %s29 = sshll.u32 1, 4
    %s30 = ssub.s32 %s29, 1
    %v32 = vld [vmem:[#allocation0] sm:%s30]
    %s33 = sshll.u32 1, 4
    %s34 = ssub.s32 %s33, 1
    %35 = vst [vmem:[%s1] sm:%s34] %v32

// kernel: _lambda_.7
$region0: #{_lambda_.7}
  #allocation0 [shape = 'u32[]', space=smem, size = 0x4, offset = 0x4, fixed_abs, tag = 'smem constant byte address 0x4 - core index']
  #allocation1 [shape = 'u32[144,128]{1,0:T(1,128)}', space=vmem, size = 0x12000, scoped, tag = 'internal scratch']
  %s0 = inlined_call_operand.vmem [shape: bf16[64,288], index: 0, kind: input, shape index: {}]
  %s1 = inlined_call_operand.vmem [shape: bf16[288,128], index: 1, kind: input, shape index: {}]
  %s2 = inlined_call_operand.vmem [shape: f32[64,128], index: 2, kind: output, shape index: {0}]
  %s3 = inlined_call_operand.vmem [shape: f32[64,1], index: 3, kind: output, shape index: {1}]
  %s4 = inlined_call_operand.vmem [shape: f32[64,1], index: 4, kind: output, shape index: {2}]
  %5 = xla_tuple %s2, %s3, %s4
  %s6 = sld [smem:[#allocation0]]
  $region38: #{_lambda_.7} parent=0
    _
  %s8 = ssub.s32 1, %s6
  %s9 = scalar_select 0, %s8, %s6
  // Predicated region
  $region2: #{_lambda_.7} parent=0 // pred_check
    _
  $region3: #{_lambda_.7} parent=0 // pred_check_branch
    %11 = sbr.rel (0) target = $region5
  $region4: #{_lambda_.7} parent=0 // pred_region
    _
  $region5: #{_lambda_.7} parent=0 // pred_fallthru
    _
  // Predicated region
  $region6: #{_lambda_.7} parent=0 // pred_check
    _
  $region7: #{_lambda_.7} parent=0 // pred_check_branch
    %13 = sbr.rel (0) target = $region9
  $region8: #{_lambda_.7} parent=0 // pred_region
    _
  $region9: #{_lambda_.7} parent=0 // pred_fallthru
    _
  %v15 = vld [vmem:[%s0] sm:$0xff]
  %v16 = vld [vmem:[%s0 + $0x8] sm:$0xf]
  %v17 = vld [vmem:[%s0 + $0xc] sm:$0xff]
  %v18 = vld [vmem:[%s0 + $0x14] sm:$0xf]
  %v19 = vld [vmem:[%s0 + $0x18] sm:$0xff]
  %v20 = vld [vmem:[%s0 + $0x20] sm:$0xf]
  %v21 = vld [vmem:[%s0 + $0x24] sm:$0xff]
  %v22 = vld [vmem:[%s0 + $0x2c] sm:$0xf]
  %v23 = vld [vmem:[%s0 + $0x30] sm:$0xff]
  %v24 = vld [vmem:[%s0 + $0x38] sm:$0xf]
  %v25 = vld [vmem:[%s0 + $0x3c] sm:$0xff]
  %v26 = vld [vmem:[%s0 + $0x44] sm:$0xf]
  %v27 = vld [vmem:[%s0 + $0x48] sm:$0xff]
  %v28 = vld [vmem:[%s0 + $0x50] sm:$0xf]
  %v29 = vld [vmem:[%s0 + $0x54] sm:$0xff]
  %v30 = vld [vmem:[%s0 + $0x5c] sm:$0xf]
  %v31 = vld [vmem:[%s1] sm:$0xf]
  %v32 = vld [vmem:[%s1 + $0x4] sm:$0xf]
  %v33 = vld [vmem:[%s1 + $0x8] sm:$0xf]
  %v34 = vld [vmem:[%s1 + $0xc] sm:$0xf]
  %v35 = vld [vmem:[%s1 + $0x10] sm:$0xf]
  %v36 = vld [vmem:[%s1 + $0x14] sm:$0xf]
  %v37 = vld [vmem:[%s1 + $0x18] sm:$0xf]
  %v38 = vld [vmem:[%s1 + $0x1c] sm:$0xf]
  %v39 = vld [vmem:[%s1 + $0x20] sm:$0xf]
  %v40 = vld [vmem:[%s1 + $0x24] sm:$0xf]
  %v41 = vld [vmem:[%s1 + $0x28] sm:$0xf]
  %v42 = vld [vmem:[%s1 + $0x2c] sm:$0xf]
  %v43 = vld [vmem:[%s1 + $0x30] sm:$0xf]
  %v44 = vld [vmem:[%s1 + $0x34] sm:$0xf]
  %v45 = vld [vmem:[%s1 + $0x38] sm:$0xf]
  %v46 = vld [vmem:[%s1 + $0x3c] sm:$0xf]
  %v47 = vld [vmem:[%s1 + $0x40] sm:$0xf]
  %v48 = vld [vmem:[%s1 + $0x44] sm:$0xf]
  %v49 = vld [vmem:[%s1 + $0x48] sm:$0xf]
  %v50 = vld [vmem:[%s1 + $0x4c] sm:$0xf]
  %v51 = vld [vmem:[%s1 + $0x50] sm:$0xf]
  %v52 = vld [vmem:[%s1 + $0x54] sm:$0xf]
  %v53 = vld [vmem:[%s1 + $0x58] sm:$0xf]
  %v54 = vld [vmem:[%s1 + $0x5c] sm:$0xf]
  %v55 = vld [vmem:[%s1 + $0x60] sm:$0xf]
  %v56 = vld [vmem:[%s1 + $0x64] sm:$0xf]
  %v57 = vld [vmem:[%s1 + $0x68] sm:$0xf]
  %v58 = vld [vmem:[%s1 + $0x6c] sm:$0xf]
  %v59 = vld [vmem:[%s1 + $0x70] sm:$0xf]
  %v60 = vld [vmem:[%s1 + $0x74] sm:$0xf]
  %v61 = vld [vmem:[%s1 + $0x78] sm:$0xf]
  %v62 = vld [vmem:[%s1 + $0x7c] sm:$0xf]
  %v63 = vld [vmem:[%s1 + $0x80] sm:$0xf]
  %v64 = vld [vmem:[%s1 + $0x84] sm:$0xf]
  %v65 = vld [vmem:[%s1 + $0x88] sm:$0xf]
  %v66 = vld [vmem:[%s1 + $0x8c] sm:$0xf]
  %v83 = vunpack.c.l.b16 %v15
  %v84 = vunpack.c.h.b16 %v15
  %v85 = vunpack.c.l.b16 %v16
  %v86 = vunpack.c.l.b16 %v17
  %v87 = vunpack.c.h.b16 %v17
  %v88 = vunpack.c.l.b16 %v18
  %v89 = vunpack.c.l.b16 %v19
  %v90 = vunpack.c.h.b16 %v19
  %v91 = vunpack.c.l.b16 %v20
  %v92 = vunpack.c.l.b16 %v21
  %v93 = vunpack.c.h.b16 %v21
  %v94 = vunpack.c.l.b16 %v22
  %v95 = vunpack.c.l.b16 %v23
  %v96 = vunpack.c.h.b16 %v23
  %v97 = vunpack.c.l.b16 %v24
  %v98 = vunpack.c.l.b16 %v25
  %v99 = vunpack.c.h.b16 %v25
  %v100 = vunpack.c.l.b16 %v26
  %v101 = vunpack.c.l.b16 %v27
  %v102 = vunpack.c.h.b16 %v27
  %v103 = vunpack.c.l.b16 %v28
  %v104 = vunpack.c.l.b16 %v29
  %v105 = vunpack.c.h.b16 %v29
  %v106 = vunpack.c.l.b16 %v30
  %v107 = vpack.c.b16 %v86, %v83
  %v108 = vpack.c.b16 %v87, %v84
  %v109 = vpack.c.b16 %v88, %v85
  %v110 = vpack.c.b16 %v92, %v89
  %v111 = vpack.c.b16 %v93, %v90
  %v112 = vpack.c.b16 %v94, %v91
  %v113 = vpack.c.b16 %v98, %v95
  %v114 = vpack.c.b16 %v99, %v96
  %v115 = vpack.c.b16 %v100, %v97
  %v116 = vpack.c.b16 %v104, %v101
  %v117 = vpack.c.b16 %v105, %v102
  %v118 = vpack.c.b16 %v106, %v103
  %v163 = vunpack.c.l.b16 %v31
  %v164 = vunpack.c.l.b16 %v32
  %v165 = vunpack.c.l.b16 %v33
  %v166 = vunpack.c.l.b16 %v34
  %v167 = vunpack.c.l.b16 %v35
  %v168 = vunpack.c.l.b16 %v36
  %v169 = vunpack.c.l.b16 %v37
  %v170 = vunpack.c.l.b16 %v38
  %v171 = vunpack.c.l.b16 %v39
  %v172 = vunpack.c.l.b16 %v40
  %v173 = vunpack.c.l.b16 %v41
  %v174 = vunpack.c.l.b16 %v42
  %v175 = vunpack.c.l.b16 %v43
  %v176 = vunpack.c.l.b16 %v44
  %v177 = vunpack.c.l.b16 %v45
  %v178 = vunpack.c.l.b16 %v46
  %v179 = vunpack.c.l.b16 %v47
  %v180 = vunpack.c.l.b16 %v48
  %v181 = vunpack.c.l.b16 %v49
  %v182 = vunpack.c.l.b16 %v50
  %v183 = vunpack.c.l.b16 %v51
  %v184 = vunpack.c.l.b16 %v52
  %v185 = vunpack.c.l.b16 %v53
  %v186 = vunpack.c.l.b16 %v54
  %v187 = vunpack.c.l.b16 %v55
  %v188 = vunpack.c.l.b16 %v56
  %v189 = vunpack.c.l.b16 %v57
  %v190 = vunpack.c.l.b16 %v58
  %v191 = vunpack.c.l.b16 %v59
  %v192 = vunpack.c.l.b16 %v60
  %v193 = vunpack.c.l.b16 %v61
  %v194 = vunpack.c.l.b16 %v62
  %v195 = vunpack.c.l.b16 %v63
  %v196 = vunpack.c.l.b16 %v64
  %v197 = vunpack.c.l.b16 %v65
  %v198 = vunpack.c.l.b16 %v66
  %v199 = vpack.c.b16 %v164, %v163
  %v200 = vpack.c.b16 %v166, %v165
  %v201 = vpack.c.b16 %v168, %v167
  %v202 = vpack.c.b16 %v170, %v169
  %v203 = vpack.c.b16 %v172, %v171
  %v204 = vpack.c.b16 %v174, %v173
  %v205 = vpack.c.b16 %v176, %v175
  %v206 = vpack.c.b16 %v178, %v177
  %v207 = vpack.c.b16 %v180, %v179
  %v208 = vpack.c.b16 %v182, %v181
  %v209 = vpack.c.b16 %v184, %v183
  %v210 = vpack.c.b16 %v186, %v185
  %v211 = vpack.c.b16 %v188, %v187
  %v212 = vpack.c.b16 %v190, %v189
  %v213 = vpack.c.b16 %v192, %v191
  %v214 = vpack.c.b16 %v194, %v193
  %v215 = vpack.c.b16 %v196, %v195
  %v216 = vpack.c.b16 %v198, %v197
  %vm235 = vcmask 261120
  %v237 = vsel %vm235, %v109, 0
  %v240 = vsel %vm235, %v112, 0
  %v243 = vsel %vm235, %v115, 0
  %v246 = vsel %vm235, %v118, 0
  %248 = vmatprep.subr.bf16.mxu0 0
  %249 = vmatpush1.bf16.msra.mxu0 %v206
  %250 = vmatprep.subr.bf16.mxu0 0
  %251 = vmatpush1.bf16.msra.mxu0 %v205
  %252 = vmatprep.subr.bf16.mxu0 0
  %253 = vmatpush1.bf16.msra.mxu0 %v204
  %254 = vmatprep.subr.bf16.mxu0 0
  %255 = vmatpush1.bf16.msra.mxu0 %v203
  %256 = vmatprep.subr.bf16.mxu0 0
  %257 = vmatpush1.bf16.msra.mxu0 %v202
  %258 = vmatprep.subr.bf16.mxu0 0
  %259 = vmatpush1.bf16.msra.mxu0 %v201
  %260 = vmatprep.subr.bf16.mxu0 0
  %261 = vmatpush1.bf16.msra.mxu0 %v200
  %262 = vmatprep.subr.bf16.mxu0 0
  %263 = vmatpush1.bf16.msra.mxu0 %v199
  %264 = vmatprep.subr.bf16.mxu0 0
  %265 = vmatpush2.bf16.msra.mxu0 %v214
  %266 = vmatprep.subr.bf16.mxu0 0
  %267 = vmatpush2.bf16.msra.mxu0 %v213
  %268 = vmatprep.subr.bf16.mxu0 0
  %269 = vmatpush2.bf16.msra.mxu0 %v212
  %270 = vmatprep.subr.bf16.mxu0 0
  %271 = vmatpush2.bf16.msra.mxu0 %v211
  %272 = vmatprep.subr.bf16.mxu0 0
  %273 = vmatpush2.bf16.msra.mxu0 %v210
  %274 = vmatprep.subr.bf16.mxu0 0
  %275 = vmatpush2.bf16.msra.mxu0 %v209
  %276 = vmatprep.subr.bf16.mxu0 0
  %277 = vmatpush2.bf16.msra.mxu0 %v208
  %278 = vmatprep.subr.bf16.mxu0 0
  %279 = vmatpush2.bf16.msra.mxu0 %v207
  %280 = vmatprep.mubr.bf16.mxu0 %v108
  %281 = vmatmul.mubr.bf16.gmra.mxu0 %v107
  %v282 = vpop.f32.mrf.mxu0
  %v283 = vadd.f32 0.0, %v282
  %v284 = vpop.f32.mrf.mxu0
  %v285 = vpop.f32.mrf.mxu0
  %v286 = vadd.f32 0.0, %v285
  %v287 = vpop.f32.mrf.mxu0
  %288 = vmatprep.mubr.bf16.mxu0 %v111
  %289 = vmatmul.mubr.bf16.gmra.mxu0 %v110
  %v290 = vpop.f32.mrf.mxu0
  %v291 = vadd.f32 0.0, %v290
  %v292 = vpop.f32.mrf.mxu0
  %v293 = vpop.f32.mrf.mxu0
  %v294 = vadd.f32 0.0, %v293
  %v295 = vpop.f32.mrf.mxu0
  %296 = vmatprep.mubr.bf16.mxu0 %v114
  %297 = vmatmul.mubr.bf16.gmra.mxu0 %v113
  %v298 = vpop.f32.mrf.mxu0
  %v299 = vadd.f32 0.0, %v298
  %v300 = vpop.f32.mrf.mxu0
  %v301 = vpop.f32.mrf.mxu0
  %v302 = vadd.f32 0.0, %v301
  %v303 = vpop.f32.mrf.mxu0
  %304 = vmatprep.mubr.bf16.mxu0 %v117
  %305 = vmatmul.mubr.bf16.gmra.mxu0 %v116
  %v306 = vpop.f32.mrf.mxu0
  %v307 = vadd.f32 0.0, %v306
  %v308 = vpop.f32.mrf.mxu0
  %v309 = vpop.f32.mrf.mxu0
  %v310 = vadd.f32 0.0, %v309
  %v311 = vpop.f32.mrf.mxu0
  %312 = vdwg.mxu0
  %313 = vmatprep.subr.bf16.mxu0 0
  %314 = vmatpush1.bf16.msra.mxu0 0
  %315 = vmatprep.subr.bf16.mxu0 0
  %316 = vmatpush1.bf16.msra.mxu0 0
  %317 = vmatprep.subr.bf16.mxu0 0
  %318 = vmatpush1.bf16.msra.mxu0 0
  %319 = vmatprep.subr.bf16.mxu0 0
  %320 = vmatpush1.bf16.msra.mxu0 0
  %321 = vmatprep.subr.bf16.mxu0 0
  %322 = vmatpush1.bf16.msra.mxu0 0
  %323 = vmatprep.subr.bf16.mxu0 0
  %324 = vmatpush1.bf16.msra.mxu0 0
  %325 = vmatprep.subr.bf16.mxu0 0
  %326 = vmatpush1.bf16.msra.mxu0 %v216
  %327 = vmatprep.subr.bf16.mxu0 0
  %328 = vmatpush1.bf16.msra.mxu0 %v215
  %329 = vmatprep.subr.bf16.mxu0 0
  %330 = vmatpush2.bf16.msra.mxu0 0
  %331 = vmatprep.subr.bf16.mxu0 0
  %332 = vmatpush2.bf16.msra.mxu0 0
  %333 = vmatprep.subr.bf16.mxu0 0
  %334 = vmatpush2.bf16.msra.mxu0 0
  %335 = vmatprep.subr.bf16.mxu0 0
  %336 = vmatpush2.bf16.msra.mxu0 0
  %337 = vmatprep.subr.bf16.mxu0 0
  %338 = vmatpush2.bf16.msra.mxu0 0
  %339 = vmatprep.subr.bf16.mxu0 0
  %340 = vmatpush2.bf16.msra.mxu0 0
  %341 = vmatprep.subr.bf16.mxu0 0
  %342 = vmatpush2.bf16.msra.mxu0 0
  %343 = vmatprep.subr.bf16.mxu0 0
  %344 = vmatpush2.bf16.msra.mxu0 0
  %345 = vmatprep.mubr.bf16.mxu0 0
  %346 = vmatmul.mubr.bf16.gmra.mxu0 %v237
  %v347 = vpop.f32.mrf.mxu0
  %v348 = vadd.f32 %v283, %v347
  %v349 = vpop.f32.mrf.mxu0
  %v350 = vpop.f32.mrf.mxu0
  %v351 = vadd.f32 %v286, %v350
  %v352 = vpop.f32.mrf.mxu0
  %353 = vmatprep.mubr.bf16.mxu0 0
  %354 = vmatmul.mubr.bf16.gmra.mxu0 %v240
  %v355 = vpop.f32.mrf.mxu0
  %v356 = vadd.f32 %v291, %v355
  %v357 = vpop.f32.mrf.mxu0
  %v358 = vpop.f32.mrf.mxu0
  %v359 = vadd.f32 %v294, %v358
  %v360 = vpop.f32.mrf.mxu0
  %361 = vmatprep.mubr.bf16.mxu0 0
  %362 = vmatmul.mubr.bf16.gmra.mxu0 %v243
  %v363 = vpop.f32.mrf.mxu0
  %v364 = vadd.f32 %v299, %v363
  %v365 = vpop.f32.mrf.mxu0
  %v366 = vpop.f32.mrf.mxu0
  %v367 = vadd.f32 %v302, %v366
  %v368 = vpop.f32.mrf.mxu0
  %369 = vmatprep.mubr.bf16.mxu0 0
  %370 = vmatmul.mubr.bf16.gmra.mxu0 %v246
  %v371 = vpop.f32.mrf.mxu0
  %v372 = vadd.f32 %v307, %v371
  %v373 = vpop.f32.mrf.mxu0
  %v374 = vpop.f32.mrf.mxu0
  %v375 = vadd.f32 %v310, %v374
  %v376 = vpop.f32.mrf.mxu0
  %377 = vdwg.mxu0
  %378 = vst [vmem:[%s2] sm:$0xff] %v348
  %379 = vst [vmem:[%s2 + $0x8] sm:$0xff] %v351
  %380 = vst [vmem:[%s2 + $0x10] sm:$0xff] %v356
  %381 = vst [vmem:[%s2 + $0x18] sm:$0xff] %v359
  %382 = vst [vmem:[%s2 + $0x20] sm:$0xff] %v364
  %383 = vst [vmem:[%s2 + $0x28] sm:$0xff] %v367
  %384 = vst [vmem:[%s2 + $0x30] sm:$0xff] %v372
  %385 = vst [vmem:[%s2 + $0x38] sm:$0xff] %v375
  %p386 = scmp.eq.s32.totalorder 0, 0
  // Predicated region
  $region10: #{_lambda_.7} parent=0 // pred_check
    %p387 = pneg %p386
  $region11: #{_lambda_.7} parent=0 // pred_check_branch
    %389 = sbr.rel (%p387) target = $region13
  $region12: #{_lambda_.7} parent=0 // pred_region
    %vm390 = vcmask 7168
    %391 = vst.msk [vmem:[%s3] sm:$0xff] %vm390, 0.0
    %392 = vst.msk [vmem:[%s3 + $0x8] sm:$0xff] %vm390, 0.0
    %393 = vst.msk [vmem:[%s3 + $0x10] sm:$0xff] %vm390, 0.0
    %394 = vst.msk [vmem:[%s3 + $0x18] sm:$0xff] %vm390, 0.0
    %395 = vst.msk [vmem:[%s3 + $0x20] sm:$0xff] %vm390, 0.0
    %396 = vst.msk [vmem:[%s3 + $0x28] sm:$0xff] %vm390, 0.0
    %397 = vst.msk [vmem:[%s3 + $0x30] sm:$0xff] %vm390, 0.0
    %398 = vst.msk [vmem:[%s3 + $0x38] sm:$0xff] %vm390, 0.0
    %399 = vst.msk [vmem:[%s4] sm:$0xff] %vm390, 0.0
    %400 = vst.msk [vmem:[%s4 + $0x8] sm:$0xff] %vm390, 0.0
    %401 = vst.msk [vmem:[%s4 + $0x10] sm:$0xff] %vm390, 0.0
    %402 = vst.msk [vmem:[%s4 + $0x18] sm:$0xff] %vm390, 0.0
    %403 = vst.msk [vmem:[%s4 + $0x20] sm:$0xff] %vm390, 0.0
    %404 = vst.msk [vmem:[%s4 + $0x28] sm:$0xff] %vm390, 0.0
    %405 = vst.msk [vmem:[%s4 + $0x30] sm:$0xff] %vm390, 0.0
    %406 = vst.msk [vmem:[%s4 + $0x38] sm:$0xff] %vm390, 0.0
  $region13: #{_lambda_.7} parent=0 // pred_fallthru
    _
  %v407 = vld [vmem:[%s3] sm:$0xff]
  %v408 = vld [vmem:[%s3 + $0x8] sm:$0xff]
  %v409 = vld [vmem:[%s3 + $0x10] sm:$0xff]
  %v410 = vld [vmem:[%s3 + $0x18] sm:$0xff]
  %v411 = vld [vmem:[%s3 + $0x20] sm:$0xff]
  %v412 = vld [vmem:[%s3 + $0x28] sm:$0xff]
  %v413 = vld [vmem:[%s3 + $0x30] sm:$0xff]
  %v414 = vld [vmem:[%s3 + $0x38] sm:$0xff]
  %415 = vadd.xlane.f32.xlu0 %v348
  %v416 = vpop.xlane.xlu0 %415
  %417 = vadd.xlane.f32.xlu0 %v351
  %v418 = vpop.xlane.xlu0 %417
  %419 = vadd.xlane.f32.xlu0 %v356
  %v420 = vpop.xlane.xlu0 %419
  %421 = vadd.xlane.f32.xlu0 %v359
  %v422 = vpop.xlane.xlu0 %421
  %423 = vadd.xlane.f32.xlu0 %v364
  %v424 = vpop.xlane.xlu0 %423
  %425 = vadd.xlane.f32.xlu0 %v367
  %v426 = vpop.xlane.xlu0 %425
  %427 = vadd.xlane.f32.xlu0 %v372
  %v428 = vpop.xlane.xlu0 %427
  %429 = vadd.xlane.f32.xlu0 %v375
  %v430 = vpop.xlane.xlu0 %429
  %v431 = vadd.f32 %v407, %v416
  %v432 = vadd.f32 %v408, %v418
  %v433 = vadd.f32 %v409, %v420
  %v434 = vadd.f32 %v410, %v422
  %v435 = vadd.f32 %v411, %v424
  %v436 = vadd.f32 %v412, %v426
  %v437 = vadd.f32 %v413, %v428
  %v438 = vadd.f32 %v414, %v430
  %vm439 = vcmask 7168
  %440 = vst.msk [vmem:[%s3] sm:$0xff] %vm439, %v431
  %441 = vst.msk [vmem:[%s3 + $0x8] sm:$0xff] %vm439, %v432
  %442 = vst.msk [vmem:[%s3 + $0x10] sm:$0xff] %vm439, %v433
  %443 = vst.msk [vmem:[%s3 + $0x18] sm:$0xff] %vm439, %v434
  %444 = vst.msk [vmem:[%s3 + $0x20] sm:$0xff] %vm439, %v435
  %445 = vst.msk [vmem:[%s3 + $0x28] sm:$0xff] %vm439, %v436
  %446 = vst.msk [vmem:[%s3 + $0x30] sm:$0xff] %vm439, %v437
  %447 = vst.msk [vmem:[%s3 + $0x38] sm:$0xff] %vm439, %v438
  %v448 = vld [vmem:[%s4] sm:$0xff]
  %v449 = vld [vmem:[%s4 + $0x8] sm:$0xff]
  %v450 = vld [vmem:[%s4 + $0x10] sm:$0xff]
  %v451 = vld [vmem:[%s4 + $0x18] sm:$0xff]
  %v452 = vld [vmem:[%s4 + $0x20] sm:$0xff]
  %v453 = vld [vmem:[%s4 + $0x28] sm:$0xff]
  %v454 = vld [vmem:[%s4 + $0x30] sm:$0xff]
  %v455 = vld [vmem:[%s4 + $0x38] sm:$0xff]
  %v456 = vmul.f32 %v348, %v348
  %v457 = vmul.f32 %v351, %v351
  %v458 = vmul.f32 %v356, %v356
  %v459 = vmul.f32 %v359, %v359
  %v460 = vmul.f32 %v364, %v364
  %v461 = vmul.f32 %v367, %v367
  %v462 = vmul.f32 %v372, %v372
  %v463 = vmul.f32 %v375, %v375
  %464 = vadd.xlane.f32.xlu0 %v456
  %v465 = vpop.xlane.xlu0 %464
  %466 = vadd.xlane.f32.xlu0 %v457
  %v467 = vpop.xlane.xlu0 %466
  %468 = vadd.xlane.f32.xlu0 %v458
  %v469 = vpop.xlane.xlu0 %468
  %470 = vadd.xlane.f32.xlu0 %v459
  %v471 = vpop.xlane.xlu0 %470
  %472 = vadd.xlane.f32.xlu0 %v460
  %v473 = vpop.xlane.xlu0 %472
  %474 = vadd.xlane.f32.xlu0 %v461
  %v475 = vpop.xlane.xlu0 %474
  %476 = vadd.xlane.f32.xlu0 %v462
  %v477 = vpop.xlane.xlu0 %476
  %478 = vadd.xlane.f32.xlu0 %v463
  %v479 = vpop.xlane.xlu0 %478
  %v480 = vadd.f32 %v448, %v465
  %v481 = vadd.f32 %v449, %v467
  %v482 = vadd.f32 %v450, %v469
  %v483 = vadd.f32 %v451, %v471
  %v484 = vadd.f32 %v452, %v473
  %v485 = vadd.f32 %v453, %v475
  %v486 = vadd.f32 %v454, %v477
  %v487 = vadd.f32 %v455, %v479
  %488 = vst.msk [vmem:[%s4] sm:$0xff] %vm439, %v480
  %489 = vst.msk [vmem:[%s4 + $0x8] sm:$0xff] %vm439, %v481
  %490 = vst.msk [vmem:[%s4 + $0x10] sm:$0xff] %vm439, %v482
  %491 = vst.msk [vmem:[%s4 + $0x18] sm:$0xff] %vm439, %v483
  %492 = vst.msk [vmem:[%s4 + $0x20] sm:$0xff] %vm439, %v484
  %493 = vst.msk [vmem:[%s4 + $0x28] sm:$0xff] %vm439, %v485
  %494 = vst.msk [vmem:[%s4 + $0x30] sm:$0xff] %vm439, %v486
  %495 = vst.msk [vmem:[%s4 + $0x38] sm:$0xff] %vm439, %v487
  // Predicated region
  $region14: #{_lambda_.7} parent=0 // pred_check
    _
  $region15: #{_lambda_.7} parent=0 // pred_check_branch
    %497 = sbr.rel (0) target = $region17
  $region16: #{_lambda_.7} parent=0 // pred_region
    _
  $region17: #{_lambda_.7} parent=0 // pred_fallthru
    _
  // Predicated region
  $region18: #{_lambda_.7} parent=0 // pred_check
    _
  $region19: #{_lambda_.7} parent=0 // pred_check_branch
    %499 = sbr.rel (0) target = $region21
  $region20: #{_lambda_.7} parent=0 // pred_region
    _
  $region21: #{_lambda_.7} parent=0 // pred_fallthru
    _
  // Predicated region
  $region22: #{_lambda_.7} parent=0 // pred_check
    _
  $region23: #{_lambda_.7} parent=0 // pred_check_branch
    %501 = sbr.rel (0) target = $region25
  $region24: #{_lambda_.7} parent=0 // pred_region
    _
  $region25: #{_lambda_.7} parent=0 // pred_fallthru
    _
  // Predicated region
  $region26: #{_lambda_.7} parent=0 // pred_check
    _
  $region27: #{_lambda_.7} parent=0 // pred_check_branch
    %503 = sbr.rel (0) target = $region29
  $region28: #{_lambda_.7} parent=0 // pred_region
    _
  $region29: #{_lambda_.7} parent=0 // pred_fallthru
    _
  // Predicated region
  $region30: #{_lambda_.7} parent=0 // pred_check
    _
  $region31: #{_lambda_.7} parent=0 // pred_check_branch
    %505 = sbr.rel (0) target = $region33
  $region32: #{_lambda_.7} parent=0 // pred_region
    _
  $region33: #{_lambda_.7} parent=0 // pred_fallthru
    _
  // Predicated region
  $region34: #{_lambda_.7} parent=0 // pred_check
    _
  $region35: #{_lambda_.7} parent=0 // pred_check_branch
    %507 = sbr.rel (0) target = $region37
  $region36: #{_lambda_.7} parent=0 // pred_region
    _
  $region37: #{_lambda_.7} parent=0 // pred_fallthru
    _

// kernel: squeeze.14
$region0: #{squeeze.14}
  %s0 = inlined_call_operand.vmem [shape: f32[32], index: 0, kind: input, shape index: {}]
  %s1 = inlined_call_operand.vmem [shape: f32[4,8], index: 1, kind: output, shape index: {}]
  $region1: #{squeeze.14} parent=0
    #allocation0 [shape = 'u8[4096]{0}', space=vmem, size = 0x1000, scoped, tag = 'scoped mem for output reshape']
    #allocation1 [shape = 'u8[4096]{0}', space=vmem, size = 0x1000, scoped, tag = 'scoped mem for input reshape']
    %s3 = sshll.u32 1, 1
    %s4 = ssub.s32 %s3, 1
    %v5 = vld [vmem:[%s0] sm:%s4]
    %6 = vst [vmem:[#allocation1] sm:%s4] %v5
    %v7 = vld [vmem:[#allocation1] sm:$0x1]
    %vm8 = vcmask 64512
    %9 = vst.msk [vmem:[#allocation0] sm:$0x1] %vm8, %v7
    %v10 = vld [vmem:[#allocation1] sm:$0x1]
    %11 = vrot.lane.b32.xlu0 %v10, 120
    %v12 = vpop.permute.xlu0 %11
    %vm13 = vcmask 64512
    %s14 = scalar_lea.vmem [#allocation0], 1
    %15 = vst.msk [vmem:[%s14] sm:$0x1] %vm13, %v12
    %v16 = vld [vmem:[#allocation1] sm:$0x1]
    %17 = vrot.lane.b32.xlu0 %v16, 112
    %v18 = vpop.permute.xlu0 %17
    %vm19 = vcmask 64512
    %s20 = scalar_lea.vmem [#allocation0], 2
    %21 = vst.msk [vmem:[%s20] sm:$0x1] %vm19, %v18
    %v22 = vld [vmem:[#allocation1] sm:$0x1]
    %23 = vrot.lane.b32.xlu0 %v22, 104
    %v24 = vpop.permute.xlu0 %23
    %vm25 = vcmask 64512
    %s26 = scalar_lea.vmem [#allocation0], 3
    %27 = vst.msk [vmem:[%s26] sm:$0x1] %vm25, %v24
    %s29 = sshll.u32 1, 4
    %s30 = ssub.s32 %s29, 1
    %v32 = vld [vmem:[#allocation0] sm:%s30]
    %s33 = sshll.u32 1, 4
    %s34 = ssub.s32 %s33, 1
    %35 = vst [vmem:[%s1] sm:%s34] %v32

// kernel: _lambda_.8
$region0: #{_lambda_.8}
  #allocation0 [shape = 'u32[]', space=smem, size = 0x4, offset = 0x4, fixed_abs, tag = 'smem constant byte address 0x4 - core index']
  #allocation1 [shape = 'u32[144,128]{1,0:T(1,128)}', space=vmem, size = 0x12000, scoped, tag = 'internal scratch']
  %s0 = inlined_call_operand.vmem [shape: bf16[32,144], index: 0, kind: input, shape index: {}]
  %s1 = inlined_call_operand.vmem [shape: bf16[144,512], index: 1, kind: input, shape index: {}]
  %s2 = inlined_call_operand.vmem [shape: f32[32,512], index: 2, kind: output, shape index: {0}]
  %s3 = inlined_call_operand.vmem [shape: f32[32,1], index: 3, kind: output, shape index: {1}]
  %s4 = inlined_call_operand.vmem [shape: f32[32,1], index: 4, kind: output, shape index: {2}]
  %5 = xla_tuple %s2, %s3, %s4
  %s6 = sld [smem:[#allocation0]]
  $region38: #{_lambda_.8} parent=0
    _
  %s8 = ssub.s32 1, %s6
  %s9 = scalar_select 0, %s8, %s6
  // Predicated region
  $region2: #{_lambda_.8} parent=0 // pred_check
    _
  $region3: #{_lambda_.8} parent=0 // pred_check_branch
    %11 = sbr.rel (0) target = $region5
  $region4: #{_lambda_.8} parent=0 // pred_region
    _
  $region5: #{_lambda_.8} parent=0 // pred_fallthru
    _
  // Predicated region
  $region6: #{_lambda_.8} parent=0 // pred_check
    _
  $region7: #{_lambda_.8} parent=0 // pred_check_branch
    %13 = sbr.rel (0) target = $region9
  $region8: #{_lambda_.8} parent=0 // pred_region
    _
  $region9: #{_lambda_.8} parent=0 // pred_fallthru
    _
  %v15 = vld [vmem:[%s0] sm:$0xff]
  %v16 = vld [vmem:[%s0 + $0x8] sm:$0xff]
  %v17 = vld [vmem:[%s0 + $0x10] sm:$0xff]
  %v18 = vld [vmem:[%s0 + $0x18] sm:$0xff]
  %v19 = vld [vmem:[%s1] sm:$0xff]
  %v20 = vld [vmem:[%s1 + $0x8] sm:$0xff]
  %v21 = vld [vmem:[%s1 + $0x10] sm:$0xff]
  %v22 = vld [vmem:[%s1 + $0x18] sm:$0xff]
  %v23 = vld [vmem:[%s1 + $0x20] sm:$0xff]
  %v24 = vld [vmem:[%s1 + $0x28] sm:$0xff]
  %v25 = vld [vmem:[%s1 + $0x30] sm:$0xff]
  %v26 = vld [vmem:[%s1 + $0x38] sm:$0xff]
  %v27 = vld [vmem:[%s1 + $0x40] sm:$0xff]
  %v28 = vld [vmem:[%s1 + $0x48] sm:$0xff]
  %v29 = vld [vmem:[%s1 + $0x50] sm:$0xff]
  %v30 = vld [vmem:[%s1 + $0x58] sm:$0xff]
  %v31 = vld [vmem:[%s1 + $0x60] sm:$0xff]
  %v32 = vld [vmem:[%s1 + $0x68] sm:$0xff]
  %v33 = vld [vmem:[%s1 + $0x70] sm:$0xff]
  %v34 = vld [vmem:[%s1 + $0x78] sm:$0xff]
  %v35 = vld [vmem:[%s1 + $0x80] sm:$0xff]
  %v36 = vld [vmem:[%s1 + $0x88] sm:$0xff]
  %v37 = vld [vmem:[%s1 + $0x90] sm:$0xff]
  %v38 = vld [vmem:[%s1 + $0x98] sm:$0xff]
  %v39 = vld [vmem:[%s1 + $0xa0] sm:$0xff]
  %v40 = vld [vmem:[%s1 + $0xa8] sm:$0xff]
  %v41 = vld [vmem:[%s1 + $0xb0] sm:$0xff]
  %v42 = vld [vmem:[%s1 + $0xb8] sm:$0xff]
  %v43 = vld [vmem:[%s1 + $0xc0] sm:$0xff]
  %v44 = vld [vmem:[%s1 + $0xc8] sm:$0xff]
  %v45 = vld [vmem:[%s1 + $0xd0] sm:$0xff]
  %v46 = vld [vmem:[%s1 + $0xd8] sm:$0xff]
  %v47 = vld [vmem:[%s1 + $0xe0] sm:$0xff]
  %v48 = vld [vmem:[%s1 + $0xe8] sm:$0xff]
  %v49 = vld [vmem:[%s1 + $0xf0] sm:$0xff]
  %v50 = vld [vmem:[%s1 + $0xf8] sm:$0xff]
  %v51 = vld [vmem:[%s1 + $0x100] sm:$0xff]
  %v52 = vld [vmem:[%s1 + $0x108] sm:$0xff]
  %v53 = vld [vmem:[%s1 + $0x110] sm:$0xff]
  %v54 = vld [vmem:[%s1 + $0x118] sm:$0xff]
  %v59 = vunpack.c.l.b16 %v15
  %v60 = vunpack.c.h.b16 %v15
  %v61 = vunpack.c.l.b16 %v16
  %v62 = vunpack.c.h.b16 %v16
  %v63 = vunpack.c.l.b16 %v17
  %v64 = vunpack.c.h.b16 %v17
  %v65 = vunpack.c.l.b16 %v18
  %v66 = vunpack.c.h.b16 %v18
  %v67 = vpack.c.b16 %v61, %v59
  %v68 = vpack.c.b16 %v62, %v60
  %v69 = vpack.c.b16 %v65, %v63
  %v70 = vpack.c.b16 %v66, %v64
  %v109 = vunpack.c.l.b16 %v19
  %v110 = vunpack.c.h.b16 %v19
  %v111 = vunpack.c.l.b16 %v20
  %v112 = vunpack.c.h.b16 %v20
  %v113 = vunpack.c.l.b16 %v21
  %v114 = vunpack.c.h.b16 %v21
  %v115 = vunpack.c.l.b16 %v22
  %v116 = vunpack.c.h.b16 %v22
  %v117 = vunpack.c.l.b16 %v23
  %v118 = vunpack.c.h.b16 %v23
  %v119 = vunpack.c.l.b16 %v24
  %v120 = vunpack.c.h.b16 %v24
  %v121 = vunpack.c.l.b16 %v25
  %v122 = vunpack.c.h.b16 %v25
  %v123 = vunpack.c.l.b16 %v26
  %v124 = vunpack.c.h.b16 %v26
  %v125 = vunpack.c.l.b16 %v27
  %v126 = vunpack.c.h.b16 %v27
  %v127 = vunpack.c.l.b16 %v28
  %v128 = vunpack.c.h.b16 %v28
  %v129 = vunpack.c.l.b16 %v29
  %v130 = vunpack.c.h.b16 %v29
  %v131 = vunpack.c.l.b16 %v30
  %v132 = vunpack.c.h.b16 %v30
  %v133 = vunpack.c.l.b16 %v31
  %v134 = vunpack.c.h.b16 %v31
  %v135 = vunpack.c.l.b16 %v32
  %v136 = vunpack.c.h.b16 %v32
  %v137 = vunpack.c.l.b16 %v33
  %v138 = vunpack.c.h.b16 %v33
  %v139 = vunpack.c.l.b16 %v34
  %v140 = vunpack.c.h.b16 %v34
  %v141 = vunpack.c.l.b16 %v35
  %v142 = vunpack.c.h.b16 %v35
  %v143 = vunpack.c.l.b16 %v36
  %v144 = vunpack.c.h.b16 %v36
  %v145 = vunpack.c.l.b16 %v37
  %v146 = vunpack.c.h.b16 %v37
  %v147 = vunpack.c.l.b16 %v38
  %v148 = vunpack.c.h.b16 %v38
  %v149 = vunpack.c.l.b16 %v39
  %v150 = vunpack.c.h.b16 %v39
  %v151 = vunpack.c.l.b16 %v40
  %v152 = vunpack.c.h.b16 %v40
  %v153 = vunpack.c.l.b16 %v41
  %v154 = vunpack.c.h.b16 %v41
  %v155 = vunpack.c.l.b16 %v42
  %v156 = vunpack.c.h.b16 %v42
  %v157 = vunpack.c.l.b16 %v43
  %v158 = vunpack.c.h.b16 %v43
  %v159 = vunpack.c.l.b16 %v44
  %v160 = vunpack.c.h.b16 %v44
  %v161 = vunpack.c.l.b16 %v45
  %v162 = vunpack.c.h.b16 %v45
  %v163 = vunpack.c.l.b16 %v46
  %v164 = vunpack.c.h.b16 %v46
  %v165 = vunpack.c.l.b16 %v47
  %v166 = vunpack.c.h.b16 %v47
  %v167 = vunpack.c.l.b16 %v48
  %v168 = vunpack.c.h.b16 %v48
  %v169 = vunpack.c.l.b16 %v49
  %v170 = vunpack.c.h.b16 %v49
  %v171 = vunpack.c.l.b16 %v50
  %v172 = vunpack.c.h.b16 %v50
  %v173 = vunpack.c.l.b16 %v51
  %v174 = vunpack.c.h.b16 %v51
  %v175 = vunpack.c.l.b16 %v52
  %v176 = vunpack.c.h.b16 %v52
  %v177 = vunpack.c.l.b16 %v53
  %v178 = vunpack.c.h.b16 %v53
  %v179 = vunpack.c.l.b16 %v54
  %v180 = vunpack.c.h.b16 %v54
  %v181 = vpack.c.b16 %v113, %v109
  %v182 = vpack.c.b16 %v114, %v110
  %v183 = vpack.c.b16 %v115, %v111
  %v184 = vpack.c.b16 %v116, %v112
  %v185 = vpack.c.b16 %v121, %v117
  %v186 = vpack.c.b16 %v122, %v118
  %v187 = vpack.c.b16 %v123, %v119
  %v188 = vpack.c.b16 %v124, %v120
  %v189 = vpack.c.b16 %v129, %v125
  %v190 = vpack.c.b16 %v130, %v126
  %v191 = vpack.c.b16 %v131, %v127
  %v192 = vpack.c.b16 %v132, %v128
  %v193 = vpack.c.b16 %v137, %v133
  %v194 = vpack.c.b16 %v138, %v134
  %v195 = vpack.c.b16 %v139, %v135
  %v196 = vpack.c.b16 %v140, %v136
  %v197 = vpack.c.b16 %v145, %v141
  %v198 = vpack.c.b16 %v146, %v142
  %v199 = vpack.c.b16 %v147, %v143
  %v200 = vpack.c.b16 %v148, %v144
  %v201 = vpack.c.b16 %v153, %v149
  %v202 = vpack.c.b16 %v154, %v150
  %v203 = vpack.c.b16 %v155, %v151
  %v204 = vpack.c.b16 %v156, %v152
  %v205 = vpack.c.b16 %v161, %v157
  %v206 = vpack.c.b16 %v162, %v158
  %v207 = vpack.c.b16 %v163, %v159
  %v208 = vpack.c.b16 %v164, %v160
  %v209 = vpack.c.b16 %v169, %v165
  %v210 = vpack.c.b16 %v170, %v166
  %v211 = vpack.c.b16 %v171, %v167
  %v212 = vpack.c.b16 %v172, %v168
  %v213 = vpack.c.b16 %v177, %v173
  %v214 = vpack.c.b16 %v178, %v174
  %v215 = vpack.c.b16 %v179, %v175
  %v216 = vpack.c.b16 %v180, %v176
  %vm253 = vcmask 130048
  %v255 = vsel %vm253, %v68, 0
  %v258 = vsel %vm253, %v70, 0
  %260 = vmatprep.subr.bf16.mxu0 %v210
  %261 = vmatpush1.bf16.msra.mxu0 %v209
  %262 = vmatprep.subr.bf16.mxu0 %v206
  %263 = vmatpush1.bf16.msra.mxu0 %v205
  %264 = vmatprep.subr.bf16.mxu0 %v202
  %265 = vmatpush1.bf16.msra.mxu0 %v201
  %266 = vmatprep.subr.bf16.mxu0 %v198
  %267 = vmatpush1.bf16.msra.mxu0 %v197
  %268 = vmatprep.subr.bf16.mxu0 %v194
  %269 = vmatpush1.bf16.msra.mxu0 %v193
  %270 = vmatprep.subr.bf16.mxu0 %v190
  %271 = vmatpush1.bf16.msra.mxu0 %v189
  %272 = vmatprep.subr.bf16.mxu0 %v186
  %273 = vmatpush1.bf16.msra.mxu0 %v185
  %274 = vmatprep.subr.bf16.mxu0 %v182
  %275 = vmatpush1.bf16.msra.mxu0 %v181
  %276 = vmatprep.subr.bf16.mxu0 0
  %277 = vmatpush2.bf16.msra.mxu0 0
  %278 = vmatprep.subr.bf16.mxu0 0
  %279 = vmatpush2.bf16.msra.mxu0 0
  %280 = vmatprep.subr.bf16.mxu0 0
  %281 = vmatpush2.bf16.msra.mxu0 0
  %282 = vmatprep.subr.bf16.mxu0 0
  %283 = vmatpush2.bf16.msra.mxu0 0
  %284 = vmatprep.subr.bf16.mxu0 0
  %285 = vmatpush2.bf16.msra.mxu0 0
  %286 = vmatprep.subr.bf16.mxu0 0
  %287 = vmatpush2.bf16.msra.mxu0 0
  %288 = vmatprep.subr.bf16.mxu0 0
  %289 = vmatpush2.bf16.msra.mxu0 0
  %290 = vmatprep.subr.bf16.mxu0 %v214
  %291 = vmatpush2.bf16.msra.mxu0 %v213
  %292 = vmatprep.mubr.bf16.mxu0 %v255
  %293 = vmatmul.mubr.bf16.gmra.mxu0 %v67
  %v294 = vpop.f32.mrf.mxu0
  %v295 = vadd.f32 0.0, %v294
  %v296 = vpop.f32.mrf.mxu0
  %v297 = vadd.f32 0.0, %v296
  %v298 = vpop.f32.mrf.mxu0
  %v299 = vadd.f32 0.0, %v298
  %v300 = vpop.f32.mrf.mxu0
  %v301 = vadd.f32 0.0, %v300
  %302 = vmatprep.mubr.bf16.mxu0 %v258
  %303 = vmatmul.mubr.bf16.gmra.mxu0 %v69
  %v304 = vpop.f32.mrf.mxu0
  %v305 = vadd.f32 0.0, %v304
  %v306 = vpop.f32.mrf.mxu0
  %v307 = vadd.f32 0.0, %v306
  %v308 = vpop.f32.mrf.mxu0
  %v309 = vadd.f32 0.0, %v308
  %v310 = vpop.f32.mrf.mxu0
  %v311 = vadd.f32 0.0, %v310
  %312 = vdwg.mxu0
  %313 = vmatprep.subr.bf16.mxu0 %v212
  %314 = vmatpush1.bf16.msra.mxu0 %v211
  %315 = vmatprep.subr.bf16.mxu0 %v208
  %316 = vmatpush1.bf16.msra.mxu0 %v207
  %317 = vmatprep.subr.bf16.mxu0 %v204
  %318 = vmatpush1.bf16.msra.mxu0 %v203
  %319 = vmatprep.subr.bf16.mxu0 %v200
  %320 = vmatpush1.bf16.msra.mxu0 %v199
  %321 = vmatprep.subr.bf16.mxu0 %v196
  %322 = vmatpush1.bf16.msra.mxu0 %v195
  %323 = vmatprep.subr.bf16.mxu0 %v192
  %324 = vmatpush1.bf16.msra.mxu0 %v191
  %325 = vmatprep.subr.bf16.mxu0 %v188
  %326 = vmatpush1.bf16.msra.mxu0 %v187
  %327 = vmatprep.subr.bf16.mxu0 %v184
  %328 = vmatpush1.bf16.msra.mxu0 %v183
  %329 = vmatprep.subr.bf16.mxu0 0
  %330 = vmatpush2.bf16.msra.mxu0 0
  %331 = vmatprep.subr.bf16.mxu0 0
  %332 = vmatpush2.bf16.msra.mxu0 0
  %333 = vmatprep.subr.bf16.mxu0 0
  %334 = vmatpush2.bf16.msra.mxu0 0
  %335 = vmatprep.subr.bf16.mxu0 0
  %336 = vmatpush2.bf16.msra.mxu0 0
  %337 = vmatprep.subr.bf16.mxu0 0
  %338 = vmatpush2.bf16.msra.mxu0 0
  %339 = vmatprep.subr.bf16.mxu0 0
  %340 = vmatpush2.bf16.msra.mxu0 0
  %341 = vmatprep.subr.bf16.mxu0 0
  %342 = vmatpush2.bf16.msra.mxu0 0
  %343 = vmatprep.subr.bf16.mxu0 %v216
  %344 = vmatpush2.bf16.msra.mxu0 %v215
  %345 = vmatprep.mubr.bf16.mxu0 %v255
  %346 = vmatmul.mubr.bf16.gmra.mxu0 %v67
  %v347 = vpop.f32.mrf.mxu0
  %v348 = vadd.f32 0.0, %v347
  %v349 = vpop.f32.mrf.mxu0
  %v350 = vadd.f32 0.0, %v349
  %v351 = vpop.f32.mrf.mxu0
  %v352 = vadd.f32 0.0, %v351
  %v353 = vpop.f32.mrf.mxu0
  %v354 = vadd.f32 0.0, %v353
  %355 = vmatprep.mubr.bf16.mxu0 %v258
  %356 = vmatmul.mubr.bf16.gmra.mxu0 %v69
  %v357 = vpop.f32.mrf.mxu0
  %v358 = vadd.f32 0.0, %v357
  %v359 = vpop.f32.mrf.mxu0
  %v360 = vadd.f32 0.0, %v359
  %v361 = vpop.f32.mrf.mxu0
  %v362 = vadd.f32 0.0, %v361
  %v363 = vpop.f32.mrf.mxu0
  %v364 = vadd.f32 0.0, %v363
  %365 = vdwg.mxu0
  %366 = vst [vmem:[%s2] sm:$0xff] %v295
  %367 = vst [vmem:[%s2 + $0x8] sm:$0xff] %v297
  %368 = vst [vmem:[%s2 + $0x10] sm:$0xff] %v348
  %369 = vst [vmem:[%s2 + $0x18] sm:$0xff] %v350
  %370 = vst [vmem:[%s2 + $0x20] sm:$0xff] %v299
  %371 = vst [vmem:[%s2 + $0x28] sm:$0xff] %v301
  %372 = vst [vmem:[%s2 + $0x30] sm:$0xff] %v352
  %373 = vst [vmem:[%s2 + $0x38] sm:$0xff] %v354
  %374 = vst [vmem:[%s2 + $0x40] sm:$0xff] %v305
  %375 = vst [vmem:[%s2 + $0x48] sm:$0xff] %v307
  %376 = vst [vmem:[%s2 + $0x50] sm:$0xff] %v358
  %377 = vst [vmem:[%s2 + $0x58] sm:$0xff] %v360
  %378 = vst [vmem:[%s2 + $0x60] sm:$0xff] %v309
  %379 = vst [vmem:[%s2 + $0x68] sm:$0xff] %v311
  %380 = vst [vmem:[%s2 + $0x70] sm:$0xff] %v362
  %381 = vst [vmem:[%s2 + $0x78] sm:$0xff] %v364
  %p382 = scmp.eq.s32.totalorder 0, 0
  // Predicated region
  $region10: #{_lambda_.8} parent=0 // pred_check
    %p383 = pneg %p382
  $region11: #{_lambda_.8} parent=0 // pred_check_branch
    %385 = sbr.rel (%p383) target = $region13
  $region12: #{_lambda_.8} parent=0 // pred_region
    %vm386 = vcmask 7168
    %387 = vst.msk [vmem:[%s3] sm:$0xff] %vm386, 0.0
    %388 = vst.msk [vmem:[%s3 + $0x8] sm:$0xff] %vm386, 0.0
    %389 = vst.msk [vmem:[%s3 + $0x10] sm:$0xff] %vm386, 0.0
    %390 = vst.msk [vmem:[%s3 + $0x18] sm:$0xff] %vm386, 0.0
    %391 = vst.msk [vmem:[%s4] sm:$0xff] %vm386, 0.0
    %392 = vst.msk [vmem:[%s4 + $0x8] sm:$0xff] %vm386, 0.0
    %393 = vst.msk [vmem:[%s4 + $0x10] sm:$0xff] %vm386, 0.0
    %394 = vst.msk [vmem:[%s4 + $0x18] sm:$0xff] %vm386, 0.0
  $region13: #{_lambda_.8} parent=0 // pred_fallthru
    _
  %v395 = vld [vmem:[%s3] sm:$0xff]
  %v396 = vld [vmem:[%s3 + $0x8] sm:$0xff]
  %v397 = vld [vmem:[%s3 + $0x10] sm:$0xff]
  %v398 = vld [vmem:[%s3 + $0x18] sm:$0xff]
  %v399 = vadd.f32 %v295, %v297
  %v400 = vadd.f32 %v399, %v348
  %v401 = vadd.f32 %v400, %v350
  %402 = vadd.xlane.f32.xlu0 %v401
  %v403 = vpop.xlane.xlu0 %402
  %v404 = vadd.f32 %v299, %v301
  %v405 = vadd.f32 %v404, %v352
  %v406 = vadd.f32 %v405, %v354
  %407 = vadd.xlane.f32.xlu0 %v406
  %v408 = vpop.xlane.xlu0 %407
  %v409 = vadd.f32 %v305, %v307
  %v410 = vadd.f32 %v409, %v358
  %v411 = vadd.f32 %v410, %v360
  %412 = vadd.xlane.f32.xlu0 %v411
  %v413 = vpop.xlane.xlu0 %412
  %v414 = vadd.f32 %v309, %v311
  %v415 = vadd.f32 %v414, %v362
  %v416 = vadd.f32 %v415, %v364
  %417 = vadd.xlane.f32.xlu0 %v416
  %v418 = vpop.xlane.xlu0 %417
  %v419 = vadd.f32 %v395, %v403
  %v420 = vadd.f32 %v396, %v408
  %v421 = vadd.f32 %v397, %v413
  %v422 = vadd.f32 %v398, %v418
  %vm423 = vcmask 7168
  %424 = vst.msk [vmem:[%s3] sm:$0xff] %vm423, %v419
  %425 = vst.msk [vmem:[%s3 + $0x8] sm:$0xff] %vm423, %v420
  %426 = vst.msk [vmem:[%s3 + $0x10] sm:$0xff] %vm423, %v421
  %427 = vst.msk [vmem:[%s3 + $0x18] sm:$0xff] %vm423, %v422
  %v428 = vld [vmem:[%s4] sm:$0xff]
  %v429 = vld [vmem:[%s4 + $0x8] sm:$0xff]
  %v430 = vld [vmem:[%s4 + $0x10] sm:$0xff]
  %v431 = vld [vmem:[%s4 + $0x18] sm:$0xff]
  %v432 = vmul.f32 %v295, %v295
  %v433 = vmul.f32 %v297, %v297
  %v434 = vmul.f32 %v348, %v348
  %v435 = vmul.f32 %v350, %v350
  %v436 = vmul.f32 %v299, %v299
  %v437 = vmul.f32 %v301, %v301
  %v438 = vmul.f32 %v352, %v352
  %v439 = vmul.f32 %v354, %v354
  %v440 = vmul.f32 %v305, %v305
  %v441 = vmul.f32 %v307, %v307
  %v442 = vmul.f32 %v358, %v358
  %v443 = vmul.f32 %v360, %v360
  %v444 = vmul.f32 %v309, %v309
  %v445 = vmul.f32 %v311, %v311
  %v446 = vmul.f32 %v362, %v362
  %v447 = vmul.f32 %v364, %v364
  %v448 = vadd.f32 %v432, %v433
  %v449 = vadd.f32 %v448, %v434
  %v450 = vadd.f32 %v449, %v435
  %451 = vadd.xlane.f32.xlu0 %v450
  %v452 = vpop.xlane.xlu0 %451
  %v453 = vadd.f32 %v436, %v437
  %v454 = vadd.f32 %v453, %v438
  %v455 = vadd.f32 %v454, %v439
  %456 = vadd.xlane.f32.xlu0 %v455
  %v457 = vpop.xlane.xlu0 %456
  %v458 = vadd.f32 %v440, %v441
  %v459 = vadd.f32 %v458, %v442
  %v460 = vadd.f32 %v459, %v443
  %461 = vadd.xlane.f32.xlu0 %v460
  %v462 = vpop.xlane.xlu0 %461
  %v463 = vadd.f32 %v444, %v445
  %v464 = vadd.f32 %v463, %v446
  %v465 = vadd.f32 %v464, %v447
  %466 = vadd.xlane.f32.xlu0 %v465
  %v467 = vpop.xlane.xlu0 %466
  %v468 = vadd.f32 %v428, %v452
  %v469 = vadd.f32 %v429, %v457
  %v470 = vadd.f32 %v430, %v462
  %v471 = vadd.f32 %v431, %v467
  %472 = vst.msk [vmem:[%s4] sm:$0xff] %vm423, %v468
  %473 = vst.msk [vmem:[%s4 + $0x8] sm:$0xff] %vm423, %v469
  %474 = vst.msk [vmem:[%s4 + $0x10] sm:$0xff] %vm423, %v470
  %475 = vst.msk [vmem:[%s4 + $0x18] sm:$0xff] %vm423, %v471
  // Predicated region
  $region14: #{_lambda_.8} parent=0 // pred_check
    _
  $region15: #{_lambda_.8} parent=0 // pred_check_branch
    %477 = sbr.rel (0) target = $region17
  $region16: #{_lambda_.8} parent=0 // pred_region
    _
  $region17: #{_lambda_.8} parent=0 // pred_fallthru
    _
  // Predicated region
  $region18: #{_lambda_.8} parent=0 // pred_check
    _
  $region19: #{_lambda_.8} parent=0 // pred_check_branch
    %479 = sbr.rel (0) target = $region21
  $region20: #{_lambda_.8} parent=0 // pred_region
    _
  $region21: #{_lambda_.8} parent=0 // pred_fallthru
    _
  // Predicated region
  $region22: #{_lambda_.8} parent=0 // pred_check
    _
  $region23: #{_lambda_.8} parent=0 // pred_check_branch
    %481 = sbr.rel (0) target = $region25
  $region24: #{_lambda_.8} parent=0 // pred_region
    _
  $region25: #{_lambda_.8} parent=0 // pred_fallthru
    _
  // Predicated region
  $region26: #{_lambda_.8} parent=0 // pred_check
    _
  $region27: #{_lambda_.8} parent=0 // pred_check_branch
    %483 = sbr.rel (0) target = $region29
  $region28: #{_lambda_.8} parent=0 // pred_region
    _
  $region29: #{_lambda_.8} parent=0 // pred_fallthru
    _
  // Predicated region
  $region30: #{_lambda_.8} parent=0 // pred_check
    _
  $region31: #{_lambda_.8} parent=0 // pred_check_branch
    %485 = sbr.rel (0) target = $region33
  $region32: #{_lambda_.8} parent=0 // pred_region
    _
  $region33: #{_lambda_.8} parent=0 // pred_fallthru
    _
  // Predicated region
  $region34: #{_lambda_.8} parent=0 // pred_check
    _
  $region35: #{_lambda_.8} parent=0 // pred_check_branch
    %487 = sbr.rel (0) target = $region37
  $region36: #{_lambda_.8} parent=0 // pred_region
    _
  $region37: #{_lambda_.8} parent=0 // pred_fallthru
    _

// kernel: _lambda_.9
$region0: #{_lambda_.9}
  #allocation0 [shape = 'u32[]', space=smem, size = 0x4, offset = 0x4, fixed_abs, tag = 'smem constant byte address 0x4 - core index']
  #allocation1 [shape = 'u32[144,128]{1,0:T(1,128)}', space=vmem, size = 0x12000, scoped, tag = 'internal scratch']
  %s0 = inlined_call_operand.vmem [shape: bf16[12,72], index: 0, kind: input, shape index: {}]
  %s1 = inlined_call_operand.vmem [shape: bf16[72,2048], index: 1, kind: input, shape index: {}]
  %s2 = inlined_call_operand.vmem [shape: f32[12,2048], index: 2, kind: output, shape index: {}]
  %s3 = sld [smem:[#allocation0]]
  $region83: #{_lambda_.9} parent=0
    _
  %s5 = ssub.s32 1, %s3
  %s6 = scalar_select 0, %s5, %s3
  $region1: #{_lambda_.9} parent=0
    #allocation2 [shape = 'u8[294912]{0}', space=vmem, size = 0x48000, scoped, tag = 'input window, operand 1']
    #allocation3 [shape = 'u8[131072]{0}', space=vmem, size = 0x20000, scoped, tag = 'output window, operand 0']
    loop: start=0, step=1, limit=4
    $region2: #{_lambda_.9} parent=1 // loop_pre_header
      _
    $region3: #{_lambda_.9} parent=1 // loop_header
      %s8 = sphi 0, %s12
      %p9 = scmp.ge.s32.totalorder %s8, 4
      %s16 = sphi 0, %s16
      %s18 = sphi 0, %s16
      %s19 = sphi 0, %s18
      %s33 = sphi 0, %s19
      %s39 = sphi 0, %s41
      %s42 = sphi 0, %s39
      %s43 = sphi 0, %s42
      %s59 = sphi 0, %s43
      %s65 = sphi 0, %s67
      %s68 = sphi 0, %s65
      %s69 = sphi 0, %s68
      %s85 = sphi 0, %s69
    $region4: #{_lambda_.9} parent=1 // loop_header_branch
      %11 = sbr.rel (%p9) target = $region8
    $region5: #{_lambda_.9} parent=1 // loop_body
      %s13 = ssub.s32 %s8, 1
      %s14 = ssub.s32 %s8, 2
      %s15 = sadd.s32 %s8, 1
      %s17 = sadd.s32 %s16, 1
      %p20 = scmp.eq.s32.totalorder %s8, 1
      %p21 = scmp.ne.s32.totalorder %s16, %s18
      %p22 = scmp.eq.s32.totalorder %s8, 0
      %p23 = por %p21, %p22
      %p24 = scmp.ne.s32.totalorder %s16, %s18
      %p25 = scmp.eq.s32.totalorder %s13, 1
      %p26 = por %p24, %p25
      %p27 = scmp.ne.s32.totalorder %s18, %s19
      %p28 = scmp.eq.s32.totalorder %s13, 0
      %p29 = por %p27, %p28
      %p30 = scmp.ne.s32.totalorder %s18, %s19
      %p31 = scmp.eq.s32.totalorder %s14, 1
      %p32 = por %p30, %p31
      %p34 = scmp.ne.s32.totalorder %s19, %s33
      %p35 = scmp.eq.s32.totalorder %s14, 0
      %p36 = por %p34, %p35
      %s37 = ssub.s32 %s8, %s15
      %p38 = scmp.eq.s32.totalorder %s37, 0
      %s40 = sadd.s32 %s39, 1
      %s41 = scalar_select %p38, %s39, %s40
      %p44 = pneg %p38
      %p45 = scmp.eq.s32.totalorder %s8, 1
      %p46 = por %p44, %p45
      %p47 = scmp.ne.s32.totalorder %s39, %s42
      %p48 = scmp.eq.s32.totalorder %s8, 0
      %p49 = por %p47, %p48
      %p50 = scmp.ne.s32.totalorder %s39, %s42
      %p51 = scmp.eq.s32.totalorder %s13, 1
      %p52 = por %p50, %p51
      %p53 = scmp.ne.s32.totalorder %s42, %s43
      %p54 = scmp.eq.s32.totalorder %s13, 0
      %p55 = por %p53, %p54
      %p56 = scmp.ne.s32.totalorder %s42, %s43
      %p57 = scmp.eq.s32.totalorder %s14, 1
      %p58 = por %p56, %p57
      %p60 = scmp.ne.s32.totalorder %s43, %s59
      %p61 = scmp.eq.s32.totalorder %s14, 0
      %p62 = por %p60, %p61
      %s63 = ssub.s32 %s8, %s15
      %p64 = scmp.eq.s32.totalorder %s63, 0
      %s66 = sadd.s32 %s65, 1
      %s67 = scalar_select %p64, %s65, %s66
      %p70 = pneg %p64
      %p71 = scmp.eq.s32.totalorder %s8, 1
      %p72 = por %p70, %p71
      %p73 = scmp.ne.s32.totalorder %s65, %s68
      %p74 = scmp.eq.s32.totalorder %s8, 0
      %p75 = por %p73, %p74
      %p76 = scmp.ne.s32.totalorder %s65, %s68
      %p77 = scmp.eq.s32.totalorder %s13, 1
      %p78 = por %p76, %p77
      %p79 = scmp.ne.s32.totalorder %s68, %s69
      %p80 = scmp.eq.s32.totalorder %s13, 0
      %p81 = por %p79, %p80
      %p82 = scmp.ne.s32.totalorder %s68, %s69
      %p83 = scmp.eq.s32.totalorder %s14, 1
      %p84 = por %p82, %p83
      %p86 = scmp.ne.s32.totalorder %s69, %s85
      %p87 = scmp.eq.s32.totalorder %s14, 0
      %p88 = por %p86, %p87
      %p89 = scmp.le.s32.totalorder 1, %s8
      %p90 = scmp.lt.s32.totalorder %s8, 3
      %p91 = pnand %p89, %p90
      %p92 = pneg %p91
      // Predicated region
      $region9: #{_lambda_.9} parent=5 // pred_check
        _
      $region10: #{_lambda_.9} parent=5 // pred_check_branch
        %94 = sbr.rel (%p91) target = $region12
      $region11: #{_lambda_.9} parent=5 // pred_region
        %s95 = ssub.s32 %s8, 1
        // Predicated region
        $region13: #{_lambda_.9} parent=11 // pred_check
          %p96 = pneg %p29
        $region14: #{_lambda_.9} parent=11 // pred_check_branch
          %98 = sbr.rel (%p96) target = $region16
        $region15: #{_lambda_.9} parent=11 // pred_region
          _
        $region16: #{_lambda_.9} parent=11 // pred_fallthru
          _
      $region12: #{_lambda_.9} parent=5 // pred_fallthru
        _
      %p99 = scmp.lt.s32.totalorder %s8, 2
      // Predicated region
      $region17: #{_lambda_.9} parent=5 // pred_check
        %p100 = pneg %p99
      $region18: #{_lambda_.9} parent=5 // pred_check_branch
        %102 = sbr.rel (%p100) target = $region20
      $region19: #{_lambda_.9} parent=5 // pred_region
        // Predicated region
        $region21: #{_lambda_.9} parent=19 // pred_check
          %p103 = pneg %p49
        $region22: #{_lambda_.9} parent=19 // pred_check_branch
          %105 = sbr.rel (%p103) target = $region24
        $region23: #{_lambda_.9} parent=19 // pred_region
          %s106 = sand.u32 %s39, 1
          %s107 = sand.u32 %s39, 1
          %s108 = smul.addr %s107, 288
          %s109 = scalar_lea.vmem [#allocation2], %s108
          %s110 = smul.u32 8, %s8
          %s111 = smul.addr %s110, 4
          %s112 = scalar_lea.vmem %s1, %s111
          // Predicated region
          $region25: #{_lambda_.9} parent=23 // pred_check
            _
          $region26: #{_lambda_.9} parent=23 // pred_check_branch
            %114 = sbr.rel (0) target = $region28
          $region27: #{_lambda_.9} parent=23 // pred_region
            // Predicated region
            $region29: #{_lambda_.9} parent=27 // pred_check
              _
            $region30: #{_lambda_.9} parent=27 // pred_check_branch
              %116 = sbr.rel (0) target = $region32
            $region31: #{_lambda_.9} parent=27 // pred_region
              loop: start=0, step=1, limit=1
              $region33: #{_lambda_.9} parent=31 // loop_pre_header
                _
              $region34: #{_lambda_.9} parent=31 // loop_header
                %s118 = sphi 0, %s122
                %p119 = scmp.ge.s32.totalorder %s118, 1
                %s123 = sphi %s112, %s112
                %s124 = sphi %s109, %s109
              $region35: #{_lambda_.9} parent=31 // loop_header_branch
                %121 = sbr.rel (%p119) target = $region39
              $region36: #{_lambda_.9} parent=31 // loop_body
                %v125 = vld [vmem:[%s123] sm:$0xff]
                %126 = vst [vmem:[%s124] sm:$0xff] %v125
                %v127 = vld [vmem:[%s123 + $0x8] sm:$0xff]
                %128 = vst [vmem:[%s124 + $0x8] sm:$0xff] %v127
                %v129 = vld [vmem:[%s123 + $0x10] sm:$0xff]
                %130 = vst [vmem:[%s124 + $0x10] sm:$0xff] %v129
                %v131 = vld [vmem:[%s123 + $0x18] sm:$0xff]
                %132 = vst [vmem:[%s124 + $0x18] sm:$0xff] %v131
                %v133 = vld [vmem:[%s123 + $0x40] sm:$0xff]
                %134 = vst [vmem:[%s124 + $0x20] sm:$0xff] %v133
                %v135 = vld [vmem:[%s123 + $0x48] sm:$0xff]
                %136 = vst [vmem:[%s124 + $0x28] sm:$0xff] %v135
                %v137 = vld [vmem:[%s123 + $0x50] sm:$0xff]
                %138 = vst [vmem:[%s124 + $0x30] sm:$0xff] %v137
                %v139 = vld [vmem:[%s123 + $0x58] sm:$0xff]
                %140 = vst [vmem:[%s124 + $0x38] sm:$0xff] %v139
                %v141 = vld [vmem:[%s123 + $0x80] sm:$0xff]
                %142 = vst [vmem:[%s124 + $0x40] sm:$0xff] %v141
                %v143 = vld [vmem:[%s123 + $0x88] sm:$0xff]
                %144 = vst [vmem:[%s124 + $0x48] sm:$0xff] %v143
                %v145 = vld [vmem:[%s123 + $0x90] sm:$0xff]
                %146 = vst [vmem:[%s124 + $0x50] sm:$0xff] %v145
                %v147 = vld [vmem:[%s123 + $0x98] sm:$0xff]
                %148 = vst [vmem:[%s124 + $0x58] sm:$0xff] %v147
                %v149 = vld [vmem:[%s123 + $0xc0] sm:$0xff]
                %150 = vst [vmem:[%s124 + $0x60] sm:$0xff] %v149
                %v151 = vld [vmem:[%s123 + $0xc8] sm:$0xff]
                %152 = vst [vmem:[%s124 + $0x68] sm:$0xff] %v151
                %v153 = vld [vmem:[%s123 + $0xd0] sm:$0xff]
                %154 = vst [vmem:[%s124 + $0x70] sm:$0xff] %v153
                %v155 = vld [vmem:[%s123 + $0xd8] sm:$0xff]
                %156 = vst [vmem:[%s124 + $0x78] sm:$0xff] %v155
                %v157 = vld [vmem:[%s123 + $0x100] sm:$0xff]
                %158 = vst [vmem:[%s124 + $0x80] sm:$0xff] %v157
                %v159 = vld [vmem:[%s123 + $0x108] sm:$0xff]
                %160 = vst [vmem:[%s124 + $0x88] sm:$0xff] %v159
                %v161 = vld [vmem:[%s123 + $0x110] sm:$0xff]
                %162 = vst [vmem:[%s124 + $0x90] sm:$0xff] %v161
                %v163 = vld [vmem:[%s123 + $0x118] sm:$0xff]
                %164 = vst [vmem:[%s124 + $0x98] sm:$0xff] %v163
                %v165 = vld [vmem:[%s123 + $0x140] sm:$0xff]
                %166 = vst [vmem:[%s124 + $0xa0] sm:$0xff] %v165
                %v167 = vld [vmem:[%s123 + $0x148] sm:$0xff]
                %168 = vst [vmem:[%s124 + $0xa8] sm:$0xff] %v167
                %v169 = vld [vmem:[%s123 + $0x150] sm:$0xff]
                %170 = vst [vmem:[%s124 + $0xb0] sm:$0xff] %v169
                %v171 = vld [vmem:[%s123 + $0x158] sm:$0xff]
                %172 = vst [vmem:[%s124 + $0xb8] sm:$0xff] %v171
                %v173 = vld [vmem:[%s123 + $0x180] sm:$0xff]
                %174 = vst [vmem:[%s124 + $0xc0] sm:$0xff] %v173
                %v175 = vld [vmem:[%s123 + $0x188] sm:$0xff]
                %176 = vst [vmem:[%s124 + $0xc8] sm:$0xff] %v175
                %v177 = vld [vmem:[%s123 + $0x190] sm:$0xff]
                %178 = vst [vmem:[%s124 + $0xd0] sm:$0xff] %v177
                %v179 = vld [vmem:[%s123 + $0x198] sm:$0xff]
                %180 = vst [vmem:[%s124 + $0xd8] sm:$0xff] %v179
                %v181 = vld [vmem:[%s123 + $0x1c0] sm:$0xff]
                %182 = vst [vmem:[%s124 + $0xe0] sm:$0xff] %v181
                %v183 = vld [vmem:[%s123 + $0x1c8] sm:$0xff]
                %184 = vst [vmem:[%s124 + $0xe8] sm:$0xff] %v183
                %v185 = vld [vmem:[%s123 + $0x1d0] sm:$0xff]
                %186 = vst [vmem:[%s124 + $0xf0] sm:$0xff] %v185
                %v187 = vld [vmem:[%s123 + $0x1d8] sm:$0xff]
                %188 = vst [vmem:[%s124 + $0xf8] sm:$0xff] %v187
                %v189 = vld [vmem:[%s123 + $0x200] sm:$0xff]
                %190 = vst [vmem:[%s124 + $0x100] sm:$0xff] %v189
                %v191 = vld [vmem:[%s123 + $0x208] sm:$0xff]
                %192 = vst [vmem:[%s124 + $0x108] sm:$0xff] %v191
                %v193 = vld [vmem:[%s123 + $0x210] sm:$0xff]
                %194 = vst [vmem:[%s124 + $0x110] sm:$0xff] %v193
                %v195 = vld [vmem:[%s123 + $0x218] sm:$0xff]
                %196 = vst [vmem:[%s124 + $0x118] sm:$0xff] %v195
              $region37: #{_lambda_.9} parent=31 // loop_footer
                %s122 = sadd.s32 1, %s118
              $region38: #{_lambda_.9} parent=31 // loop_footer_branch
                %117 = sbr.rel target = $region34
              $region39: #{_lambda_.9} parent=31 // loop_exit
                _
            $region32: #{_lambda_.9} parent=27 // pred_fallthru
              _
            // Predicated region
            $region40: #{_lambda_.9} parent=27 // pred_check
              _
            $region41: #{_lambda_.9} parent=27 // pred_check_branch
              %198 = sbr.rel target = $region43
            $region42: #{_lambda_.9} parent=27 // pred_region
              _
            $region43: #{_lambda_.9} parent=27 // pred_fallthru
              _
          $region28: #{_lambda_.9} parent=23 // pred_fallthru
            _
          %199 = vnop
        $region24: #{_lambda_.9} parent=19 // pred_fallthru
          _
      $region20: #{_lambda_.9} parent=5 // pred_fallthru
        _
      %p200 = scmp.le.s32.totalorder 1, %s8
      %p201 = scmp.lt.s32.totalorder %s8, 3
      %p202 = pnand %p200, %p201
      %p203 = pneg %p202
      // Predicated region
      $region44: #{_lambda_.9} parent=5 // pred_check
        _
      $region45: #{_lambda_.9} parent=5 // pred_check_branch
        %205 = sbr.rel (%p202) target = $region47
      $region46: #{_lambda_.9} parent=5 // pred_region
        %s206 = ssub.s32 %s8, 1
        %s207 = sand.u32 %s42, 1
        %s208 = sand.u32 %s42, 1
        %s209 = smul.addr %s208, 288
        %s210 = scalar_lea.vmem [#allocation2], %s209
        // Predicated region
        $region48: #{_lambda_.9} parent=46 // pred_check
          %p211 = pneg %p55
        $region49: #{_lambda_.9} parent=46 // pred_check_branch
          %213 = sbr.rel (%p211) target = $region51
        $region50: #{_lambda_.9} parent=46 // pred_region
          _
        $region51: #{_lambda_.9} parent=46 // pred_fallthru
          _
        %p214 = pneg %p29
        %p215 = pneg %p26
        %s216 = sand.u32 %s42, 1
        %s217 = sand.u32 %s42, 1
        %s218 = smul.addr %s217, 288
        %s219 = scalar_lea.vmem [#allocation2], %s218
        %p220 = pneg %p55
        %p221 = pneg %p52
        %p222 = pneg %p81
        %p223 = pneg %p78
        %s224 = sand.u32 %s68, 1
        %s225 = sand.u32 %s68, 1
        %s226 = smul.addr %s225, 128
        %s227 = scalar_lea.vmem [#allocation3], %s226
        %s228 = smul.u32 8, %s13
        %s229 = smul.u32 8, %s13
        %v231 = vld [vmem:[%s0] sm:$0xf]
        %v232 = vld [vmem:[%s0 + $0x4] sm:$0x3]
        %v233 = vld [vmem:[%s210] sm:$0xff]
        %v234 = vld [vmem:[%s210 + $0x8] sm:$0xff]
        %v235 = vld [vmem:[%s210 + $0x10] sm:$0xff]
        %v236 = vld [vmem:[%s210 + $0x18] sm:$0xff]
        %v237 = vld [vmem:[%s210 + $0x20] sm:$0xff]
        %v238 = vld [vmem:[%s210 + $0x28] sm:$0xff]
        %v239 = vld [vmem:[%s210 + $0x30] sm:$0xff]
        %v240 = vld [vmem:[%s210 + $0x38] sm:$0xff]
        %v241 = vld [vmem:[%s210 + $0x40] sm:$0xff]
        %v242 = vld [vmem:[%s210 + $0x48] sm:$0xff]
        %v243 = vld [vmem:[%s210 + $0x50] sm:$0xff]
        %v244 = vld [vmem:[%s210 + $0x58] sm:$0xff]
        %v245 = vld [vmem:[%s210 + $0x60] sm:$0xff]
        %v246 = vld [vmem:[%s210 + $0x68] sm:$0xff]
        %v247 = vld [vmem:[%s210 + $0x70] sm:$0xff]
        %v248 = vld [vmem:[%s210 + $0x78] sm:$0xff]
        %v249 = vld [vmem:[%s210 + $0x80] sm:$0xff]
        %v250 = vld [vmem:[%s210 + $0x88] sm:$0xff]
        %v251 = vld [vmem:[%s210 + $0x90] sm:$0xff]
        %v252 = vld [vmem:[%s210 + $0x98] sm:$0xff]
        %v253 = vld [vmem:[%s210 + $0xa0] sm:$0xff]
        %v254 = vld [vmem:[%s210 + $0xa8] sm:$0xff]
        %v255 = vld [vmem:[%s210 + $0xb0] sm:$0xff]
        %v256 = vld [vmem:[%s210 + $0xb8] sm:$0xff]
        %v257 = vld [vmem:[%s210 + $0xc0] sm:$0xff]
        %v258 = vld [vmem:[%s210 + $0xc8] sm:$0xff]
        %v259 = vld [vmem:[%s210 + $0xd0] sm:$0xff]
        %v260 = vld [vmem:[%s210 + $0xd8] sm:$0xff]
        %v261 = vld [vmem:[%s210 + $0xe0] sm:$0xff]
        %v262 = vld [vmem:[%s210 + $0xe8] sm:$0xff]
        %v263 = vld [vmem:[%s210 + $0xf0] sm:$0xff]
        %v264 = vld [vmem:[%s210 + $0xf8] sm:$0xff]
        %v265 = vld [vmem:[%s210 + $0x100] sm:$0xff]
        %v266 = vld [vmem:[%s210 + $0x108] sm:$0xff]
        %v267 = vld [vmem:[%s210 + $0x110] sm:$0xff]
        %v268 = vld [vmem:[%s210 + $0x118] sm:$0xff]
        %v271 = vunpack.c.l.b16 %v231
        %v272 = vunpack.c.l.b16 %v232
        %v273 = vpack.c.b16 %v272, %v271
        %v310 = vunpack.c.l.b16 %v233
        %v311 = vunpack.c.h.b16 %v233
        %v312 = vunpack.c.l.b16 %v234
        %v313 = vunpack.c.h.b16 %v234
        %v314 = vunpack.c.l.b16 %v235
        %v315 = vunpack.c.h.b16 %v235
        %v316 = vunpack.c.l.b16 %v236
        %v317 = vunpack.c.h.b16 %v236
        %v318 = vunpack.c.l.b16 %v237
        %v319 = vunpack.c.h.b16 %v237
        %v320 = vunpack.c.l.b16 %v238
        %v321 = vunpack.c.h.b16 %v238
        %v322 = vunpack.c.l.b16 %v239
        %v323 = vunpack.c.h.b16 %v239
        %v324 = vunpack.c.l.b16 %v240
        %v325 = vunpack.c.h.b16 %v240
        %v326 = vunpack.c.l.b16 %v241
        %v327 = vunpack.c.h.b16 %v241
        %v328 = vunpack.c.l.b16 %v242
        %v329 = vunpack.c.h.b16 %v242
        %v330 = vunpack.c.l.b16 %v243
        %v331 = vunpack.c.h.b16 %v243
        %v332 = vunpack.c.l.b16 %v244
        %v333 = vunpack.c.h.b16 %v244
        %v334 = vunpack.c.l.b16 %v245
        %v335 = vunpack.c.h.b16 %v245
        %v336 = vunpack.c.l.b16 %v246
        %v337 = vunpack.c.h.b16 %v246
        %v338 = vunpack.c.l.b16 %v247
        %v339 = vunpack.c.h.b16 %v247
        %v340 = vunpack.c.l.b16 %v248
        %v341 = vunpack.c.h.b16 %v248
        %v342 = vunpack.c.l.b16 %v249
        %v343 = vunpack.c.h.b16 %v249
        %v344 = vunpack.c.l.b16 %v250
        %v345 = vunpack.c.h.b16 %v250
        %v346 = vunpack.c.l.b16 %v251
        %v347 = vunpack.c.h.b16 %v251
        %v348 = vunpack.c.l.b16 %v252
        %v349 = vunpack.c.h.b16 %v252
        %v350 = vunpack.c.l.b16 %v253
        %v351 = vunpack.c.h.b16 %v253
        %v352 = vunpack.c.l.b16 %v254
        %v353 = vunpack.c.h.b16 %v254
        %v354 = vunpack.c.l.b16 %v255
        %v355 = vunpack.c.h.b16 %v255
        %v356 = vunpack.c.l.b16 %v256
        %v357 = vunpack.c.h.b16 %v256
        %v358 = vunpack.c.l.b16 %v257
        %v359 = vunpack.c.h.b16 %v257
        %v360 = vunpack.c.l.b16 %v258
        %v361 = vunpack.c.h.b16 %v258
        %v362 = vunpack.c.l.b16 %v259
        %v363 = vunpack.c.h.b16 %v259
        %v364 = vunpack.c.l.b16 %v260
        %v365 = vunpack.c.h.b16 %v260
        %v366 = vunpack.c.l.b16 %v261
        %v367 = vunpack.c.h.b16 %v261
        %v368 = vunpack.c.l.b16 %v262
        %v369 = vunpack.c.h.b16 %v262
        %v370 = vunpack.c.l.b16 %v263
        %v371 = vunpack.c.h.b16 %v263
        %v372 = vunpack.c.l.b16 %v264
        %v373 = vunpack.c.h.b16 %v264
        %v374 = vunpack.c.l.b16 %v265
        %v375 = vunpack.c.h.b16 %v265
        %v376 = vunpack.c.l.b16 %v266
        %v377 = vunpack.c.h.b16 %v266
        %v378 = vunpack.c.l.b16 %v267
        %v379 = vunpack.c.h.b16 %v267
        %v380 = vunpack.c.l.b16 %v268
        %v381 = vunpack.c.h.b16 %v268
        %v382 = vpack.c.b16 %v318, %v310
        %v383 = vpack.c.b16 %v319, %v311
        %v384 = vpack.c.b16 %v320, %v312
        %v385 = vpack.c.b16 %v321, %v313
        %v386 = vpack.c.b16 %v322, %v314
        %v387 = vpack.c.b16 %v323, %v315
        %v388 = vpack.c.b16 %v324, %v316
        %v389 = vpack.c.b16 %v325, %v317
        %v390 = vpack.c.b16 %v334, %v326
        %v391 = vpack.c.b16 %v335, %v327
        %v392 = vpack.c.b16 %v336, %v328
        %v393 = vpack.c.b16 %v337, %v329
        %v394 = vpack.c.b16 %v338, %v330
        %v395 = vpack.c.b16 %v339, %v331
        %v396 = vpack.c.b16 %v340, %v332
        %v397 = vpack.c.b16 %v341, %v333
        %v398 = vpack.c.b16 %v350, %v342
        %v399 = vpack.c.b16 %v351, %v343
        %v400 = vpack.c.b16 %v352, %v344
        %v401 = vpack.c.b16 %v353, %v345
        %v402 = vpack.c.b16 %v354, %v346
        %v403 = vpack.c.b16 %v355, %v347
        %v404 = vpack.c.b16 %v356, %v348
        %v405 = vpack.c.b16 %v357, %v349
        %v406 = vpack.c.b16 %v366, %v358
        %v407 = vpack.c.b16 %v367, %v359
        %v408 = vpack.c.b16 %v368, %v360
        %v409 = vpack.c.b16 %v369, %v361
        %v410 = vpack.c.b16 %v370, %v362
        %v411 = vpack.c.b16 %v371, %v363
        %v412 = vpack.c.b16 %v372, %v364
        %v413 = vpack.c.b16 %v373, %v365
        %v414 = vpack.c.b16 %v374, %v374
        %v415 = vpack.c.b16 %v375, %v375
        %v416 = vpack.c.b16 %v376, %v376
        %v417 = vpack.c.b16 %v377, %v377
        %v418 = vpack.c.b16 %v378, %v378
        %v419 = vpack.c.b16 %v379, %v379
        %v420 = vpack.c.b16 %v380, %v380
        %v421 = vpack.c.b16 %v381, %v381
        %vm454 = vcmask 588800
        %v456 = vsel %vm454, %v273, 0
        %vm458 = vcmask 1043456
        %v460 = vsel %vm458, %v414, 0
        %v463 = vsel %vm458, %v415, 0
        %v466 = vsel %vm458, %v416, 0
        %v469 = vsel %vm458, %v417, 0
        %v472 = vsel %vm458, %v418, 0
        %v475 = vsel %vm458, %v419, 0
        %v478 = vsel %vm458, %v420, 0
        %v481 = vsel %vm458, %v421, 0
        %483 = vmatprep.subr.bf16.mxu0 0
        %484 = vmatpush1.bf16.msra.mxu0 0
        %485 = vmatprep.subr.bf16.mxu0 0
        %486 = vmatpush1.bf16.msra.mxu0 0
        %487 = vmatprep.subr.bf16.mxu0 0
        %488 = vmatpush1.bf16.msra.mxu0 0
        %489 = vmatprep.subr.bf16.mxu0 %v463
        %490 = vmatpush1.bf16.msra.mxu0 %v460
        %491 = vmatprep.subr.bf16.mxu0 %v407
        %492 = vmatpush1.bf16.msra.mxu0 %v406
        %493 = vmatprep.subr.bf16.mxu0 %v399
        %494 = vmatpush1.bf16.msra.mxu0 %v398
        %495 = vmatprep.subr.bf16.mxu0 %v391
        %496 = vmatpush1.bf16.msra.mxu0 %v390
        %497 = vmatprep.subr.bf16.mxu0 %v383
        %498 = vmatpush1.bf16.msra.mxu0 %v382
        %499 = vmatprep.subr.bf16.mxu0 0
        %500 = vmatpush2.bf16.msra.mxu0 0
        %501 = vmatprep.subr.bf16.mxu0 0
        %502 = vmatpush2.bf16.msra.mxu0 0
        %503 = vmatprep.subr.bf16.mxu0 0
        %504 = vmatpush2.bf16.msra.mxu0 0
        %505 = vmatprep.subr.bf16.mxu0 0
        %506 = vmatpush2.bf16.msra.mxu0 0
        %507 = vmatprep.subr.bf16.mxu0 0
        %508 = vmatpush2.bf16.msra.mxu0 0
        %509 = vmatprep.subr.bf16.mxu0 0
        %510 = vmatpush2.bf16.msra.mxu0 0
        %511 = vmatprep.subr.bf16.mxu0 0
        %512 = vmatpush2.bf16.msra.mxu0 0
        %513 = vmatprep.subr.bf16.mxu0 0
        %514 = vmatpush2.bf16.msra.mxu0 0
        %515 = vmatprep.mubr.bf16.mxu0 0
        %516 = vmatmul.mubr.bf16.gmra.mxu0 %v456
        %v517 = vpop.f32.mrf.mxu0
        %v518 = vadd.f32 0.0, %v517
        %v519 = vpop.f32.mrf.mxu0
        %v520 = vadd.f32 0.0, %v519
        %v521 = vpop.f32.mrf.mxu0
        %v522 = vadd.f32 0.0, %v521
        %v523 = vpop.f32.mrf.mxu0
        %v524 = vadd.f32 0.0, %v523
        %525 = vdwg.mxu0
        %526 = vmatprep.subr.bf16.mxu0 0
        %527 = vmatpush1.bf16.msra.mxu0 0
        %528 = vmatprep.subr.bf16.mxu0 0
        %529 = vmatpush1.bf16.msra.mxu0 0
        %530 = vmatprep.subr.bf16.mxu0 0
        %531 = vmatpush1.bf16.msra.mxu0 0
        %532 = vmatprep.subr.bf16.mxu0 %v469
        %533 = vmatpush1.bf16.msra.mxu0 %v466
        %534 = vmatprep.subr.bf16.mxu0 %v409
        %535 = vmatpush1.bf16.msra.mxu0 %v408
        %536 = vmatprep.subr.bf16.mxu0 %v401
        %537 = vmatpush1.bf16.msra.mxu0 %v400
        %538 = vmatprep.subr.bf16.mxu0 %v393
        %539 = vmatpush1.bf16.msra.mxu0 %v392
        %540 = vmatprep.subr.bf16.mxu0 %v385
        %541 = vmatpush1.bf16.msra.mxu0 %v384
        %542 = vmatprep.subr.bf16.mxu0 0
        %543 = vmatpush2.bf16.msra.mxu0 0
        %544 = vmatprep.subr.bf16.mxu0 0
        %545 = vmatpush2.bf16.msra.mxu0 0
        %546 = vmatprep.subr.bf16.mxu0 0
        %547 = vmatpush2.bf16.msra.mxu0 0
        %548 = vmatprep.subr.bf16.mxu0 0
        %549 = vmatpush2.bf16.msra.mxu0 0
        %550 = vmatprep.subr.bf16.mxu0 0
        %551 = vmatpush2.bf16.msra.mxu0 0
        %552 = vmatprep.subr.bf16.mxu0 0
        %553 = vmatpush2.bf16.msra.mxu0 0
        %554 = vmatprep.subr.bf16.mxu0 0
        %555 = vmatpush2.bf16.msra.mxu0 0
        %556 = vmatprep.subr.bf16.mxu0 0
        %557 = vmatpush2.bf16.msra.mxu0 0
        %558 = vmatprep.mubr.bf16.mxu0 0
        %559 = vmatmul.mubr.bf16.gmra.mxu0 %v456
        %v560 = vpop.f32.mrf.mxu0
        %v561 = vadd.f32 0.0, %v560
        %v562 = vpop.f32.mrf.mxu0
        %v563 = vadd.f32 0.0, %v562
        %v564 = vpop.f32.mrf.mxu0
        %v565 = vadd.f32 0.0, %v564
        %v566 = vpop.f32.mrf.mxu0
        %v567 = vadd.f32 0.0, %v566
        %568 = vdwg.mxu0
        %569 = vmatprep.subr.bf16.mxu0 0
        %570 = vmatpush1.bf16.msra.mxu0 0
        %571 = vmatprep.subr.bf16.mxu0 0
        %572 = vmatpush1.bf16.msra.mxu0 0
        %573 = vmatprep.subr.bf16.mxu0 0
        %574 = vmatpush1.bf16.msra.mxu0 0
        %575 = vmatprep.subr.bf16.mxu0 %v475
        %576 = vmatpush1.bf16.msra.mxu0 %v472
        %577 = vmatprep.subr.bf16.mxu0 %v411
        %578 = vmatpush1.bf16.msra.mxu0 %v410
        %579 = vmatprep.subr.bf16.mxu0 %v403
        %580 = vmatpush1.bf16.msra.mxu0 %v402
        %581 = vmatprep.subr.bf16.mxu0 %v395
        %582 = vmatpush1.bf16.msra.mxu0 %v394
        %583 = vmatprep.subr.bf16.mxu0 %v387
        %584 = vmatpush1.bf16.msra.mxu0 %v386
        %585 = vmatprep.subr.bf16.mxu0 0
        %586 = vmatpush2.bf16.msra.mxu0 0
        %587 = vmatprep.subr.bf16.mxu0 0
        %588 = vmatpush2.bf16.msra.mxu0 0
        %589 = vmatprep.subr.bf16.mxu0 0
        %590 = vmatpush2.bf16.msra.mxu0 0
        %591 = vmatprep.subr.bf16.mxu0 0
        %592 = vmatpush2.bf16.msra.mxu0 0
        %593 = vmatprep.subr.bf16.mxu0 0
        %594 = vmatpush2.bf16.msra.mxu0 0
        %595 = vmatprep.subr.bf16.mxu0 0
        %596 = vmatpush2.bf16.msra.mxu0 0
        %597 = vmatprep.subr.bf16.mxu0 0
        %598 = vmatpush2.bf16.msra.mxu0 0
        %599 = vmatprep.subr.bf16.mxu0 0
        %600 = vmatpush2.bf16.msra.mxu0 0
        %601 = vmatprep.mubr.bf16.mxu0 0
        %602 = vmatmul.mubr.bf16.gmra.mxu0 %v456
        %v603 = vpop.f32.mrf.mxu0
        %v604 = vadd.f32 0.0, %v603
        %v605 = vpop.f32.mrf.mxu0
        %v606 = vadd.f32 0.0, %v605
        %v607 = vpop.f32.mrf.mxu0
        %v608 = vadd.f32 0.0, %v607
        %v609 = vpop.f32.mrf.mxu0
        %v610 = vadd.f32 0.0, %v609
        %611 = vdwg.mxu0
        %612 = vmatprep.subr.bf16.mxu0 0
        %613 = vmatpush1.bf16.msra.mxu0 0
        %614 = vmatprep.subr.bf16.mxu0 0
        %615 = vmatpush1.bf16.msra.mxu0 0
        %616 = vmatprep.subr.bf16.mxu0 0
        %617 = vmatpush1.bf16.msra.mxu0 0
        %618 = vmatprep.subr.bf16.mxu0 %v481
        %619 = vmatpush1.bf16.msra.mxu0 %v478
        %620 = vmatprep.subr.bf16.mxu0 %v413
        %621 = vmatpush1.bf16.msra.mxu0 %v412
        %622 = vmatprep.subr.bf16.mxu0 %v405
        %623 = vmatpush1.bf16.msra.mxu0 %v404
        %624 = vmatprep.subr.bf16.mxu0 %v397
        %625 = vmatpush1.bf16.msra.mxu0 %v396
        %626 = vmatprep.subr.bf16.mxu0 %v389
        %627 = vmatpush1.bf16.msra.mxu0 %v388
        %628 = vmatprep.subr.bf16.mxu0 0
        %629 = vmatpush2.bf16.msra.mxu0 0
        %630 = vmatprep.subr.bf16.mxu0 0
        %631 = vmatpush2.bf16.msra.mxu0 0
        %632 = vmatprep.subr.bf16.mxu0 0
        %633 = vmatpush2.bf16.msra.mxu0 0
        %634 = vmatprep.subr.bf16.mxu0 0
        %635 = vmatpush2.bf16.msra.mxu0 0
        %636 = vmatprep.subr.bf16.mxu0 0
        %637 = vmatpush2.bf16.msra.mxu0 0
        %638 = vmatprep.subr.bf16.mxu0 0
        %639 = vmatpush2.bf16.msra.mxu0 0
        %640 = vmatprep.subr.bf16.mxu0 0
        %641 = vmatpush2.bf16.msra.mxu0 0
        %642 = vmatprep.subr.bf16.mxu0 0
        %643 = vmatpush2.bf16.msra.mxu0 0
        %644 = vmatprep.mubr.bf16.mxu0 0
        %645 = vmatmul.mubr.bf16.gmra.mxu0 %v456
        %v646 = vpop.f32.mrf.mxu0
        %v647 = vadd.f32 0.0, %v646
        %v648 = vpop.f32.mrf.mxu0
        %v649 = vadd.f32 0.0, %v648
        %v650 = vpop.f32.mrf.mxu0
        %v651 = vadd.f32 0.0, %v650
        %v652 = vpop.f32.mrf.mxu0
        %v653 = vadd.f32 0.0, %v652
        %654 = vdwg.mxu0
        %v655 = vtanh.pop %v518
        %v656 = vtanh.pop %v520
        %v657 = vtanh.pop %v561
        %v658 = vtanh.pop %v563
        %v659 = vtanh.pop %v604
        %v660 = vtanh.pop %v606
        %v661 = vtanh.pop %v647
        %v662 = vtanh.pop %v649
        %v663 = vtanh.pop %v522
        %v664 = vtanh.pop %v524
        %v665 = vtanh.pop %v565
        %v666 = vtanh.pop %v567
        %v667 = vtanh.pop %v608
        %v668 = vtanh.pop %v610
        %v669 = vtanh.pop %v651
        %v670 = vtanh.pop %v653
        %671 = vst [vmem:[%s227] sm:$0xff] %v655
        %672 = vst [vmem:[%s227 + $0x8] sm:$0xff] %v656
        %673 = vst [vmem:[%s227 + $0x10] sm:$0xff] %v657
        %674 = vst [vmem:[%s227 + $0x18] sm:$0xff] %v658
        %675 = vst [vmem:[%s227 + $0x20] sm:$0xff] %v659
        %676 = vst [vmem:[%s227 + $0x28] sm:$0xff] %v660
        %677 = vst [vmem:[%s227 + $0x30] sm:$0xff] %v661
        %678 = vst [vmem:[%s227 + $0x38] sm:$0xff] %v662
        %679 = vst [vmem:[%s227 + $0x40] sm:$0xf] %v663
        %680 = vst [vmem:[%s227 + $0x48] sm:$0xf] %v664
        %681 = vst [vmem:[%s227 + $0x50] sm:$0xf] %v665
        %682 = vst [vmem:[%s227 + $0x58] sm:$0xf] %v666
        %683 = vst [vmem:[%s227 + $0x60] sm:$0xf] %v667
        %684 = vst [vmem:[%s227 + $0x68] sm:$0xf] %v668
        %685 = vst [vmem:[%s227 + $0x70] sm:$0xf] %v669
        %686 = vst [vmem:[%s227 + $0x78] sm:$0xf] %v670
        %s687 = sand.u32 %s68, 1
        %s688 = sand.u32 %s68, 1
        %s689 = smul.addr %s688, 128
        %s690 = scalar_lea.vmem [#allocation3], %s689
        // Predicated region
        $region52: #{_lambda_.9} parent=46 // pred_check
          %p691 = pneg %p78
        $region53: #{_lambda_.9} parent=46 // pred_check_branch
          %693 = sbr.rel (%p691) target = $region55
        $region54: #{_lambda_.9} parent=46 // pred_region
          %s694 = smul.u32 8, %s13
          %s695 = smul.addr %s694, 8
          %s696 = scalar_lea.vmem %s2, %s695
          // Predicated region
          $region56: #{_lambda_.9} parent=54 // pred_check
            _
          $region57: #{_lambda_.9} parent=54 // pred_check_branch
            %698 = sbr.rel (0) target = $region59
          $region58: #{_lambda_.9} parent=54 // pred_region
            // Predicated region
            $region60: #{_lambda_.9} parent=58 // pred_check
              _
            $region61: #{_lambda_.9} parent=58 // pred_check_branch
              %700 = sbr.rel (0) target = $region63
            $region62: #{_lambda_.9} parent=58 // pred_region
              loop: start=0, step=1, limit=1
              $region64: #{_lambda_.9} parent=62 // loop_pre_header
                _
              $region65: #{_lambda_.9} parent=62 // loop_header
                %s702 = sphi 0, %s706
                %p703 = scmp.ge.s32.totalorder %s702, 1
                %s707 = sphi %s690, %s690
                %s708 = sphi %s696, %s696
              $region66: #{_lambda_.9} parent=62 // loop_header_branch
                %705 = sbr.rel (%p703) target = $region70
              $region67: #{_lambda_.9} parent=62 // loop_body
                %v709 = vld [vmem:[%s707] sm:$0xff]
                %710 = vst [vmem:[%s708] sm:$0xff] %v709
                %v711 = vld [vmem:[%s707 + $0x8] sm:$0xff]
                %712 = vst [vmem:[%s708 + $0x8] sm:$0xff] %v711
                %v713 = vld [vmem:[%s707 + $0x10] sm:$0xff]
                %714 = vst [vmem:[%s708 + $0x10] sm:$0xff] %v713
                %v715 = vld [vmem:[%s707 + $0x18] sm:$0xff]
                %716 = vst [vmem:[%s708 + $0x18] sm:$0xff] %v715
                %v717 = vld [vmem:[%s707 + $0x20] sm:$0xff]
                %718 = vst [vmem:[%s708 + $0x20] sm:$0xff] %v717
                %v719 = vld [vmem:[%s707 + $0x28] sm:$0xff]
                %720 = vst [vmem:[%s708 + $0x28] sm:$0xff] %v719
                %v721 = vld [vmem:[%s707 + $0x30] sm:$0xff]
                %722 = vst [vmem:[%s708 + $0x30] sm:$0xff] %v721
                %v723 = vld [vmem:[%s707 + $0x38] sm:$0xff]
                %724 = vst [vmem:[%s708 + $0x38] sm:$0xff] %v723
                %v725 = vld [vmem:[%s707 + $0x40] sm:$0xff]
                %726 = vst [vmem:[%s708 + $0x80] sm:$0xff] %v725
                %v727 = vld [vmem:[%s707 + $0x48] sm:$0xff]
                %728 = vst [vmem:[%s708 + $0x88] sm:$0xff] %v727
                %v729 = vld [vmem:[%s707 + $0x50] sm:$0xff]
                %730 = vst [vmem:[%s708 + $0x90] sm:$0xff] %v729
                %v731 = vld [vmem:[%s707 + $0x58] sm:$0xff]
                %732 = vst [vmem:[%s708 + $0x98] sm:$0xff] %v731
                %v733 = vld [vmem:[%s707 + $0x60] sm:$0xff]
                %734 = vst [vmem:[%s708 + $0xa0] sm:$0xff] %v733
                %v735 = vld [vmem:[%s707 + $0x68] sm:$0xff]
                %736 = vst [vmem:[%s708 + $0xa8] sm:$0xff] %v735
                %v737 = vld [vmem:[%s707 + $0x70] sm:$0xff]
                %738 = vst [vmem:[%s708 + $0xb0] sm:$0xff] %v737
                %v739 = vld [vmem:[%s707 + $0x78] sm:$0xff]
                %740 = vst [vmem:[%s708 + $0xb8] sm:$0xff] %v739
              $region68: #{_lambda_.9} parent=62 // loop_footer
                %s706 = sadd.s32 1, %s702
              $region69: #{_lambda_.9} parent=62 // loop_footer_branch
                %701 = sbr.rel target = $region65
              $region70: #{_lambda_.9} parent=62 // loop_exit
                _
            $region63: #{_lambda_.9} parent=58 // pred_fallthru
              _
            // Predicated region
            $region71: #{_lambda_.9} parent=58 // pred_check
              _
            $region72: #{_lambda_.9} parent=58 // pred_check_branch
              %742 = sbr.rel target = $region74
            $region73: #{_lambda_.9} parent=58 // pred_region
              _
            $region74: #{_lambda_.9} parent=58 // pred_fallthru
              _
          $region59: #{_lambda_.9} parent=54 // pred_fallthru
            _
          %743 = vnop
        $region55: #{_lambda_.9} parent=46 // pred_fallthru
          _
      $region47: #{_lambda_.9} parent=5 // pred_fallthru
        _
      %p744 = scmp.le.s32.totalorder 2, %s8
      // Predicated region
      $region75: #{_lambda_.9} parent=5 // pred_check
        %p745 = pneg %p744
      $region76: #{_lambda_.9} parent=5 // pred_check_branch
        %747 = sbr.rel (%p745) target = $region78
      $region77: #{_lambda_.9} parent=5 // pred_region
        %s748 = ssub.s32 %s8, 2
        // Predicated region
        $region79: #{_lambda_.9} parent=77 // pred_check
          %p749 = pneg %p84
        $region80: #{_lambda_.9} parent=77 // pred_check_branch
          %751 = sbr.rel (%p749) target = $region82
        $region81: #{_lambda_.9} parent=77 // pred_region
          %s752 = sand.u32 %s69, 1
          %s753 = sand.u32 %s69, 1
          %s754 = smul.addr %s753, 128
          %s755 = scalar_lea.vmem [#allocation3], %s754
        $region82: #{_lambda_.9} parent=77 // pred_fallthru
          _
      $region78: #{_lambda_.9} parent=5 // pred_fallthru
        _
    $region6: #{_lambda_.9} parent=1 // loop_footer
      %s12 = sadd.s32 1, %s8
    $region7: #{_lambda_.9} parent=1 // loop_footer_branch
      %7 = sbr.rel target = $region3
    $region8: #{_lambda_.9} parent=1 // loop_exit
      _

</llo_original>
